<compile_context>
chip_gen: v7x
topology: tpu7x:2x2x1
jax: 0.10.0
libtpu: 0.0.40
codegen_flags: <defaults>
</compile_context>

<pallas_src>
import numpy as np
import jax
import jax.numpy as jnp
from jax.experimental import pallas as pl
from jax.experimental.pallas import tpu as pltpu

# ---- small config (consistent with the module's forward) --------------------
SEQ_LEN  = 16            # configs.seq_len  (L)
PRED_LEN = 8             # configs.pred_len (P)
N_VARS   = 4             # number of variates N
N_MARKS  = 3             # time-feature channels in x_mark_enc
D_MODEL  = 32            # configs.d_model
N_HEADS  = 4             # configs.n_heads
D_FF     = 64            # configs.d_ff
E_LAYERS = 2             # configs.e_layers
D_HEAD   = D_MODEL // N_HEADS
N_TOK    = N_VARS + N_MARKS     # inverted tokens = variates + mark channels
EPS_SERIES = 1e-5
EPS_LN     = 1e-5

ATTN_SAMPLES_MAX = 16           # attention sub-chunk: 16 samples * 7 tokens = 112 rows
OUT_PAD = 128                   # lane-dense output width (multiple of 128)
NEG_INF = -1e9                  # cross-sample attention bias


def _layernorm(x, g, b):
    mu = jnp.mean(x, axis=-1, keepdims=True)
    xc = x - mu
    var = jnp.mean(xc * xc, axis=-1, keepdims=True)
    return xc * jax.lax.rsqrt(var + EPS_LN) * g + b


def _build_kernel(b_blk):
    """Build the kernel for a given samples-per-grid-step block size."""
    m_blk = b_blk * N_TOK
    a_samples = min(ATTN_SAMPLES_MAX, b_blk)
    a_rows = a_samples * N_TOK          # multiple of 8 for 8/16 samples? 56 / 112 -> yes
    n_chunks = b_blk // a_samples
    scale = 1.0 / (D_HEAD ** 0.5)

    def kernel(tok_ref, vmask_ref, abias_ref,
               wemb_ref, wqkv_ref, wo_ref, w1_ref, w2_ref, wp_ref, bp_ref,
               lvec_ref, gvec_ref,
               out_ref):
        x = tok_ref[...]            # [M, L]  raw variate + mark token rows (f32)
        is_var = vmask_ref[...]     # [M, 1]  1.0 for variate rows, 0.0 for mark rows
        attn_bias = abias_ref[...]  # [A, A]  0 within a sample, -1e9 across samples
        gv = gvec_ref[...]          # [8, D]  packed: bemb | gf | bf | zeros (f32)

        # --- series normalization (mean / biased var over time) on variate rows only ---
        means = jnp.mean(x, axis=-1, keepdims=True)                 # [M, 1]
        xc = x - means
        var = jnp.mean(xc * xc, axis=-1, keepdims=True)
        stdev = jnp.sqrt(var + EPS_SERIES)
        inv_std = jax.lax.rsqrt(var + EPS_SERIES)
        xn = x + is_var * (xc * inv_std - x)                        # normalize variates, keep marks

        # --- inverted embedding (all rows of the whole block in one bf16 matmul) ---
        h = jnp.dot(xn.astype(jnp.bfloat16), wemb_ref[...],
                    preferred_element_type=jnp.float32) + gv[0:1, :]

        for l in range(E_LAYERS):
            lv = lvec_ref[l]                     # [8, 3D] packed per-layer vectors (f32)
            bqkv = lv[0:1, :]
            bo, b1, b2 = lv[1:2, :D_MODEL], lv[2:3, :D_FF], lv[3:4, :D_MODEL]
            g1, be1 = lv[4:5, :D_MODEL], lv[5:6, :D_MODEL]
            g2, be2 = lv[6:7, :D_MODEL], lv[7:8, :D_MODEL]

            # ----- fused QKV projection (bf16 operands, f32 accumulate) -----
            qkv = jnp.dot(h.astype(jnp.bfloat16), wqkv_ref[l],
                          preferred_element_type=jnp.float32) + bqkv          # [M, 3D]

            # ----- multi-head self attention, block-diagonal over fixed-size chunks -----
            chunk_outs = []
            for c in range(n_chunks):
                r0 = c * a_rows
                qkv_c = qkv[r0:r0 + a_rows, :]                                # [A, 3D]
                heads = []
                for hh in range(N_HEADS):
                    lo = hh * D_HEAD
                    qh = qkv_c[:, lo:lo + D_HEAD].astype(jnp.bfloat16)
                    kh = qkv_c[:, D_MODEL + lo:D_MODEL + lo + D_HEAD].astype(jnp.bfloat16)
                    vh = qkv_c[:, 2 * D_MODEL + lo:2 * D_MODEL + lo + D_HEAD].astype(jnp.bfloat16)
                    s = jax.lax.dot_general(qh, kh, (((1,), (1,)), ((), ())),
                                            preferred_element_type=jnp.float32) * scale
                    s = s + attn_bias                               # mask cross-sample pairs
                    s = s - jnp.max(s, axis=-1, keepdims=True)      # keep: mark rows un-normalized
                    p = jnp.exp(s)
                    p = p * pl.reciprocal(jnp.sum(p, axis=-1, keepdims=True))   # exact recip
                    heads.append(jnp.dot(p.astype(jnp.bfloat16), vh,
                                         preferred_element_type=jnp.float32))  # [A, dk]
                chunk_outs.append(jnp.concatenate(heads, axis=-1))              # [A, D]
            attn = chunk_outs[0] if n_chunks == 1 else jnp.concatenate(chunk_outs, axis=0)
            attn = jnp.dot(attn.astype(jnp.bfloat16), wo_ref[l],
                           preferred_element_type=jnp.float32) + bo            # [M, D]

            x1 = _layernorm(h + attn, g1, be1)

            # ----- position-wise FFN (kernel-size-1 convs == linears) -----
            y = jnp.dot(x1.astype(jnp.bfloat16), w1_ref[l],
                        preferred_element_type=jnp.float32) + b1
            y = jnp.maximum(y, 0.0)                                 # relu
            y = jnp.dot(y.astype(jnp.bfloat16), w2_ref[l],
                        preferred_element_type=jnp.float32) + b2
            h = _layernorm(x1 + y, g2, be2)

        # ----- final encoder LayerNorm, 128-lane padded projector, de-normalization -----
        h = _layernorm(h, gv[1:2, :], gv[2:3, :])
        dec = jnp.dot(h.astype(jnp.bfloat16), wp_ref[...],
                      preferred_element_type=jnp.float32) + bp_ref[...]        # [M, 128]
        # de-norm; extra lanes carry garbage-but-finite values and are sliced off host-side
        out_ref[...] = dec * stdev + means

    return kernel, m_blk, a_rows


# ---------------------------------------------------------------------------
def pack_params(p):
    """Pack the 22 logical weight tensors into 9 kernel buffers (matrices in bf16)."""
    wqkv = jnp.concatenate([p["wq"], p["wk"], p["wv"]], axis=-1).astype(jnp.bfloat16)  # [E, D, 3D]
    bqkv = jnp.concatenate([p["bq"], p["bk"], p["bv"]], axis=-1)                        # [E, 1, 3D] f32
    w3 = 3 * D_MODEL
    pad = lambda a: jnp.pad(a, ((0, 0), (0, 0), (0, w3 - a.shape[-1])))
    lvec = jnp.concatenate(
        [bqkv, pad(p["bo"]), pad(p["b1"]), pad(p["b2"]),
         pad(p["g1"]), pad(p["be1"]), pad(p["g2"]), pad(p["be2"])], axis=1)   # [E, 8, 3D] f32
    gvec = jnp.concatenate(
        [p["bemb"], p["gf"], p["bf"], jnp.zeros((5, D_MODEL), jnp.float32)], axis=0)  # [8, D] f32
    wp_pad = jnp.pad(p["wp"], ((0, 0), (0, OUT_PAD - PRED_LEN))).astype(jnp.bfloat16)  # [D, 128]
    bp_pad = jnp.pad(p["bp"], ((0, 0), (0, OUT_PAD - PRED_LEN)))                        # [1, 128] f32
    return [p["wemb"].astype(jnp.bfloat16), wqkv,
            p["wo"].astype(jnp.bfloat16), p["w1"].astype(jnp.bfloat16),
            p["w2"].astype(jnp.bfloat16), wp_pad, bp_pad, lvec, gvec]


def _choose_b_blk(B):
    # Prefer >= 2 grid steps (so v7x's two TensorCores both get work via the
    # "parallel" block axis) while still amortizing per-step overhead on big batches.
    for cand in (64, 32, 16, 8):
        if B > cand:
            return cand
    return 8


def itransformer_forward(x_enc, x_mark_enc, params):
    B = x_enc.shape[0]
    b_blk = _choose_b_blk(B)
    kernel, m_blk, a_rows = _build_kernel(b_blk)
    B_pad = ((B + b_blk - 1) // b_blk) * b_blk
    n_blocks = B_pad // b_blk

    # layout prep (tiny): inverted tokens [B_pad*N_TOK, L], zero-padded batch
    tok = jnp.concatenate([jnp.transpose(x_enc, (0, 2, 1)),
                           jnp.transpose(x_mark_enc, (0, 2, 1))], axis=1)  # [B, N_TOK, L]
    tok = jnp.pad(tok, ((0, B_pad - B), (0, 0), (0, 0)))
    tok = tok.reshape(B_pad * N_TOK, SEQ_LEN).astype(jnp.float32)

    # per-block constant masks (same pattern every grid step -> fetched once per call)
    sid = np.repeat(np.arange(a_rows // N_TOK), N_TOK)
    attn_bias = jnp.asarray(np.where(sid[:, None] == sid[None, :], 0.0, NEG_INF),
                            dtype=jnp.float32)                              # [A, A]
    var_mask = jnp.asarray(np.tile([1.0] * N_VARS + [0.0] * N_MARKS, b_blk)
                           .reshape(m_blk, 1), dtype=jnp.float32)            # [M, 1]

    weights = pack_params(params)

    def const_spec(a):
        zeros = (0,) * a.ndim
        return pl.BlockSpec(a.shape, lambda i, _z=zeros: _z)

    out = pl.pallas_call(
        kernel,
        out_shape=jax.ShapeDtypeStruct((B_pad * N_TOK, OUT_PAD), jnp.float32),
        grid_spec=pltpu.PrefetchScalarGridSpec(
            num_scalar_prefetch=0,
            grid=(n_blocks,),
            in_specs=[pl.BlockSpec((m_blk, SEQ_LEN), lambda i: (i, 0)),
                      const_spec(var_mask),
                      const_spec(attn_bias)]
                     + [const_spec(w) for w in weights],
            out_specs=pl.BlockSpec((m_blk, OUT_PAD), lambda i: (i, 0)),
        ),
        compiler_params=pltpu.CompilerParams(dimension_semantics=("parallel",)),
    )(tok, var_mask, attn_bias, *weights)

    # slice the useful lanes / rows and return in PyTorch convention [B, P, N]
    dec = out[:, :PRED_LEN].reshape(B_pad, N_TOK, PRED_LEN)[:B, :N_VARS, :]  # [B, N, P]
    return jnp.transpose(dec, (0, 2, 1))


# ---------------------------------------------------------------------------
def init_params(key):
    keys = iter(jax.random.split(key, 20))

    def w(shape, scale=0.08):
        return jax.random.normal(next(keys), shape, jnp.float32) * scale

    p = {
        "wemb": w((SEQ_LEN, D_MODEL)), "bemb": w((1, D_MODEL)),
        "wq": w((E_LAYERS, D_MODEL, D_MODEL)), "bq": w((E_LAYERS, 1, D_MODEL)),
        "wk": w((E_LAYERS, D_MODEL, D_MODEL)), "bk": w((E_LAYERS, 1, D_MODEL)),
        "wv": w((E_LAYERS, D_MODEL, D_MODEL)), "bv": w((E_LAYERS, 1, D_MODEL)),
        "wo": w((E_LAYERS, D_MODEL, D_MODEL)), "bo": w((E_LAYERS, 1, D_MODEL)),
        "w1": w((E_LAYERS, D_MODEL, D_FF)),    "b1": w((E_LAYERS, 1, D_FF)),
        "w2": w((E_LAYERS, D_FF, D_MODEL)),    "b2": w((E_LAYERS, 1, D_MODEL)),
        "g1": jnp.ones((E_LAYERS, 1, D_MODEL), jnp.float32),
        "be1": jnp.zeros((E_LAYERS, 1, D_MODEL), jnp.float32),
        "g2": jnp.ones((E_LAYERS, 1, D_MODEL), jnp.float32),
        "be2": jnp.zeros((E_LAYERS, 1, D_MODEL), jnp.float32),
        "gf": jnp.ones((1, D_MODEL), jnp.float32),
        "bf": jnp.zeros((1, D_MODEL), jnp.float32),
        "wp": w((D_MODEL, PRED_LEN)), "bp": w((1, PRED_LEN)),
    }
    return p


def reference_forward(x_enc, x_mark_enc, p):
    # Pure-JAX f32 mirror of Model.forward (eval mode) for validation.
    means = jnp.mean(x_enc, axis=1, keepdims=True)
    xc = x_enc - means
    stdev = jnp.sqrt(jnp.var(xc, axis=1, keepdims=True) + EPS_SERIES)
    xn = xc / stdev
    tokens = jnp.concatenate([jnp.transpose(xn, (0, 2, 1)),
                              jnp.transpose(x_mark_enc, (0, 2, 1))], axis=1)
    h = tokens @ p["wemb"] + p["bemb"]

    def ln(x, g, b):
        mu = jnp.mean(x, -1, keepdims=True)
        v = jnp.mean((x - mu) ** 2, -1, keepdims=True)
        return (x - mu) / jnp.sqrt(v + EPS_LN) * g + b

    for l in range(E_LAYERS):
        q = h @ p["wq"][l] + p["bq"][l]
        k = h @ p["wk"][l] + p["bk"][l]
        v = h @ p["wv"][l] + p["bv"][l]
        B_, T, _ = q.shape
        qh = q.reshape(B_, T, N_HEADS, D_HEAD)
        kh = k.reshape(B_, T, N_HEADS, D_HEAD)
        vh = v.reshape(B_, T, N_HEADS, D_HEAD)
        scores = jnp.einsum("blhe,bshe->bhls", qh, kh) / jnp.sqrt(D_HEAD)
        a = jax.nn.softmax(scores, axis=-1)
        o = jnp.einsum("bhls,bshe->blhe", a, vh).reshape(B_, T, D_MODEL)
        o = o @ p["wo"][l] + p["bo"][l]
        x1 = ln(h + o, p["g1"][l], p["be1"][l])
        y = jnp.maximum(x1 @ p["w1"][l] + p["b1"][l], 0.0) @ p["w2"][l] + p["b2"][l]
        h = ln(x1 + y, p["g2"][l], p["be2"][l])
    h = ln(h, p["gf"], p["bf"])
    proj = h @ p["wp"] + p["bp"]
    dec = jnp.transpose(proj, (0, 2, 1))[:, :, :N_VARS]
    dec = dec * stdev[:, 0, :][:, None, :] + means[:, 0, :][:, None, :]
    return dec


if __name__ == "__main__":
    key = jax.random.PRNGKey(0)
    kx, km, kp = jax.random.split(key, 3)
    B = 20                                   # -> B_BLK=16: 2 grid blocks + batch padding
    x_enc = jax.random.normal(kx, (B, SEQ_LEN, N_VARS), jnp.float32)
    x_mark_enc = jax.random.normal(km, (B, SEQ_LEN, N_MARKS), jnp.float32)
    # x_dec / x_mark_dec are unused by Model.forward's forecast path.
    params = init_params(kp)

    out = itransformer_forward(x_enc, x_mark_enc, params)
    out = jax.block_until_ready(out)
    assert out.shape == (B, PRED_LEN, N_VARS)

    ref = reference_forward(x_enc, x_mark_enc, params)
    # The kernel runs its matmuls with bf16 operands on the MXU (per perf review), so
    # agreement with the f32 reference is ~1e-2; structural errors would be >> 1e-1.
    if not jnp.allclose(out, ref, rtol=5e-2, atol=5e-2):
        raise AssertionError("Pallas kernel output does not match JAX reference")

    print("KERNEL_OK")
</pallas_src>

<mosaic_0001>
module attributes {stable_mosaic.version = 11 : i64} {
  func.func @kernel(%arg0: i32, %arg1: memref<112x16xf32, #tpu.memory_space<vmem>>, %arg2: memref<112x1xf32, #tpu.memory_space<vmem>>, %arg3: memref<112x112xf32, #tpu.memory_space<vmem>>, %arg4: memref<16x32xbf16, #tpu.memory_space<vmem>>, %arg5: memref<2x32x96xbf16, #tpu.memory_space<vmem>>, %arg6: memref<2x32x32xbf16, #tpu.memory_space<vmem>>, %arg7: memref<2x32x64xbf16, #tpu.memory_space<vmem>>, %arg8: memref<2x64x32xbf16, #tpu.memory_space<vmem>>, %arg9: memref<32x128xbf16, #tpu.memory_space<vmem>>, %arg10: memref<1x128xf32, #tpu.memory_space<vmem>>, %arg11: memref<2x8x96xf32, #tpu.memory_space<vmem>>, %arg12: memref<8x32xf32, #tpu.memory_space<vmem>>, %arg13: memref<112x128xf32, #tpu.memory_space<vmem>>) attributes {dimension_semantics = [#tpu.dimension_semantics<parallel>], iteration_bounds = array<i64: 2>, scalar_prefetch = 0 : i64, scratch_operands = 0 : i64, tpu.core_type = #tpu.core_type<tc>, window_params = [{transform_indices = @transform_0, window_bounds = array<i64: 112, 16>}, {pipeline_mode = #tpu.pipeline_mode<synchronous>, transform_indices = @transform_1, window_bounds = array<i64: 112, 1>}, {pipeline_mode = #tpu.pipeline_mode<synchronous>, transform_indices = @transform_2, window_bounds = array<i64: 112, 112>}, {pipeline_mode = #tpu.pipeline_mode<synchronous>, transform_indices = @transform_3, window_bounds = array<i64: 16, 32>}, {pipeline_mode = #tpu.pipeline_mode<synchronous>, transform_indices = @transform_4, window_bounds = array<i64: 2, 32, 96>}, {pipeline_mode = #tpu.pipeline_mode<synchronous>, transform_indices = @transform_5, window_bounds = array<i64: 2, 32, 32>}, {pipeline_mode = #tpu.pipeline_mode<synchronous>, transform_indices = @transform_6, window_bounds = array<i64: 2, 32, 64>}, {pipeline_mode = #tpu.pipeline_mode<synchronous>, transform_indices = @transform_7, window_bounds = array<i64: 2, 64, 32>}, {pipeline_mode = #tpu.pipeline_mode<synchronous>, transform_indices = @transform_8, window_bounds = array<i64: 32, 128>}, {pipeline_mode = #tpu.pipeline_mode<synchronous>, transform_indices = @transform_9, window_bounds = array<i64: 1, 128>}, {pipeline_mode = #tpu.pipeline_mode<synchronous>, transform_indices = @transform_10, window_bounds = array<i64: 2, 8, 96>}, {pipeline_mode = #tpu.pipeline_mode<synchronous>, transform_indices = @transform_11, window_bounds = array<i64: 8, 32>}, {transform_indices = @transform_12, window_bounds = array<i64: 112, 128>}]} {
    %c0 = arith.constant 0 : index
    %c0_0 = arith.constant 0 : index
    %0 = vector.load %arg1[%c0, %c0_0] : memref<112x16xf32, #tpu.memory_space<vmem>>, vector<112x16xf32>
    %c0_1 = arith.constant 0 : index
    %c0_2 = arith.constant 0 : index
    %1 = vector.load %arg2[%c0_1, %c0_2] : memref<112x1xf32, #tpu.memory_space<vmem>>, vector<112x1xf32>
    %c0_3 = arith.constant 0 : index
    %c0_4 = arith.constant 0 : index
    %2 = vector.load %arg3[%c0_3, %c0_4] : memref<112x112xf32, #tpu.memory_space<vmem>>, vector<112x112xf32>
    %c0_5 = arith.constant 0 : index
    %c0_6 = arith.constant 0 : index
    %3 = vector.load %arg12[%c0_5, %c0_6] : memref<8x32xf32, #tpu.memory_space<vmem>>, vector<8x32xf32>
    %cst = arith.constant dense<0.000000e+00> : vector<112xf32>
    %4 = vector.multi_reduction <add>, %0, %cst [1] : vector<112x16xf32> to vector<112xf32>
    %5 = vector.shape_cast %4 : vector<112xf32> to vector<112x1xf32>
    %cst_7 = arith.constant 1.600000e+01 : f32
    %6 = vector.broadcast %cst_7 : f32 to vector<112x1xf32>
    %7 = arith.divf %5, %6 : vector<112x1xf32>
    %8 = vector.broadcast %7 : vector<112x1xf32> to vector<112x16xf32>
    %9 = arith.subf %0, %8 : vector<112x16xf32>
    %10 = arith.mulf %9, %9 : vector<112x16xf32>
    %cst_8 = arith.constant dense<0.000000e+00> : vector<112xf32>
    %11 = vector.multi_reduction <add>, %10, %cst_8 [1] : vector<112x16xf32> to vector<112xf32>
    %12 = vector.shape_cast %11 : vector<112xf32> to vector<112x1xf32>
    %cst_9 = arith.constant 1.600000e+01 : f32
    %13 = vector.broadcast %cst_9 : f32 to vector<112x1xf32>
    %14 = arith.divf %12, %13 : vector<112x1xf32>
    %cst_10 = arith.constant 9.99999974E-6 : f32
    %15 = vector.broadcast %cst_10 : f32 to vector<112x1xf32>
    %16 = arith.addf %14, %15 : vector<112x1xf32>
    %17 = math.sqrt %16 : vector<112x1xf32>
    %cst_11 = arith.constant 9.99999974E-6 : f32
    %18 = vector.broadcast %cst_11 : f32 to vector<112x1xf32>
    %19 = arith.addf %14, %18 : vector<112x1xf32>
    %20 = math.rsqrt %19 : vector<112x1xf32>
    %21 = vector.broadcast %20 : vector<112x1xf32> to vector<112x16xf32>
    %22 = arith.mulf %9, %21 : vector<112x16xf32>
    %23 = arith.subf %22, %0 : vector<112x16xf32>
    %24 = vector.broadcast %1 : vector<112x1xf32> to vector<112x16xf32>
    %25 = arith.mulf %24, %23 : vector<112x16xf32>
    %26 = arith.addf %0, %25 : vector<112x16xf32>
    %27 = arith.truncf %26 : vector<112x16xf32> to vector<112x16xbf16>
    %c0_12 = arith.constant 0 : index
    %c0_13 = arith.constant 0 : index
    %28 = vector.load %arg4[%c0_12, %c0_13] : memref<16x32xbf16, #tpu.memory_space<vmem>>, vector<16x32xbf16>
    %cst_14 = arith.constant dense<0.000000e+00> : vector<112x32xf32>
    %29 = tpu.matmul %27, %28, %cst_14 {dimension_numbers = #tpu.dot_dimension_numbers<[1], [0], [0], [1], [0, 0, 1, 1], [], []>} : vector<112x16xbf16>, vector<16x32xbf16>, vector<112x32xf32> -> vector<112x32xf32>
    %30 = vector.extract_strided_slice %3 {offsets = [0, 0], sizes = [1, 32], strides = [1, 1]} : vector<8x32xf32> to vector<1x32xf32>
    %31 = vector.broadcast %30 : vector<1x32xf32> to vector<112x32xf32>
    %32 = arith.addf %29, %31 : vector<112x32xf32>
    %c0_15 = arith.constant 0 : index
    %c0_16 = arith.constant 0 : index
    %c0_17 = arith.constant 0 : index
    %33 = vector.load %arg11[%c0_15, %c0_16, %c0_17] : memref<2x8x96xf32, #tpu.memory_space<vmem>>, vector<1x8x96xf32>
    %34 = vector.shape_cast %33 : vector<1x8x96xf32> to vector<8x96xf32>
    %35 = vector.extract_strided_slice %34 {offsets = [0, 0], sizes = [1, 96], strides = [1, 1]} : vector<8x96xf32> to vector<1x96xf32>
    %36 = vector.extract_strided_slice %34 {offsets = [1, 0], sizes = [1, 32], strides = [1, 1]} : vector<8x96xf32> to vector<1x32xf32>
    %37 = vector.extract_strided_slice %34 {offsets = [2, 0], sizes = [1, 64], strides = [1, 1]} : vector<8x96xf32> to vector<1x64xf32>
    %38 = vector.extract_strided_slice %34 {offsets = [3, 0], sizes = [1, 32], strides = [1, 1]} : vector<8x96xf32> to vector<1x32xf32>
    %39 = vector.extract_strided_slice %34 {offsets = [4, 0], sizes = [1, 32], strides = [1, 1]} : vector<8x96xf32> to vector<1x32xf32>
    %40 = vector.extract_strided_slice %34 {offsets = [5, 0], sizes = [1, 32], strides = [1, 1]} : vector<8x96xf32> to vector<1x32xf32>
    %41 = vector.extract_strided_slice %34 {offsets = [6, 0], sizes = [1, 32], strides = [1, 1]} : vector<8x96xf32> to vector<1x32xf32>
    %42 = vector.extract_strided_slice %34 {offsets = [7, 0], sizes = [1, 32], strides = [1, 1]} : vector<8x96xf32> to vector<1x32xf32>
    %43 = arith.truncf %32 : vector<112x32xf32> to vector<112x32xbf16>
    %c0_18 = arith.constant 0 : index
    %c0_19 = arith.constant 0 : index
    %c0_20 = arith.constant 0 : index
    %44 = vector.load %arg5[%c0_18, %c0_19, %c0_20] : memref<2x32x96xbf16, #tpu.memory_space<vmem>>, vector<1x32x96xbf16>
    %45 = vector.shape_cast %44 : vector<1x32x96xbf16> to vector<32x96xbf16>
    %cst_21 = arith.constant dense<0.000000e+00> : vector<112x96xf32>
    %46 = tpu.matmul %43, %45, %cst_21 {dimension_numbers = #tpu.dot_dimension_numbers<[1], [0], [0], [1], [0, 0, 1, 1], [], []>} : vector<112x32xbf16>, vector<32x96xbf16>, vector<112x96xf32> -> vector<112x96xf32>
    %47 = vector.broadcast %35 : vector<1x96xf32> to vector<112x96xf32>
    %48 = arith.addf %46, %47 : vector<112x96xf32>
    %49 = vector.extract_strided_slice %48 {offsets = [0, 0], sizes = [112, 8], strides = [1, 1]} : vector<112x96xf32> to vector<112x8xf32>
    %50 = arith.truncf %49 : vector<112x8xf32> to vector<112x8xbf16>
    %51 = vector.extract_strided_slice %48 {offsets = [0, 32], sizes = [112, 8], strides = [1, 1]} : vector<112x96xf32> to vector<112x8xf32>
    %52 = arith.truncf %51 : vector<112x8xf32> to vector<112x8xbf16>
    %53 = vector.extract_strided_slice %48 {offsets = [0, 64], sizes = [112, 8], strides = [1, 1]} : vector<112x96xf32> to vector<112x8xf32>
    %54 = arith.truncf %53 : vector<112x8xf32> to vector<112x8xbf16>
    %cst_22 = arith.constant dense<0.000000e+00> : vector<112x112xf32>
    %55 = tpu.matmul %50, %52, %cst_22 {dimension_numbers = #tpu.dot_dimension_numbers<[1], [1], [0], [0], [0, 0, 1, 0], [], []>} : vector<112x8xbf16>, vector<112x8xbf16>, vector<112x112xf32> -> vector<112x112xf32>
    %cst_23 = arith.constant 0.353553385 : f32
    %56 = vector.broadcast %cst_23 : f32 to vector<112x112xf32>
    %57 = arith.mulf %55, %56 : vector<112x112xf32>
    %58 = arith.addf %57, %2 : vector<112x112xf32>
    %cst_24 = arith.constant dense<0xFF800000> : vector<112xf32>
    %59 = vector.multi_reduction <maximumf>, %58, %cst_24 [1] : vector<112x112xf32> to vector<112xf32>
    %60 = vector.shape_cast %59 : vector<112xf32> to vector<112x1xf32>
    %61 = vector.broadcast %60 : vector<112x1xf32> to vector<112x112xf32>
    %62 = arith.subf %58, %61 : vector<112x112xf32>
    %63 = math.exp %62 : vector<112x112xf32>
    %cst_25 = arith.constant dense<0.000000e+00> : vector<112xf32>
    %64 = vector.multi_reduction <add>, %63, %cst_25 [1] : vector<112x112xf32> to vector<112xf32>
    %65 = vector.shape_cast %64 : vector<112xf32> to vector<112x1xf32>
    %66 = tpu.reciprocal %65 : vector<112x1xf32> -> vector<112x1xf32>
    %67 = vector.broadcast %66 : vector<112x1xf32> to vector<112x112xf32>
    %68 = arith.mulf %63, %67 : vector<112x112xf32>
    %69 = arith.truncf %68 : vector<112x112xf32> to vector<112x112xbf16>
    %cst_26 = arith.constant dense<0.000000e+00> : vector<112x8xf32>
    %70 = tpu.matmul %69, %54, %cst_26 {dimension_numbers = #tpu.dot_dimension_numbers<[1], [0], [0], [1], [0, 0, 1, 1], [], []>} : vector<112x112xbf16>, vector<112x8xbf16>, vector<112x8xf32> -> vector<112x8xf32>
    %71 = vector.extract_strided_slice %48 {offsets = [0, 8], sizes = [112, 8], strides = [1, 1]} : vector<112x96xf32> to vector<112x8xf32>
    %72 = arith.truncf %71 : vector<112x8xf32> to vector<112x8xbf16>
    %73 = vector.extract_strided_slice %48 {offsets = [0, 40], sizes = [112, 8], strides = [1, 1]} : vector<112x96xf32> to vector<112x8xf32>
    %74 = arith.truncf %73 : vector<112x8xf32> to vector<112x8xbf16>
    %75 = vector.extract_strided_slice %48 {offsets = [0, 72], sizes = [112, 8], strides = [1, 1]} : vector<112x96xf32> to vector<112x8xf32>
    %76 = arith.truncf %75 : vector<112x8xf32> to vector<112x8xbf16>
    %cst_27 = arith.constant dense<0.000000e+00> : vector<112x112xf32>
    %77 = tpu.matmul %72, %74, %cst_27 {dimension_numbers = #tpu.dot_dimension_numbers<[1], [1], [0], [0], [0, 0, 1, 0], [], []>} : vector<112x8xbf16>, vector<112x8xbf16>, vector<112x112xf32> -> vector<112x112xf32>
    %cst_28 = arith.constant 0.353553385 : f32
    %78 = vector.broadcast %cst_28 : f32 to vector<112x112xf32>
    %79 = arith.mulf %77, %78 : vector<112x112xf32>
    %80 = arith.addf %79, %2 : vector<112x112xf32>
    %cst_29 = arith.constant dense<0xFF800000> : vector<112xf32>
    %81 = vector.multi_reduction <maximumf>, %80, %cst_29 [1] : vector<112x112xf32> to vector<112xf32>
    %82 = vector.shape_cast %81 : vector<112xf32> to vector<112x1xf32>
    %83 = vector.broadcast %82 : vector<112x1xf32> to vector<112x112xf32>
    %84 = arith.subf %80, %83 : vector<112x112xf32>
    %85 = math.exp %84 : vector<112x112xf32>
    %cst_30 = arith.constant dense<0.000000e+00> : vector<112xf32>
    %86 = vector.multi_reduction <add>, %85, %cst_30 [1] : vector<112x112xf32> to vector<112xf32>
    %87 = vector.shape_cast %86 : vector<112xf32> to vector<112x1xf32>
    %88 = tpu.reciprocal %87 : vector<112x1xf32> -> vector<112x1xf32>
    %89 = vector.broadcast %88 : vector<112x1xf32> to vector<112x112xf32>
    %90 = arith.mulf %85, %89 : vector<112x112xf32>
    %91 = arith.truncf %90 : vector<112x112xf32> to vector<112x112xbf16>
    %cst_31 = arith.constant dense<0.000000e+00> : vector<112x8xf32>
    %92 = tpu.matmul %91, %76, %cst_31 {dimension_numbers = #tpu.dot_dimension_numbers<[1], [0], [0], [1], [0, 0, 1, 1], [], []>} : vector<112x112xbf16>, vector<112x8xbf16>, vector<112x8xf32> -> vector<112x8xf32>
    %93 = vector.extract_strided_slice %48 {offsets = [0, 16], sizes = [112, 8], strides = [1, 1]} : vector<112x96xf32> to vector<112x8xf32>
    %94 = arith.truncf %93 : vector<112x8xf32> to vector<112x8xbf16>
    %95 = vector.extract_strided_slice %48 {offsets = [0, 48], sizes = [112, 8], strides = [1, 1]} : vector<112x96xf32> to vector<112x8xf32>
    %96 = arith.truncf %95 : vector<112x8xf32> to vector<112x8xbf16>
    %97 = vector.extract_strided_slice %48 {offsets = [0, 80], sizes = [112, 8], strides = [1, 1]} : vector<112x96xf32> to vector<112x8xf32>
    %98 = arith.truncf %97 : vector<112x8xf32> to vector<112x8xbf16>
    %cst_32 = arith.constant dense<0.000000e+00> : vector<112x112xf32>
    %99 = tpu.matmul %94, %96, %cst_32 {dimension_numbers = #tpu.dot_dimension_numbers<[1], [1], [0], [0], [0, 0, 1, 0], [], []>} : vector<112x8xbf16>, vector<112x8xbf16>, vector<112x112xf32> -> vector<112x112xf32>
    %cst_33 = arith.constant 0.353553385 : f32
    %100 = vector.broadcast %cst_33 : f32 to vector<112x112xf32>
    %101 = arith.mulf %99, %100 : vector<112x112xf32>
    %102 = arith.addf %101, %2 : vector<112x112xf32>
    %cst_34 = arith.constant dense<0xFF800000> : vector<112xf32>
    %103 = vector.multi_reduction <maximumf>, %102, %cst_34 [1] : vector<112x112xf32> to vector<112xf32>
    %104 = vector.shape_cast %103 : vector<112xf32> to vector<112x1xf32>
    %105 = vector.broadcast %104 : vector<112x1xf32> to vector<112x112xf32>
    %106 = arith.subf %102, %105 : vector<112x112xf32>
    %107 = math.exp %106 : vector<112x112xf32>
    %cst_35 = arith.constant dense<0.000000e+00> : vector<112xf32>
    %108 = vector.multi_reduction <add>, %107, %cst_35 [1] : vector<112x112xf32> to vector<112xf32>
    %109 = vector.shape_cast %108 : vector<112xf32> to vector<112x1xf32>
    %110 = tpu.reciprocal %109 : vector<112x1xf32> -> vector<112x1xf32>
    %111 = vector.broadcast %110 : vector<112x1xf32> to vector<112x112xf32>
    %112 = arith.mulf %107, %111 : vector<112x112xf32>
    %113 = arith.truncf %112 : vector<112x112xf32> to vector<112x112xbf16>
    %cst_36 = arith.constant dense<0.000000e+00> : vector<112x8xf32>
    %114 = tpu.matmul %113, %98, %cst_36 {dimension_numbers = #tpu.dot_dimension_numbers<[1], [0], [0], [1], [0, 0, 1, 1], [], []>} : vector<112x112xbf16>, vector<112x8xbf16>, vector<112x8xf32> -> vector<112x8xf32>
    %115 = vector.extract_strided_slice %48 {offsets = [0, 24], sizes = [112, 8], strides = [1, 1]} : vector<112x96xf32> to vector<112x8xf32>
    %116 = arith.truncf %115 : vector<112x8xf32> to vector<112x8xbf16>
    %117 = vector.extract_strided_slice %48 {offsets = [0, 56], sizes = [112, 8], strides = [1, 1]} : vector<112x96xf32> to vector<112x8xf32>
    %118 = arith.truncf %117 : vector<112x8xf32> to vector<112x8xbf16>
    %119 = vector.extract_strided_slice %48 {offsets = [0, 88], sizes = [112, 8], strides = [1, 1]} : vector<112x96xf32> to vector<112x8xf32>
    %120 = arith.truncf %119 : vector<112x8xf32> to vector<112x8xbf16>
    %cst_37 = arith.constant dense<0.000000e+00> : vector<112x112xf32>
    %121 = tpu.matmul %116, %118, %cst_37 {dimension_numbers = #tpu.dot_dimension_numbers<[1], [1], [0], [0], [0, 0, 1, 0], [], []>} : vector<112x8xbf16>, vector<112x8xbf16>, vector<112x112xf32> -> vector<112x112xf32>
    %cst_38 = arith.constant 0.353553385 : f32
    %122 = vector.broadcast %cst_38 : f32 to vector<112x112xf32>
    %123 = arith.mulf %121, %122 : vector<112x112xf32>
    %124 = arith.addf %123, %2 : vector<112x112xf32>
    %cst_39 = arith.constant dense<0xFF800000> : vector<112xf32>
    %125 = vector.multi_reduction <maximumf>, %124, %cst_39 [1] : vector<112x112xf32> to vector<112xf32>
    %126 = vector.shape_cast %125 : vector<112xf32> to vector<112x1xf32>
    %127 = vector.broadcast %126 : vector<112x1xf32> to vector<112x112xf32>
    %128 = arith.subf %124, %127 : vector<112x112xf32>
    %129 = math.exp %128 : vector<112x112xf32>
    %cst_40 = arith.constant dense<0.000000e+00> : vector<112xf32>
    %130 = vector.multi_reduction <add>, %129, %cst_40 [1] : vector<112x112xf32> to vector<112xf32>
    %131 = vector.shape_cast %130 : vector<112xf32> to vector<112x1xf32>
    %132 = tpu.reciprocal %131 : vector<112x1xf32> -> vector<112x1xf32>
    %133 = vector.broadcast %132 : vector<112x1xf32> to vector<112x112xf32>
    %134 = arith.mulf %129, %133 : vector<112x112xf32>
    %135 = arith.truncf %134 : vector<112x112xf32> to vector<112x112xbf16>
    %cst_41 = arith.constant dense<0.000000e+00> : vector<112x8xf32>
    %136 = tpu.matmul %135, %120, %cst_41 {dimension_numbers = #tpu.dot_dimension_numbers<[1], [0], [0], [1], [0, 0, 1, 1], [], []>} : vector<112x112xbf16>, vector<112x8xbf16>, vector<112x8xf32> -> vector<112x8xf32>
    %137 = tpu.concatenate %70, %92, %114, %136 in 1 : vector<112x8xf32>, vector<112x8xf32>, vector<112x8xf32>, vector<112x8xf32> -> vector<112x32xf32>
    %138 = arith.truncf %137 : vector<112x32xf32> to vector<112x32xbf16>
    %c0_42 = arith.constant 0 : index
    %c0_43 = arith.constant 0 : index
    %c0_44 = arith.constant 0 : index
    %139 = vector.load %arg6[%c0_42, %c0_43, %c0_44] : memref<2x32x32xbf16, #tpu.memory_space<vmem>>, vector<1x32x32xbf16>
    %140 = vector.shape_cast %139 : vector<1x32x32xbf16> to vector<32x32xbf16>
    %cst_45 = arith.constant dense<0.000000e+00> : vector<112x32xf32>
    %141 = tpu.matmul %138, %140, %cst_45 {dimension_numbers = #tpu.dot_dimension_numbers<[1], [0], [0], [1], [0, 0, 1, 1], [], []>} : vector<112x32xbf16>, vector<32x32xbf16>, vector<112x32xf32> -> vector<112x32xf32>
    %142 = vector.broadcast %36 : vector<1x32xf32> to vector<112x32xf32>
    %143 = arith.addf %141, %142 : vector<112x32xf32>
    %144 = arith.addf %32, %143 : vector<112x32xf32>
    %cst_46 = arith.constant dense<0.000000e+00> : vector<112xf32>
    %145 = vector.multi_reduction <add>, %144, %cst_46 [1] : vector<112x32xf32> to vector<112xf32>
    %146 = vector.shape_cast %145 : vector<112xf32> to vector<112x1xf32>
    %cst_47 = arith.constant 3.200000e+01 : f32
    %147 = vector.broadcast %cst_47 : f32 to vector<112x1xf32>
    %148 = arith.divf %146, %147 : vector<112x1xf32>
    %149 = vector.broadcast %148 : vector<112x1xf32> to vector<112x32xf32>
    %150 = arith.subf %144, %149 : vector<112x32xf32>
    %151 = arith.mulf %150, %150 : vector<112x32xf32>
    %cst_48 = arith.constant dense<0.000000e+00> : vector<112xf32>
    %152 = vector.multi_reduction <add>, %151, %cst_48 [1] : vector<112x32xf32> to vector<112xf32>
    %153 = vector.shape_cast %152 : vector<112xf32> to vector<112x1xf32>
    %cst_49 = arith.constant 3.200000e+01 : f32
    %154 = vector.broadcast %cst_49 : f32 to vector<112x1xf32>
    %155 = arith.divf %153, %154 : vector<112x1xf32>
    %cst_50 = arith.constant 9.99999974E-6 : f32
    %156 = vector.broadcast %cst_50 : f32 to vector<112x1xf32>
    %157 = arith.addf %155, %156 : vector<112x1xf32>
    %158 = math.rsqrt %157 : vector<112x1xf32>
    %159 = vector.broadcast %158 : vector<112x1xf32> to vector<112x32xf32>
    %160 = arith.mulf %150, %159 : vector<112x32xf32>
    %161 = vector.broadcast %39 : vector<1x32xf32> to vector<112x32xf32>
    %162 = arith.mulf %160, %161 : vector<112x32xf32>
    %163 = vector.broadcast %40 : vector<1x32xf32> to vector<112x32xf32>
    %164 = arith.addf %162, %163 : vector<112x32xf32>
    %165 = arith.truncf %164 : vector<112x32xf32> to vector<112x32xbf16>
    %c0_51 = arith.constant 0 : index
    %c0_52 = arith.constant 0 : index
    %c0_53 = arith.constant 0 : index
    %166 = vector.load %arg7[%c0_51, %c0_52, %c0_53] : memref<2x32x64xbf16, #tpu.memory_space<vmem>>, vector<1x32x64xbf16>
    %167 = vector.shape_cast %166 : vector<1x32x64xbf16> to vector<32x64xbf16>
    %cst_54 = arith.constant dense<0.000000e+00> : vector<112x64xf32>
    %168 = tpu.matmul %165, %167, %cst_54 {dimension_numbers = #tpu.dot_dimension_numbers<[1], [0], [0], [1], [0, 0, 1, 1], [], []>} : vector<112x32xbf16>, vector<32x64xbf16>, vector<112x64xf32> -> vector<112x64xf32>
    %169 = vector.broadcast %37 : vector<1x64xf32> to vector<112x64xf32>
    %170 = arith.addf %168, %169 : vector<112x64xf32>
    %cst_55 = arith.constant 0.000000e+00 : f32
    %171 = vector.broadcast %cst_55 : f32 to vector<112x64xf32>
    %172 = arith.maximumf %170, %171 : vector<112x64xf32>
    %173 = arith.truncf %172 : vector<112x64xf32> to vector<112x64xbf16>
    %c0_56 = arith.constant 0 : index
    %c0_57 = arith.constant 0 : index
    %c0_58 = arith.constant 0 : index
    %174 = vector.load %arg8[%c0_56, %c0_57, %c0_58] : memref<2x64x32xbf16, #tpu.memory_space<vmem>>, vector<1x64x32xbf16>
    %175 = vector.shape_cast %174 : vector<1x64x32xbf16> to vector<64x32xbf16>
    %cst_59 = arith.constant dense<0.000000e+00> : vector<112x32xf32>
    %176 = tpu.matmul %173, %175, %cst_59 {dimension_numbers = #tpu.dot_dimension_numbers<[1], [0], [0], [1], [0, 0, 1, 1], [], []>} : vector<112x64xbf16>, vector<64x32xbf16>, vector<112x32xf32> -> vector<112x32xf32>
    %177 = vector.broadcast %38 : vector<1x32xf32> to vector<112x32xf32>
    %178 = arith.addf %176, %177 : vector<112x32xf32>
    %179 = arith.addf %164, %178 : vector<112x32xf32>
    %cst_60 = arith.constant dense<0.000000e+00> : vector<112xf32>
    %180 = vector.multi_reduction <add>, %179, %cst_60 [1] : vector<112x32xf32> to vector<112xf32>
    %181 = vector.shape_cast %180 : vector<112xf32> to vector<112x1xf32>
    %cst_61 = arith.constant 3.200000e+01 : f32
    %182 = vector.broadcast %cst_61 : f32 to vector<112x1xf32>
    %183 = arith.divf %181, %182 : vector<112x1xf32>
    %184 = vector.broadcast %183 : vector<112x1xf32> to vector<112x32xf32>
    %185 = arith.subf %179, %184 : vector<112x32xf32>
    %186 = arith.mulf %185, %185 : vector<112x32xf32>
    %cst_62 = arith.constant dense<0.000000e+00> : vector<112xf32>
    %187 = vector.multi_reduction <add>, %186, %cst_62 [1] : vector<112x32xf32> to vector<112xf32>
    %188 = vector.shape_cast %187 : vector<112xf32> to vector<112x1xf32>
    %cst_63 = arith.constant 3.200000e+01 : f32
    %189 = vector.broadcast %cst_63 : f32 to vector<112x1xf32>
    %190 = arith.divf %188, %189 : vector<112x1xf32>
    %cst_64 = arith.constant 9.99999974E-6 : f32
    %191 = vector.broadcast %cst_64 : f32 to vector<112x1xf32>
    %192 = arith.addf %190, %191 : vector<112x1xf32>
    %193 = math.rsqrt %192 : vector<112x1xf32>
    %194 = vector.broadcast %193 : vector<112x1xf32> to vector<112x32xf32>
    %195 = arith.mulf %185, %194 : vector<112x32xf32>
    %196 = vector.broadcast %41 : vector<1x32xf32> to vector<112x32xf32>
    %197 = arith.mulf %195, %196 : vector<112x32xf32>
    %198 = vector.broadcast %42 : vector<1x32xf32> to vector<112x32xf32>
    %199 = arith.addf %197, %198 : vector<112x32xf32>
    %c1 = arith.constant 1 : index
    %c0_65 = arith.constant 0 : index
    %c0_66 = arith.constant 0 : index
    %200 = vector.load %arg11[%c1, %c0_65, %c0_66] : memref<2x8x96xf32, #tpu.memory_space<vmem>>, vector<1x8x96xf32>
    %201 = vector.shape_cast %200 : vector<1x8x96xf32> to vector<8x96xf32>
    %202 = vector.extract_strided_slice %201 {offsets = [0, 0], sizes = [1, 96], strides = [1, 1]} : vector<8x96xf32> to vector<1x96xf32>
    %203 = vector.extract_strided_slice %201 {offsets = [1, 0], sizes = [1, 32], strides = [1, 1]} : vector<8x96xf32> to vector<1x32xf32>
    %204 = vector.extract_strided_slice %201 {offsets = [2, 0], sizes = [1, 64], strides = [1, 1]} : vector<8x96xf32> to vector<1x64xf32>
    %205 = vector.extract_strided_slice %201 {offsets = [3, 0], sizes = [1, 32], strides = [1, 1]} : vector<8x96xf32> to vector<1x32xf32>
    %206 = vector.extract_strided_slice %201 {offsets = [4, 0], sizes = [1, 32], strides = [1, 1]} : vector<8x96xf32> to vector<1x32xf32>
    %207 = vector.extract_strided_slice %201 {offsets = [5, 0], sizes = [1, 32], strides = [1, 1]} : vector<8x96xf32> to vector<1x32xf32>
    %208 = vector.extract_strided_slice %201 {offsets = [6, 0], sizes = [1, 32], strides = [1, 1]} : vector<8x96xf32> to vector<1x32xf32>
    %209 = vector.extract_strided_slice %201 {offsets = [7, 0], sizes = [1, 32], strides = [1, 1]} : vector<8x96xf32> to vector<1x32xf32>
    %210 = arith.truncf %199 : vector<112x32xf32> to vector<112x32xbf16>
    %c1_67 = arith.constant 1 : index
    %c0_68 = arith.constant 0 : index
    %c0_69 = arith.constant 0 : index
    %211 = vector.load %arg5[%c1_67, %c0_68, %c0_69] : memref<2x32x96xbf16, #tpu.memory_space<vmem>>, vector<1x32x96xbf16>
    %212 = vector.shape_cast %211 : vector<1x32x96xbf16> to vector<32x96xbf16>
    %cst_70 = arith.constant dense<0.000000e+00> : vector<112x96xf32>
    %213 = tpu.matmul %210, %212, %cst_70 {dimension_numbers = #tpu.dot_dimension_numbers<[1], [0], [0], [1], [0, 0, 1, 1], [], []>} : vector<112x32xbf16>, vector<32x96xbf16>, vector<112x96xf32> -> vector<112x96xf32>
    %214 = vector.broadcast %202 : vector<1x96xf32> to vector<112x96xf32>
    %215 = arith.addf %213, %214 : vector<112x96xf32>
    %216 = vector.extract_strided_slice %215 {offsets = [0, 0], sizes = [112, 8], strides = [1, 1]} : vector<112x96xf32> to vector<112x8xf32>
    %217 = arith.truncf %216 : vector<112x8xf32> to vector<112x8xbf16>
    %218 = vector.extract_strided_slice %215 {offsets = [0, 32], sizes = [112, 8], strides = [1, 1]} : vector<112x96xf32> to vector<112x8xf32>
    %219 = arith.truncf %218 : vector<112x8xf32> to vector<112x8xbf16>
    %220 = vector.extract_strided_slice %215 {offsets = [0, 64], sizes = [112, 8], strides = [1, 1]} : vector<112x96xf32> to vector<112x8xf32>
    %221 = arith.truncf %220 : vector<112x8xf32> to vector<112x8xbf16>
    %cst_71 = arith.constant dense<0.000000e+00> : vector<112x112xf32>
    %222 = tpu.matmul %217, %219, %cst_71 {dimension_numbers = #tpu.dot_dimension_numbers<[1], [1], [0], [0], [0, 0, 1, 0], [], []>} : vector<112x8xbf16>, vector<112x8xbf16>, vector<112x112xf32> -> vector<112x112xf32>
    %cst_72 = arith.constant 0.353553385 : f32
    %223 = vector.broadcast %cst_72 : f32 to vector<112x112xf32>
    %224 = arith.mulf %222, %223 : vector<112x112xf32>
    %225 = arith.addf %224, %2 : vector<112x112xf32>
    %cst_73 = arith.constant dense<0xFF800000> : vector<112xf32>
    %226 = vector.multi_reduction <maximumf>, %225, %cst_73 [1] : vector<112x112xf32> to vector<112xf32>
    %227 = vector.shape_cast %226 : vector<112xf32> to vector<112x1xf32>
    %228 = vector.broadcast %227 : vector<112x1xf32> to vector<112x112xf32>
    %229 = arith.subf %225, %228 : vector<112x112xf32>
    %230 = math.exp %229 : vector<112x112xf32>
    %cst_74 = arith.constant dense<0.000000e+00> : vector<112xf32>
    %231 = vector.multi_reduction <add>, %230, %cst_74 [1] : vector<112x112xf32> to vector<112xf32>
    %232 = vector.shape_cast %231 : vector<112xf32> to vector<112x1xf32>
    %233 = tpu.reciprocal %232 : vector<112x1xf32> -> vector<112x1xf32>
    %234 = vector.broadcast %233 : vector<112x1xf32> to vector<112x112xf32>
    %235 = arith.mulf %230, %234 : vector<112x112xf32>
    %236 = arith.truncf %235 : vector<112x112xf32> to vector<112x112xbf16>
    %cst_75 = arith.constant dense<0.000000e+00> : vector<112x8xf32>
    %237 = tpu.matmul %236, %221, %cst_75 {dimension_numbers = #tpu.dot_dimension_numbers<[1], [0], [0], [1], [0, 0, 1, 1], [], []>} : vector<112x112xbf16>, vector<112x8xbf16>, vector<112x8xf32> -> vector<112x8xf32>
    %238 = vector.extract_strided_slice %215 {offsets = [0, 8], sizes = [112, 8], strides = [1, 1]} : vector<112x96xf32> to vector<112x8xf32>
    %239 = arith.truncf %238 : vector<112x8xf32> to vector<112x8xbf16>
    %240 = vector.extract_strided_slice %215 {offsets = [0, 40], sizes = [112, 8], strides = [1, 1]} : vector<112x96xf32> to vector<112x8xf32>
    %241 = arith.truncf %240 : vector<112x8xf32> to vector<112x8xbf16>
    %242 = vector.extract_strided_slice %215 {offsets = [0, 72], sizes = [112, 8], strides = [1, 1]} : vector<112x96xf32> to vector<112x8xf32>
    %243 = arith.truncf %242 : vector<112x8xf32> to vector<112x8xbf16>
    %cst_76 = arith.constant dense<0.000000e+00> : vector<112x112xf32>
    %244 = tpu.matmul %239, %241, %cst_76 {dimension_numbers = #tpu.dot_dimension_numbers<[1], [1], [0], [0], [0, 0, 1, 0], [], []>} : vector<112x8xbf16>, vector<112x8xbf16>, vector<112x112xf32> -> vector<112x112xf32>
    %cst_77 = arith.constant 0.353553385 : f32
    %245 = vector.broadcast %cst_77 : f32 to vector<112x112xf32>
    %246 = arith.mulf %244, %245 : vector<112x112xf32>
    %247 = arith.addf %246, %2 : vector<112x112xf32>
    %cst_78 = arith.constant dense<0xFF800000> : vector<112xf32>
    %248 = vector.multi_reduction <maximumf>, %247, %cst_78 [1] : vector<112x112xf32> to vector<112xf32>
    %249 = vector.shape_cast %248 : vector<112xf32> to vector<112x1xf32>
    %250 = vector.broadcast %249 : vector<112x1xf32> to vector<112x112xf32>
    %251 = arith.subf %247, %250 : vector<112x112xf32>
    %252 = math.exp %251 : vector<112x112xf32>
    %cst_79 = arith.constant dense<0.000000e+00> : vector<112xf32>
    %253 = vector.multi_reduction <add>, %252, %cst_79 [1] : vector<112x112xf32> to vector<112xf32>
    %254 = vector.shape_cast %253 : vector<112xf32> to vector<112x1xf32>
    %255 = tpu.reciprocal %254 : vector<112x1xf32> -> vector<112x1xf32>
    %256 = vector.broadcast %255 : vector<112x1xf32> to vector<112x112xf32>
    %257 = arith.mulf %252, %256 : vector<112x112xf32>
    %258 = arith.truncf %257 : vector<112x112xf32> to vector<112x112xbf16>
    %cst_80 = arith.constant dense<0.000000e+00> : vector<112x8xf32>
    %259 = tpu.matmul %258, %243, %cst_80 {dimension_numbers = #tpu.dot_dimension_numbers<[1], [0], [0], [1], [0, 0, 1, 1], [], []>} : vector<112x112xbf16>, vector<112x8xbf16>, vector<112x8xf32> -> vector<112x8xf32>
    %260 = vector.extract_strided_slice %215 {offsets = [0, 16], sizes = [112, 8], strides = [1, 1]} : vector<112x96xf32> to vector<112x8xf32>
    %261 = arith.truncf %260 : vector<112x8xf32> to vector<112x8xbf16>
    %262 = vector.extract_strided_slice %215 {offsets = [0, 48], sizes = [112, 8], strides = [1, 1]} : vector<112x96xf32> to vector<112x8xf32>
    %263 = arith.truncf %262 : vector<112x8xf32> to vector<112x8xbf16>
    %264 = vector.extract_strided_slice %215 {offsets = [0, 80], sizes = [112, 8], strides = [1, 1]} : vector<112x96xf32> to vector<112x8xf32>
    %265 = arith.truncf %264 : vector<112x8xf32> to vector<112x8xbf16>
    %cst_81 = arith.constant dense<0.000000e+00> : vector<112x112xf32>
    %266 = tpu.matmul %261, %263, %cst_81 {dimension_numbers = #tpu.dot_dimension_numbers<[1], [1], [0], [0], [0, 0, 1, 0], [], []>} : vector<112x8xbf16>, vector<112x8xbf16>, vector<112x112xf32> -> vector<112x112xf32>
    %cst_82 = arith.constant 0.353553385 : f32
    %267 = vector.broadcast %cst_82 : f32 to vector<112x112xf32>
    %268 = arith.mulf %266, %267 : vector<112x112xf32>
    %269 = arith.addf %268, %2 : vector<112x112xf32>
    %cst_83 = arith.constant dense<0xFF800000> : vector<112xf32>
    %270 = vector.multi_reduction <maximumf>, %269, %cst_83 [1] : vector<112x112xf32> to vector<112xf32>
    %271 = vector.shape_cast %270 : vector<112xf32> to vector<112x1xf32>
    %272 = vector.broadcast %271 : vector<112x1xf32> to vector<112x112xf32>
    %273 = arith.subf %269, %272 : vector<112x112xf32>
    %274 = math.exp %273 : vector<112x112xf32>
    %cst_84 = arith.constant dense<0.000000e+00> : vector<112xf32>
    %275 = vector.multi_reduction <add>, %274, %cst_84 [1] : vector<112x112xf32> to vector<112xf32>
    %276 = vector.shape_cast %275 : vector<112xf32> to vector<112x1xf32>
    %277 = tpu.reciprocal %276 : vector<112x1xf32> -> vector<112x1xf32>
    %278 = vector.broadcast %277 : vector<112x1xf32> to vector<112x112xf32>
    %279 = arith.mulf %274, %278 : vector<112x112xf32>
    %280 = arith.truncf %279 : vector<112x112xf32> to vector<112x112xbf16>
    %cst_85 = arith.constant dense<0.000000e+00> : vector<112x8xf32>
    %281 = tpu.matmul %280, %265, %cst_85 {dimension_numbers = #tpu.dot_dimension_numbers<[1], [0], [0], [1], [0, 0, 1, 1], [], []>} : vector<112x112xbf16>, vector<112x8xbf16>, vector<112x8xf32> -> vector<112x8xf32>
    %282 = vector.extract_strided_slice %215 {offsets = [0, 24], sizes = [112, 8], strides = [1, 1]} : vector<112x96xf32> to vector<112x8xf32>
    %283 = arith.truncf %282 : vector<112x8xf32> to vector<112x8xbf16>
    %284 = vector.extract_strided_slice %215 {offsets = [0, 56], sizes = [112, 8], strides = [1, 1]} : vector<112x96xf32> to vector<112x8xf32>
    %285 = arith.truncf %284 : vector<112x8xf32> to vector<112x8xbf16>
    %286 = vector.extract_strided_slice %215 {offsets = [0, 88], sizes = [112, 8], strides = [1, 1]} : vector<112x96xf32> to vector<112x8xf32>
    %287 = arith.truncf %286 : vector<112x8xf32> to vector<112x8xbf16>
    %cst_86 = arith.constant dense<0.000000e+00> : vector<112x112xf32>
    %288 = tpu.matmul %283, %285, %cst_86 {dimension_numbers = #tpu.dot_dimension_numbers<[1], [1], [0], [0], [0, 0, 1, 0], [], []>} : vector<112x8xbf16>, vector<112x8xbf16>, vector<112x112xf32> -> vector<112x112xf32>
    %cst_87 = arith.constant 0.353553385 : f32
    %289 = vector.broadcast %cst_87 : f32 to vector<112x112xf32>
    %290 = arith.mulf %288, %289 : vector<112x112xf32>
    %291 = arith.addf %290, %2 : vector<112x112xf32>
    %cst_88 = arith.constant dense<0xFF800000> : vector<112xf32>
    %292 = vector.multi_reduction <maximumf>, %291, %cst_88 [1] : vector<112x112xf32> to vector<112xf32>
    %293 = vector.shape_cast %292 : vector<112xf32> to vector<112x1xf32>
    %294 = vector.broadcast %293 : vector<112x1xf32> to vector<112x112xf32>
    %295 = arith.subf %291, %294 : vector<112x112xf32>
    %296 = math.exp %295 : vector<112x112xf32>
    %cst_89 = arith.constant dense<0.000000e+00> : vector<112xf32>
    %297 = vector.multi_reduction <add>, %296, %cst_89 [1] : vector<112x112xf32> to vector<112xf32>
    %298 = vector.shape_cast %297 : vector<112xf32> to vector<112x1xf32>
    %299 = tpu.reciprocal %298 : vector<112x1xf32> -> vector<112x1xf32>
    %300 = vector.broadcast %299 : vector<112x1xf32> to vector<112x112xf32>
    %301 = arith.mulf %296, %300 : vector<112x112xf32>
    %302 = arith.truncf %301 : vector<112x112xf32> to vector<112x112xbf16>
    %cst_90 = arith.constant dense<0.000000e+00> : vector<112x8xf32>
    %303 = tpu.matmul %302, %287, %cst_90 {dimension_numbers = #tpu.dot_dimension_numbers<[1], [0], [0], [1], [0, 0, 1, 1], [], []>} : vector<112x112xbf16>, vector<112x8xbf16>, vector<112x8xf32> -> vector<112x8xf32>
    %304 = tpu.concatenate %237, %259, %281, %303 in 1 : vector<112x8xf32>, vector<112x8xf32>, vector<112x8xf32>, vector<112x8xf32> -> vector<112x32xf32>
    %305 = arith.truncf %304 : vector<112x32xf32> to vector<112x32xbf16>
    %c1_91 = arith.constant 1 : index
    %c0_92 = arith.constant 0 : index
    %c0_93 = arith.constant 0 : index
    %306 = vector.load %arg6[%c1_91, %c0_92, %c0_93] : memref<2x32x32xbf16, #tpu.memory_space<vmem>>, vector<1x32x32xbf16>
    %307 = vector.shape_cast %306 : vector<1x32x32xbf16> to vector<32x32xbf16>
    %cst_94 = arith.constant dense<0.000000e+00> : vector<112x32xf32>
    %308 = tpu.matmul %305, %307, %cst_94 {dimension_numbers = #tpu.dot_dimension_numbers<[1], [0], [0], [1], [0, 0, 1, 1], [], []>} : vector<112x32xbf16>, vector<32x32xbf16>, vector<112x32xf32> -> vector<112x32xf32>
    %309 = vector.broadcast %203 : vector<1x32xf32> to vector<112x32xf32>
    %310 = arith.addf %308, %309 : vector<112x32xf32>
    %311 = arith.addf %199, %310 : vector<112x32xf32>
    %cst_95 = arith.constant dense<0.000000e+00> : vector<112xf32>
    %312 = vector.multi_reduction <add>, %311, %cst_95 [1] : vector<112x32xf32> to vector<112xf32>
    %313 = vector.shape_cast %312 : vector<112xf32> to vector<112x1xf32>
    %cst_96 = arith.constant 3.200000e+01 : f32
    %314 = vector.broadcast %cst_96 : f32 to vector<112x1xf32>
    %315 = arith.divf %313, %314 : vector<112x1xf32>
    %316 = vector.broadcast %315 : vector<112x1xf32> to vector<112x32xf32>
    %317 = arith.subf %311, %316 : vector<112x32xf32>
    %318 = arith.mulf %317, %317 : vector<112x32xf32>
    %cst_97 = arith.constant dense<0.000000e+00> : vector<112xf32>
    %319 = vector.multi_reduction <add>, %318, %cst_97 [1] : vector<112x32xf32> to vector<112xf32>
    %320 = vector.shape_cast %319 : vector<112xf32> to vector<112x1xf32>
    %cst_98 = arith.constant 3.200000e+01 : f32
    %321 = vector.broadcast %cst_98 : f32 to vector<112x1xf32>
    %322 = arith.divf %320, %321 : vector<112x1xf32>
    %cst_99 = arith.constant 9.99999974E-6 : f32
    %323 = vector.broadcast %cst_99 : f32 to vector<112x1xf32>
    %324 = arith.addf %322, %323 : vector<112x1xf32>
    %325 = math.rsqrt %324 : vector<112x1xf32>
    %326 = vector.broadcast %325 : vector<112x1xf32> to vector<112x32xf32>
    %327 = arith.mulf %317, %326 : vector<112x32xf32>
    %328 = vector.broadcast %206 : vector<1x32xf32> to vector<112x32xf32>
    %329 = arith.mulf %327, %328 : vector<112x32xf32>
    %330 = vector.broadcast %207 : vector<1x32xf32> to vector<112x32xf32>
    %331 = arith.addf %329, %330 : vector<112x32xf32>
    %332 = arith.truncf %331 : vector<112x32xf32> to vector<112x32xbf16>
    %c1_100 = arith.constant 1 : index
    %c0_101 = arith.constant 0 : index
    %c0_102 = arith.constant 0 : index
    %333 = vector.load %arg7[%c1_100, %c0_101, %c0_102] : memref<2x32x64xbf16, #tpu.memory_space<vmem>>, vector<1x32x64xbf16>
    %334 = vector.shape_cast %333 : vector<1x32x64xbf16> to vector<32x64xbf16>
    %cst_103 = arith.constant dense<0.000000e+00> : vector<112x64xf32>
    %335 = tpu.matmul %332, %334, %cst_103 {dimension_numbers = #tpu.dot_dimension_numbers<[1], [0], [0], [1], [0, 0, 1, 1], [], []>} : vector<112x32xbf16>, vector<32x64xbf16>, vector<112x64xf32> -> vector<112x64xf32>
    %336 = vector.broadcast %204 : vector<1x64xf32> to vector<112x64xf32>
    %337 = arith.addf %335, %336 : vector<112x64xf32>
    %cst_104 = arith.constant 0.000000e+00 : f32
    %338 = vector.broadcast %cst_104 : f32 to vector<112x64xf32>
    %339 = arith.maximumf %337, %338 : vector<112x64xf32>
    %340 = arith.truncf %339 : vector<112x64xf32> to vector<112x64xbf16>
    %c1_105 = arith.constant 1 : index
    %c0_106 = arith.constant 0 : index
    %c0_107 = arith.constant 0 : index
    %341 = vector.load %arg8[%c1_105, %c0_106, %c0_107] : memref<2x64x32xbf16, #tpu.memory_space<vmem>>, vector<1x64x32xbf16>
    %342 = vector.shape_cast %341 : vector<1x64x32xbf16> to vector<64x32xbf16>
    %cst_108 = arith.constant dense<0.000000e+00> : vector<112x32xf32>
    %343 = tpu.matmul %340, %342, %cst_108 {dimension_numbers = #tpu.dot_dimension_numbers<[1], [0], [0], [1], [0, 0, 1, 1], [], []>} : vector<112x64xbf16>, vector<64x32xbf16>, vector<112x32xf32> -> vector<112x32xf32>
    %344 = vector.broadcast %205 : vector<1x32xf32> to vector<112x32xf32>
    %345 = arith.addf %343, %344 : vector<112x32xf32>
    %346 = arith.addf %331, %345 : vector<112x32xf32>
    %cst_109 = arith.constant dense<0.000000e+00> : vector<112xf32>
    %347 = vector.multi_reduction <add>, %346, %cst_109 [1] : vector<112x32xf32> to vector<112xf32>
    %348 = vector.shape_cast %347 : vector<112xf32> to vector<112x1xf32>
    %cst_110 = arith.constant 3.200000e+01 : f32
    %349 = vector.broadcast %cst_110 : f32 to vector<112x1xf32>
    %350 = arith.divf %348, %349 : vector<112x1xf32>
    %351 = vector.broadcast %350 : vector<112x1xf32> to vector<112x32xf32>
    %352 = arith.subf %346, %351 : vector<112x32xf32>
    %353 = arith.mulf %352, %352 : vector<112x32xf32>
    %cst_111 = arith.constant dense<0.000000e+00> : vector<112xf32>
    %354 = vector.multi_reduction <add>, %353, %cst_111 [1] : vector<112x32xf32> to vector<112xf32>
    %355 = vector.shape_cast %354 : vector<112xf32> to vector<112x1xf32>
    %cst_112 = arith.constant 3.200000e+01 : f32
    %356 = vector.broadcast %cst_112 : f32 to vector<112x1xf32>
    %357 = arith.divf %355, %356 : vector<112x1xf32>
    %cst_113 = arith.constant 9.99999974E-6 : f32
    %358 = vector.broadcast %cst_113 : f32 to vector<112x1xf32>
    %359 = arith.addf %357, %358 : vector<112x1xf32>
    %360 = math.rsqrt %359 : vector<112x1xf32>
    %361 = vector.broadcast %360 : vector<112x1xf32> to vector<112x32xf32>
    %362 = arith.mulf %352, %361 : vector<112x32xf32>
    %363 = vector.broadcast %208 : vector<1x32xf32> to vector<112x32xf32>
    %364 = arith.mulf %362, %363 : vector<112x32xf32>
    %365 = vector.broadcast %209 : vector<1x32xf32> to vector<112x32xf32>
    %366 = arith.addf %364, %365 : vector<112x32xf32>
    %367 = vector.extract_strided_slice %3 {offsets = [1, 0], sizes = [1, 32], strides = [1, 1]} : vector<8x32xf32> to vector<1x32xf32>
    %368 = vector.extract_strided_slice %3 {offsets = [2, 0], sizes = [1, 32], strides = [1, 1]} : vector<8x32xf32> to vector<1x32xf32>
    %cst_114 = arith.constant dense<0.000000e+00> : vector<112xf32>
    %369 = vector.multi_reduction <add>, %366, %cst_114 [1] : vector<112x32xf32> to vector<112xf32>
    %370 = vector.shape_cast %369 : vector<112xf32> to vector<112x1xf32>
    %cst_115 = arith.constant 3.200000e+01 : f32
    %371 = vector.broadcast %cst_115 : f32 to vector<112x1xf32>
    %372 = arith.divf %370, %371 : vector<112x1xf32>
    %373 = vector.broadcast %372 : vector<112x1xf32> to vector<112x32xf32>
    %374 = arith.subf %366, %373 : vector<112x32xf32>
    %375 = arith.mulf %374, %374 : vector<112x32xf32>
    %cst_116 = arith.constant dense<0.000000e+00> : vector<112xf32>
    %376 = vector.multi_reduction <add>, %375, %cst_116 [1] : vector<112x32xf32> to vector<112xf32>
    %377 = vector.shape_cast %376 : vector<112xf32> to vector<112x1xf32>
    %cst_117 = arith.constant 3.200000e+01 : f32
    %378 = vector.broadcast %cst_117 : f32 to vector<112x1xf32>
    %379 = arith.divf %377, %378 : vector<112x1xf32>
    %cst_118 = arith.constant 9.99999974E-6 : f32
    %380 = vector.broadcast %cst_118 : f32 to vector<112x1xf32>
    %381 = arith.addf %379, %380 : vector<112x1xf32>
    %382 = math.rsqrt %381 : vector<112x1xf32>
    %383 = vector.broadcast %382 : vector<112x1xf32> to vector<112x32xf32>
    %384 = arith.mulf %374, %383 : vector<112x32xf32>
    %385 = vector.broadcast %367 : vector<1x32xf32> to vector<112x32xf32>
    %386 = arith.mulf %384, %385 : vector<112x32xf32>
    %387 = vector.broadcast %368 : vector<1x32xf32> to vector<112x32xf32>
    %388 = arith.addf %386, %387 : vector<112x32xf32>
    %389 = arith.truncf %388 : vector<112x32xf32> to vector<112x32xbf16>
    %c0_119 = arith.constant 0 : index
    %c0_120 = arith.constant 0 : index
    %390 = vector.load %arg9[%c0_119, %c0_120] : memref<32x128xbf16, #tpu.memory_space<vmem>>, vector<32x128xbf16>
    %cst_121 = arith.constant dense<0.000000e+00> : vector<112x128xf32>
    %391 = tpu.matmul %389, %390, %cst_121 {dimension_numbers = #tpu.dot_dimension_numbers<[1], [0], [0], [1], [0, 0, 1, 1], [], []>} : vector<112x32xbf16>, vector<32x128xbf16>, vector<112x128xf32> -> vector<112x128xf32>
    %c0_122 = arith.constant 0 : index
    %c0_123 = arith.constant 0 : index
    %392 = vector.load %arg10[%c0_122, %c0_123] : memref<1x128xf32, #tpu.memory_space<vmem>>, vector<1x128xf32>
    %393 = vector.broadcast %392 : vector<1x128xf32> to vector<112x128xf32>
    %394 = arith.addf %391, %393 : vector<112x128xf32>
    %395 = vector.broadcast %17 : vector<112x1xf32> to vector<112x128xf32>
    %396 = arith.mulf %394, %395 : vector<112x128xf32>
    %397 = vector.broadcast %7 : vector<112x1xf32> to vector<112x128xf32>
    %398 = arith.addf %396, %397 : vector<112x128xf32>
    %c0_124 = arith.constant 0 : index
    %c0_125 = arith.constant 0 : index
    %399 = vector.load %arg13[%c0_124, %c0_125] : memref<112x128xf32, #tpu.memory_space<vmem>>, vector<112x128xf32>
    tpu.vector_store %arg13[%c0_124, %c0_125], %398 {strides = array<i32>} : memref<112x128xf32, #tpu.memory_space<vmem>>, vector<112x128xf32>,
    return
  }
  func.func @transform_0(%arg0: i32) -> (i32, i32) {
    %c0_i32 = arith.constant 0 : i32
    %c0_i32_0 = arith.constant 0 : i32
    return %arg0, %c0_i32 : i32, i32
  }
  func.func @transform_1(%arg0: i32) -> (i32, i32) {
    %c0_i32 = arith.constant 0 : i32
    %c0_i32_0 = arith.constant 0 : i32
    %c0_i32_1 = arith.constant 0 : i32
    return %c0_i32, %c0_i32_0 : i32, i32
  }
  func.func @transform_2(%arg0: i32) -> (i32, i32) {
    %c0_i32 = arith.constant 0 : i32
    %c0_i32_0 = arith.constant 0 : i32
    %c0_i32_1 = arith.constant 0 : i32
    return %c0_i32, %c0_i32_0 : i32, i32
  }
  func.func @transform_3(%arg0: i32) -> (i32, i32) {
    %c0_i32 = arith.constant 0 : i32
    %c0_i32_0 = arith.constant 0 : i32
    %c0_i32_1 = arith.constant 0 : i32
    return %c0_i32, %c0_i32_0 : i32, i32
  }
  func.func @transform_4(%arg0: i32) -> (i32, i32, i32) {
    %c0_i32 = arith.constant 0 : i32
    %c0_i32_0 = arith.constant 0 : i32
    %c0_i32_1 = arith.constant 0 : i32
    %c0_i32_2 = arith.constant 0 : i32
    return %c0_i32, %c0_i32_0, %c0_i32_1 : i32, i32, i32
  }
  func.func @transform_5(%arg0: i32) -> (i32, i32, i32) {
    %c0_i32 = arith.constant 0 : i32
    %c0_i32_0 = arith.constant 0 : i32
    %c0_i32_1 = arith.constant 0 : i32
    %c0_i32_2 = arith.constant 0 : i32
    return %c0_i32, %c0_i32_0, %c0_i32_1 : i32, i32, i32
  }
  func.func @transform_6(%arg0: i32) -> (i32, i32, i32) {
    %c0_i32 = arith.constant 0 : i32
    %c0_i32_0 = arith.constant 0 : i32
    %c0_i32_1 = arith.constant 0 : i32
    %c0_i32_2 = arith.constant 0 : i32
    return %c0_i32, %c0_i32_0, %c0_i32_1 : i32, i32, i32
  }
  func.func @transform_7(%arg0: i32) -> (i32, i32, i32) {
    %c0_i32 = arith.constant 0 : i32
    %c0_i32_0 = arith.constant 0 : i32
    %c0_i32_1 = arith.constant 0 : i32
    %c0_i32_2 = arith.constant 0 : i32
    return %c0_i32, %c0_i32_0, %c0_i32_1 : i32, i32, i32
  }
  func.func @transform_8(%arg0: i32) -> (i32, i32) {
    %c0_i32 = arith.constant 0 : i32
    %c0_i32_0 = arith.constant 0 : i32
    %c0_i32_1 = arith.constant 0 : i32
    return %c0_i32, %c0_i32_0 : i32, i32
  }
  func.func @transform_9(%arg0: i32) -> (i32, i32) {
    %c0_i32 = arith.constant 0 : i32
    %c0_i32_0 = arith.constant 0 : i32
    %c0_i32_1 = arith.constant 0 : i32
    return %c0_i32, %c0_i32_0 : i32, i32
  }
  func.func @transform_10(%arg0: i32) -> (i32, i32, i32) {
    %c0_i32 = arith.constant 0 : i32
    %c0_i32_0 = arith.constant 0 : i32
    %c0_i32_1 = arith.constant 0 : i32
    %c0_i32_2 = arith.constant 0 : i32
    return %c0_i32, %c0_i32_0, %c0_i32_1 : i32, i32, i32
  }
  func.func @transform_11(%arg0: i32) -> (i32, i32) {
    %c0_i32 = arith.constant 0 : i32
    %c0_i32_0 = arith.constant 0 : i32
    %c0_i32_1 = arith.constant 0 : i32
    return %c0_i32, %c0_i32_0 : i32, i32
  }
  func.func @transform_12(%arg0: i32) -> (i32, i32) {
    %c0_i32 = arith.constant 0 : i32
    %c0_i32_0 = arith.constant 0 : i32
    return %arg0, %c0_i32 : i32, i32
  }
}

</mosaic_0001>

<llo_original>
// kernel: tpu_custom_call.1
$region0: #{tpu_custom_call.1}
  #allocation0 [shape = 'u32[]', space=smem, size = 0x4, offset = 0x4, fixed_abs, tag = 'smem constant byte address 0x4 - core index']
  #allocation1 [shape = 'u32[144,128]{1,0:T(1,128)}', space=vmem, size = 0x12000, scoped, tag = 'internal scratch']
  %s0 = inlined_call_operand.vmem [shape: f32[224,16], index: 0, kind: input, shape index: {}]
  %s1 = inlined_call_operand.vmem [shape: f32[112,1], index: 1, kind: input, shape index: {}]
  %s2 = inlined_call_operand.vmem [shape: f32[112,112], index: 2, kind: input, shape index: {}]
  %s3 = inlined_call_operand.vmem [shape: bf16[16,32], index: 3, kind: input, shape index: {}]
  %s4 = inlined_call_operand.vmem [shape: bf16[2,32,96], index: 4, kind: input, shape index: {}]
  %s5 = inlined_call_operand.vmem [shape: bf16[2,32,32], index: 5, kind: input, shape index: {}]
  %s6 = inlined_call_operand.vmem [shape: bf16[2,32,64], index: 6, kind: input, shape index: {}]
  %s7 = inlined_call_operand.vmem [shape: bf16[2,64,32], index: 7, kind: input, shape index: {}]
  %s8 = inlined_call_operand.vmem [shape: bf16[32,128], index: 8, kind: input, shape index: {}]
  %s9 = inlined_call_operand.vmem [shape: f32[1,128], index: 9, kind: input, shape index: {}]
  %s10 = inlined_call_operand.vmem [shape: f32[2,8,96], index: 10, kind: input, shape index: {}]
  %s11 = inlined_call_operand.vmem [shape: f32[8,32], index: 11, kind: input, shape index: {}]
  %s12 = inlined_call_operand.hbm [shape: f32[224,128], index: 12, kind: output, shape index: {}]
  %s13 = sld [smem:[#allocation0]]
  $region81: #{tpu_custom_call.1} parent=0
    _
  %s15 = ssub.s32 1, %s13
  %s16 = scalar_select 0, %s15, %s13
  $region1: #{tpu_custom_call.1} parent=0
    #allocation2 [shape = 'u8[114688]{0}', space=vmem, size = 0x1c000, scoped, tag = 'output window, operand 0']
    #allocation3 [shape = 's32[2]{0}', space=sflag, size = 0x8, scoped, tag = 'scoped memory for tpu_custom_call.1']
    %17 = vsyncpa [#allocation3], 0
    %s18 = scalar_lea.sflag [#allocation3], 1
    %19 = vsyncpa %s18, 0
    loop: start=0, step=1, limit=4
    $region2: #{tpu_custom_call.1} parent=1 // loop_pre_header
      _
    $region3: #{tpu_custom_call.1} parent=1 // loop_header
      %s21 = sphi 0, %s25
      %p22 = scmp.ge.s32.totalorder %s21, 4
      %s31 = sphi 0, %s33
      %s34 = sphi 0, %s31
      %s35 = sphi 0, %s34
      %s51 = sphi 0, %s35
      %s55 = sphi 0, %s55
      %s57 = sphi 0, %s55
      %s58 = sphi 0, %s57
      %s72 = sphi 0, %s58
      %s76 = sphi 0, %s76
      %s78 = sphi 0, %s76
      %s79 = sphi 0, %s78
      %s93 = sphi 0, %s79
      %s97 = sphi 0, %s97
      %s99 = sphi 0, %s97
      %s100 = sphi 0, %s99
      %s114 = sphi 0, %s100
      %s118 = sphi 0, %s118
      %s120 = sphi 0, %s118
      %s121 = sphi 0, %s120
      %s135 = sphi 0, %s121
      %s139 = sphi 0, %s139
      %s141 = sphi 0, %s139
      %s142 = sphi 0, %s141
      %s156 = sphi 0, %s142
      %s160 = sphi 0, %s160
      %s162 = sphi 0, %s160
      %s163 = sphi 0, %s162
      %s177 = sphi 0, %s163
      %s181 = sphi 0, %s181
      %s183 = sphi 0, %s181
      %s184 = sphi 0, %s183
      %s198 = sphi 0, %s184
      %s202 = sphi 0, %s202
      %s204 = sphi 0, %s202
      %s205 = sphi 0, %s204
      %s219 = sphi 0, %s205
      %s223 = sphi 0, %s223
      %s225 = sphi 0, %s223
      %s226 = sphi 0, %s225
      %s240 = sphi 0, %s226
      %s244 = sphi 0, %s244
      %s246 = sphi 0, %s244
      %s247 = sphi 0, %s246
      %s261 = sphi 0, %s247
      %s265 = sphi 0, %s265
      %s267 = sphi 0, %s265
      %s268 = sphi 0, %s267
      %s282 = sphi 0, %s268
      %s288 = sphi 0, %s290
      %s291 = sphi 0, %s288
      %s292 = sphi 0, %s291
      %s308 = sphi 0, %s292
    $region4: #{tpu_custom_call.1} parent=1 // loop_header_branch
      %24 = sbr.rel (%p22) target = $region8
    $region5: #{tpu_custom_call.1} parent=1 // loop_body
      %s26 = ssub.s32 %s21, 1
      %s27 = ssub.s32 %s21, 2
      %s28 = sadd.s32 %s21, 1
      %s29 = ssub.s32 %s21, %s28
      %p30 = scmp.eq.s32.totalorder %s29, 0
      %s32 = sadd.s32 %s31, 1
      %s33 = scalar_select %p30, %s31, %s32
      %p36 = pneg %p30
      %p37 = scmp.eq.s32.totalorder %s21, 1
      %p38 = por %p36, %p37
      %p39 = scmp.ne.s32.totalorder %s31, %s34
      %p40 = scmp.eq.s32.totalorder %s21, 0
      %p41 = por %p39, %p40
      %p42 = scmp.ne.s32.totalorder %s31, %s34
      %p43 = scmp.eq.s32.totalorder %s26, 1
      %p44 = por %p42, %p43
      %p45 = scmp.ne.s32.totalorder %s34, %s35
      %p46 = scmp.eq.s32.totalorder %s26, 0
      %p47 = por %p45, %p46
      %p48 = scmp.ne.s32.totalorder %s34, %s35
      %p49 = scmp.eq.s32.totalorder %s27, 1
      %p50 = por %p48, %p49
      %p52 = scmp.ne.s32.totalorder %s35, %s51
      %p53 = scmp.eq.s32.totalorder %s27, 0
      %p54 = por %p52, %p53
      %s56 = sadd.s32 %s55, 1
      %p59 = scmp.eq.s32.totalorder %s21, 1
      %p60 = scmp.ne.s32.totalorder %s55, %s57
      %p61 = scmp.eq.s32.totalorder %s21, 0
      %p62 = por %p60, %p61
      %p63 = scmp.ne.s32.totalorder %s55, %s57
      %p64 = scmp.eq.s32.totalorder %s26, 1
      %p65 = por %p63, %p64
      %p66 = scmp.ne.s32.totalorder %s57, %s58
      %p67 = scmp.eq.s32.totalorder %s26, 0
      %p68 = por %p66, %p67
      %p69 = scmp.ne.s32.totalorder %s57, %s58
      %p70 = scmp.eq.s32.totalorder %s27, 1
      %p71 = por %p69, %p70
      %p73 = scmp.ne.s32.totalorder %s58, %s72
      %p74 = scmp.eq.s32.totalorder %s27, 0
      %p75 = por %p73, %p74
      %s77 = sadd.s32 %s76, 1
      %p80 = scmp.eq.s32.totalorder %s21, 1
      %p81 = scmp.ne.s32.totalorder %s76, %s78
      %p82 = scmp.eq.s32.totalorder %s21, 0
      %p83 = por %p81, %p82
      %p84 = scmp.ne.s32.totalorder %s76, %s78
      %p85 = scmp.eq.s32.totalorder %s26, 1
      %p86 = por %p84, %p85
      %p87 = scmp.ne.s32.totalorder %s78, %s79
      %p88 = scmp.eq.s32.totalorder %s26, 0
      %p89 = por %p87, %p88
      %p90 = scmp.ne.s32.totalorder %s78, %s79
      %p91 = scmp.eq.s32.totalorder %s27, 1
      %p92 = por %p90, %p91
      %p94 = scmp.ne.s32.totalorder %s79, %s93
      %p95 = scmp.eq.s32.totalorder %s27, 0
      %p96 = por %p94, %p95
      %s98 = sadd.s32 %s97, 1
      %p101 = scmp.eq.s32.totalorder %s21, 1
      %p102 = scmp.ne.s32.totalorder %s97, %s99
      %p103 = scmp.eq.s32.totalorder %s21, 0
      %p104 = por %p102, %p103
      %p105 = scmp.ne.s32.totalorder %s97, %s99
      %p106 = scmp.eq.s32.totalorder %s26, 1
      %p107 = por %p105, %p106
      %p108 = scmp.ne.s32.totalorder %s99, %s100
      %p109 = scmp.eq.s32.totalorder %s26, 0
      %p110 = por %p108, %p109
      %p111 = scmp.ne.s32.totalorder %s99, %s100
      %p112 = scmp.eq.s32.totalorder %s27, 1
      %p113 = por %p111, %p112
      %p115 = scmp.ne.s32.totalorder %s100, %s114
      %p116 = scmp.eq.s32.totalorder %s27, 0
      %p117 = por %p115, %p116
      %s119 = sadd.s32 %s118, 1
      %p122 = scmp.eq.s32.totalorder %s21, 1
      %p123 = scmp.ne.s32.totalorder %s118, %s120
      %p124 = scmp.eq.s32.totalorder %s21, 0
      %p125 = por %p123, %p124
      %p126 = scmp.ne.s32.totalorder %s118, %s120
      %p127 = scmp.eq.s32.totalorder %s26, 1
      %p128 = por %p126, %p127
      %p129 = scmp.ne.s32.totalorder %s120, %s121
      %p130 = scmp.eq.s32.totalorder %s26, 0
      %p131 = por %p129, %p130
      %p132 = scmp.ne.s32.totalorder %s120, %s121
      %p133 = scmp.eq.s32.totalorder %s27, 1
      %p134 = por %p132, %p133
      %p136 = scmp.ne.s32.totalorder %s121, %s135
      %p137 = scmp.eq.s32.totalorder %s27, 0
      %p138 = por %p136, %p137
      %s140 = sadd.s32 %s139, 1
      %p143 = scmp.eq.s32.totalorder %s21, 1
      %p144 = scmp.ne.s32.totalorder %s139, %s141
      %p145 = scmp.eq.s32.totalorder %s21, 0
      %p146 = por %p144, %p145
      %p147 = scmp.ne.s32.totalorder %s139, %s141
      %p148 = scmp.eq.s32.totalorder %s26, 1
      %p149 = por %p147, %p148
      %p150 = scmp.ne.s32.totalorder %s141, %s142
      %p151 = scmp.eq.s32.totalorder %s26, 0
      %p152 = por %p150, %p151
      %p153 = scmp.ne.s32.totalorder %s141, %s142
      %p154 = scmp.eq.s32.totalorder %s27, 1
      %p155 = por %p153, %p154
      %p157 = scmp.ne.s32.totalorder %s142, %s156
      %p158 = scmp.eq.s32.totalorder %s27, 0
      %p159 = por %p157, %p158
      %s161 = sadd.s32 %s160, 1
      %p164 = scmp.eq.s32.totalorder %s21, 1
      %p165 = scmp.ne.s32.totalorder %s160, %s162
      %p166 = scmp.eq.s32.totalorder %s21, 0
      %p167 = por %p165, %p166
      %p168 = scmp.ne.s32.totalorder %s160, %s162
      %p169 = scmp.eq.s32.totalorder %s26, 1
      %p170 = por %p168, %p169
      %p171 = scmp.ne.s32.totalorder %s162, %s163
      %p172 = scmp.eq.s32.totalorder %s26, 0
      %p173 = por %p171, %p172
      %p174 = scmp.ne.s32.totalorder %s162, %s163
      %p175 = scmp.eq.s32.totalorder %s27, 1
      %p176 = por %p174, %p175
      %p178 = scmp.ne.s32.totalorder %s163, %s177
      %p179 = scmp.eq.s32.totalorder %s27, 0
      %p180 = por %p178, %p179
      %s182 = sadd.s32 %s181, 1
      %p185 = scmp.eq.s32.totalorder %s21, 1
      %p186 = scmp.ne.s32.totalorder %s181, %s183
      %p187 = scmp.eq.s32.totalorder %s21, 0
      %p188 = por %p186, %p187
      %p189 = scmp.ne.s32.totalorder %s181, %s183
      %p190 = scmp.eq.s32.totalorder %s26, 1
      %p191 = por %p189, %p190
      %p192 = scmp.ne.s32.totalorder %s183, %s184
      %p193 = scmp.eq.s32.totalorder %s26, 0
      %p194 = por %p192, %p193
      %p195 = scmp.ne.s32.totalorder %s183, %s184
      %p196 = scmp.eq.s32.totalorder %s27, 1
      %p197 = por %p195, %p196
      %p199 = scmp.ne.s32.totalorder %s184, %s198
      %p200 = scmp.eq.s32.totalorder %s27, 0
      %p201 = por %p199, %p200
      %s203 = sadd.s32 %s202, 1
      %p206 = scmp.eq.s32.totalorder %s21, 1
      %p207 = scmp.ne.s32.totalorder %s202, %s204
      %p208 = scmp.eq.s32.totalorder %s21, 0
      %p209 = por %p207, %p208
      %p210 = scmp.ne.s32.totalorder %s202, %s204
      %p211 = scmp.eq.s32.totalorder %s26, 1
      %p212 = por %p210, %p211
      %p213 = scmp.ne.s32.totalorder %s204, %s205
      %p214 = scmp.eq.s32.totalorder %s26, 0
      %p215 = por %p213, %p214
      %p216 = scmp.ne.s32.totalorder %s204, %s205
      %p217 = scmp.eq.s32.totalorder %s27, 1
      %p218 = por %p216, %p217
      %p220 = scmp.ne.s32.totalorder %s205, %s219
      %p221 = scmp.eq.s32.totalorder %s27, 0
      %p222 = por %p220, %p221
      %s224 = sadd.s32 %s223, 1
      %p227 = scmp.eq.s32.totalorder %s21, 1
      %p228 = scmp.ne.s32.totalorder %s223, %s225
      %p229 = scmp.eq.s32.totalorder %s21, 0
      %p230 = por %p228, %p229
      %p231 = scmp.ne.s32.totalorder %s223, %s225
      %p232 = scmp.eq.s32.totalorder %s26, 1
      %p233 = por %p231, %p232
      %p234 = scmp.ne.s32.totalorder %s225, %s226
      %p235 = scmp.eq.s32.totalorder %s26, 0
      %p236 = por %p234, %p235
      %p237 = scmp.ne.s32.totalorder %s225, %s226
      %p238 = scmp.eq.s32.totalorder %s27, 1
      %p239 = por %p237, %p238
      %p241 = scmp.ne.s32.totalorder %s226, %s240
      %p242 = scmp.eq.s32.totalorder %s27, 0
      %p243 = por %p241, %p242
      %s245 = sadd.s32 %s244, 1
      %p248 = scmp.eq.s32.totalorder %s21, 1
      %p249 = scmp.ne.s32.totalorder %s244, %s246
      %p250 = scmp.eq.s32.totalorder %s21, 0
      %p251 = por %p249, %p250
      %p252 = scmp.ne.s32.totalorder %s244, %s246
      %p253 = scmp.eq.s32.totalorder %s26, 1
      %p254 = por %p252, %p253
      %p255 = scmp.ne.s32.totalorder %s246, %s247
      %p256 = scmp.eq.s32.totalorder %s26, 0
      %p257 = por %p255, %p256
      %p258 = scmp.ne.s32.totalorder %s246, %s247
      %p259 = scmp.eq.s32.totalorder %s27, 1
      %p260 = por %p258, %p259
      %p262 = scmp.ne.s32.totalorder %s247, %s261
      %p263 = scmp.eq.s32.totalorder %s27, 0
      %p264 = por %p262, %p263
      %s266 = sadd.s32 %s265, 1
      %p269 = scmp.eq.s32.totalorder %s21, 1
      %p270 = scmp.ne.s32.totalorder %s265, %s267
      %p271 = scmp.eq.s32.totalorder %s21, 0
      %p272 = por %p270, %p271
      %p273 = scmp.ne.s32.totalorder %s265, %s267
      %p274 = scmp.eq.s32.totalorder %s26, 1
      %p275 = por %p273, %p274
      %p276 = scmp.ne.s32.totalorder %s267, %s268
      %p277 = scmp.eq.s32.totalorder %s26, 0
      %p278 = por %p276, %p277
      %p279 = scmp.ne.s32.totalorder %s267, %s268
      %p280 = scmp.eq.s32.totalorder %s27, 1
      %p281 = por %p279, %p280
      %p283 = scmp.ne.s32.totalorder %s268, %s282
      %p284 = scmp.eq.s32.totalorder %s27, 0
      %p285 = por %p283, %p284
      %s286 = ssub.s32 %s21, %s28
      %p287 = scmp.eq.s32.totalorder %s286, 0
      %s289 = sadd.s32 %s288, 1
      %s290 = scalar_select %p287, %s288, %s289
      %p293 = pneg %p287
      %p294 = scmp.eq.s32.totalorder %s21, 1
      %p295 = por %p293, %p294
      %p296 = scmp.ne.s32.totalorder %s288, %s291
      %p297 = scmp.eq.s32.totalorder %s21, 0
      %p298 = por %p296, %p297
      %p299 = scmp.ne.s32.totalorder %s288, %s291
      %p300 = scmp.eq.s32.totalorder %s26, 1
      %p301 = por %p299, %p300
      %p302 = scmp.ne.s32.totalorder %s291, %s292
      %p303 = scmp.eq.s32.totalorder %s26, 0
      %p304 = por %p302, %p303
      %p305 = scmp.ne.s32.totalorder %s291, %s292
      %p306 = scmp.eq.s32.totalorder %s27, 1
      %p307 = por %p305, %p306
      %p309 = scmp.ne.s32.totalorder %s292, %s308
      %p310 = scmp.eq.s32.totalorder %s27, 0
      %p311 = por %p309, %p310
      %p312 = scmp.le.s32.totalorder 1, %s21
      %p313 = scmp.lt.s32.totalorder %s21, 3
      %p314 = pnand %p312, %p313
      %p315 = pneg %p314
      // Predicated region
      $region9: #{tpu_custom_call.1} parent=5 // pred_check
        _
      $region10: #{tpu_custom_call.1} parent=5 // pred_check_branch
        %317 = sbr.rel (%p314) target = $region12
      $region11: #{tpu_custom_call.1} parent=5 // pred_region
        %s318 = ssub.s32 %s21, 1
        // Predicated region
        $region13: #{tpu_custom_call.1} parent=11 // pred_check
          %p319 = pneg %p68
        $region14: #{tpu_custom_call.1} parent=11 // pred_check_branch
          %321 = sbr.rel (%p319) target = $region16
        $region15: #{tpu_custom_call.1} parent=11 // pred_region
          _
        $region16: #{tpu_custom_call.1} parent=11 // pred_fallthru
          _
        // Predicated region
        $region17: #{tpu_custom_call.1} parent=11 // pred_check
          %p322 = pneg %p89
        $region18: #{tpu_custom_call.1} parent=11 // pred_check_branch
          %324 = sbr.rel (%p322) target = $region20
        $region19: #{tpu_custom_call.1} parent=11 // pred_region
          _
        $region20: #{tpu_custom_call.1} parent=11 // pred_fallthru
          _
        // Predicated region
        $region21: #{tpu_custom_call.1} parent=11 // pred_check
          %p325 = pneg %p110
        $region22: #{tpu_custom_call.1} parent=11 // pred_check_branch
          %327 = sbr.rel (%p325) target = $region24
        $region23: #{tpu_custom_call.1} parent=11 // pred_region
          _
        $region24: #{tpu_custom_call.1} parent=11 // pred_fallthru
          _
        // Predicated region
        $region25: #{tpu_custom_call.1} parent=11 // pred_check
          %p328 = pneg %p131
        $region26: #{tpu_custom_call.1} parent=11 // pred_check_branch
          %330 = sbr.rel (%p328) target = $region28
        $region27: #{tpu_custom_call.1} parent=11 // pred_region
          _
        $region28: #{tpu_custom_call.1} parent=11 // pred_fallthru
          _
        // Predicated region
        $region29: #{tpu_custom_call.1} parent=11 // pred_check
          %p331 = pneg %p152
        $region30: #{tpu_custom_call.1} parent=11 // pred_check_branch
          %333 = sbr.rel (%p331) target = $region32
        $region31: #{tpu_custom_call.1} parent=11 // pred_region
          _
        $region32: #{tpu_custom_call.1} parent=11 // pred_fallthru
          _
        // Predicated region
        $region33: #{tpu_custom_call.1} parent=11 // pred_check
          %p334 = pneg %p173
        $region34: #{tpu_custom_call.1} parent=11 // pred_check_branch
          %336 = sbr.rel (%p334) target = $region36
        $region35: #{tpu_custom_call.1} parent=11 // pred_region
          _
        $region36: #{tpu_custom_call.1} parent=11 // pred_fallthru
          _
        // Predicated region
        $region37: #{tpu_custom_call.1} parent=11 // pred_check
          %p337 = pneg %p194
        $region38: #{tpu_custom_call.1} parent=11 // pred_check_branch
          %339 = sbr.rel (%p337) target = $region40
        $region39: #{tpu_custom_call.1} parent=11 // pred_region
          _
        $region40: #{tpu_custom_call.1} parent=11 // pred_fallthru
          _
        // Predicated region
        $region41: #{tpu_custom_call.1} parent=11 // pred_check
          %p340 = pneg %p215
        $region42: #{tpu_custom_call.1} parent=11 // pred_check_branch
          %342 = sbr.rel (%p340) target = $region44
        $region43: #{tpu_custom_call.1} parent=11 // pred_region
          _
        $region44: #{tpu_custom_call.1} parent=11 // pred_fallthru
          _
        // Predicated region
        $region45: #{tpu_custom_call.1} parent=11 // pred_check
          %p343 = pneg %p236
        $region46: #{tpu_custom_call.1} parent=11 // pred_check_branch
          %345 = sbr.rel (%p343) target = $region48
        $region47: #{tpu_custom_call.1} parent=11 // pred_region
          _
        $region48: #{tpu_custom_call.1} parent=11 // pred_fallthru
          _
        // Predicated region
        $region49: #{tpu_custom_call.1} parent=11 // pred_check
          %p346 = pneg %p257
        $region50: #{tpu_custom_call.1} parent=11 // pred_check_branch
          %348 = sbr.rel (%p346) target = $region52
        $region51: #{tpu_custom_call.1} parent=11 // pred_region
          _
        $region52: #{tpu_custom_call.1} parent=11 // pred_fallthru
          _
        // Predicated region
        $region53: #{tpu_custom_call.1} parent=11 // pred_check
          %p349 = pneg %p278
        $region54: #{tpu_custom_call.1} parent=11 // pred_check_branch
          %351 = sbr.rel (%p349) target = $region56
        $region55: #{tpu_custom_call.1} parent=11 // pred_region
          _
        $region56: #{tpu_custom_call.1} parent=11 // pred_fallthru
          _
      $region12: #{tpu_custom_call.1} parent=5 // pred_fallthru
        _
      %p352 = scmp.lt.s32.totalorder %s21, 2
      // Predicated region
      $region57: #{tpu_custom_call.1} parent=5 // pred_check
        %p353 = pneg %p352
      $region58: #{tpu_custom_call.1} parent=5 // pred_check_branch
        %355 = sbr.rel (%p353) target = $region60
      $region59: #{tpu_custom_call.1} parent=5 // pred_region
        // Predicated region
        $region61: #{tpu_custom_call.1} parent=59 // pred_check
          %p356 = pneg %p41
        $region62: #{tpu_custom_call.1} parent=59 // pred_check_branch
          %358 = sbr.rel (%p356) target = $region64
        $region63: #{tpu_custom_call.1} parent=59 // pred_region
          %s359 = smul.u32 14, %s21
          %p360 = scmp.lt.s32.totalorder %s359, 27
          %s361 = scalar_select %p360, %s359, 27
          %s362 = smul.addr %s361, 8
          %s363 = scalar_lea.vmem %s0, %s362
          %s364 = smul.u32 14, %s21
        $region64: #{tpu_custom_call.1} parent=59 // pred_fallthru
          _
      $region60: #{tpu_custom_call.1} parent=5 // pred_fallthru
        _
      %p365 = scmp.le.s32.totalorder 1, %s21
      %p366 = scmp.lt.s32.totalorder %s21, 3
      %p367 = pnand %p365, %p366
      %p368 = pneg %p367
      // Predicated region
      $region65: #{tpu_custom_call.1} parent=5 // pred_check
        _
      $region66: #{tpu_custom_call.1} parent=5 // pred_check_branch
        %370 = sbr.rel (%p367) target = $region68
      $region67: #{tpu_custom_call.1} parent=5 // pred_region
        %s371 = ssub.s32 %s21, 1
        %s372 = smul.u32 14, %s26
        %p373 = scmp.lt.s32.totalorder %s372, 27
        %s374 = scalar_select %p373, %s372, 27
        %s375 = smul.addr %s374, 8
        %s376 = scalar_lea.vmem %s0, %s375
        %p377 = pneg %p47
        %p378 = pneg %p44
        %p379 = pneg %p68
        %p380 = pneg %p65
        %p381 = pneg %p89
        %p382 = pneg %p86
        %p383 = pneg %p110
        %p384 = pneg %p107
        %p385 = pneg %p131
        %p386 = pneg %p128
        %p387 = pneg %p152
        %p388 = pneg %p149
        %p389 = pneg %p173
        %p390 = pneg %p170
        %p391 = pneg %p194
        %p392 = pneg %p191
        %p393 = pneg %p215
        %p394 = pneg %p212
        %p395 = pneg %p236
        %p396 = pneg %p233
        %p397 = pneg %p257
        %p398 = pneg %p254
        %p399 = pneg %p278
        %p400 = pneg %p275
        %p401 = pneg %p304
        %p402 = pneg %p301
        %s403 = sand.u32 %s291, 1
        %s404 = scalar_lea.sflag [#allocation3], %s403
        %s405 = sand.u32 %s291, 1
        %s406 = smul.addr %s405, 112
        %s407 = scalar_lea.vmem [#allocation2], %s406
        %s408 = smul.u32 14, %s26
        %p409 = scmp.lt.s32.totalorder %s408, 27
        %s410 = scalar_select %p409, %s408, 27
        %s411 = smul.addr %s410, 8
        %s412 = scalar_lea.vmem %s0, %s411
        %s413 = smul.u32 14, %s26
        %s414 = smul.u32 14, %s26
        %v416 = vld [vmem:[%s412] sm:$0xff]
        %v417 = vld [vmem:[%s412 + $0x8] sm:$0xff]
        %v418 = vld [vmem:[%s412 + $0x10] sm:$0xff]
        %v419 = vld [vmem:[%s412 + $0x18] sm:$0xff]
        %v420 = vld [vmem:[%s412 + $0x20] sm:$0xff]
        %v421 = vld [vmem:[%s412 + $0x28] sm:$0xff]
        %v422 = vld [vmem:[%s412 + $0x30] sm:$0xff]
        %v423 = vld [vmem:[%s412 + $0x38] sm:$0xff]
        %v424 = vld [vmem:[%s412 + $0x40] sm:$0xff]
        %v425 = vld [vmem:[%s412 + $0x48] sm:$0xff]
        %v426 = vld [vmem:[%s412 + $0x50] sm:$0xff]
        %v427 = vld [vmem:[%s412 + $0x58] sm:$0xff]
        %v428 = vld [vmem:[%s412 + $0x60] sm:$0xff]
        %v429 = vld [vmem:[%s412 + $0x68] sm:$0xff]
        %v430 = vld [vmem:[%s1] sm:$0xff]
        %v431 = vld [vmem:[%s1 + $0x8] sm:$0xff]
        %v432 = vld [vmem:[%s1 + $0x10] sm:$0xff]
        %v433 = vld [vmem:[%s1 + $0x18] sm:$0xff]
        %v434 = vld [vmem:[%s1 + $0x20] sm:$0xff]
        %v435 = vld [vmem:[%s1 + $0x28] sm:$0xff]
        %v436 = vld [vmem:[%s1 + $0x30] sm:$0xff]
        %v437 = vld [vmem:[%s1 + $0x38] sm:$0xff]
        %v438 = vld [vmem:[%s1 + $0x40] sm:$0xff]
        %v439 = vld [vmem:[%s1 + $0x48] sm:$0xff]
        %v440 = vld [vmem:[%s1 + $0x50] sm:$0xff]
        %v441 = vld [vmem:[%s1 + $0x58] sm:$0xff]
        %v442 = vld [vmem:[%s1 + $0x60] sm:$0xff]
        %v443 = vld [vmem:[%s1 + $0x68] sm:$0xff]
        %v444 = vld [vmem:[%s2] sm:$0xff]
        %v445 = vld [vmem:[%s2 + $0x8] sm:$0xff]
        %v446 = vld [vmem:[%s2 + $0x10] sm:$0xff]
        %v447 = vld [vmem:[%s2 + $0x18] sm:$0xff]
        %v448 = vld [vmem:[%s2 + $0x20] sm:$0xff]
        %v449 = vld [vmem:[%s2 + $0x28] sm:$0xff]
        %v450 = vld [vmem:[%s2 + $0x30] sm:$0xff]
        %v451 = vld [vmem:[%s2 + $0x38] sm:$0xff]
        %v452 = vld [vmem:[%s2 + $0x40] sm:$0xff]
        %v453 = vld [vmem:[%s2 + $0x48] sm:$0xff]
        %v454 = vld [vmem:[%s2 + $0x50] sm:$0xff]
        %v455 = vld [vmem:[%s2 + $0x58] sm:$0xff]
        %v456 = vld [vmem:[%s2 + $0x60] sm:$0xff]
        %v457 = vld [vmem:[%s2 + $0x68] sm:$0xff]
        %v458 = vld [vmem:[%s11] sm:$0xff]
        %vm459 = vcmask 130048
        %v460 = vsel %vm459, %v416, 0.0
        %461 = vadd.xlane.f32.xlu0 %v460
        %v462 = vpop.xlane.xlu0 %461
        %v463 = vsel %vm459, %v417, 0.0
        %464 = vadd.xlane.f32.xlu0 %v463
        %v465 = vpop.xlane.xlu0 %464
        %v466 = vsel %vm459, %v418, 0.0
        %467 = vadd.xlane.f32.xlu0 %v466
        %v468 = vpop.xlane.xlu0 %467
        %v469 = vsel %vm459, %v419, 0.0
        %470 = vadd.xlane.f32.xlu0 %v469
        %v471 = vpop.xlane.xlu0 %470
        %v472 = vsel %vm459, %v420, 0.0
        %473 = vadd.xlane.f32.xlu0 %v472
        %v474 = vpop.xlane.xlu0 %473
        %v475 = vsel %vm459, %v421, 0.0
        %476 = vadd.xlane.f32.xlu0 %v475
        %v477 = vpop.xlane.xlu0 %476
        %v478 = vsel %vm459, %v422, 0.0
        %479 = vadd.xlane.f32.xlu0 %v478
        %v480 = vpop.xlane.xlu0 %479
        %v481 = vsel %vm459, %v423, 0.0
        %482 = vadd.xlane.f32.xlu0 %v481
        %v483 = vpop.xlane.xlu0 %482
        %v484 = vsel %vm459, %v424, 0.0
        %485 = vadd.xlane.f32.xlu0 %v484
        %v486 = vpop.xlane.xlu0 %485
        %v487 = vsel %vm459, %v425, 0.0
        %488 = vadd.xlane.f32.xlu0 %v487
        %v489 = vpop.xlane.xlu0 %488
        %v490 = vsel %vm459, %v426, 0.0
        %491 = vadd.xlane.f32.xlu0 %v490
        %v492 = vpop.xlane.xlu0 %491
        %v493 = vsel %vm459, %v427, 0.0
        %494 = vadd.xlane.f32.xlu0 %v493
        %v495 = vpop.xlane.xlu0 %494
        %v496 = vsel %vm459, %v428, 0.0
        %497 = vadd.xlane.f32.xlu0 %v496
        %v498 = vpop.xlane.xlu0 %497
        %v499 = vsel %vm459, %v429, 0.0
        %500 = vadd.xlane.f32.xlu0 %v499
        %v501 = vpop.xlane.xlu0 %500
        %v502 = vrcp.pop 16.0
        %v503 = vmul.f32 %v462, %v502
        %v504 = vmul.f32 %v465, %v502
        %v505 = vmul.f32 %v468, %v502
        %v506 = vmul.f32 %v471, %v502
        %v507 = vmul.f32 %v474, %v502
        %v508 = vmul.f32 %v477, %v502
        %v509 = vmul.f32 %v480, %v502
        %v510 = vmul.f32 %v483, %v502
        %v511 = vmul.f32 %v486, %v502
        %v512 = vmul.f32 %v489, %v502
        %v513 = vmul.f32 %v492, %v502
        %v514 = vmul.f32 %v495, %v502
        %v515 = vmul.f32 %v498, %v502
        %v516 = vmul.f32 %v501, %v502
        %v517 = vsub.f32 %v416, %v503
        %v518 = vsub.f32 %v417, %v504
        %v519 = vsub.f32 %v418, %v505
        %v520 = vsub.f32 %v419, %v506
        %v521 = vsub.f32 %v420, %v507
        %v522 = vsub.f32 %v421, %v508
        %v523 = vsub.f32 %v422, %v509
        %v524 = vsub.f32 %v423, %v510
        %v525 = vsub.f32 %v424, %v511
        %v526 = vsub.f32 %v425, %v512
        %v527 = vsub.f32 %v426, %v513
        %v528 = vsub.f32 %v427, %v514
        %v529 = vsub.f32 %v428, %v515
        %v530 = vsub.f32 %v429, %v516
        %v531 = vmul.f32 %v517, %v517
        %v532 = vmul.f32 %v518, %v518
        %v533 = vmul.f32 %v519, %v519
        %v534 = vmul.f32 %v520, %v520
        %v535 = vmul.f32 %v521, %v521
        %v536 = vmul.f32 %v522, %v522
        %v537 = vmul.f32 %v523, %v523
        %v538 = vmul.f32 %v524, %v524
        %v539 = vmul.f32 %v525, %v525
        %v540 = vmul.f32 %v526, %v526
        %v541 = vmul.f32 %v527, %v527
        %v542 = vmul.f32 %v528, %v528
        %v543 = vmul.f32 %v529, %v529
        %v544 = vmul.f32 %v530, %v530
        %v545 = vsel %vm459, %v531, 0.0
        %546 = vadd.xlane.f32.xlu0 %v545
        %v547 = vpop.xlane.xlu0 %546
        %v548 = vsel %vm459, %v532, 0.0
        %549 = vadd.xlane.f32.xlu0 %v548
        %v550 = vpop.xlane.xlu0 %549
        %v551 = vsel %vm459, %v533, 0.0
        %552 = vadd.xlane.f32.xlu0 %v551
        %v553 = vpop.xlane.xlu0 %552
        %v554 = vsel %vm459, %v534, 0.0
        %555 = vadd.xlane.f32.xlu0 %v554
        %v556 = vpop.xlane.xlu0 %555
        %v557 = vsel %vm459, %v535, 0.0
        %558 = vadd.xlane.f32.xlu0 %v557
        %v559 = vpop.xlane.xlu0 %558
        %v560 = vsel %vm459, %v536, 0.0
        %561 = vadd.xlane.f32.xlu0 %v560
        %v562 = vpop.xlane.xlu0 %561
        %v563 = vsel %vm459, %v537, 0.0
        %564 = vadd.xlane.f32.xlu0 %v563
        %v565 = vpop.xlane.xlu0 %564
        %v566 = vsel %vm459, %v538, 0.0
        %567 = vadd.xlane.f32.xlu0 %v566
        %v568 = vpop.xlane.xlu0 %567
        %v569 = vsel %vm459, %v539, 0.0
        %570 = vadd.xlane.f32.xlu0 %v569
        %v571 = vpop.xlane.xlu0 %570
        %v572 = vsel %vm459, %v540, 0.0
        %573 = vadd.xlane.f32.xlu0 %v572
        %v574 = vpop.xlane.xlu0 %573
        %v575 = vsel %vm459, %v541, 0.0
        %576 = vadd.xlane.f32.xlu0 %v575
        %v577 = vpop.xlane.xlu0 %576
        %v578 = vsel %vm459, %v542, 0.0
        %579 = vadd.xlane.f32.xlu0 %v578
        %v580 = vpop.xlane.xlu0 %579
        %v581 = vsel %vm459, %v543, 0.0
        %582 = vadd.xlane.f32.xlu0 %v581
        %v583 = vpop.xlane.xlu0 %582
        %v584 = vsel %vm459, %v544, 0.0
        %585 = vadd.xlane.f32.xlu0 %v584
        %v586 = vpop.xlane.xlu0 %585
        %v587 = vmul.f32 %v547, %v502
        %v588 = vmul.f32 %v550, %v502
        %v589 = vmul.f32 %v553, %v502
        %v590 = vmul.f32 %v556, %v502
        %v591 = vmul.f32 %v559, %v502
        %v592 = vmul.f32 %v562, %v502
        %v593 = vmul.f32 %v565, %v502
        %v594 = vmul.f32 %v568, %v502
        %v595 = vmul.f32 %v571, %v502
        %v596 = vmul.f32 %v574, %v502
        %v597 = vmul.f32 %v577, %v502
        %v598 = vmul.f32 %v580, %v502
        %v599 = vmul.f32 %v583, %v502
        %v600 = vmul.f32 %v586, %v502
        %v601 = vadd.f32 %v587, 1e-05
        %v602 = vadd.f32 %v588, 1e-05
        %v603 = vadd.f32 %v589, 1e-05
        %v604 = vadd.f32 %v590, 1e-05
        %v605 = vadd.f32 %v591, 1e-05
        %v606 = vadd.f32 %v592, 1e-05
        %v607 = vadd.f32 %v593, 1e-05
        %v608 = vadd.f32 %v594, 1e-05
        %v609 = vadd.f32 %v595, 1e-05
        %v610 = vadd.f32 %v596, 1e-05
        %v611 = vadd.f32 %v597, 1e-05
        %v612 = vadd.f32 %v598, 1e-05
        %v613 = vadd.f32 %v599, 1e-05
        %v614 = vadd.f32 %v600, 1e-05
        %v615 = vrsqrt.pop %v601
        %v616 = vmul.f32 %v601, %v615
        %vm617 = vcmp.eq.f32.partialorder %v601, inf
        %v618 = vsel %vm617, %v601, %v616
        %vm619 = vcmp.eq.f32.partialorder %v601, 0.0
        %v620 = vand.u32 %v601, 2147483648
        %v621 = vsel %vm619, %v620, %v618
        %v622 = vrsqrt.pop %v602
        %v623 = vmul.f32 %v602, %v622
        %vm624 = vcmp.eq.f32.partialorder %v602, inf
        %v625 = vsel %vm624, %v602, %v623
        %vm626 = vcmp.eq.f32.partialorder %v602, 0.0
        %v627 = vand.u32 %v602, 2147483648
        %v628 = vsel %vm626, %v627, %v625
        %v629 = vrsqrt.pop %v603
        %v630 = vmul.f32 %v603, %v629
        %vm631 = vcmp.eq.f32.partialorder %v603, inf
        %v632 = vsel %vm631, %v603, %v630
        %vm633 = vcmp.eq.f32.partialorder %v603, 0.0
        %v634 = vand.u32 %v603, 2147483648
        %v635 = vsel %vm633, %v634, %v632
        %v636 = vrsqrt.pop %v604
        %v637 = vmul.f32 %v604, %v636
        %vm638 = vcmp.eq.f32.partialorder %v604, inf
        %v639 = vsel %vm638, %v604, %v637
        %vm640 = vcmp.eq.f32.partialorder %v604, 0.0
        %v641 = vand.u32 %v604, 2147483648
        %v642 = vsel %vm640, %v641, %v639
        %v643 = vrsqrt.pop %v605
        %v644 = vmul.f32 %v605, %v643
        %vm645 = vcmp.eq.f32.partialorder %v605, inf
        %v646 = vsel %vm645, %v605, %v644
        %vm647 = vcmp.eq.f32.partialorder %v605, 0.0
        %v648 = vand.u32 %v605, 2147483648
        %v649 = vsel %vm647, %v648, %v646
        %v650 = vrsqrt.pop %v606
        %v651 = vmul.f32 %v606, %v650
        %vm652 = vcmp.eq.f32.partialorder %v606, inf
        %v653 = vsel %vm652, %v606, %v651
        %vm654 = vcmp.eq.f32.partialorder %v606, 0.0
        %v655 = vand.u32 %v606, 2147483648
        %v656 = vsel %vm654, %v655, %v653
        %v657 = vrsqrt.pop %v607
        %v658 = vmul.f32 %v607, %v657
        %vm659 = vcmp.eq.f32.partialorder %v607, inf
        %v660 = vsel %vm659, %v607, %v658
        %vm661 = vcmp.eq.f32.partialorder %v607, 0.0
        %v662 = vand.u32 %v607, 2147483648
        %v663 = vsel %vm661, %v662, %v660
        %v664 = vrsqrt.pop %v608
        %v665 = vmul.f32 %v608, %v664
        %vm666 = vcmp.eq.f32.partialorder %v608, inf
        %v667 = vsel %vm666, %v608, %v665
        %vm668 = vcmp.eq.f32.partialorder %v608, 0.0
        %v669 = vand.u32 %v608, 2147483648
        %v670 = vsel %vm668, %v669, %v667
        %v671 = vrsqrt.pop %v609
        %v672 = vmul.f32 %v609, %v671
        %vm673 = vcmp.eq.f32.partialorder %v609, inf
        %v674 = vsel %vm673, %v609, %v672
        %vm675 = vcmp.eq.f32.partialorder %v609, 0.0
        %v676 = vand.u32 %v609, 2147483648
        %v677 = vsel %vm675, %v676, %v674
        %v678 = vrsqrt.pop %v610
        %v679 = vmul.f32 %v610, %v678
        %vm680 = vcmp.eq.f32.partialorder %v610, inf
        %v681 = vsel %vm680, %v610, %v679
        %vm682 = vcmp.eq.f32.partialorder %v610, 0.0
        %v683 = vand.u32 %v610, 2147483648
        %v684 = vsel %vm682, %v683, %v681
        %v685 = vrsqrt.pop %v611
        %v686 = vmul.f32 %v611, %v685
        %vm687 = vcmp.eq.f32.partialorder %v611, inf
        %v688 = vsel %vm687, %v611, %v686
        %vm689 = vcmp.eq.f32.partialorder %v611, 0.0
        %v690 = vand.u32 %v611, 2147483648
        %v691 = vsel %vm689, %v690, %v688
        %v692 = vrsqrt.pop %v612
        %v693 = vmul.f32 %v612, %v692
        %vm694 = vcmp.eq.f32.partialorder %v612, inf
        %v695 = vsel %vm694, %v612, %v693
        %vm696 = vcmp.eq.f32.partialorder %v612, 0.0
        %v697 = vand.u32 %v612, 2147483648
        %v698 = vsel %vm696, %v697, %v695
        %v699 = vrsqrt.pop %v613
        %v700 = vmul.f32 %v613, %v699
        %vm701 = vcmp.eq.f32.partialorder %v613, inf
        %v702 = vsel %vm701, %v613, %v700
        %vm703 = vcmp.eq.f32.partialorder %v613, 0.0
        %v704 = vand.u32 %v613, 2147483648
        %v705 = vsel %vm703, %v704, %v702
        %v706 = vrsqrt.pop %v614
        %v707 = vmul.f32 %v614, %v706
        %vm708 = vcmp.eq.f32.partialorder %v614, inf
        %v709 = vsel %vm708, %v614, %v707
        %vm710 = vcmp.eq.f32.partialorder %v614, 0.0
        %v711 = vand.u32 %v614, 2147483648
        %v712 = vsel %vm710, %v711, %v709
        %v713 = vrsqrt.pop %v601
        %v714 = vrsqrt.pop %v602
        %v715 = vrsqrt.pop %v603
        %v716 = vrsqrt.pop %v604
        %v717 = vrsqrt.pop %v605
        %v718 = vrsqrt.pop %v606
        %v719 = vrsqrt.pop %v607
        %v720 = vrsqrt.pop %v608
        %v721 = vrsqrt.pop %v609
        %v722 = vrsqrt.pop %v610
        %v723 = vrsqrt.pop %v611
        %v724 = vrsqrt.pop %v612
        %v725 = vrsqrt.pop %v613
        %v726 = vrsqrt.pop %v614
        %v727 = vmul.f32 %v517, %v713
        %v728 = vmul.f32 %v518, %v714
        %v729 = vmul.f32 %v519, %v715
        %v730 = vmul.f32 %v520, %v716
        %v731 = vmul.f32 %v521, %v717
        %v732 = vmul.f32 %v522, %v718
        %v733 = vmul.f32 %v523, %v719
        %v734 = vmul.f32 %v524, %v720
        %v735 = vmul.f32 %v525, %v721
        %v736 = vmul.f32 %v526, %v722
        %v737 = vmul.f32 %v527, %v723
        %v738 = vmul.f32 %v528, %v724
        %v739 = vmul.f32 %v529, %v725
        %v740 = vmul.f32 %v530, %v726
        %v741 = vsub.f32 %v727, %v416
        %v742 = vsub.f32 %v728, %v417
        %v743 = vsub.f32 %v729, %v418
        %v744 = vsub.f32 %v730, %v419
        %v745 = vsub.f32 %v731, %v420
        %v746 = vsub.f32 %v732, %v421
        %v747 = vsub.f32 %v733, %v422
        %v748 = vsub.f32 %v734, %v423
        %v749 = vsub.f32 %v735, %v424
        %v750 = vsub.f32 %v736, %v425
        %v751 = vsub.f32 %v737, %v426
        %v752 = vsub.f32 %v738, %v427
        %v753 = vsub.f32 %v739, %v428
        %v754 = vsub.f32 %v740, %v429
        %756 = vset.pattern.permute.xlu0 0
        %757 = vperm.xlu0 %756, %v430
        %v758 = vpop.permute.xlu0 %757
        %761 = vset.pattern.permute.xlu0 0
        %762 = vperm.xlu0 %761, %v431
        %v763 = vpop.permute.xlu0 %762
        %766 = vset.pattern.permute.xlu0 0
        %767 = vperm.xlu0 %766, %v432
        %v768 = vpop.permute.xlu0 %767
        %771 = vset.pattern.permute.xlu0 0
        %772 = vperm.xlu0 %771, %v433
        %v773 = vpop.permute.xlu0 %772
        %776 = vset.pattern.permute.xlu0 0
        %777 = vperm.xlu0 %776, %v434
        %v778 = vpop.permute.xlu0 %777
        %781 = vset.pattern.permute.xlu0 0
        %782 = vperm.xlu0 %781, %v435
        %v783 = vpop.permute.xlu0 %782
        %786 = vset.pattern.permute.xlu0 0
        %787 = vperm.xlu0 %786, %v436
        %v788 = vpop.permute.xlu0 %787
        %791 = vset.pattern.permute.xlu0 0
        %792 = vperm.xlu0 %791, %v437
        %v793 = vpop.permute.xlu0 %792
        %796 = vset.pattern.permute.xlu0 0
        %797 = vperm.xlu0 %796, %v438
        %v798 = vpop.permute.xlu0 %797
        %801 = vset.pattern.permute.xlu0 0
        %802 = vperm.xlu0 %801, %v439
        %v803 = vpop.permute.xlu0 %802
        %806 = vset.pattern.permute.xlu0 0
        %807 = vperm.xlu0 %806, %v440
        %v808 = vpop.permute.xlu0 %807
        %811 = vset.pattern.permute.xlu0 0
        %812 = vperm.xlu0 %811, %v441
        %v813 = vpop.permute.xlu0 %812
        %816 = vset.pattern.permute.xlu0 0
        %817 = vperm.xlu0 %816, %v442
        %v818 = vpop.permute.xlu0 %817
        %821 = vset.pattern.permute.xlu0 0
        %822 = vperm.xlu0 %821, %v443
        %v823 = vpop.permute.xlu0 %822
        %v825 = vmul.f32 %v758, %v741
        %v826 = vmul.f32 %v763, %v742
        %v827 = vmul.f32 %v768, %v743
        %v828 = vmul.f32 %v773, %v744
        %v829 = vmul.f32 %v778, %v745
        %v830 = vmul.f32 %v783, %v746
        %v831 = vmul.f32 %v788, %v747
        %v832 = vmul.f32 %v793, %v748
        %v833 = vmul.f32 %v798, %v749
        %v834 = vmul.f32 %v803, %v750
        %v835 = vmul.f32 %v808, %v751
        %v836 = vmul.f32 %v813, %v752
        %v837 = vmul.f32 %v818, %v753
        %v838 = vmul.f32 %v823, %v754
        %v839 = vadd.f32 %v416, %v825
        %v840 = vadd.f32 %v417, %v826
        %v841 = vadd.f32 %v418, %v827
        %v842 = vadd.f32 %v419, %v828
        %v843 = vadd.f32 %v420, %v829
        %v844 = vadd.f32 %v421, %v830
        %v845 = vadd.f32 %v422, %v831
        %v846 = vadd.f32 %v423, %v832
        %v847 = vadd.f32 %v424, %v833
        %v848 = vadd.f32 %v425, %v834
        %v849 = vadd.f32 %v426, %v835
        %v850 = vadd.f32 %v427, %v836
        %v851 = vadd.f32 %v428, %v837
        %v852 = vadd.f32 %v429, %v838
        %v853 = vpack.c.bf16 %v840, %v839
        %v854 = vpack.c.bf16 %v842, %v841
        %v855 = vpack.c.bf16 %v844, %v843
        %v856 = vpack.c.bf16 %v846, %v845
        %v857 = vpack.c.bf16 %v848, %v847
        %v858 = vpack.c.bf16 %v850, %v849
        %v859 = vpack.c.bf16 %v852, %v851
        %v860 = vld [vmem:[%s3] sm:$0xf]
        %v861 = vld [vmem:[%s3 + $0x4] sm:$0xf]
        %v862 = vlaneseq
        %v863 = vshrl.u32 %v862, 7
        %v864 = vsub.s32 0, %v863
        %v865 = vrot.slane %v458, %v864
        %v868 = vunpack.c.l.b16 %v860
        %v869 = vunpack.c.l.b16 %v861
        %v870 = vpack.c.b16 %v869, %v868
        %v873 = vsel %vm459, %v853, 0
        %v876 = vsel %vm459, %v854, 0
        %v879 = vsel %vm459, %v855, 0
        %v882 = vsel %vm459, %v856, 0
        %v885 = vsel %vm459, %v857, 0
        %v888 = vsel %vm459, %v858, 0
        %v891 = vsel %vm459, %v859, 0
        %893 = vmatprep.subr.bf16.mxu0 0
        %894 = vmatpush1.bf16.msra.mxu0 %v870
        %895 = vmatprep.subr.bf16.mxu0 0
        %896 = vmatpush1.bf16.msra.mxu0 0
        %897 = vmatprep.subr.bf16.mxu0 0
        %898 = vmatpush1.bf16.msra.mxu0 0
        %899 = vmatprep.subr.bf16.mxu0 0
        %900 = vmatpush1.bf16.msra.mxu0 0
        %901 = vmatprep.subr.bf16.mxu0 0
        %902 = vmatpush1.bf16.msra.mxu0 0
        %903 = vmatprep.subr.bf16.mxu0 0
        %904 = vmatpush1.bf16.msra.mxu0 0
        %905 = vmatprep.subr.bf16.mxu0 0
        %906 = vmatpush1.bf16.msra.mxu0 0
        %907 = vmatprep.subr.bf16.mxu0 0
        %908 = vmatpush1.bf16.msra.mxu0 0
        %909 = vmatprep.subr.bf16.mxu0 0
        %910 = vmatpush1.bf16.msra.mxu0 0
        %911 = vmatprep.subr.bf16.mxu0 0
        %912 = vmatpush1.bf16.msra.mxu0 0
        %913 = vmatprep.subr.bf16.mxu0 0
        %914 = vmatpush1.bf16.msra.mxu0 0
        %915 = vmatprep.subr.bf16.mxu0 0
        %916 = vmatpush1.bf16.msra.mxu0 0
        %917 = vmatprep.subr.bf16.mxu0 0
        %918 = vmatpush1.bf16.msra.mxu0 0
        %919 = vmatprep.subr.bf16.mxu0 0
        %920 = vmatpush1.bf16.msra.mxu0 0
        %921 = vmatprep.subr.bf16.mxu0 0
        %922 = vmatpush1.bf16.msra.mxu0 0
        %923 = vmatprep.subr.bf16.mxu0 0
        %924 = vmatpush1.bf16.msra.mxu0 0
        %925 = vmatprep.mubr.bf16.mxu0 0
        %926 = vmatmul.mubr.bf16.gmra.mrb[0].mxu0 %v873
        %v927 = vpop.f32.mrb[0].mxu0
        %v928 = vadd.f32 %v865, %v927
        %v929 = vpop.f32.mrb[0].mxu0
        %v930 = vpop.f32.mrb[0].mxu0
        %v931 = vadd.f32 %v865, %v930
        %v932 = vpop.f32.mrb[0].mxu0
        %933 = vmatprep.mubr.bf16.mxu0 0
        %934 = vmatmul.mubr.bf16.gmra.mrb[0].mxu0 %v876
        %v935 = vpop.f32.mrb[0].mxu0
        %v936 = vadd.f32 %v865, %v935
        %v937 = vpop.f32.mrb[0].mxu0
        %v938 = vpop.f32.mrb[0].mxu0
        %v939 = vadd.f32 %v865, %v938
        %v940 = vpop.f32.mrb[0].mxu0
        %941 = vmatprep.mubr.bf16.mxu0 0
        %942 = vmatmul.mubr.bf16.gmra.mrb[0].mxu0 %v879
        %v943 = vpop.f32.mrb[0].mxu0
        %v944 = vadd.f32 %v865, %v943
        %v945 = vpop.f32.mrb[0].mxu0
        %v946 = vpop.f32.mrb[0].mxu0
        %v947 = vadd.f32 %v865, %v946
        %v948 = vpop.f32.mrb[0].mxu0
        %949 = vmatprep.mubr.bf16.mxu0 0
        %950 = vmatmul.mubr.bf16.gmra.mrb[0].mxu0 %v882
        %v951 = vpop.f32.mrb[0].mxu0
        %v952 = vadd.f32 %v865, %v951
        %v953 = vpop.f32.mrb[0].mxu0
        %v954 = vpop.f32.mrb[0].mxu0
        %v955 = vadd.f32 %v865, %v954
        %v956 = vpop.f32.mrb[0].mxu0
        %957 = vmatprep.mubr.bf16.mxu0 0
        %958 = vmatmul.mubr.bf16.gmra.mrb[0].mxu0 %v885
        %v959 = vpop.f32.mrb[0].mxu0
        %v960 = vadd.f32 %v865, %v959
        %v961 = vpop.f32.mrb[0].mxu0
        %v962 = vpop.f32.mrb[0].mxu0
        %v963 = vadd.f32 %v865, %v962
        %v964 = vpop.f32.mrb[0].mxu0
        %965 = vmatprep.mubr.bf16.mxu0 0
        %966 = vmatmul.mubr.bf16.gmra.mrb[0].mxu0 %v888
        %v967 = vpop.f32.mrb[0].mxu0
        %v968 = vadd.f32 %v865, %v967
        %v969 = vpop.f32.mrb[0].mxu0
        %v970 = vpop.f32.mrb[0].mxu0
        %v971 = vadd.f32 %v865, %v970
        %v972 = vpop.f32.mrb[0].mxu0
        %973 = vmatprep.mubr.bf16.mxu0 0
        %974 = vmatmul.mubr.bf16.gmra.mrb[0].mxu0 %v891
        %v975 = vpop.f32.mrb[0].mxu0
        %v976 = vadd.f32 %v865, %v975
        %v977 = vpop.f32.mrb[0].mxu0
        %v978 = vpop.f32.mrb[0].mxu0
        %v979 = vadd.f32 %v865, %v978
        %v980 = vpop.f32.mrb[0].mxu0
        %981 = vdwg.mxu0
        %v982 = vld [vmem:[%s10] sm:$0xff]
        %v983 = vpack.c.bf16 %v931, %v928
        %v984 = vpack.c.bf16 %v939, %v936
        %v985 = vpack.c.bf16 %v947, %v944
        %v986 = vpack.c.bf16 %v955, %v952
        %v987 = vpack.c.bf16 %v963, %v960
        %v988 = vpack.c.bf16 %v971, %v968
        %v989 = vpack.c.bf16 %v979, %v976
        %v990 = vld [vmem:[%s4] sm:$0xf]
        %v991 = vld [vmem:[%s4 + $0x4] sm:$0xf]
        %v992 = vld [vmem:[%s4 + $0x8] sm:$0xf]
        %v993 = vld [vmem:[%s4 + $0xc] sm:$0xf]
        %v994 = vlaneseq
        %v995 = vshrl.u32 %v994, 7
        %v996 = vsub.s32 0, %v995
        %v997 = vrot.slane %v982, %v996
        %v1002 = vunpack.c.l.b16 %v990
        %v1003 = vunpack.c.l.b16 %v991
        %v1004 = vunpack.c.l.b16 %v992
        %v1005 = vunpack.c.l.b16 %v993
        %v1006 = vpack.c.b16 %v1003, %v1002
        %v1007 = vpack.c.b16 %v1005, %v1004
        %vm1010 = vcmask 261120
        %v1012 = vsel %vm1010, %v983, 0
        %v1015 = vsel %vm1010, %v984, 0
        %v1018 = vsel %vm1010, %v985, 0
        %v1021 = vsel %vm1010, %v986, 0
        %v1024 = vsel %vm1010, %v987, 0
        %v1027 = vsel %vm1010, %v988, 0
        %v1030 = vsel %vm1010, %v989, 0
        %1032 = vmatprep.subr.bf16.mxu0 0
        %1033 = vmatpush1.bf16.msra.mxu0 %v1006
        %1034 = vmatprep.subr.bf16.mxu0 0
        %1035 = vmatpush1.bf16.msra.mxu0 %v1007
        %1036 = vmatprep.subr.bf16.mxu0 0
        %1037 = vmatpush1.bf16.msra.mxu0 0
        %1038 = vmatprep.subr.bf16.mxu0 0
        %1039 = vmatpush1.bf16.msra.mxu0 0
        %1040 = vmatprep.subr.bf16.mxu0 0
        %1041 = vmatpush1.bf16.msra.mxu0 0
        %1042 = vmatprep.subr.bf16.mxu0 0
        %1043 = vmatpush1.bf16.msra.mxu0 0
        %1044 = vmatprep.subr.bf16.mxu0 0
        %1045 = vmatpush1.bf16.msra.mxu0 0
        %1046 = vmatprep.subr.bf16.mxu0 0
        %1047 = vmatpush1.bf16.msra.mxu0 0
        %1048 = vmatprep.subr.bf16.mxu0 0
        %1049 = vmatpush1.bf16.msra.mxu0 0
        %1050 = vmatprep.subr.bf16.mxu0 0
        %1051 = vmatpush1.bf16.msra.mxu0 0
        %1052 = vmatprep.subr.bf16.mxu0 0
        %1053 = vmatpush1.bf16.msra.mxu0 0
        %1054 = vmatprep.subr.bf16.mxu0 0
        %1055 = vmatpush1.bf16.msra.mxu0 0
        %1056 = vmatprep.subr.bf16.mxu0 0
        %1057 = vmatpush1.bf16.msra.mxu0 0
        %1058 = vmatprep.subr.bf16.mxu0 0
        %1059 = vmatpush1.bf16.msra.mxu0 0
        %1060 = vmatprep.subr.bf16.mxu0 0
        %1061 = vmatpush1.bf16.msra.mxu0 0
        %1062 = vmatprep.subr.bf16.mxu0 0
        %1063 = vmatpush1.bf16.msra.mxu0 0
        %1064 = vmatprep.mubr.bf16.mxu0 0
        %1065 = vmatmul.mubr.bf16.gmra.mrb[0].mxu0 %v1012
        %v1066 = vpop.f32.mrb[0].mxu0
        %v1067 = vadd.f32 %v997, %v1066
        %v1068 = vpop.f32.mrb[0].mxu0
        %v1069 = vpop.f32.mrb[0].mxu0
        %v1070 = vadd.f32 %v997, %v1069
        %v1071 = vpop.f32.mrb[0].mxu0
        %1072 = vmatprep.mubr.bf16.mxu0 0
        %1073 = vmatmul.mubr.bf16.gmra.mrb[0].mxu0 %v1015
        %v1074 = vpop.f32.mrb[0].mxu0
        %v1075 = vadd.f32 %v997, %v1074
        %v1076 = vpop.f32.mrb[0].mxu0
        %v1077 = vpop.f32.mrb[0].mxu0
        %v1078 = vadd.f32 %v997, %v1077
        %v1079 = vpop.f32.mrb[0].mxu0
        %1080 = vmatprep.mubr.bf16.mxu0 0
        %1081 = vmatmul.mubr.bf16.gmra.mrb[0].mxu0 %v1018
        %v1082 = vpop.f32.mrb[0].mxu0
        %v1083 = vadd.f32 %v997, %v1082
        %v1084 = vpop.f32.mrb[0].mxu0
        %v1085 = vpop.f32.mrb[0].mxu0
        %v1086 = vadd.f32 %v997, %v1085
        %v1087 = vpop.f32.mrb[0].mxu0
        %1088 = vmatprep.mubr.bf16.mxu0 0
        %1089 = vmatmul.mubr.bf16.gmra.mrb[0].mxu0 %v1021
        %v1090 = vpop.f32.mrb[0].mxu0
        %v1091 = vadd.f32 %v997, %v1090
        %v1092 = vpop.f32.mrb[0].mxu0
        %v1093 = vpop.f32.mrb[0].mxu0
        %v1094 = vadd.f32 %v997, %v1093
        %v1095 = vpop.f32.mrb[0].mxu0
        %1096 = vmatprep.mubr.bf16.mxu0 0
        %1097 = vmatmul.mubr.bf16.gmra.mrb[0].mxu0 %v1024
        %v1098 = vpop.f32.mrb[0].mxu0
        %v1099 = vadd.f32 %v997, %v1098
        %v1100 = vpop.f32.mrb[0].mxu0
        %v1101 = vpop.f32.mrb[0].mxu0
        %v1102 = vadd.f32 %v997, %v1101
        %v1103 = vpop.f32.mrb[0].mxu0
        %1104 = vmatprep.mubr.bf16.mxu0 0
        %1105 = vmatmul.mubr.bf16.gmra.mrb[0].mxu0 %v1027
        %v1106 = vpop.f32.mrb[0].mxu0
        %v1107 = vadd.f32 %v997, %v1106
        %v1108 = vpop.f32.mrb[0].mxu0
        %v1109 = vpop.f32.mrb[0].mxu0
        %v1110 = vadd.f32 %v997, %v1109
        %v1111 = vpop.f32.mrb[0].mxu0
        %1112 = vmatprep.mubr.bf16.mxu0 0
        %1113 = vmatmul.mubr.bf16.gmra.mrb[0].mxu0 %v1030
        %v1114 = vpop.f32.mrb[0].mxu0
        %v1115 = vadd.f32 %v997, %v1114
        %v1116 = vpop.f32.mrb[0].mxu0
        %v1117 = vpop.f32.mrb[0].mxu0
        %v1118 = vadd.f32 %v997, %v1117
        %v1119 = vpop.f32.mrb[0].mxu0
        %1120 = vdwg.mxu0
        %v1121 = vpack.c.bf16 %v1070, %v1067
        %v1122 = vpack.c.bf16 %v1078, %v1075
        %v1123 = vpack.c.bf16 %v1086, %v1083
        %v1124 = vpack.c.bf16 %v1094, %v1091
        %v1125 = vpack.c.bf16 %v1102, %v1099
        %v1126 = vpack.c.bf16 %v1110, %v1107
        %v1127 = vpack.c.bf16 %v1118, %v1115
        %1135 = vrot.lane.b32.xlu0 %v1121, 96
        %v1136 = vpop.permute.xlu0 %1135
        %1137 = vrot.lane.b32.xlu0 %v1122, 96
        %v1138 = vpop.permute.xlu0 %1137
        %1139 = vrot.lane.b32.xlu0 %v1123, 96
        %v1140 = vpop.permute.xlu0 %1139
        %1141 = vrot.lane.b32.xlu0 %v1124, 96
        %v1142 = vpop.permute.xlu0 %1141
        %1143 = vrot.lane.b32.xlu0 %v1125, 96
        %v1144 = vpop.permute.xlu0 %1143
        %1145 = vrot.lane.b32.xlu0 %v1126, 96
        %v1146 = vpop.permute.xlu0 %1145
        %1147 = vrot.lane.b32.xlu0 %v1127, 96
        %v1148 = vpop.permute.xlu0 %1147
        %vm1149 = vcmask 64512
        %v1151 = vsel %vm1149, %v1121, 0
        %v1154 = vsel %vm1149, %v1122, 0
        %v1157 = vsel %vm1149, %v1123, 0
        %v1160 = vsel %vm1149, %v1124, 0
        %v1163 = vsel %vm1149, %v1125, 0
        %v1166 = vsel %vm1149, %v1126, 0
        %v1169 = vsel %vm1149, %v1127, 0
        %v1172 = vsel %vm1149, %v1136, 0
        %v1175 = vsel %vm1149, %v1138, 0
        %v1178 = vsel %vm1149, %v1140, 0
        %v1181 = vsel %vm1149, %v1142, 0
        %v1184 = vsel %vm1149, %v1144, 0
        %v1187 = vsel %vm1149, %v1146, 0
        %v1190 = vsel %vm1149, %v1148, 0
        %1192 = vmatprep.subr.bf16.mxu0 0
        %1193 = vmatpush1.bf16.xpose.msra.mxu0 %v1172
        %1194 = vmatprep.subr.bf16.mxu0 0
        %1195 = vmatpush1.bf16.xpose.msra.mxu0 %v1175
        %1196 = vmatprep.subr.bf16.mxu0 0
        %1197 = vmatpush1.bf16.xpose.msra.mxu0 %v1178
        %1198 = vmatprep.subr.bf16.mxu0 0
        %1199 = vmatpush1.bf16.xpose.msra.mxu0 %v1181
        %1200 = vmatprep.subr.bf16.mxu0 0
        %1201 = vmatpush1.bf16.xpose.msra.mxu0 %v1184
        %1202 = vmatprep.subr.bf16.mxu0 0
        %1203 = vmatpush1.bf16.xpose.msra.mxu0 %v1187
        %1204 = vmatprep.subr.bf16.mxu0 0
        %1205 = vmatpush1.bf16.xpose.msra.mxu0 %v1190
        %1206 = vmatprep.subr.bf16.mxu0 0
        %1207 = vmatpush1.bf16.xpose.msra.mxu0 0
        %1208 = vmatprep.subr.bf16.mxu0 0
        %1209 = vmatpush1.bf16.xpose.msra.mxu0 0
        %1210 = vmatprep.subr.bf16.mxu0 0
        %1211 = vmatpush1.bf16.xpose.msra.mxu0 0
        %1212 = vmatprep.subr.bf16.mxu0 0
        %1213 = vmatpush1.bf16.xpose.msra.mxu0 0
        %1214 = vmatprep.subr.bf16.mxu0 0
        %1215 = vmatpush1.bf16.xpose.msra.mxu0 0
        %1216 = vmatprep.subr.bf16.mxu0 0
        %1217 = vmatpush1.bf16.xpose.msra.mxu0 0
        %1218 = vmatprep.subr.bf16.mxu0 0
        %1219 = vmatpush1.bf16.xpose.msra.mxu0 0
        %1220 = vmatprep.subr.bf16.mxu0 0
        %1221 = vmatpush1.bf16.xpose.msra.mxu0 0
        %1222 = vmatprep.subr.bf16.mxu0 0
        %1223 = vmatpush1.bf16.xpose.msra.mxu0 0
        %1224 = vmatprep.mubr.bf16.mxu0 0
        %1225 = vmatmul.mubr.bf16.gmra.mrb[0].mxu0 %v1151
        %v1226 = vpop.f32.mrb[0].mxu0
        %v1227 = vadd.f32 0.0, %v1226
        %v1228 = vpop.f32.mrb[0].mxu0
        %v1229 = vpop.f32.mrb[0].mxu0
        %v1230 = vadd.f32 0.0, %v1229
        %v1231 = vpop.f32.mrb[0].mxu0
        %1232 = vmatprep.mubr.bf16.mxu0 0
        %1233 = vmatmul.mubr.bf16.gmra.mrb[0].mxu0 %v1154
        %v1234 = vpop.f32.mrb[0].mxu0
        %v1235 = vadd.f32 0.0, %v1234
        %v1236 = vpop.f32.mrb[0].mxu0
        %v1237 = vpop.f32.mrb[0].mxu0
        %v1238 = vadd.f32 0.0, %v1237
        %v1239 = vpop.f32.mrb[0].mxu0
        %1240 = vmatprep.mubr.bf16.mxu0 0
        %1241 = vmatmul.mubr.bf16.gmra.mrb[0].mxu0 %v1157
        %v1242 = vpop.f32.mrb[0].mxu0
        %v1243 = vadd.f32 0.0, %v1242
        %v1244 = vpop.f32.mrb[0].mxu0
        %v1245 = vpop.f32.mrb[0].mxu0
        %v1246 = vadd.f32 0.0, %v1245
        %v1247 = vpop.f32.mrb[0].mxu0
        %1248 = vmatprep.mubr.bf16.mxu0 0
        %1249 = vmatmul.mubr.bf16.gmra.mrb[0].mxu0 %v1160
        %v1250 = vpop.f32.mrb[0].mxu0
        %v1251 = vadd.f32 0.0, %v1250
        %v1252 = vpop.f32.mrb[0].mxu0
        %v1253 = vpop.f32.mrb[0].mxu0
        %v1254 = vadd.f32 0.0, %v1253
        %v1255 = vpop.f32.mrb[0].mxu0
        %1256 = vmatprep.mubr.bf16.mxu0 0
        %1257 = vmatmul.mubr.bf16.gmra.mrb[0].mxu0 %v1163
        %v1258 = vpop.f32.mrb[0].mxu0
        %v1259 = vadd.f32 0.0, %v1258
        %v1260 = vpop.f32.mrb[0].mxu0
        %v1261 = vpop.f32.mrb[0].mxu0
        %v1262 = vadd.f32 0.0, %v1261
        %v1263 = vpop.f32.mrb[0].mxu0
        %1264 = vmatprep.mubr.bf16.mxu0 0
        %1265 = vmatmul.mubr.bf16.gmra.mrb[0].mxu0 %v1166
        %v1266 = vpop.f32.mrb[0].mxu0
        %v1267 = vadd.f32 0.0, %v1266
        %v1268 = vpop.f32.mrb[0].mxu0
        %v1269 = vpop.f32.mrb[0].mxu0
        %v1270 = vadd.f32 0.0, %v1269
        %v1271 = vpop.f32.mrb[0].mxu0
        %1272 = vmatprep.mubr.bf16.mxu0 0
        %1273 = vmatmul.mubr.bf16.gmra.mrb[0].mxu0 %v1169
        %v1274 = vpop.f32.mrb[0].mxu0
        %v1275 = vadd.f32 0.0, %v1274
        %v1276 = vpop.f32.mrb[0].mxu0
        %v1277 = vpop.f32.mrb[0].mxu0
        %v1278 = vadd.f32 0.0, %v1277
        %v1279 = vpop.f32.mrb[0].mxu0
        %1280 = vdwg.mxu0
        %v1281 = vmul.f32 %v1227, 0.35355338
        %v1282 = vmul.f32 %v1230, 0.35355338
        %v1283 = vmul.f32 %v1235, 0.35355338
        %v1284 = vmul.f32 %v1238, 0.35355338
        %v1285 = vmul.f32 %v1243, 0.35355338
        %v1286 = vmul.f32 %v1246, 0.35355338
        %v1287 = vmul.f32 %v1251, 0.35355338
        %v1288 = vmul.f32 %v1254, 0.35355338
        %v1289 = vmul.f32 %v1259, 0.35355338
        %v1290 = vmul.f32 %v1262, 0.35355338
        %v1291 = vmul.f32 %v1267, 0.35355338
        %v1292 = vmul.f32 %v1270, 0.35355338
        %v1293 = vmul.f32 %v1275, 0.35355338
        %v1294 = vmul.f32 %v1278, 0.35355338
        %v1295 = vadd.f32 %v1281, %v444
        %v1296 = vadd.f32 %v1282, %v445
        %v1297 = vadd.f32 %v1283, %v446
        %v1298 = vadd.f32 %v1284, %v447
        %v1299 = vadd.f32 %v1285, %v448
        %v1300 = vadd.f32 %v1286, %v449
        %v1301 = vadd.f32 %v1287, %v450
        %v1302 = vadd.f32 %v1288, %v451
        %v1303 = vadd.f32 %v1289, %v452
        %v1304 = vadd.f32 %v1290, %v453
        %v1305 = vadd.f32 %v1291, %v454
        %v1306 = vadd.f32 %v1292, %v455
        %v1307 = vadd.f32 %v1293, %v456
        %v1308 = vadd.f32 %v1294, %v457
        %vm1309 = vcmask 916480
        %v1310 = vsel %vm1309, %v1295, -inf
        %1311 = vmax.xlane.f32.xlu0 %v1310
        %v1312 = vpop.xlane.xlu0 %1311
        %v1313 = vsel %vm1309, %v1296, -inf
        %1314 = vmax.xlane.f32.xlu0 %v1313
        %v1315 = vpop.xlane.xlu0 %1314
        %v1316 = vsel %vm1309, %v1297, -inf
        %1317 = vmax.xlane.f32.xlu0 %v1316
        %v1318 = vpop.xlane.xlu0 %1317
        %v1319 = vsel %vm1309, %v1298, -inf
        %1320 = vmax.xlane.f32.xlu0 %v1319
        %v1321 = vpop.xlane.xlu0 %1320
        %v1322 = vsel %vm1309, %v1299, -inf
        %1323 = vmax.xlane.f32.xlu0 %v1322
        %v1324 = vpop.xlane.xlu0 %1323
        %v1325 = vsel %vm1309, %v1300, -inf
        %1326 = vmax.xlane.f32.xlu0 %v1325
        %v1327 = vpop.xlane.xlu0 %1326
        %v1328 = vsel %vm1309, %v1301, -inf
        %1329 = vmax.xlane.f32.xlu0 %v1328
        %v1330 = vpop.xlane.xlu0 %1329
        %v1331 = vsel %vm1309, %v1302, -inf
        %1332 = vmax.xlane.f32.xlu0 %v1331
        %v1333 = vpop.xlane.xlu0 %1332
        %v1334 = vsel %vm1309, %v1303, -inf
        %1335 = vmax.xlane.f32.xlu0 %v1334
        %v1336 = vpop.xlane.xlu0 %1335
        %v1337 = vsel %vm1309, %v1304, -inf
        %1338 = vmax.xlane.f32.xlu0 %v1337
        %v1339 = vpop.xlane.xlu0 %1338
        %v1340 = vsel %vm1309, %v1305, -inf
        %1341 = vmax.xlane.f32.xlu0 %v1340
        %v1342 = vpop.xlane.xlu0 %1341
        %v1343 = vsel %vm1309, %v1306, -inf
        %1344 = vmax.xlane.f32.xlu0 %v1343
        %v1345 = vpop.xlane.xlu0 %1344
        %v1346 = vsel %vm1309, %v1307, -inf
        %1347 = vmax.xlane.f32.xlu0 %v1346
        %v1348 = vpop.xlane.xlu0 %1347
        %v1349 = vsel %vm1309, %v1308, -inf
        %1350 = vmax.xlane.f32.xlu0 %v1349
        %v1351 = vpop.xlane.xlu0 %1350
        %v1352 = vsub.f32 %v1295, %v1312
        %v1353 = vsub.f32 %v1296, %v1315
        %v1354 = vsub.f32 %v1297, %v1318
        %v1355 = vsub.f32 %v1298, %v1321
        %v1356 = vsub.f32 %v1299, %v1324
        %v1357 = vsub.f32 %v1300, %v1327
        %v1358 = vsub.f32 %v1301, %v1330
        %v1359 = vsub.f32 %v1302, %v1333
        %v1360 = vsub.f32 %v1303, %v1336
        %v1361 = vsub.f32 %v1304, %v1339
        %v1362 = vsub.f32 %v1305, %v1342
        %v1363 = vsub.f32 %v1306, %v1345
        %v1364 = vsub.f32 %v1307, %v1348
        %v1365 = vsub.f32 %v1308, %v1351
        %v1366 = vmul.f32 %v1352, 1.442695
        %v1367 = vpow.pop %v1366
        %v1368 = vmul.f32 %v1353, 1.442695
        %v1369 = vpow.pop %v1368
        %v1370 = vmul.f32 %v1354, 1.442695
        %v1371 = vpow.pop %v1370
        %v1372 = vmul.f32 %v1355, 1.442695
        %v1373 = vpow.pop %v1372
        %v1374 = vmul.f32 %v1356, 1.442695
        %v1375 = vpow.pop %v1374
        %v1376 = vmul.f32 %v1357, 1.442695
        %v1377 = vpow.pop %v1376
        %v1378 = vmul.f32 %v1358, 1.442695
        %v1379 = vpow.pop %v1378
        %v1380 = vmul.f32 %v1359, 1.442695
        %v1381 = vpow.pop %v1380
        %v1382 = vmul.f32 %v1360, 1.442695
        %v1383 = vpow.pop %v1382
        %v1384 = vmul.f32 %v1361, 1.442695
        %v1385 = vpow.pop %v1384
        %v1386 = vmul.f32 %v1362, 1.442695
        %v1387 = vpow.pop %v1386
        %v1388 = vmul.f32 %v1363, 1.442695
        %v1389 = vpow.pop %v1388
        %v1390 = vmul.f32 %v1364, 1.442695
        %v1391 = vpow.pop %v1390
        %v1392 = vmul.f32 %v1365, 1.442695
        %v1393 = vpow.pop %v1392
        %v1394 = vsel %vm1309, %v1367, 0.0
        %1395 = vadd.xlane.f32.xlu0 %v1394
        %v1396 = vpop.xlane.xlu0 %1395
        %v1397 = vsel %vm1309, %v1369, 0.0
        %1398 = vadd.xlane.f32.xlu0 %v1397
        %v1399 = vpop.xlane.xlu0 %1398
        %v1400 = vsel %vm1309, %v1371, 0.0
        %1401 = vadd.xlane.f32.xlu0 %v1400
        %v1402 = vpop.xlane.xlu0 %1401
        %v1403 = vsel %vm1309, %v1373, 0.0
        %1404 = vadd.xlane.f32.xlu0 %v1403
        %v1405 = vpop.xlane.xlu0 %1404
        %v1406 = vsel %vm1309, %v1375, 0.0
        %1407 = vadd.xlane.f32.xlu0 %v1406
        %v1408 = vpop.xlane.xlu0 %1407
        %v1409 = vsel %vm1309, %v1377, 0.0
        %1410 = vadd.xlane.f32.xlu0 %v1409
        %v1411 = vpop.xlane.xlu0 %1410
        %v1412 = vsel %vm1309, %v1379, 0.0
        %1413 = vadd.xlane.f32.xlu0 %v1412
        %v1414 = vpop.xlane.xlu0 %1413
        %v1415 = vsel %vm1309, %v1381, 0.0
        %1416 = vadd.xlane.f32.xlu0 %v1415
        %v1417 = vpop.xlane.xlu0 %1416
        %v1418 = vsel %vm1309, %v1383, 0.0
        %1419 = vadd.xlane.f32.xlu0 %v1418
        %v1420 = vpop.xlane.xlu0 %1419
        %v1421 = vsel %vm1309, %v1385, 0.0
        %1422 = vadd.xlane.f32.xlu0 %v1421
        %v1423 = vpop.xlane.xlu0 %1422
        %v1424 = vsel %vm1309, %v1387, 0.0
        %1425 = vadd.xlane.f32.xlu0 %v1424
        %v1426 = vpop.xlane.xlu0 %1425
        %v1427 = vsel %vm1309, %v1389, 0.0
        %1428 = vadd.xlane.f32.xlu0 %v1427
        %v1429 = vpop.xlane.xlu0 %1428
        %v1430 = vsel %vm1309, %v1391, 0.0
        %1431 = vadd.xlane.f32.xlu0 %v1430
        %v1432 = vpop.xlane.xlu0 %1431
        %v1433 = vsel %vm1309, %v1393, 0.0
        %1434 = vadd.xlane.f32.xlu0 %v1433
        %v1435 = vpop.xlane.xlu0 %1434
        %v1436 = vrcp.pop %v1396
        %v1437 = vrcp.pop %v1399
        %v1438 = vrcp.pop %v1402
        %v1439 = vrcp.pop %v1405
        %v1440 = vrcp.pop %v1408
        %v1441 = vrcp.pop %v1411
        %v1442 = vrcp.pop %v1414
        %v1443 = vrcp.pop %v1417
        %v1444 = vrcp.pop %v1420
        %v1445 = vrcp.pop %v1423
        %v1446 = vrcp.pop %v1426
        %v1447 = vrcp.pop %v1429
        %v1448 = vrcp.pop %v1432
        %v1449 = vrcp.pop %v1435
        %v1450 = vmul.f32 %v1367, %v1436
        %v1451 = vmul.f32 %v1369, %v1437
        %v1452 = vmul.f32 %v1371, %v1438
        %v1453 = vmul.f32 %v1373, %v1439
        %v1454 = vmul.f32 %v1375, %v1440
        %v1455 = vmul.f32 %v1377, %v1441
        %v1456 = vmul.f32 %v1379, %v1442
        %v1457 = vmul.f32 %v1381, %v1443
        %v1458 = vmul.f32 %v1383, %v1444
        %v1459 = vmul.f32 %v1385, %v1445
        %v1460 = vmul.f32 %v1387, %v1446
        %v1461 = vmul.f32 %v1389, %v1447
        %v1462 = vmul.f32 %v1391, %v1448
        %v1463 = vmul.f32 %v1393, %v1449
        %v1464 = vpack.c.bf16 %v1451, %v1450
        %v1465 = vpack.c.bf16 %v1453, %v1452
        %v1466 = vpack.c.bf16 %v1455, %v1454
        %v1467 = vpack.c.bf16 %v1457, %v1456
        %v1468 = vpack.c.bf16 %v1459, %v1458
        %v1469 = vpack.c.bf16 %v1461, %v1460
        %v1470 = vpack.c.bf16 %v1463, %v1462
        %1471 = vrot.lane.b32.xlu0 %v1121, 64
        %v1472 = vpop.permute.xlu0 %1471
        %1473 = vrot.lane.b32.xlu0 %v1122, 64
        %v1474 = vpop.permute.xlu0 %1473
        %1475 = vrot.lane.b32.xlu0 %v1123, 64
        %v1476 = vpop.permute.xlu0 %1475
        %1477 = vrot.lane.b32.xlu0 %v1124, 64
        %v1478 = vpop.permute.xlu0 %1477
        %1479 = vrot.lane.b32.xlu0 %v1125, 64
        %v1480 = vpop.permute.xlu0 %1479
        %1481 = vrot.lane.b32.xlu0 %v1126, 64
        %v1482 = vpop.permute.xlu0 %1481
        %1483 = vrot.lane.b32.xlu0 %v1127, 64
        %v1484 = vpop.permute.xlu0 %1483
        %v1493 = vsel %vm1309, %v1464, 0
        %v1496 = vsel %vm1309, %v1465, 0
        %v1499 = vsel %vm1309, %v1466, 0
        %v1502 = vsel %vm1309, %v1467, 0
        %v1505 = vsel %vm1309, %v1468, 0
        %v1508 = vsel %vm1309, %v1469, 0
        %v1511 = vsel %vm1309, %v1470, 0
        %1513 = vmatprep.subr.bf16.mxu0 0
        %1514 = vmatpush1.bf16.msra.mxu0 %v1472
        %1515 = vmatprep.subr.bf16.mxu0 0
        %1516 = vmatpush1.bf16.msra.mxu0 %v1474
        %1517 = vmatprep.subr.bf16.mxu0 0
        %1518 = vmatpush1.bf16.msra.mxu0 %v1476
        %1519 = vmatprep.subr.bf16.mxu0 0
        %1520 = vmatpush1.bf16.msra.mxu0 %v1478
        %1521 = vmatprep.subr.bf16.mxu0 0
        %1522 = vmatpush1.bf16.msra.mxu0 %v1480
        %1523 = vmatprep.subr.bf16.mxu0 0
        %1524 = vmatpush1.bf16.msra.mxu0 %v1482
        %1525 = vmatprep.subr.bf16.mxu0 0
        %1526 = vmatpush1.bf16.msra.mxu0 %v1484
        %1527 = vmatprep.subr.bf16.mxu0 0
        %1528 = vmatpush1.bf16.msra.mxu0 0
        %1529 = vmatprep.subr.bf16.mxu0 0
        %1530 = vmatpush1.bf16.msra.mxu0 0
        %1531 = vmatprep.subr.bf16.mxu0 0
        %1532 = vmatpush1.bf16.msra.mxu0 0
        %1533 = vmatprep.subr.bf16.mxu0 0
        %1534 = vmatpush1.bf16.msra.mxu0 0
        %1535 = vmatprep.subr.bf16.mxu0 0
        %1536 = vmatpush1.bf16.msra.mxu0 0
        %1537 = vmatprep.subr.bf16.mxu0 0
        %1538 = vmatpush1.bf16.msra.mxu0 0
        %1539 = vmatprep.subr.bf16.mxu0 0
        %1540 = vmatpush1.bf16.msra.mxu0 0
        %1541 = vmatprep.subr.bf16.mxu0 0
        %1542 = vmatpush1.bf16.msra.mxu0 0
        %1543 = vmatprep.subr.bf16.mxu0 0
        %1544 = vmatpush1.bf16.msra.mxu0 0
        %1545 = vmatprep.mubr.bf16.mxu0 0
        %1546 = vmatmul.mubr.bf16.gmra.mrb[0].mxu0 %v1493
        %v1547 = vpop.f32.mrb[0].mxu0
        %v1548 = vadd.f32 0.0, %v1547
        %v1549 = vpop.f32.mrb[0].mxu0
        %v1550 = vpop.f32.mrb[0].mxu0
        %v1551 = vadd.f32 0.0, %v1550
        %v1552 = vpop.f32.mrb[0].mxu0
        %1553 = vmatprep.mubr.bf16.mxu0 0
        %1554 = vmatmul.mubr.bf16.gmra.mrb[0].mxu0 %v1496
        %v1555 = vpop.f32.mrb[0].mxu0
        %v1556 = vadd.f32 0.0, %v1555
        %v1557 = vpop.f32.mrb[0].mxu0
        %v1558 = vpop.f32.mrb[0].mxu0
        %v1559 = vadd.f32 0.0, %v1558
        %v1560 = vpop.f32.mrb[0].mxu0
        %1561 = vmatprep.mubr.bf16.mxu0 0
        %1562 = vmatmul.mubr.bf16.gmra.mrb[0].mxu0 %v1499
        %v1563 = vpop.f32.mrb[0].mxu0
        %v1564 = vadd.f32 0.0, %v1563
        %v1565 = vpop.f32.mrb[0].mxu0
        %v1566 = vpop.f32.mrb[0].mxu0
        %v1567 = vadd.f32 0.0, %v1566
        %v1568 = vpop.f32.mrb[0].mxu0
        %1569 = vmatprep.mubr.bf16.mxu0 0
        %1570 = vmatmul.mubr.bf16.gmra.mrb[0].mxu0 %v1502
        %v1571 = vpop.f32.mrb[0].mxu0
        %v1572 = vadd.f32 0.0, %v1571
        %v1573 = vpop.f32.mrb[0].mxu0
        %v1574 = vpop.f32.mrb[0].mxu0
        %v1575 = vadd.f32 0.0, %v1574
        %v1576 = vpop.f32.mrb[0].mxu0
        %1577 = vmatprep.mubr.bf16.mxu0 0
        %1578 = vmatmul.mubr.bf16.gmra.mrb[0].mxu0 %v1505
        %v1579 = vpop.f32.mrb[0].mxu0
        %v1580 = vadd.f32 0.0, %v1579
        %v1581 = vpop.f32.mrb[0].mxu0
        %v1582 = vpop.f32.mrb[0].mxu0
        %v1583 = vadd.f32 0.0, %v1582
        %v1584 = vpop.f32.mrb[0].mxu0
        %1585 = vmatprep.mubr.bf16.mxu0 0
        %1586 = vmatmul.mubr.bf16.gmra.mrb[0].mxu0 %v1508
        %v1587 = vpop.f32.mrb[0].mxu0
        %v1588 = vadd.f32 0.0, %v1587
        %v1589 = vpop.f32.mrb[0].mxu0
        %v1590 = vpop.f32.mrb[0].mxu0
        %v1591 = vadd.f32 0.0, %v1590
        %v1592 = vpop.f32.mrb[0].mxu0
        %1593 = vmatprep.mubr.bf16.mxu0 0
        %1594 = vmatmul.mubr.bf16.gmra.mrb[0].mxu0 %v1511
        %v1595 = vpop.f32.mrb[0].mxu0
        %v1596 = vadd.f32 0.0, %v1595
        %v1597 = vpop.f32.mrb[0].mxu0
        %v1598 = vpop.f32.mrb[0].mxu0
        %v1599 = vadd.f32 0.0, %v1598
        %v1600 = vpop.f32.mrb[0].mxu0
        %1601 = vdwg.mxu0
        %1602 = vrot.lane.b32.xlu0 %v1121, 120
        %v1603 = vpop.permute.xlu0 %1602
        %1604 = vrot.lane.b32.xlu0 %v1122, 120
        %v1605 = vpop.permute.xlu0 %1604
        %1606 = vrot.lane.b32.xlu0 %v1123, 120
        %v1607 = vpop.permute.xlu0 %1606
        %1608 = vrot.lane.b32.xlu0 %v1124, 120
        %v1609 = vpop.permute.xlu0 %1608
        %1610 = vrot.lane.b32.xlu0 %v1125, 120
        %v1611 = vpop.permute.xlu0 %1610
        %1612 = vrot.lane.b32.xlu0 %v1126, 120
        %v1613 = vpop.permute.xlu0 %1612
        %1614 = vrot.lane.b32.xlu0 %v1127, 120
        %v1615 = vpop.permute.xlu0 %1614
        %1616 = vrot.lane.b32.xlu0 %v1121, 88
        %v1617 = vpop.permute.xlu0 %1616
        %1618 = vrot.lane.b32.xlu0 %v1122, 88
        %v1619 = vpop.permute.xlu0 %1618
        %1620 = vrot.lane.b32.xlu0 %v1123, 88
        %v1621 = vpop.permute.xlu0 %1620
        %1622 = vrot.lane.b32.xlu0 %v1124, 88
        %v1623 = vpop.permute.xlu0 %1622
        %1624 = vrot.lane.b32.xlu0 %v1125, 88
        %v1625 = vpop.permute.xlu0 %1624
        %1626 = vrot.lane.b32.xlu0 %v1126, 88
        %v1627 = vpop.permute.xlu0 %1626
        %1628 = vrot.lane.b32.xlu0 %v1127, 88
        %v1629 = vpop.permute.xlu0 %1628
        %v1631 = vsel %vm1149, %v1603, 0
        %v1634 = vsel %vm1149, %v1605, 0
        %v1637 = vsel %vm1149, %v1607, 0
        %v1640 = vsel %vm1149, %v1609, 0
        %v1643 = vsel %vm1149, %v1611, 0
        %v1646 = vsel %vm1149, %v1613, 0
        %v1649 = vsel %vm1149, %v1615, 0
        %v1652 = vsel %vm1149, %v1617, 0
        %v1655 = vsel %vm1149, %v1619, 0
        %v1658 = vsel %vm1149, %v1621, 0
        %v1661 = vsel %vm1149, %v1623, 0
        %v1664 = vsel %vm1149, %v1625, 0
        %v1667 = vsel %vm1149, %v1627, 0
        %v1670 = vsel %vm1149, %v1629, 0
        %1672 = vmatprep.subr.bf16.mxu0 0
        %1673 = vmatpush1.bf16.xpose.msra.mxu0 %v1652
        %1674 = vmatprep.subr.bf16.mxu0 0
        %1675 = vmatpush1.bf16.xpose.msra.mxu0 %v1655
        %1676 = vmatprep.subr.bf16.mxu0 0
        %1677 = vmatpush1.bf16.xpose.msra.mxu0 %v1658
        %1678 = vmatprep.subr.bf16.mxu0 0
        %1679 = vmatpush1.bf16.xpose.msra.mxu0 %v1661
        %1680 = vmatprep.subr.bf16.mxu0 0
        %1681 = vmatpush1.bf16.xpose.msra.mxu0 %v1664
        %1682 = vmatprep.subr.bf16.mxu0 0
        %1683 = vmatpush1.bf16.xpose.msra.mxu0 %v1667
        %1684 = vmatprep.subr.bf16.mxu0 0
        %1685 = vmatpush1.bf16.xpose.msra.mxu0 %v1670
        %1686 = vmatprep.subr.bf16.mxu0 0
        %1687 = vmatpush1.bf16.xpose.msra.mxu0 0
        %1688 = vmatprep.subr.bf16.mxu0 0
        %1689 = vmatpush1.bf16.xpose.msra.mxu0 0
        %1690 = vmatprep.subr.bf16.mxu0 0
        %1691 = vmatpush1.bf16.xpose.msra.mxu0 0
        %1692 = vmatprep.subr.bf16.mxu0 0
        %1693 = vmatpush1.bf16.xpose.msra.mxu0 0
        %1694 = vmatprep.subr.bf16.mxu0 0
        %1695 = vmatpush1.bf16.xpose.msra.mxu0 0
        %1696 = vmatprep.subr.bf16.mxu0 0
        %1697 = vmatpush1.bf16.xpose.msra.mxu0 0
        %1698 = vmatprep.subr.bf16.mxu0 0
        %1699 = vmatpush1.bf16.xpose.msra.mxu0 0
        %1700 = vmatprep.subr.bf16.mxu0 0
        %1701 = vmatpush1.bf16.xpose.msra.mxu0 0
        %1702 = vmatprep.subr.bf16.mxu0 0
        %1703 = vmatpush1.bf16.xpose.msra.mxu0 0
        %1704 = vmatprep.mubr.bf16.mxu0 0
        %1705 = vmatmul.mubr.bf16.gmra.mrb[0].mxu0 %v1631
        %v1706 = vpop.f32.mrb[0].mxu0
        %v1707 = vadd.f32 0.0, %v1706
        %v1708 = vpop.f32.mrb[0].mxu0
        %v1709 = vpop.f32.mrb[0].mxu0
        %v1710 = vadd.f32 0.0, %v1709
        %v1711 = vpop.f32.mrb[0].mxu0
        %1712 = vmatprep.mubr.bf16.mxu0 0
        %1713 = vmatmul.mubr.bf16.gmra.mrb[0].mxu0 %v1634
        %v1714 = vpop.f32.mrb[0].mxu0
        %v1715 = vadd.f32 0.0, %v1714
        %v1716 = vpop.f32.mrb[0].mxu0
        %v1717 = vpop.f32.mrb[0].mxu0
        %v1718 = vadd.f32 0.0, %v1717
        %v1719 = vpop.f32.mrb[0].mxu0
        %1720 = vmatprep.mubr.bf16.mxu0 0
        %1721 = vmatmul.mubr.bf16.gmra.mrb[0].mxu0 %v1637
        %v1722 = vpop.f32.mrb[0].mxu0
        %v1723 = vadd.f32 0.0, %v1722
        %v1724 = vpop.f32.mrb[0].mxu0
        %v1725 = vpop.f32.mrb[0].mxu0
        %v1726 = vadd.f32 0.0, %v1725
        %v1727 = vpop.f32.mrb[0].mxu0
        %1728 = vmatprep.mubr.bf16.mxu0 0
        %1729 = vmatmul.mubr.bf16.gmra.mrb[0].mxu0 %v1640
        %v1730 = vpop.f32.mrb[0].mxu0
        %v1731 = vadd.f32 0.0, %v1730
        %v1732 = vpop.f32.mrb[0].mxu0
        %v1733 = vpop.f32.mrb[0].mxu0
        %v1734 = vadd.f32 0.0, %v1733
        %v1735 = vpop.f32.mrb[0].mxu0
        %1736 = vmatprep.mubr.bf16.mxu0 0
        %1737 = vmatmul.mubr.bf16.gmra.mrb[0].mxu0 %v1643
        %v1738 = vpop.f32.mrb[0].mxu0
        %v1739 = vadd.f32 0.0, %v1738
        %v1740 = vpop.f32.mrb[0].mxu0
        %v1741 = vpop.f32.mrb[0].mxu0
        %v1742 = vadd.f32 0.0, %v1741
        %v1743 = vpop.f32.mrb[0].mxu0
        %1744 = vmatprep.mubr.bf16.mxu0 0
        %1745 = vmatmul.mubr.bf16.gmra.mrb[0].mxu0 %v1646
        %v1746 = vpop.f32.mrb[0].mxu0
        %v1747 = vadd.f32 0.0, %v1746
        %v1748 = vpop.f32.mrb[0].mxu0
        %v1749 = vpop.f32.mrb[0].mxu0
        %v1750 = vadd.f32 0.0, %v1749
        %v1751 = vpop.f32.mrb[0].mxu0
        %1752 = vmatprep.mubr.bf16.mxu0 0
        %1753 = vmatmul.mubr.bf16.gmra.mrb[0].mxu0 %v1649
        %v1754 = vpop.f32.mrb[0].mxu0
        %v1755 = vadd.f32 0.0, %v1754
        %v1756 = vpop.f32.mrb[0].mxu0
        %v1757 = vpop.f32.mrb[0].mxu0
        %v1758 = vadd.f32 0.0, %v1757
        %v1759 = vpop.f32.mrb[0].mxu0
        %1760 = vdwg.mxu0
        %v1761 = vmul.f32 %v1707, 0.35355338
        %v1762 = vmul.f32 %v1710, 0.35355338
        %v1763 = vmul.f32 %v1715, 0.35355338
        %v1764 = vmul.f32 %v1718, 0.35355338
        %v1765 = vmul.f32 %v1723, 0.35355338
        %v1766 = vmul.f32 %v1726, 0.35355338
        %v1767 = vmul.f32 %v1731, 0.35355338
        %v1768 = vmul.f32 %v1734, 0.35355338
        %v1769 = vmul.f32 %v1739, 0.35355338
        %v1770 = vmul.f32 %v1742, 0.35355338
        %v1771 = vmul.f32 %v1747, 0.35355338
        %v1772 = vmul.f32 %v1750, 0.35355338
        %v1773 = vmul.f32 %v1755, 0.35355338
        %v1774 = vmul.f32 %v1758, 0.35355338
        %v1775 = vadd.f32 %v1761, %v444
        %v1776 = vadd.f32 %v1762, %v445
        %v1777 = vadd.f32 %v1763, %v446
        %v1778 = vadd.f32 %v1764, %v447
        %v1779 = vadd.f32 %v1765, %v448
        %v1780 = vadd.f32 %v1766, %v449
        %v1781 = vadd.f32 %v1767, %v450
        %v1782 = vadd.f32 %v1768, %v451
        %v1783 = vadd.f32 %v1769, %v452
        %v1784 = vadd.f32 %v1770, %v453
        %v1785 = vadd.f32 %v1771, %v454
        %v1786 = vadd.f32 %v1772, %v455
        %v1787 = vadd.f32 %v1773, %v456
        %v1788 = vadd.f32 %v1774, %v457
        %v1789 = vsel %vm1309, %v1775, -inf
        %1790 = vmax.xlane.f32.xlu0 %v1789
        %v1791 = vpop.xlane.xlu0 %1790
        %v1792 = vsel %vm1309, %v1776, -inf
        %1793 = vmax.xlane.f32.xlu0 %v1792
        %v1794 = vpop.xlane.xlu0 %1793
        %v1795 = vsel %vm1309, %v1777, -inf
        %1796 = vmax.xlane.f32.xlu0 %v1795
        %v1797 = vpop.xlane.xlu0 %1796
        %v1798 = vsel %vm1309, %v1778, -inf
        %1799 = vmax.xlane.f32.xlu0 %v1798
        %v1800 = vpop.xlane.xlu0 %1799
        %v1801 = vsel %vm1309, %v1779, -inf
        %1802 = vmax.xlane.f32.xlu0 %v1801
        %v1803 = vpop.xlane.xlu0 %1802
        %v1804 = vsel %vm1309, %v1780, -inf
        %1805 = vmax.xlane.f32.xlu0 %v1804
        %v1806 = vpop.xlane.xlu0 %1805
        %v1807 = vsel %vm1309, %v1781, -inf
        %1808 = vmax.xlane.f32.xlu0 %v1807
        %v1809 = vpop.xlane.xlu0 %1808
        %v1810 = vsel %vm1309, %v1782, -inf
        %1811 = vmax.xlane.f32.xlu0 %v1810
        %v1812 = vpop.xlane.xlu0 %1811
        %v1813 = vsel %vm1309, %v1783, -inf
        %1814 = vmax.xlane.f32.xlu0 %v1813
        %v1815 = vpop.xlane.xlu0 %1814
        %v1816 = vsel %vm1309, %v1784, -inf
        %1817 = vmax.xlane.f32.xlu0 %v1816
        %v1818 = vpop.xlane.xlu0 %1817
        %v1819 = vsel %vm1309, %v1785, -inf
        %1820 = vmax.xlane.f32.xlu0 %v1819
        %v1821 = vpop.xlane.xlu0 %1820
        %v1822 = vsel %vm1309, %v1786, -inf
        %1823 = vmax.xlane.f32.xlu0 %v1822
        %v1824 = vpop.xlane.xlu0 %1823
        %v1825 = vsel %vm1309, %v1787, -inf
        %1826 = vmax.xlane.f32.xlu0 %v1825
        %v1827 = vpop.xlane.xlu0 %1826
        %v1828 = vsel %vm1309, %v1788, -inf
        %1829 = vmax.xlane.f32.xlu0 %v1828
        %v1830 = vpop.xlane.xlu0 %1829
        %v1831 = vsub.f32 %v1775, %v1791
        %v1832 = vsub.f32 %v1776, %v1794
        %v1833 = vsub.f32 %v1777, %v1797
        %v1834 = vsub.f32 %v1778, %v1800
        %v1835 = vsub.f32 %v1779, %v1803
        %v1836 = vsub.f32 %v1780, %v1806
        %v1837 = vsub.f32 %v1781, %v1809
        %v1838 = vsub.f32 %v1782, %v1812
        %v1839 = vsub.f32 %v1783, %v1815
        %v1840 = vsub.f32 %v1784, %v1818
        %v1841 = vsub.f32 %v1785, %v1821
        %v1842 = vsub.f32 %v1786, %v1824
        %v1843 = vsub.f32 %v1787, %v1827
        %v1844 = vsub.f32 %v1788, %v1830
        %v1845 = vmul.f32 %v1831, 1.442695
        %v1846 = vpow.pop %v1845
        %v1847 = vmul.f32 %v1832, 1.442695
        %v1848 = vpow.pop %v1847
        %v1849 = vmul.f32 %v1833, 1.442695
        %v1850 = vpow.pop %v1849
        %v1851 = vmul.f32 %v1834, 1.442695
        %v1852 = vpow.pop %v1851
        %v1853 = vmul.f32 %v1835, 1.442695
        %v1854 = vpow.pop %v1853
        %v1855 = vmul.f32 %v1836, 1.442695
        %v1856 = vpow.pop %v1855
        %v1857 = vmul.f32 %v1837, 1.442695
        %v1858 = vpow.pop %v1857
        %v1859 = vmul.f32 %v1838, 1.442695
        %v1860 = vpow.pop %v1859
        %v1861 = vmul.f32 %v1839, 1.442695
        %v1862 = vpow.pop %v1861
        %v1863 = vmul.f32 %v1840, 1.442695
        %v1864 = vpow.pop %v1863
        %v1865 = vmul.f32 %v1841, 1.442695
        %v1866 = vpow.pop %v1865
        %v1867 = vmul.f32 %v1842, 1.442695
        %v1868 = vpow.pop %v1867
        %v1869 = vmul.f32 %v1843, 1.442695
        %v1870 = vpow.pop %v1869
        %v1871 = vmul.f32 %v1844, 1.442695
        %v1872 = vpow.pop %v1871
        %v1873 = vsel %vm1309, %v1846, 0.0
        %1874 = vadd.xlane.f32.xlu0 %v1873
        %v1875 = vpop.xlane.xlu0 %1874
        %v1876 = vsel %vm1309, %v1848, 0.0
        %1877 = vadd.xlane.f32.xlu0 %v1876
        %v1878 = vpop.xlane.xlu0 %1877
        %v1879 = vsel %vm1309, %v1850, 0.0
        %1880 = vadd.xlane.f32.xlu0 %v1879
        %v1881 = vpop.xlane.xlu0 %1880
        %v1882 = vsel %vm1309, %v1852, 0.0
        %1883 = vadd.xlane.f32.xlu0 %v1882
        %v1884 = vpop.xlane.xlu0 %1883
        %v1885 = vsel %vm1309, %v1854, 0.0
        %1886 = vadd.xlane.f32.xlu0 %v1885
        %v1887 = vpop.xlane.xlu0 %1886
        %v1888 = vsel %vm1309, %v1856, 0.0
        %1889 = vadd.xlane.f32.xlu0 %v1888
        %v1890 = vpop.xlane.xlu0 %1889
        %v1891 = vsel %vm1309, %v1858, 0.0
        %1892 = vadd.xlane.f32.xlu0 %v1891
        %v1893 = vpop.xlane.xlu0 %1892
        %v1894 = vsel %vm1309, %v1860, 0.0
        %1895 = vadd.xlane.f32.xlu0 %v1894
        %v1896 = vpop.xlane.xlu0 %1895
        %v1897 = vsel %vm1309, %v1862, 0.0
        %1898 = vadd.xlane.f32.xlu0 %v1897
        %v1899 = vpop.xlane.xlu0 %1898
        %v1900 = vsel %vm1309, %v1864, 0.0
        %1901 = vadd.xlane.f32.xlu0 %v1900
        %v1902 = vpop.xlane.xlu0 %1901
        %v1903 = vsel %vm1309, %v1866, 0.0
        %1904 = vadd.xlane.f32.xlu0 %v1903
        %v1905 = vpop.xlane.xlu0 %1904
        %v1906 = vsel %vm1309, %v1868, 0.0
        %1907 = vadd.xlane.f32.xlu0 %v1906
        %v1908 = vpop.xlane.xlu0 %1907
        %v1909 = vsel %vm1309, %v1870, 0.0
        %1910 = vadd.xlane.f32.xlu0 %v1909
        %v1911 = vpop.xlane.xlu0 %1910
        %v1912 = vsel %vm1309, %v1872, 0.0
        %1913 = vadd.xlane.f32.xlu0 %v1912
        %v1914 = vpop.xlane.xlu0 %1913
        %v1915 = vrcp.pop %v1875
        %v1916 = vrcp.pop %v1878
        %v1917 = vrcp.pop %v1881
        %v1918 = vrcp.pop %v1884
        %v1919 = vrcp.pop %v1887
        %v1920 = vrcp.pop %v1890
        %v1921 = vrcp.pop %v1893
        %v1922 = vrcp.pop %v1896
        %v1923 = vrcp.pop %v1899
        %v1924 = vrcp.pop %v1902
        %v1925 = vrcp.pop %v1905
        %v1926 = vrcp.pop %v1908
        %v1927 = vrcp.pop %v1911
        %v1928 = vrcp.pop %v1914
        %v1929 = vmul.f32 %v1846, %v1915
        %v1930 = vmul.f32 %v1848, %v1916
        %v1931 = vmul.f32 %v1850, %v1917
        %v1932 = vmul.f32 %v1852, %v1918
        %v1933 = vmul.f32 %v1854, %v1919
        %v1934 = vmul.f32 %v1856, %v1920
        %v1935 = vmul.f32 %v1858, %v1921
        %v1936 = vmul.f32 %v1860, %v1922
        %v1937 = vmul.f32 %v1862, %v1923
        %v1938 = vmul.f32 %v1864, %v1924
        %v1939 = vmul.f32 %v1866, %v1925
        %v1940 = vmul.f32 %v1868, %v1926
        %v1941 = vmul.f32 %v1870, %v1927
        %v1942 = vmul.f32 %v1872, %v1928
        %v1943 = vpack.c.bf16 %v1930, %v1929
        %v1944 = vpack.c.bf16 %v1932, %v1931
        %v1945 = vpack.c.bf16 %v1934, %v1933
        %v1946 = vpack.c.bf16 %v1936, %v1935
        %v1947 = vpack.c.bf16 %v1938, %v1937
        %v1948 = vpack.c.bf16 %v1940, %v1939
        %v1949 = vpack.c.bf16 %v1942, %v1941
        %1950 = vrot.lane.b32.xlu0 %v1121, 56
        %v1951 = vpop.permute.xlu0 %1950
        %1952 = vrot.lane.b32.xlu0 %v1122, 56
        %v1953 = vpop.permute.xlu0 %1952
        %1954 = vrot.lane.b32.xlu0 %v1123, 56
        %v1955 = vpop.permute.xlu0 %1954
        %1956 = vrot.lane.b32.xlu0 %v1124, 56
        %v1957 = vpop.permute.xlu0 %1956
        %1958 = vrot.lane.b32.xlu0 %v1125, 56
        %v1959 = vpop.permute.xlu0 %1958
        %1960 = vrot.lane.b32.xlu0 %v1126, 56
        %v1961 = vpop.permute.xlu0 %1960
        %1962 = vrot.lane.b32.xlu0 %v1127, 56
        %v1963 = vpop.permute.xlu0 %1962
        %v1972 = vsel %vm1309, %v1943, 0
        %v1975 = vsel %vm1309, %v1944, 0
        %v1978 = vsel %vm1309, %v1945, 0
        %v1981 = vsel %vm1309, %v1946, 0
        %v1984 = vsel %vm1309, %v1947, 0
        %v1987 = vsel %vm1309, %v1948, 0
        %v1990 = vsel %vm1309, %v1949, 0
        %1992 = vmatprep.subr.bf16.mxu0 0
        %1993 = vmatpush1.bf16.msra.mxu0 %v1951
        %1994 = vmatprep.subr.bf16.mxu0 0
        %1995 = vmatpush1.bf16.msra.mxu0 %v1953
        %1996 = vmatprep.subr.bf16.mxu0 0
        %1997 = vmatpush1.bf16.msra.mxu0 %v1955
        %1998 = vmatprep.subr.bf16.mxu0 0
        %1999 = vmatpush1.bf16.msra.mxu0 %v1957
        %2000 = vmatprep.subr.bf16.mxu0 0
        %2001 = vmatpush1.bf16.msra.mxu0 %v1959
        %2002 = vmatprep.subr.bf16.mxu0 0
        %2003 = vmatpush1.bf16.msra.mxu0 %v1961
        %2004 = vmatprep.subr.bf16.mxu0 0
        %2005 = vmatpush1.bf16.msra.mxu0 %v1963
        %2006 = vmatprep.subr.bf16.mxu0 0
        %2007 = vmatpush1.bf16.msra.mxu0 0
        %2008 = vmatprep.subr.bf16.mxu0 0
        %2009 = vmatpush1.bf16.msra.mxu0 0
        %2010 = vmatprep.subr.bf16.mxu0 0
        %2011 = vmatpush1.bf16.msra.mxu0 0
        %2012 = vmatprep.subr.bf16.mxu0 0
        %2013 = vmatpush1.bf16.msra.mxu0 0
        %2014 = vmatprep.subr.bf16.mxu0 0
        %2015 = vmatpush1.bf16.msra.mxu0 0
        %2016 = vmatprep.subr.bf16.mxu0 0
        %2017 = vmatpush1.bf16.msra.mxu0 0
        %2018 = vmatprep.subr.bf16.mxu0 0
        %2019 = vmatpush1.bf16.msra.mxu0 0
        %2020 = vmatprep.subr.bf16.mxu0 0
        %2021 = vmatpush1.bf16.msra.mxu0 0
        %2022 = vmatprep.subr.bf16.mxu0 0
        %2023 = vmatpush1.bf16.msra.mxu0 0
        %2024 = vmatprep.mubr.bf16.mxu0 0
        %2025 = vmatmul.mubr.bf16.gmra.mrb[0].mxu0 %v1972
        %v2026 = vpop.f32.mrb[0].mxu0
        %v2027 = vadd.f32 0.0, %v2026
        %v2028 = vpop.f32.mrb[0].mxu0
        %v2029 = vpop.f32.mrb[0].mxu0
        %v2030 = vadd.f32 0.0, %v2029
        %v2031 = vpop.f32.mrb[0].mxu0
        %2032 = vmatprep.mubr.bf16.mxu0 0
        %2033 = vmatmul.mubr.bf16.gmra.mrb[0].mxu0 %v1975
        %v2034 = vpop.f32.mrb[0].mxu0
        %v2035 = vadd.f32 0.0, %v2034
        %v2036 = vpop.f32.mrb[0].mxu0
        %v2037 = vpop.f32.mrb[0].mxu0
        %v2038 = vadd.f32 0.0, %v2037
        %v2039 = vpop.f32.mrb[0].mxu0
        %2040 = vmatprep.mubr.bf16.mxu0 0
        %2041 = vmatmul.mubr.bf16.gmra.mrb[0].mxu0 %v1978
        %v2042 = vpop.f32.mrb[0].mxu0
        %v2043 = vadd.f32 0.0, %v2042
        %v2044 = vpop.f32.mrb[0].mxu0
        %v2045 = vpop.f32.mrb[0].mxu0
        %v2046 = vadd.f32 0.0, %v2045
        %v2047 = vpop.f32.mrb[0].mxu0
        %2048 = vmatprep.mubr.bf16.mxu0 0
        %2049 = vmatmul.mubr.bf16.gmra.mrb[0].mxu0 %v1981
        %v2050 = vpop.f32.mrb[0].mxu0
        %v2051 = vadd.f32 0.0, %v2050
        %v2052 = vpop.f32.mrb[0].mxu0
        %v2053 = vpop.f32.mrb[0].mxu0
        %v2054 = vadd.f32 0.0, %v2053
        %v2055 = vpop.f32.mrb[0].mxu0
        %2056 = vmatprep.mubr.bf16.mxu0 0
        %2057 = vmatmul.mubr.bf16.gmra.mrb[0].mxu0 %v1984
        %v2058 = vpop.f32.mrb[0].mxu0
        %v2059 = vadd.f32 0.0, %v2058
        %v2060 = vpop.f32.mrb[0].mxu0
        %v2061 = vpop.f32.mrb[0].mxu0
        %v2062 = vadd.f32 0.0, %v2061
        %v2063 = vpop.f32.mrb[0].mxu0
        %2064 = vmatprep.mubr.bf16.mxu0 0
        %2065 = vmatmul.mubr.bf16.gmra.mrb[0].mxu0 %v1987
        %v2066 = vpop.f32.mrb[0].mxu0
        %v2067 = vadd.f32 0.0, %v2066
        %v2068 = vpop.f32.mrb[0].mxu0
        %v2069 = vpop.f32.mrb[0].mxu0
        %v2070 = vadd.f32 0.0, %v2069
        %v2071 = vpop.f32.mrb[0].mxu0
        %2072 = vmatprep.mubr.bf16.mxu0 0
        %2073 = vmatmul.mubr.bf16.gmra.mrb[0].mxu0 %v1990
        %v2074 = vpop.f32.mrb[0].mxu0
        %v2075 = vadd.f32 0.0, %v2074
        %v2076 = vpop.f32.mrb[0].mxu0
        %v2077 = vpop.f32.mrb[0].mxu0
        %v2078 = vadd.f32 0.0, %v2077
        %v2079 = vpop.f32.mrb[0].mxu0
        %2080 = vdwg.mxu0
        %2081 = vrot.lane.b32.xlu0 %v1121, 112
        %v2082 = vpop.permute.xlu0 %2081
        %2083 = vrot.lane.b32.xlu0 %v1122, 112
        %v2084 = vpop.permute.xlu0 %2083
        %2085 = vrot.lane.b32.xlu0 %v1123, 112
        %v2086 = vpop.permute.xlu0 %2085
        %2087 = vrot.lane.b32.xlu0 %v1124, 112
        %v2088 = vpop.permute.xlu0 %2087
        %2089 = vrot.lane.b32.xlu0 %v1125, 112
        %v2090 = vpop.permute.xlu0 %2089
        %2091 = vrot.lane.b32.xlu0 %v1126, 112
        %v2092 = vpop.permute.xlu0 %2091
        %2093 = vrot.lane.b32.xlu0 %v1127, 112
        %v2094 = vpop.permute.xlu0 %2093
        %2095 = vrot.lane.b32.xlu0 %v1121, 80
        %v2096 = vpop.permute.xlu0 %2095
        %2097 = vrot.lane.b32.xlu0 %v1122, 80
        %v2098 = vpop.permute.xlu0 %2097
        %2099 = vrot.lane.b32.xlu0 %v1123, 80
        %v2100 = vpop.permute.xlu0 %2099
        %2101 = vrot.lane.b32.xlu0 %v1124, 80
        %v2102 = vpop.permute.xlu0 %2101
        %2103 = vrot.lane.b32.xlu0 %v1125, 80
        %v2104 = vpop.permute.xlu0 %2103
        %2105 = vrot.lane.b32.xlu0 %v1126, 80
        %v2106 = vpop.permute.xlu0 %2105
        %2107 = vrot.lane.b32.xlu0 %v1127, 80
        %v2108 = vpop.permute.xlu0 %2107
        %v2110 = vsel %vm1149, %v2082, 0
        %v2113 = vsel %vm1149, %v2084, 0
        %v2116 = vsel %vm1149, %v2086, 0
        %v2119 = vsel %vm1149, %v2088, 0
        %v2122 = vsel %vm1149, %v2090, 0
        %v2125 = vsel %vm1149, %v2092, 0
        %v2128 = vsel %vm1149, %v2094, 0
        %v2131 = vsel %vm1149, %v2096, 0
        %v2134 = vsel %vm1149, %v2098, 0
        %v2137 = vsel %vm1149, %v2100, 0
        %v2140 = vsel %vm1149, %v2102, 0
        %v2143 = vsel %vm1149, %v2104, 0
        %v2146 = vsel %vm1149, %v2106, 0
        %v2149 = vsel %vm1149, %v2108, 0
        %2151 = vmatprep.subr.bf16.mxu0 0
        %2152 = vmatpush1.bf16.xpose.msra.mxu0 %v2131
        %2153 = vmatprep.subr.bf16.mxu0 0
        %2154 = vmatpush1.bf16.xpose.msra.mxu0 %v2134
        %2155 = vmatprep.subr.bf16.mxu0 0
        %2156 = vmatpush1.bf16.xpose.msra.mxu0 %v2137
        %2157 = vmatprep.subr.bf16.mxu0 0
        %2158 = vmatpush1.bf16.xpose.msra.mxu0 %v2140
        %2159 = vmatprep.subr.bf16.mxu0 0
        %2160 = vmatpush1.bf16.xpose.msra.mxu0 %v2143
        %2161 = vmatprep.subr.bf16.mxu0 0
        %2162 = vmatpush1.bf16.xpose.msra.mxu0 %v2146
        %2163 = vmatprep.subr.bf16.mxu0 0
        %2164 = vmatpush1.bf16.xpose.msra.mxu0 %v2149
        %2165 = vmatprep.subr.bf16.mxu0 0
        %2166 = vmatpush1.bf16.xpose.msra.mxu0 0
        %2167 = vmatprep.subr.bf16.mxu0 0
        %2168 = vmatpush1.bf16.xpose.msra.mxu0 0
        %2169 = vmatprep.subr.bf16.mxu0 0
        %2170 = vmatpush1.bf16.xpose.msra.mxu0 0
        %2171 = vmatprep.subr.bf16.mxu0 0
        %2172 = vmatpush1.bf16.xpose.msra.mxu0 0
        %2173 = vmatprep.subr.bf16.mxu0 0
        %2174 = vmatpush1.bf16.xpose.msra.mxu0 0
        %2175 = vmatprep.subr.bf16.mxu0 0
        %2176 = vmatpush1.bf16.xpose.msra.mxu0 0
        %2177 = vmatprep.subr.bf16.mxu0 0
        %2178 = vmatpush1.bf16.xpose.msra.mxu0 0
        %2179 = vmatprep.subr.bf16.mxu0 0
        %2180 = vmatpush1.bf16.xpose.msra.mxu0 0
        %2181 = vmatprep.subr.bf16.mxu0 0
        %2182 = vmatpush1.bf16.xpose.msra.mxu0 0
        %2183 = vmatprep.mubr.bf16.mxu0 0
        %2184 = vmatmul.mubr.bf16.gmra.mrb[0].mxu0 %v2110
        %v2185 = vpop.f32.mrb[0].mxu0
        %v2186 = vadd.f32 0.0, %v2185
        %v2187 = vpop.f32.mrb[0].mxu0
        %v2188 = vpop.f32.mrb[0].mxu0
        %v2189 = vadd.f32 0.0, %v2188
        %v2190 = vpop.f32.mrb[0].mxu0
        %2191 = vmatprep.mubr.bf16.mxu0 0
        %2192 = vmatmul.mubr.bf16.gmra.mrb[0].mxu0 %v2113
        %v2193 = vpop.f32.mrb[0].mxu0
        %v2194 = vadd.f32 0.0, %v2193
        %v2195 = vpop.f32.mrb[0].mxu0
        %v2196 = vpop.f32.mrb[0].mxu0
        %v2197 = vadd.f32 0.0, %v2196
        %v2198 = vpop.f32.mrb[0].mxu0
        %2199 = vmatprep.mubr.bf16.mxu0 0
        %2200 = vmatmul.mubr.bf16.gmra.mrb[0].mxu0 %v2116
        %v2201 = vpop.f32.mrb[0].mxu0
        %v2202 = vadd.f32 0.0, %v2201
        %v2203 = vpop.f32.mrb[0].mxu0
        %v2204 = vpop.f32.mrb[0].mxu0
        %v2205 = vadd.f32 0.0, %v2204
        %v2206 = vpop.f32.mrb[0].mxu0
        %2207 = vmatprep.mubr.bf16.mxu0 0
        %2208 = vmatmul.mubr.bf16.gmra.mrb[0].mxu0 %v2119
        %v2209 = vpop.f32.mrb[0].mxu0
        %v2210 = vadd.f32 0.0, %v2209
        %v2211 = vpop.f32.mrb[0].mxu0
        %v2212 = vpop.f32.mrb[0].mxu0
        %v2213 = vadd.f32 0.0, %v2212
        %v2214 = vpop.f32.mrb[0].mxu0
        %2215 = vmatprep.mubr.bf16.mxu0 0
        %2216 = vmatmul.mubr.bf16.gmra.mrb[0].mxu0 %v2122
        %v2217 = vpop.f32.mrb[0].mxu0
        %v2218 = vadd.f32 0.0, %v2217
        %v2219 = vpop.f32.mrb[0].mxu0
        %v2220 = vpop.f32.mrb[0].mxu0
        %v2221 = vadd.f32 0.0, %v2220
        %v2222 = vpop.f32.mrb[0].mxu0
        %2223 = vmatprep.mubr.bf16.mxu0 0
        %2224 = vmatmul.mubr.bf16.gmra.mrb[0].mxu0 %v2125
        %v2225 = vpop.f32.mrb[0].mxu0
        %v2226 = vadd.f32 0.0, %v2225
        %v2227 = vpop.f32.mrb[0].mxu0
        %v2228 = vpop.f32.mrb[0].mxu0
        %v2229 = vadd.f32 0.0, %v2228
        %v2230 = vpop.f32.mrb[0].mxu0
        %2231 = vmatprep.mubr.bf16.mxu0 0
        %2232 = vmatmul.mubr.bf16.gmra.mrb[0].mxu0 %v2128
        %v2233 = vpop.f32.mrb[0].mxu0
        %v2234 = vadd.f32 0.0, %v2233
        %v2235 = vpop.f32.mrb[0].mxu0
        %v2236 = vpop.f32.mrb[0].mxu0
        %v2237 = vadd.f32 0.0, %v2236
        %v2238 = vpop.f32.mrb[0].mxu0
        %2239 = vdwg.mxu0
        %v2240 = vmul.f32 %v2186, 0.35355338
        %v2241 = vmul.f32 %v2189, 0.35355338
        %v2242 = vmul.f32 %v2194, 0.35355338
        %v2243 = vmul.f32 %v2197, 0.35355338
        %v2244 = vmul.f32 %v2202, 0.35355338
        %v2245 = vmul.f32 %v2205, 0.35355338
        %v2246 = vmul.f32 %v2210, 0.35355338
        %v2247 = vmul.f32 %v2213, 0.35355338
        %v2248 = vmul.f32 %v2218, 0.35355338
        %v2249 = vmul.f32 %v2221, 0.35355338
        %v2250 = vmul.f32 %v2226, 0.35355338
        %v2251 = vmul.f32 %v2229, 0.35355338
        %v2252 = vmul.f32 %v2234, 0.35355338
        %v2253 = vmul.f32 %v2237, 0.35355338
        %v2254 = vadd.f32 %v2240, %v444
        %v2255 = vadd.f32 %v2241, %v445
        %v2256 = vadd.f32 %v2242, %v446
        %v2257 = vadd.f32 %v2243, %v447
        %v2258 = vadd.f32 %v2244, %v448
        %v2259 = vadd.f32 %v2245, %v449
        %v2260 = vadd.f32 %v2246, %v450
        %v2261 = vadd.f32 %v2247, %v451
        %v2262 = vadd.f32 %v2248, %v452
        %v2263 = vadd.f32 %v2249, %v453
        %v2264 = vadd.f32 %v2250, %v454
        %v2265 = vadd.f32 %v2251, %v455
        %v2266 = vadd.f32 %v2252, %v456
        %v2267 = vadd.f32 %v2253, %v457
        %v2268 = vsel %vm1309, %v2254, -inf
        %2269 = vmax.xlane.f32.xlu0 %v2268
        %v2270 = vpop.xlane.xlu0 %2269
        %v2271 = vsel %vm1309, %v2255, -inf
        %2272 = vmax.xlane.f32.xlu0 %v2271
        %v2273 = vpop.xlane.xlu0 %2272
        %v2274 = vsel %vm1309, %v2256, -inf
        %2275 = vmax.xlane.f32.xlu0 %v2274
        %v2276 = vpop.xlane.xlu0 %2275
        %v2277 = vsel %vm1309, %v2257, -inf
        %2278 = vmax.xlane.f32.xlu0 %v2277
        %v2279 = vpop.xlane.xlu0 %2278
        %v2280 = vsel %vm1309, %v2258, -inf
        %2281 = vmax.xlane.f32.xlu0 %v2280
        %v2282 = vpop.xlane.xlu0 %2281
        %v2283 = vsel %vm1309, %v2259, -inf
        %2284 = vmax.xlane.f32.xlu0 %v2283
        %v2285 = vpop.xlane.xlu0 %2284
        %v2286 = vsel %vm1309, %v2260, -inf
        %2287 = vmax.xlane.f32.xlu0 %v2286
        %v2288 = vpop.xlane.xlu0 %2287
        %v2289 = vsel %vm1309, %v2261, -inf
        %2290 = vmax.xlane.f32.xlu0 %v2289
        %v2291 = vpop.xlane.xlu0 %2290
        %v2292 = vsel %vm1309, %v2262, -inf
        %2293 = vmax.xlane.f32.xlu0 %v2292
        %v2294 = vpop.xlane.xlu0 %2293
        %v2295 = vsel %vm1309, %v2263, -inf
        %2296 = vmax.xlane.f32.xlu0 %v2295
        %v2297 = vpop.xlane.xlu0 %2296
        %v2298 = vsel %vm1309, %v2264, -inf
        %2299 = vmax.xlane.f32.xlu0 %v2298
        %v2300 = vpop.xlane.xlu0 %2299
        %v2301 = vsel %vm1309, %v2265, -inf
        %2302 = vmax.xlane.f32.xlu0 %v2301
        %v2303 = vpop.xlane.xlu0 %2302
        %v2304 = vsel %vm1309, %v2266, -inf
        %2305 = vmax.xlane.f32.xlu0 %v2304
        %v2306 = vpop.xlane.xlu0 %2305
        %v2307 = vsel %vm1309, %v2267, -inf
        %2308 = vmax.xlane.f32.xlu0 %v2307
        %v2309 = vpop.xlane.xlu0 %2308
        %v2310 = vsub.f32 %v2254, %v2270
        %v2311 = vsub.f32 %v2255, %v2273
        %v2312 = vsub.f32 %v2256, %v2276
        %v2313 = vsub.f32 %v2257, %v2279
        %v2314 = vsub.f32 %v2258, %v2282
        %v2315 = vsub.f32 %v2259, %v2285
        %v2316 = vsub.f32 %v2260, %v2288
        %v2317 = vsub.f32 %v2261, %v2291
        %v2318 = vsub.f32 %v2262, %v2294
        %v2319 = vsub.f32 %v2263, %v2297
        %v2320 = vsub.f32 %v2264, %v2300
        %v2321 = vsub.f32 %v2265, %v2303
        %v2322 = vsub.f32 %v2266, %v2306
        %v2323 = vsub.f32 %v2267, %v2309
        %v2324 = vmul.f32 %v2310, 1.442695
        %v2325 = vpow.pop %v2324
        %v2326 = vmul.f32 %v2311, 1.442695
        %v2327 = vpow.pop %v2326
        %v2328 = vmul.f32 %v2312, 1.442695
        %v2329 = vpow.pop %v2328
        %v2330 = vmul.f32 %v2313, 1.442695
        %v2331 = vpow.pop %v2330
        %v2332 = vmul.f32 %v2314, 1.442695
        %v2333 = vpow.pop %v2332
        %v2334 = vmul.f32 %v2315, 1.442695
        %v2335 = vpow.pop %v2334
        %v2336 = vmul.f32 %v2316, 1.442695
        %v2337 = vpow.pop %v2336
        %v2338 = vmul.f32 %v2317, 1.442695
        %v2339 = vpow.pop %v2338
        %v2340 = vmul.f32 %v2318, 1.442695
        %v2341 = vpow.pop %v2340
        %v2342 = vmul.f32 %v2319, 1.442695
        %v2343 = vpow.pop %v2342
        %v2344 = vmul.f32 %v2320, 1.442695
        %v2345 = vpow.pop %v2344
        %v2346 = vmul.f32 %v2321, 1.442695
        %v2347 = vpow.pop %v2346
        %v2348 = vmul.f32 %v2322, 1.442695
        %v2349 = vpow.pop %v2348
        %v2350 = vmul.f32 %v2323, 1.442695
        %v2351 = vpow.pop %v2350
        %v2352 = vsel %vm1309, %v2325, 0.0
        %2353 = vadd.xlane.f32.xlu0 %v2352
        %v2354 = vpop.xlane.xlu0 %2353
        %v2355 = vsel %vm1309, %v2327, 0.0
        %2356 = vadd.xlane.f32.xlu0 %v2355
        %v2357 = vpop.xlane.xlu0 %2356
        %v2358 = vsel %vm1309, %v2329, 0.0
        %2359 = vadd.xlane.f32.xlu0 %v2358
        %v2360 = vpop.xlane.xlu0 %2359
        %v2361 = vsel %vm1309, %v2331, 0.0
        %2362 = vadd.xlane.f32.xlu0 %v2361
        %v2363 = vpop.xlane.xlu0 %2362
        %v2364 = vsel %vm1309, %v2333, 0.0
        %2365 = vadd.xlane.f32.xlu0 %v2364
        %v2366 = vpop.xlane.xlu0 %2365
        %v2367 = vsel %vm1309, %v2335, 0.0
        %2368 = vadd.xlane.f32.xlu0 %v2367
        %v2369 = vpop.xlane.xlu0 %2368
        %v2370 = vsel %vm1309, %v2337, 0.0
        %2371 = vadd.xlane.f32.xlu0 %v2370
        %v2372 = vpop.xlane.xlu0 %2371
        %v2373 = vsel %vm1309, %v2339, 0.0
        %2374 = vadd.xlane.f32.xlu0 %v2373
        %v2375 = vpop.xlane.xlu0 %2374
        %v2376 = vsel %vm1309, %v2341, 0.0
        %2377 = vadd.xlane.f32.xlu0 %v2376
        %v2378 = vpop.xlane.xlu0 %2377
        %v2379 = vsel %vm1309, %v2343, 0.0
        %2380 = vadd.xlane.f32.xlu0 %v2379
        %v2381 = vpop.xlane.xlu0 %2380
        %v2382 = vsel %vm1309, %v2345, 0.0
        %2383 = vadd.xlane.f32.xlu0 %v2382
        %v2384 = vpop.xlane.xlu0 %2383
        %v2385 = vsel %vm1309, %v2347, 0.0
        %2386 = vadd.xlane.f32.xlu0 %v2385
        %v2387 = vpop.xlane.xlu0 %2386
        %v2388 = vsel %vm1309, %v2349, 0.0
        %2389 = vadd.xlane.f32.xlu0 %v2388
        %v2390 = vpop.xlane.xlu0 %2389
        %v2391 = vsel %vm1309, %v2351, 0.0
        %2392 = vadd.xlane.f32.xlu0 %v2391
        %v2393 = vpop.xlane.xlu0 %2392
        %v2394 = vrcp.pop %v2354
        %v2395 = vrcp.pop %v2357
        %v2396 = vrcp.pop %v2360
        %v2397 = vrcp.pop %v2363
        %v2398 = vrcp.pop %v2366
        %v2399 = vrcp.pop %v2369
        %v2400 = vrcp.pop %v2372
        %v2401 = vrcp.pop %v2375
        %v2402 = vrcp.pop %v2378
        %v2403 = vrcp.pop %v2381
        %v2404 = vrcp.pop %v2384
        %v2405 = vrcp.pop %v2387
        %v2406 = vrcp.pop %v2390
        %v2407 = vrcp.pop %v2393
        %v2408 = vmul.f32 %v2325, %v2394
        %v2409 = vmul.f32 %v2327, %v2395
        %v2410 = vmul.f32 %v2329, %v2396
        %v2411 = vmul.f32 %v2331, %v2397
        %v2412 = vmul.f32 %v2333, %v2398
        %v2413 = vmul.f32 %v2335, %v2399
        %v2414 = vmul.f32 %v2337, %v2400
        %v2415 = vmul.f32 %v2339, %v2401
        %v2416 = vmul.f32 %v2341, %v2402
        %v2417 = vmul.f32 %v2343, %v2403
        %v2418 = vmul.f32 %v2345, %v2404
        %v2419 = vmul.f32 %v2347, %v2405
        %v2420 = vmul.f32 %v2349, %v2406
        %v2421 = vmul.f32 %v2351, %v2407
        %v2422 = vpack.c.bf16 %v2409, %v2408
        %v2423 = vpack.c.bf16 %v2411, %v2410
        %v2424 = vpack.c.bf16 %v2413, %v2412
        %v2425 = vpack.c.bf16 %v2415, %v2414
        %v2426 = vpack.c.bf16 %v2417, %v2416
        %v2427 = vpack.c.bf16 %v2419, %v2418
        %v2428 = vpack.c.bf16 %v2421, %v2420
        %2429 = vrot.lane.b32.xlu0 %v1121, 48
        %v2430 = vpop.permute.xlu0 %2429
        %2431 = vrot.lane.b32.xlu0 %v1122, 48
        %v2432 = vpop.permute.xlu0 %2431
        %2433 = vrot.lane.b32.xlu0 %v1123, 48
        %v2434 = vpop.permute.xlu0 %2433
        %2435 = vrot.lane.b32.xlu0 %v1124, 48
        %v2436 = vpop.permute.xlu0 %2435
        %2437 = vrot.lane.b32.xlu0 %v1125, 48
        %v2438 = vpop.permute.xlu0 %2437
        %2439 = vrot.lane.b32.xlu0 %v1126, 48
        %v2440 = vpop.permute.xlu0 %2439
        %2441 = vrot.lane.b32.xlu0 %v1127, 48
        %v2442 = vpop.permute.xlu0 %2441
        %v2451 = vsel %vm1309, %v2422, 0
        %v2454 = vsel %vm1309, %v2423, 0
        %v2457 = vsel %vm1309, %v2424, 0
        %v2460 = vsel %vm1309, %v2425, 0
        %v2463 = vsel %vm1309, %v2426, 0
        %v2466 = vsel %vm1309, %v2427, 0
        %v2469 = vsel %vm1309, %v2428, 0
        %2471 = vmatprep.subr.bf16.mxu0 0
        %2472 = vmatpush1.bf16.msra.mxu0 %v2430
        %2473 = vmatprep.subr.bf16.mxu0 0
        %2474 = vmatpush1.bf16.msra.mxu0 %v2432
        %2475 = vmatprep.subr.bf16.mxu0 0
        %2476 = vmatpush1.bf16.msra.mxu0 %v2434
        %2477 = vmatprep.subr.bf16.mxu0 0
        %2478 = vmatpush1.bf16.msra.mxu0 %v2436
        %2479 = vmatprep.subr.bf16.mxu0 0
        %2480 = vmatpush1.bf16.msra.mxu0 %v2438
        %2481 = vmatprep.subr.bf16.mxu0 0
        %2482 = vmatpush1.bf16.msra.mxu0 %v2440
        %2483 = vmatprep.subr.bf16.mxu0 0
        %2484 = vmatpush1.bf16.msra.mxu0 %v2442
        %2485 = vmatprep.subr.bf16.mxu0 0
        %2486 = vmatpush1.bf16.msra.mxu0 0
        %2487 = vmatprep.subr.bf16.mxu0 0
        %2488 = vmatpush1.bf16.msra.mxu0 0
        %2489 = vmatprep.subr.bf16.mxu0 0
        %2490 = vmatpush1.bf16.msra.mxu0 0
        %2491 = vmatprep.subr.bf16.mxu0 0
        %2492 = vmatpush1.bf16.msra.mxu0 0
        %2493 = vmatprep.subr.bf16.mxu0 0
        %2494 = vmatpush1.bf16.msra.mxu0 0
        %2495 = vmatprep.subr.bf16.mxu0 0
        %2496 = vmatpush1.bf16.msra.mxu0 0
        %2497 = vmatprep.subr.bf16.mxu0 0
        %2498 = vmatpush1.bf16.msra.mxu0 0
        %2499 = vmatprep.subr.bf16.mxu0 0
        %2500 = vmatpush1.bf16.msra.mxu0 0
        %2501 = vmatprep.subr.bf16.mxu0 0
        %2502 = vmatpush1.bf16.msra.mxu0 0
        %2503 = vmatprep.mubr.bf16.mxu0 0
        %2504 = vmatmul.mubr.bf16.gmra.mrb[0].mxu0 %v2451
        %v2505 = vpop.f32.mrb[0].mxu0
        %v2506 = vadd.f32 0.0, %v2505
        %v2507 = vpop.f32.mrb[0].mxu0
        %v2508 = vpop.f32.mrb[0].mxu0
        %v2509 = vadd.f32 0.0, %v2508
        %v2510 = vpop.f32.mrb[0].mxu0
        %2511 = vmatprep.mubr.bf16.mxu0 0
        %2512 = vmatmul.mubr.bf16.gmra.mrb[0].mxu0 %v2454
        %v2513 = vpop.f32.mrb[0].mxu0
        %v2514 = vadd.f32 0.0, %v2513
        %v2515 = vpop.f32.mrb[0].mxu0
        %v2516 = vpop.f32.mrb[0].mxu0
        %v2517 = vadd.f32 0.0, %v2516
        %v2518 = vpop.f32.mrb[0].mxu0
        %2519 = vmatprep.mubr.bf16.mxu0 0
        %2520 = vmatmul.mubr.bf16.gmra.mrb[0].mxu0 %v2457
        %v2521 = vpop.f32.mrb[0].mxu0
        %v2522 = vadd.f32 0.0, %v2521
        %v2523 = vpop.f32.mrb[0].mxu0
        %v2524 = vpop.f32.mrb[0].mxu0
        %v2525 = vadd.f32 0.0, %v2524
        %v2526 = vpop.f32.mrb[0].mxu0
        %2527 = vmatprep.mubr.bf16.mxu0 0
        %2528 = vmatmul.mubr.bf16.gmra.mrb[0].mxu0 %v2460
        %v2529 = vpop.f32.mrb[0].mxu0
        %v2530 = vadd.f32 0.0, %v2529
        %v2531 = vpop.f32.mrb[0].mxu0
        %v2532 = vpop.f32.mrb[0].mxu0
        %v2533 = vadd.f32 0.0, %v2532
        %v2534 = vpop.f32.mrb[0].mxu0
        %2535 = vmatprep.mubr.bf16.mxu0 0
        %2536 = vmatmul.mubr.bf16.gmra.mrb[0].mxu0 %v2463
        %v2537 = vpop.f32.mrb[0].mxu0
        %v2538 = vadd.f32 0.0, %v2537
        %v2539 = vpop.f32.mrb[0].mxu0
        %v2540 = vpop.f32.mrb[0].mxu0
        %v2541 = vadd.f32 0.0, %v2540
        %v2542 = vpop.f32.mrb[0].mxu0
        %2543 = vmatprep.mubr.bf16.mxu0 0
        %2544 = vmatmul.mubr.bf16.gmra.mrb[0].mxu0 %v2466
        %v2545 = vpop.f32.mrb[0].mxu0
        %v2546 = vadd.f32 0.0, %v2545
        %v2547 = vpop.f32.mrb[0].mxu0
        %v2548 = vpop.f32.mrb[0].mxu0
        %v2549 = vadd.f32 0.0, %v2548
        %v2550 = vpop.f32.mrb[0].mxu0
        %2551 = vmatprep.mubr.bf16.mxu0 0
        %2552 = vmatmul.mubr.bf16.gmra.mrb[0].mxu0 %v2469
        %v2553 = vpop.f32.mrb[0].mxu0
        %v2554 = vadd.f32 0.0, %v2553
        %v2555 = vpop.f32.mrb[0].mxu0
        %v2556 = vpop.f32.mrb[0].mxu0
        %v2557 = vadd.f32 0.0, %v2556
        %v2558 = vpop.f32.mrb[0].mxu0
        %2559 = vdwg.mxu0
        %2560 = vrot.lane.b32.xlu0 %v1121, 104
        %v2561 = vpop.permute.xlu0 %2560
        %2562 = vrot.lane.b32.xlu0 %v1122, 104
        %v2563 = vpop.permute.xlu0 %2562
        %2564 = vrot.lane.b32.xlu0 %v1123, 104
        %v2565 = vpop.permute.xlu0 %2564
        %2566 = vrot.lane.b32.xlu0 %v1124, 104
        %v2567 = vpop.permute.xlu0 %2566
        %2568 = vrot.lane.b32.xlu0 %v1125, 104
        %v2569 = vpop.permute.xlu0 %2568
        %2570 = vrot.lane.b32.xlu0 %v1126, 104
        %v2571 = vpop.permute.xlu0 %2570
        %2572 = vrot.lane.b32.xlu0 %v1127, 104
        %v2573 = vpop.permute.xlu0 %2572
        %2574 = vrot.lane.b32.xlu0 %v1121, 72
        %v2575 = vpop.permute.xlu0 %2574
        %2576 = vrot.lane.b32.xlu0 %v1122, 72
        %v2577 = vpop.permute.xlu0 %2576
        %2578 = vrot.lane.b32.xlu0 %v1123, 72
        %v2579 = vpop.permute.xlu0 %2578
        %2580 = vrot.lane.b32.xlu0 %v1124, 72
        %v2581 = vpop.permute.xlu0 %2580
        %2582 = vrot.lane.b32.xlu0 %v1125, 72
        %v2583 = vpop.permute.xlu0 %2582
        %2584 = vrot.lane.b32.xlu0 %v1126, 72
        %v2585 = vpop.permute.xlu0 %2584
        %2586 = vrot.lane.b32.xlu0 %v1127, 72
        %v2587 = vpop.permute.xlu0 %2586
        %v2589 = vsel %vm1149, %v2561, 0
        %v2592 = vsel %vm1149, %v2563, 0
        %v2595 = vsel %vm1149, %v2565, 0
        %v2598 = vsel %vm1149, %v2567, 0
        %v2601 = vsel %vm1149, %v2569, 0
        %v2604 = vsel %vm1149, %v2571, 0
        %v2607 = vsel %vm1149, %v2573, 0
        %v2610 = vsel %vm1149, %v2575, 0
        %v2613 = vsel %vm1149, %v2577, 0
        %v2616 = vsel %vm1149, %v2579, 0
        %v2619 = vsel %vm1149, %v2581, 0
        %v2622 = vsel %vm1149, %v2583, 0
        %v2625 = vsel %vm1149, %v2585, 0
        %v2628 = vsel %vm1149, %v2587, 0
        %2630 = vmatprep.subr.bf16.mxu0 0
        %2631 = vmatpush1.bf16.xpose.msra.mxu0 %v2610
        %2632 = vmatprep.subr.bf16.mxu0 0
        %2633 = vmatpush1.bf16.xpose.msra.mxu0 %v2613
        %2634 = vmatprep.subr.bf16.mxu0 0
        %2635 = vmatpush1.bf16.xpose.msra.mxu0 %v2616
        %2636 = vmatprep.subr.bf16.mxu0 0
        %2637 = vmatpush1.bf16.xpose.msra.mxu0 %v2619
        %2638 = vmatprep.subr.bf16.mxu0 0
        %2639 = vmatpush1.bf16.xpose.msra.mxu0 %v2622
        %2640 = vmatprep.subr.bf16.mxu0 0
        %2641 = vmatpush1.bf16.xpose.msra.mxu0 %v2625
        %2642 = vmatprep.subr.bf16.mxu0 0
        %2643 = vmatpush1.bf16.xpose.msra.mxu0 %v2628
        %2644 = vmatprep.subr.bf16.mxu0 0
        %2645 = vmatpush1.bf16.xpose.msra.mxu0 0
        %2646 = vmatprep.subr.bf16.mxu0 0
        %2647 = vmatpush1.bf16.xpose.msra.mxu0 0
        %2648 = vmatprep.subr.bf16.mxu0 0
        %2649 = vmatpush1.bf16.xpose.msra.mxu0 0
        %2650 = vmatprep.subr.bf16.mxu0 0
        %2651 = vmatpush1.bf16.xpose.msra.mxu0 0
        %2652 = vmatprep.subr.bf16.mxu0 0
        %2653 = vmatpush1.bf16.xpose.msra.mxu0 0
        %2654 = vmatprep.subr.bf16.mxu0 0
        %2655 = vmatpush1.bf16.xpose.msra.mxu0 0
        %2656 = vmatprep.subr.bf16.mxu0 0
        %2657 = vmatpush1.bf16.xpose.msra.mxu0 0
        %2658 = vmatprep.subr.bf16.mxu0 0
        %2659 = vmatpush1.bf16.xpose.msra.mxu0 0
        %2660 = vmatprep.subr.bf16.mxu0 0
        %2661 = vmatpush1.bf16.xpose.msra.mxu0 0
        %2662 = vmatprep.mubr.bf16.mxu0 0
        %2663 = vmatmul.mubr.bf16.gmra.mrb[0].mxu0 %v2589
        %v2664 = vpop.f32.mrb[0].mxu0
        %v2665 = vadd.f32 0.0, %v2664
        %v2666 = vpop.f32.mrb[0].mxu0
        %v2667 = vpop.f32.mrb[0].mxu0
        %v2668 = vadd.f32 0.0, %v2667
        %v2669 = vpop.f32.mrb[0].mxu0
        %2670 = vmatprep.mubr.bf16.mxu0 0
        %2671 = vmatmul.mubr.bf16.gmra.mrb[0].mxu0 %v2592
        %v2672 = vpop.f32.mrb[0].mxu0
        %v2673 = vadd.f32 0.0, %v2672
        %v2674 = vpop.f32.mrb[0].mxu0
        %v2675 = vpop.f32.mrb[0].mxu0
        %v2676 = vadd.f32 0.0, %v2675
        %v2677 = vpop.f32.mrb[0].mxu0
        %2678 = vmatprep.mubr.bf16.mxu0 0
        %2679 = vmatmul.mubr.bf16.gmra.mrb[0].mxu0 %v2595
        %v2680 = vpop.f32.mrb[0].mxu0
        %v2681 = vadd.f32 0.0, %v2680
        %v2682 = vpop.f32.mrb[0].mxu0
        %v2683 = vpop.f32.mrb[0].mxu0
        %v2684 = vadd.f32 0.0, %v2683
        %v2685 = vpop.f32.mrb[0].mxu0
        %2686 = vmatprep.mubr.bf16.mxu0 0
        %2687 = vmatmul.mubr.bf16.gmra.mrb[0].mxu0 %v2598
        %v2688 = vpop.f32.mrb[0].mxu0
        %v2689 = vadd.f32 0.0, %v2688
        %v2690 = vpop.f32.mrb[0].mxu0
        %v2691 = vpop.f32.mrb[0].mxu0
        %v2692 = vadd.f32 0.0, %v2691
        %v2693 = vpop.f32.mrb[0].mxu0
        %2694 = vmatprep.mubr.bf16.mxu0 0
        %2695 = vmatmul.mubr.bf16.gmra.mrb[0].mxu0 %v2601
        %v2696 = vpop.f32.mrb[0].mxu0
        %v2697 = vadd.f32 0.0, %v2696
        %v2698 = vpop.f32.mrb[0].mxu0
        %v2699 = vpop.f32.mrb[0].mxu0
        %v2700 = vadd.f32 0.0, %v2699
        %v2701 = vpop.f32.mrb[0].mxu0
        %2702 = vmatprep.mubr.bf16.mxu0 0
        %2703 = vmatmul.mubr.bf16.gmra.mrb[0].mxu0 %v2604
        %v2704 = vpop.f32.mrb[0].mxu0
        %v2705 = vadd.f32 0.0, %v2704
        %v2706 = vpop.f32.mrb[0].mxu0
        %v2707 = vpop.f32.mrb[0].mxu0
        %v2708 = vadd.f32 0.0, %v2707
        %v2709 = vpop.f32.mrb[0].mxu0
        %2710 = vmatprep.mubr.bf16.mxu0 0
        %2711 = vmatmul.mubr.bf16.gmra.mrb[0].mxu0 %v2607
        %v2712 = vpop.f32.mrb[0].mxu0
        %v2713 = vadd.f32 0.0, %v2712
        %v2714 = vpop.f32.mrb[0].mxu0
        %v2715 = vpop.f32.mrb[0].mxu0
        %v2716 = vadd.f32 0.0, %v2715
        %v2717 = vpop.f32.mrb[0].mxu0
        %2718 = vdwg.mxu0
        %v2719 = vmul.f32 %v2665, 0.35355338
        %v2720 = vmul.f32 %v2668, 0.35355338
        %v2721 = vmul.f32 %v2673, 0.35355338
        %v2722 = vmul.f32 %v2676, 0.35355338
        %v2723 = vmul.f32 %v2681, 0.35355338
        %v2724 = vmul.f32 %v2684, 0.35355338
        %v2725 = vmul.f32 %v2689, 0.35355338
        %v2726 = vmul.f32 %v2692, 0.35355338
        %v2727 = vmul.f32 %v2697, 0.35355338
        %v2728 = vmul.f32 %v2700, 0.35355338
        %v2729 = vmul.f32 %v2705, 0.35355338
        %v2730 = vmul.f32 %v2708, 0.35355338
        %v2731 = vmul.f32 %v2713, 0.35355338
        %v2732 = vmul.f32 %v2716, 0.35355338
        %v2733 = vadd.f32 %v2719, %v444
        %v2734 = vadd.f32 %v2720, %v445
        %v2735 = vadd.f32 %v2721, %v446
        %v2736 = vadd.f32 %v2722, %v447
        %v2737 = vadd.f32 %v2723, %v448
        %v2738 = vadd.f32 %v2724, %v449
        %v2739 = vadd.f32 %v2725, %v450
        %v2740 = vadd.f32 %v2726, %v451
        %v2741 = vadd.f32 %v2727, %v452
        %v2742 = vadd.f32 %v2728, %v453
        %v2743 = vadd.f32 %v2729, %v454
        %v2744 = vadd.f32 %v2730, %v455
        %v2745 = vadd.f32 %v2731, %v456
        %v2746 = vadd.f32 %v2732, %v457
        %v2747 = vsel %vm1309, %v2733, -inf
        %2748 = vmax.xlane.f32.xlu0 %v2747
        %v2749 = vpop.xlane.xlu0 %2748
        %v2750 = vsel %vm1309, %v2734, -inf
        %2751 = vmax.xlane.f32.xlu0 %v2750
        %v2752 = vpop.xlane.xlu0 %2751
        %v2753 = vsel %vm1309, %v2735, -inf
        %2754 = vmax.xlane.f32.xlu0 %v2753
        %v2755 = vpop.xlane.xlu0 %2754
        %v2756 = vsel %vm1309, %v2736, -inf
        %2757 = vmax.xlane.f32.xlu0 %v2756
        %v2758 = vpop.xlane.xlu0 %2757
        %v2759 = vsel %vm1309, %v2737, -inf
        %2760 = vmax.xlane.f32.xlu0 %v2759
        %v2761 = vpop.xlane.xlu0 %2760
        %v2762 = vsel %vm1309, %v2738, -inf
        %2763 = vmax.xlane.f32.xlu0 %v2762
        %v2764 = vpop.xlane.xlu0 %2763
        %v2765 = vsel %vm1309, %v2739, -inf
        %2766 = vmax.xlane.f32.xlu0 %v2765
        %v2767 = vpop.xlane.xlu0 %2766
        %v2768 = vsel %vm1309, %v2740, -inf
        %2769 = vmax.xlane.f32.xlu0 %v2768
        %v2770 = vpop.xlane.xlu0 %2769
        %v2771 = vsel %vm1309, %v2741, -inf
        %2772 = vmax.xlane.f32.xlu0 %v2771
        %v2773 = vpop.xlane.xlu0 %2772
        %v2774 = vsel %vm1309, %v2742, -inf
        %2775 = vmax.xlane.f32.xlu0 %v2774
        %v2776 = vpop.xlane.xlu0 %2775
        %v2777 = vsel %vm1309, %v2743, -inf
        %2778 = vmax.xlane.f32.xlu0 %v2777
        %v2779 = vpop.xlane.xlu0 %2778
        %v2780 = vsel %vm1309, %v2744, -inf
        %2781 = vmax.xlane.f32.xlu0 %v2780
        %v2782 = vpop.xlane.xlu0 %2781
        %v2783 = vsel %vm1309, %v2745, -inf
        %2784 = vmax.xlane.f32.xlu0 %v2783
        %v2785 = vpop.xlane.xlu0 %2784
        %v2786 = vsel %vm1309, %v2746, -inf
        %2787 = vmax.xlane.f32.xlu0 %v2786
        %v2788 = vpop.xlane.xlu0 %2787
        %v2789 = vsub.f32 %v2733, %v2749
        %v2790 = vsub.f32 %v2734, %v2752
        %v2791 = vsub.f32 %v2735, %v2755
        %v2792 = vsub.f32 %v2736, %v2758
        %v2793 = vsub.f32 %v2737, %v2761
        %v2794 = vsub.f32 %v2738, %v2764
        %v2795 = vsub.f32 %v2739, %v2767
        %v2796 = vsub.f32 %v2740, %v2770
        %v2797 = vsub.f32 %v2741, %v2773
        %v2798 = vsub.f32 %v2742, %v2776
        %v2799 = vsub.f32 %v2743, %v2779
        %v2800 = vsub.f32 %v2744, %v2782
        %v2801 = vsub.f32 %v2745, %v2785
        %v2802 = vsub.f32 %v2746, %v2788
        %v2803 = vmul.f32 %v2789, 1.442695
        %v2804 = vpow.pop %v2803
        %v2805 = vmul.f32 %v2790, 1.442695
        %v2806 = vpow.pop %v2805
        %v2807 = vmul.f32 %v2791, 1.442695
        %v2808 = vpow.pop %v2807
        %v2809 = vmul.f32 %v2792, 1.442695
        %v2810 = vpow.pop %v2809
        %v2811 = vmul.f32 %v2793, 1.442695
        %v2812 = vpow.pop %v2811
        %v2813 = vmul.f32 %v2794, 1.442695
        %v2814 = vpow.pop %v2813
        %v2815 = vmul.f32 %v2795, 1.442695
        %v2816 = vpow.pop %v2815
        %v2817 = vmul.f32 %v2796, 1.442695
        %v2818 = vpow.pop %v2817
        %v2819 = vmul.f32 %v2797, 1.442695
        %v2820 = vpow.pop %v2819
        %v2821 = vmul.f32 %v2798, 1.442695
        %v2822 = vpow.pop %v2821
        %v2823 = vmul.f32 %v2799, 1.442695
        %v2824 = vpow.pop %v2823
        %v2825 = vmul.f32 %v2800, 1.442695
        %v2826 = vpow.pop %v2825
        %v2827 = vmul.f32 %v2801, 1.442695
        %v2828 = vpow.pop %v2827
        %v2829 = vmul.f32 %v2802, 1.442695
        %v2830 = vpow.pop %v2829
        %v2831 = vsel %vm1309, %v2804, 0.0
        %2832 = vadd.xlane.f32.xlu0 %v2831
        %v2833 = vpop.xlane.xlu0 %2832
        %v2834 = vsel %vm1309, %v2806, 0.0
        %2835 = vadd.xlane.f32.xlu0 %v2834
        %v2836 = vpop.xlane.xlu0 %2835
        %v2837 = vsel %vm1309, %v2808, 0.0
        %2838 = vadd.xlane.f32.xlu0 %v2837
        %v2839 = vpop.xlane.xlu0 %2838
        %v2840 = vsel %vm1309, %v2810, 0.0
        %2841 = vadd.xlane.f32.xlu0 %v2840
        %v2842 = vpop.xlane.xlu0 %2841
        %v2843 = vsel %vm1309, %v2812, 0.0
        %2844 = vadd.xlane.f32.xlu0 %v2843
        %v2845 = vpop.xlane.xlu0 %2844
        %v2846 = vsel %vm1309, %v2814, 0.0
        %2847 = vadd.xlane.f32.xlu0 %v2846
        %v2848 = vpop.xlane.xlu0 %2847
        %v2849 = vsel %vm1309, %v2816, 0.0
        %2850 = vadd.xlane.f32.xlu0 %v2849
        %v2851 = vpop.xlane.xlu0 %2850
        %v2852 = vsel %vm1309, %v2818, 0.0
        %2853 = vadd.xlane.f32.xlu0 %v2852
        %v2854 = vpop.xlane.xlu0 %2853
        %v2855 = vsel %vm1309, %v2820, 0.0
        %2856 = vadd.xlane.f32.xlu0 %v2855
        %v2857 = vpop.xlane.xlu0 %2856
        %v2858 = vsel %vm1309, %v2822, 0.0
        %2859 = vadd.xlane.f32.xlu0 %v2858
        %v2860 = vpop.xlane.xlu0 %2859
        %v2861 = vsel %vm1309, %v2824, 0.0
        %2862 = vadd.xlane.f32.xlu0 %v2861
        %v2863 = vpop.xlane.xlu0 %2862
        %v2864 = vsel %vm1309, %v2826, 0.0
        %2865 = vadd.xlane.f32.xlu0 %v2864
        %v2866 = vpop.xlane.xlu0 %2865
        %v2867 = vsel %vm1309, %v2828, 0.0
        %2868 = vadd.xlane.f32.xlu0 %v2867
        %v2869 = vpop.xlane.xlu0 %2868
        %v2870 = vsel %vm1309, %v2830, 0.0
        %2871 = vadd.xlane.f32.xlu0 %v2870
        %v2872 = vpop.xlane.xlu0 %2871
        %v2873 = vrcp.pop %v2833
        %v2874 = vrcp.pop %v2836
        %v2875 = vrcp.pop %v2839
        %v2876 = vrcp.pop %v2842
        %v2877 = vrcp.pop %v2845
        %v2878 = vrcp.pop %v2848
        %v2879 = vrcp.pop %v2851
        %v2880 = vrcp.pop %v2854
        %v2881 = vrcp.pop %v2857
        %v2882 = vrcp.pop %v2860
        %v2883 = vrcp.pop %v2863
        %v2884 = vrcp.pop %v2866
        %v2885 = vrcp.pop %v2869
        %v2886 = vrcp.pop %v2872
        %v2887 = vmul.f32 %v2804, %v2873
        %v2888 = vmul.f32 %v2806, %v2874
        %v2889 = vmul.f32 %v2808, %v2875
        %v2890 = vmul.f32 %v2810, %v2876
        %v2891 = vmul.f32 %v2812, %v2877
        %v2892 = vmul.f32 %v2814, %v2878
        %v2893 = vmul.f32 %v2816, %v2879
        %v2894 = vmul.f32 %v2818, %v2880
        %v2895 = vmul.f32 %v2820, %v2881
        %v2896 = vmul.f32 %v2822, %v2882
        %v2897 = vmul.f32 %v2824, %v2883
        %v2898 = vmul.f32 %v2826, %v2884
        %v2899 = vmul.f32 %v2828, %v2885
        %v2900 = vmul.f32 %v2830, %v2886
        %v2901 = vpack.c.bf16 %v2888, %v2887
        %v2902 = vpack.c.bf16 %v2890, %v2889
        %v2903 = vpack.c.bf16 %v2892, %v2891
        %v2904 = vpack.c.bf16 %v2894, %v2893
        %v2905 = vpack.c.bf16 %v2896, %v2895
        %v2906 = vpack.c.bf16 %v2898, %v2897
        %v2907 = vpack.c.bf16 %v2900, %v2899
        %2908 = vrot.lane.b32.xlu0 %v1121, 40
        %v2909 = vpop.permute.xlu0 %2908
        %2910 = vrot.lane.b32.xlu0 %v1122, 40
        %v2911 = vpop.permute.xlu0 %2910
        %2912 = vrot.lane.b32.xlu0 %v1123, 40
        %v2913 = vpop.permute.xlu0 %2912
        %2914 = vrot.lane.b32.xlu0 %v1124, 40
        %v2915 = vpop.permute.xlu0 %2914
        %2916 = vrot.lane.b32.xlu0 %v1125, 40
        %v2917 = vpop.permute.xlu0 %2916
        %2918 = vrot.lane.b32.xlu0 %v1126, 40
        %v2919 = vpop.permute.xlu0 %2918
        %2920 = vrot.lane.b32.xlu0 %v1127, 40
        %v2921 = vpop.permute.xlu0 %2920
        %v2930 = vsel %vm1309, %v2901, 0
        %v2933 = vsel %vm1309, %v2902, 0
        %v2936 = vsel %vm1309, %v2903, 0
        %v2939 = vsel %vm1309, %v2904, 0
        %v2942 = vsel %vm1309, %v2905, 0
        %v2945 = vsel %vm1309, %v2906, 0
        %v2948 = vsel %vm1309, %v2907, 0
        %2950 = vmatprep.subr.bf16.mxu0 0
        %2951 = vmatpush1.bf16.msra.mxu0 %v2909
        %2952 = vmatprep.subr.bf16.mxu0 0
        %2953 = vmatpush1.bf16.msra.mxu0 %v2911
        %2954 = vmatprep.subr.bf16.mxu0 0
        %2955 = vmatpush1.bf16.msra.mxu0 %v2913
        %2956 = vmatprep.subr.bf16.mxu0 0
        %2957 = vmatpush1.bf16.msra.mxu0 %v2915
        %2958 = vmatprep.subr.bf16.mxu0 0
        %2959 = vmatpush1.bf16.msra.mxu0 %v2917
        %2960 = vmatprep.subr.bf16.mxu0 0
        %2961 = vmatpush1.bf16.msra.mxu0 %v2919
        %2962 = vmatprep.subr.bf16.mxu0 0
        %2963 = vmatpush1.bf16.msra.mxu0 %v2921
        %2964 = vmatprep.subr.bf16.mxu0 0
        %2965 = vmatpush1.bf16.msra.mxu0 0
        %2966 = vmatprep.subr.bf16.mxu0 0
        %2967 = vmatpush1.bf16.msra.mxu0 0
        %2968 = vmatprep.subr.bf16.mxu0 0
        %2969 = vmatpush1.bf16.msra.mxu0 0
        %2970 = vmatprep.subr.bf16.mxu0 0
        %2971 = vmatpush1.bf16.msra.mxu0 0
        %2972 = vmatprep.subr.bf16.mxu0 0
        %2973 = vmatpush1.bf16.msra.mxu0 0
        %2974 = vmatprep.subr.bf16.mxu0 0
        %2975 = vmatpush1.bf16.msra.mxu0 0
        %2976 = vmatprep.subr.bf16.mxu0 0
        %2977 = vmatpush1.bf16.msra.mxu0 0
        %2978 = vmatprep.subr.bf16.mxu0 0
        %2979 = vmatpush1.bf16.msra.mxu0 0
        %2980 = vmatprep.subr.bf16.mxu0 0
        %2981 = vmatpush1.bf16.msra.mxu0 0
        %2982 = vmatprep.mubr.bf16.mxu0 0
        %2983 = vmatmul.mubr.bf16.gmra.mrb[0].mxu0 %v2930
        %v2984 = vpop.f32.mrb[0].mxu0
        %v2985 = vadd.f32 0.0, %v2984
        %v2986 = vpop.f32.mrb[0].mxu0
        %v2987 = vpop.f32.mrb[0].mxu0
        %v2988 = vadd.f32 0.0, %v2987
        %v2989 = vpop.f32.mrb[0].mxu0
        %2990 = vmatprep.mubr.bf16.mxu0 0
        %2991 = vmatmul.mubr.bf16.gmra.mrb[0].mxu0 %v2933
        %v2992 = vpop.f32.mrb[0].mxu0
        %v2993 = vadd.f32 0.0, %v2992
        %v2994 = vpop.f32.mrb[0].mxu0
        %v2995 = vpop.f32.mrb[0].mxu0
        %v2996 = vadd.f32 0.0, %v2995
        %v2997 = vpop.f32.mrb[0].mxu0
        %2998 = vmatprep.mubr.bf16.mxu0 0
        %2999 = vmatmul.mubr.bf16.gmra.mrb[0].mxu0 %v2936
        %v3000 = vpop.f32.mrb[0].mxu0
        %v3001 = vadd.f32 0.0, %v3000
        %v3002 = vpop.f32.mrb[0].mxu0
        %v3003 = vpop.f32.mrb[0].mxu0
        %v3004 = vadd.f32 0.0, %v3003
        %v3005 = vpop.f32.mrb[0].mxu0
        %3006 = vmatprep.mubr.bf16.mxu0 0
        %3007 = vmatmul.mubr.bf16.gmra.mrb[0].mxu0 %v2939
        %v3008 = vpop.f32.mrb[0].mxu0
        %v3009 = vadd.f32 0.0, %v3008
        %v3010 = vpop.f32.mrb[0].mxu0
        %v3011 = vpop.f32.mrb[0].mxu0
        %v3012 = vadd.f32 0.0, %v3011
        %v3013 = vpop.f32.mrb[0].mxu0
        %3014 = vmatprep.mubr.bf16.mxu0 0
        %3015 = vmatmul.mubr.bf16.gmra.mrb[0].mxu0 %v2942
        %v3016 = vpop.f32.mrb[0].mxu0
        %v3017 = vadd.f32 0.0, %v3016
        %v3018 = vpop.f32.mrb[0].mxu0
        %v3019 = vpop.f32.mrb[0].mxu0
        %v3020 = vadd.f32 0.0, %v3019
        %v3021 = vpop.f32.mrb[0].mxu0
        %3022 = vmatprep.mubr.bf16.mxu0 0
        %3023 = vmatmul.mubr.bf16.gmra.mrb[0].mxu0 %v2945
        %v3024 = vpop.f32.mrb[0].mxu0
        %v3025 = vadd.f32 0.0, %v3024
        %v3026 = vpop.f32.mrb[0].mxu0
        %v3027 = vpop.f32.mrb[0].mxu0
        %v3028 = vadd.f32 0.0, %v3027
        %v3029 = vpop.f32.mrb[0].mxu0
        %3030 = vmatprep.mubr.bf16.mxu0 0
        %3031 = vmatmul.mubr.bf16.gmra.mrb[0].mxu0 %v2948
        %v3032 = vpop.f32.mrb[0].mxu0
        %v3033 = vadd.f32 0.0, %v3032
        %v3034 = vpop.f32.mrb[0].mxu0
        %v3035 = vpop.f32.mrb[0].mxu0
        %v3036 = vadd.f32 0.0, %v3035
        %v3037 = vpop.f32.mrb[0].mxu0
        %3038 = vdwg.mxu0
        %3053 = vrot.lane.b32.xlu0 %v2027, 8
        %v3054 = vpop.permute.xlu0 %3053
        %3055 = vrot.lane.b32.xlu0 %v2030, 8
        %v3056 = vpop.permute.xlu0 %3055
        %3057 = vrot.lane.b32.xlu0 %v2035, 8
        %v3058 = vpop.permute.xlu0 %3057
        %3059 = vrot.lane.b32.xlu0 %v2038, 8
        %v3060 = vpop.permute.xlu0 %3059
        %3061 = vrot.lane.b32.xlu0 %v2043, 8
        %v3062 = vpop.permute.xlu0 %3061
        %3063 = vrot.lane.b32.xlu0 %v2046, 8
        %v3064 = vpop.permute.xlu0 %3063
        %3065 = vrot.lane.b32.xlu0 %v2051, 8
        %v3066 = vpop.permute.xlu0 %3065
        %3067 = vrot.lane.b32.xlu0 %v2054, 8
        %v3068 = vpop.permute.xlu0 %3067
        %3069 = vrot.lane.b32.xlu0 %v2059, 8
        %v3070 = vpop.permute.xlu0 %3069
        %3071 = vrot.lane.b32.xlu0 %v2062, 8
        %v3072 = vpop.permute.xlu0 %3071
        %3073 = vrot.lane.b32.xlu0 %v2067, 8
        %v3074 = vpop.permute.xlu0 %3073
        %3075 = vrot.lane.b32.xlu0 %v2070, 8
        %v3076 = vpop.permute.xlu0 %3075
        %3077 = vrot.lane.b32.xlu0 %v2075, 8
        %v3078 = vpop.permute.xlu0 %3077
        %3079 = vrot.lane.b32.xlu0 %v2078, 8
        %v3080 = vpop.permute.xlu0 %3079
        %3109 = vrot.lane.b32.xlu0 %v2506, 16
        %v3110 = vpop.permute.xlu0 %3109
        %3111 = vrot.lane.b32.xlu0 %v2509, 16
        %v3112 = vpop.permute.xlu0 %3111
        %3113 = vrot.lane.b32.xlu0 %v2514, 16
        %v3114 = vpop.permute.xlu0 %3113
        %3115 = vrot.lane.b32.xlu0 %v2517, 16
        %v3116 = vpop.permute.xlu0 %3115
        %3117 = vrot.lane.b32.xlu0 %v2522, 16
        %v3118 = vpop.permute.xlu0 %3117
        %3119 = vrot.lane.b32.xlu0 %v2525, 16
        %v3120 = vpop.permute.xlu0 %3119
        %3121 = vrot.lane.b32.xlu0 %v2530, 16
        %v3122 = vpop.permute.xlu0 %3121
        %3123 = vrot.lane.b32.xlu0 %v2533, 16
        %v3124 = vpop.permute.xlu0 %3123
        %3125 = vrot.lane.b32.xlu0 %v2538, 16
        %v3126 = vpop.permute.xlu0 %3125
        %3127 = vrot.lane.b32.xlu0 %v2541, 16
        %v3128 = vpop.permute.xlu0 %3127
        %3129 = vrot.lane.b32.xlu0 %v2546, 16
        %v3130 = vpop.permute.xlu0 %3129
        %3131 = vrot.lane.b32.xlu0 %v2549, 16
        %v3132 = vpop.permute.xlu0 %3131
        %3133 = vrot.lane.b32.xlu0 %v2554, 16
        %v3134 = vpop.permute.xlu0 %3133
        %3135 = vrot.lane.b32.xlu0 %v2557, 16
        %v3136 = vpop.permute.xlu0 %3135
        %3165 = vrot.lane.b32.xlu0 %v2985, 24
        %v3166 = vpop.permute.xlu0 %3165
        %3167 = vrot.lane.b32.xlu0 %v2988, 24
        %v3168 = vpop.permute.xlu0 %3167
        %3169 = vrot.lane.b32.xlu0 %v2993, 24
        %v3170 = vpop.permute.xlu0 %3169
        %3171 = vrot.lane.b32.xlu0 %v2996, 24
        %v3172 = vpop.permute.xlu0 %3171
        %3173 = vrot.lane.b32.xlu0 %v3001, 24
        %v3174 = vpop.permute.xlu0 %3173
        %3175 = vrot.lane.b32.xlu0 %v3004, 24
        %v3176 = vpop.permute.xlu0 %3175
        %3177 = vrot.lane.b32.xlu0 %v3009, 24
        %v3178 = vpop.permute.xlu0 %3177
        %3179 = vrot.lane.b32.xlu0 %v3012, 24
        %v3180 = vpop.permute.xlu0 %3179
        %3181 = vrot.lane.b32.xlu0 %v3017, 24
        %v3182 = vpop.permute.xlu0 %3181
        %3183 = vrot.lane.b32.xlu0 %v3020, 24
        %v3184 = vpop.permute.xlu0 %3183
        %3185 = vrot.lane.b32.xlu0 %v3025, 24
        %v3186 = vpop.permute.xlu0 %3185
        %3187 = vrot.lane.b32.xlu0 %v3028, 24
        %v3188 = vpop.permute.xlu0 %3187
        %3189 = vrot.lane.b32.xlu0 %v3033, 24
        %v3190 = vpop.permute.xlu0 %3189
        %3191 = vrot.lane.b32.xlu0 %v3036, 24
        %v3192 = vpop.permute.xlu0 %3191
        %v3207 = vsel %vm1149, %v1548, %v3054
        %v3208 = vsel %vm1149, %v1551, %v3056
        %v3209 = vsel %vm1149, %v1556, %v3058
        %v3210 = vsel %vm1149, %v1559, %v3060
        %v3211 = vsel %vm1149, %v1564, %v3062
        %v3212 = vsel %vm1149, %v1567, %v3064
        %v3213 = vsel %vm1149, %v1572, %v3066
        %v3214 = vsel %vm1149, %v1575, %v3068
        %v3215 = vsel %vm1149, %v1580, %v3070
        %v3216 = vsel %vm1149, %v1583, %v3072
        %v3217 = vsel %vm1149, %v1588, %v3074
        %v3218 = vsel %vm1149, %v1591, %v3076
        %v3219 = vsel %vm1149, %v1596, %v3078
        %v3220 = vsel %vm1149, %v1599, %v3080
        %v3221 = vsel %vm459, %v3207, %v3110
        %v3222 = vsel %vm459, %v3208, %v3112
        %v3223 = vsel %vm459, %v3209, %v3114
        %v3224 = vsel %vm459, %v3210, %v3116
        %v3225 = vsel %vm459, %v3211, %v3118
        %v3226 = vsel %vm459, %v3212, %v3120
        %v3227 = vsel %vm459, %v3213, %v3122
        %v3228 = vsel %vm459, %v3214, %v3124
        %v3229 = vsel %vm459, %v3215, %v3126
        %v3230 = vsel %vm459, %v3216, %v3128
        %v3231 = vsel %vm459, %v3217, %v3130
        %v3232 = vsel %vm459, %v3218, %v3132
        %v3233 = vsel %vm459, %v3219, %v3134
        %v3234 = vsel %vm459, %v3220, %v3136
        %vm3235 = vcmask 195584
        %v3236 = vsel %vm3235, %v3221, %v3166
        %v3237 = vsel %vm3235, %v3222, %v3168
        %v3238 = vsel %vm3235, %v3223, %v3170
        %v3239 = vsel %vm3235, %v3224, %v3172
        %v3240 = vsel %vm3235, %v3225, %v3174
        %v3241 = vsel %vm3235, %v3226, %v3176
        %v3242 = vsel %vm3235, %v3227, %v3178
        %v3243 = vsel %vm3235, %v3228, %v3180
        %v3244 = vsel %vm3235, %v3229, %v3182
        %v3245 = vsel %vm3235, %v3230, %v3184
        %v3246 = vsel %vm3235, %v3231, %v3186
        %v3247 = vsel %vm3235, %v3232, %v3188
        %v3248 = vsel %vm3235, %v3233, %v3190
        %v3249 = vsel %vm3235, %v3234, %v3192
        %v3250 = vpack.c.bf16 %v3237, %v3236
        %v3251 = vpack.c.bf16 %v3239, %v3238
        %v3252 = vpack.c.bf16 %v3241, %v3240
        %v3253 = vpack.c.bf16 %v3243, %v3242
        %v3254 = vpack.c.bf16 %v3245, %v3244
        %v3255 = vpack.c.bf16 %v3247, %v3246
        %v3256 = vpack.c.bf16 %v3249, %v3248
        %v3257 = vld [vmem:[%s5] sm:$0xf]
        %v3258 = vld [vmem:[%s5 + $0x4] sm:$0xf]
        %v3259 = vld [vmem:[%s5 + $0x8] sm:$0xf]
        %v3260 = vld [vmem:[%s5 + $0xc] sm:$0xf]
        %v3261 = vlaneseq
        %v3262 = vshrl.u32 %v3261, 7
        %v3263 = vsub.s32 1, %v3262
        %v3264 = vrot.slane %v982, %v3263
        %v3269 = vunpack.c.l.b16 %v3257
        %v3270 = vunpack.c.l.b16 %v3258
        %v3271 = vunpack.c.l.b16 %v3259
        %v3272 = vunpack.c.l.b16 %v3260
        %v3273 = vpack.c.b16 %v3270, %v3269
        %v3274 = vpack.c.b16 %v3272, %v3271
        %v3278 = vsel %vm1010, %v3250, 0
        %v3281 = vsel %vm1010, %v3251, 0
        %v3284 = vsel %vm1010, %v3252, 0
        %v3287 = vsel %vm1010, %v3253, 0
        %v3290 = vsel %vm1010, %v3254, 0
        %v3293 = vsel %vm1010, %v3255, 0
        %v3296 = vsel %vm1010, %v3256, 0
        %3298 = vmatprep.subr.bf16.mxu0 0
        %3299 = vmatpush1.bf16.msra.mxu0 %v3273
        %3300 = vmatprep.subr.bf16.mxu0 0
        %3301 = vmatpush1.bf16.msra.mxu0 %v3274
        %3302 = vmatprep.subr.bf16.mxu0 0
        %3303 = vmatpush1.bf16.msra.mxu0 0
        %3304 = vmatprep.subr.bf16.mxu0 0
        %3305 = vmatpush1.bf16.msra.mxu0 0
        %3306 = vmatprep.subr.bf16.mxu0 0
        %3307 = vmatpush1.bf16.msra.mxu0 0
        %3308 = vmatprep.subr.bf16.mxu0 0
        %3309 = vmatpush1.bf16.msra.mxu0 0
        %3310 = vmatprep.subr.bf16.mxu0 0
        %3311 = vmatpush1.bf16.msra.mxu0 0
        %3312 = vmatprep.subr.bf16.mxu0 0
        %3313 = vmatpush1.bf16.msra.mxu0 0
        %3314 = vmatprep.subr.bf16.mxu0 0
        %3315 = vmatpush1.bf16.msra.mxu0 0
        %3316 = vmatprep.subr.bf16.mxu0 0
        %3317 = vmatpush1.bf16.msra.mxu0 0
        %3318 = vmatprep.subr.bf16.mxu0 0
        %3319 = vmatpush1.bf16.msra.mxu0 0
        %3320 = vmatprep.subr.bf16.mxu0 0
        %3321 = vmatpush1.bf16.msra.mxu0 0
        %3322 = vmatprep.subr.bf16.mxu0 0
        %3323 = vmatpush1.bf16.msra.mxu0 0
        %3324 = vmatprep.subr.bf16.mxu0 0
        %3325 = vmatpush1.bf16.msra.mxu0 0
        %3326 = vmatprep.subr.bf16.mxu0 0
        %3327 = vmatpush1.bf16.msra.mxu0 0
        %3328 = vmatprep.subr.bf16.mxu0 0
        %3329 = vmatpush1.bf16.msra.mxu0 0
        %3330 = vmatprep.mubr.bf16.mxu0 0
        %3331 = vmatmul.mubr.bf16.gmra.mrb[0].mxu0 %v3278
        %v3332 = vpop.f32.mrb[0].mxu0
        %v3333 = vadd.f32 %v3264, %v3332
        %v3334 = vpop.f32.mrb[0].mxu0
        %v3335 = vpop.f32.mrb[0].mxu0
        %v3336 = vadd.f32 %v3264, %v3335
        %v3337 = vpop.f32.mrb[0].mxu0
        %3338 = vmatprep.mubr.bf16.mxu0 0
        %3339 = vmatmul.mubr.bf16.gmra.mrb[0].mxu0 %v3281
        %v3340 = vpop.f32.mrb[0].mxu0
        %v3341 = vadd.f32 %v3264, %v3340
        %v3342 = vpop.f32.mrb[0].mxu0
        %v3343 = vpop.f32.mrb[0].mxu0
        %v3344 = vadd.f32 %v3264, %v3343
        %v3345 = vpop.f32.mrb[0].mxu0
        %3346 = vmatprep.mubr.bf16.mxu0 0
        %3347 = vmatmul.mubr.bf16.gmra.mrb[0].mxu0 %v3284
        %v3348 = vpop.f32.mrb[0].mxu0
        %v3349 = vadd.f32 %v3264, %v3348
        %v3350 = vpop.f32.mrb[0].mxu0
        %v3351 = vpop.f32.mrb[0].mxu0
        %v3352 = vadd.f32 %v3264, %v3351
        %v3353 = vpop.f32.mrb[0].mxu0
        %3354 = vmatprep.mubr.bf16.mxu0 0
        %3355 = vmatmul.mubr.bf16.gmra.mrb[0].mxu0 %v3287
        %v3356 = vpop.f32.mrb[0].mxu0
        %v3357 = vadd.f32 %v3264, %v3356
        %v3358 = vpop.f32.mrb[0].mxu0
        %v3359 = vpop.f32.mrb[0].mxu0
        %v3360 = vadd.f32 %v3264, %v3359
        %v3361 = vpop.f32.mrb[0].mxu0
        %3362 = vmatprep.mubr.bf16.mxu0 0
        %3363 = vmatmul.mubr.bf16.gmra.mrb[0].mxu0 %v3290
        %v3364 = vpop.f32.mrb[0].mxu0
        %v3365 = vadd.f32 %v3264, %v3364
        %v3366 = vpop.f32.mrb[0].mxu0
        %v3367 = vpop.f32.mrb[0].mxu0
        %v3368 = vadd.f32 %v3264, %v3367
        %v3369 = vpop.f32.mrb[0].mxu0
        %3370 = vmatprep.mubr.bf16.mxu0 0
        %3371 = vmatmul.mubr.bf16.gmra.mrb[0].mxu0 %v3293
        %v3372 = vpop.f32.mrb[0].mxu0
        %v3373 = vadd.f32 %v3264, %v3372
        %v3374 = vpop.f32.mrb[0].mxu0
        %v3375 = vpop.f32.mrb[0].mxu0
        %v3376 = vadd.f32 %v3264, %v3375
        %v3377 = vpop.f32.mrb[0].mxu0
        %3378 = vmatprep.mubr.bf16.mxu0 0
        %3379 = vmatmul.mubr.bf16.gmra.mrb[0].mxu0 %v3296
        %v3380 = vpop.f32.mrb[0].mxu0
        %v3381 = vadd.f32 %v3264, %v3380
        %v3382 = vpop.f32.mrb[0].mxu0
        %v3383 = vpop.f32.mrb[0].mxu0
        %v3384 = vadd.f32 %v3264, %v3383
        %v3385 = vpop.f32.mrb[0].mxu0
        %3386 = vdwg.mxu0
        %v3387 = vadd.f32 %v928, %v3333
        %v3388 = vadd.f32 %v931, %v3336
        %v3389 = vadd.f32 %v936, %v3341
        %v3390 = vadd.f32 %v939, %v3344
        %v3391 = vadd.f32 %v944, %v3349
        %v3392 = vadd.f32 %v947, %v3352
        %v3393 = vadd.f32 %v952, %v3357
        %v3394 = vadd.f32 %v955, %v3360
        %v3395 = vadd.f32 %v960, %v3365
        %v3396 = vadd.f32 %v963, %v3368
        %v3397 = vadd.f32 %v968, %v3373
        %v3398 = vadd.f32 %v971, %v3376
        %v3399 = vadd.f32 %v976, %v3381
        %v3400 = vadd.f32 %v979, %v3384
        %v3401 = vsel %vm1010, %v3387, 0.0
        %3402 = vadd.xlane.f32.xlu0 %v3401
        %v3403 = vpop.xlane.xlu0 %3402
        %v3404 = vsel %vm1010, %v3388, 0.0
        %3405 = vadd.xlane.f32.xlu0 %v3404
        %v3406 = vpop.xlane.xlu0 %3405
        %v3407 = vsel %vm1010, %v3389, 0.0
        %3408 = vadd.xlane.f32.xlu0 %v3407
        %v3409 = vpop.xlane.xlu0 %3408
        %v3410 = vsel %vm1010, %v3390, 0.0
        %3411 = vadd.xlane.f32.xlu0 %v3410
        %v3412 = vpop.xlane.xlu0 %3411
        %v3413 = vsel %vm1010, %v3391, 0.0
        %3414 = vadd.xlane.f32.xlu0 %v3413
        %v3415 = vpop.xlane.xlu0 %3414
        %v3416 = vsel %vm1010, %v3392, 0.0
        %3417 = vadd.xlane.f32.xlu0 %v3416
        %v3418 = vpop.xlane.xlu0 %3417
        %v3419 = vsel %vm1010, %v3393, 0.0
        %3420 = vadd.xlane.f32.xlu0 %v3419
        %v3421 = vpop.xlane.xlu0 %3420
        %v3422 = vsel %vm1010, %v3394, 0.0
        %3423 = vadd.xlane.f32.xlu0 %v3422
        %v3424 = vpop.xlane.xlu0 %3423
        %v3425 = vsel %vm1010, %v3395, 0.0
        %3426 = vadd.xlane.f32.xlu0 %v3425
        %v3427 = vpop.xlane.xlu0 %3426
        %v3428 = vsel %vm1010, %v3396, 0.0
        %3429 = vadd.xlane.f32.xlu0 %v3428
        %v3430 = vpop.xlane.xlu0 %3429
        %v3431 = vsel %vm1010, %v3397, 0.0
        %3432 = vadd.xlane.f32.xlu0 %v3431
        %v3433 = vpop.xlane.xlu0 %3432
        %v3434 = vsel %vm1010, %v3398, 0.0
        %3435 = vadd.xlane.f32.xlu0 %v3434
        %v3436 = vpop.xlane.xlu0 %3435
        %v3437 = vsel %vm1010, %v3399, 0.0
        %3438 = vadd.xlane.f32.xlu0 %v3437
        %v3439 = vpop.xlane.xlu0 %3438
        %v3440 = vsel %vm1010, %v3400, 0.0
        %3441 = vadd.xlane.f32.xlu0 %v3440
        %v3442 = vpop.xlane.xlu0 %3441
        %v3443 = vrcp.pop 32.0
        %v3444 = vmul.f32 %v3403, %v3443
        %v3445 = vmul.f32 %v3406, %v3443
        %v3446 = vmul.f32 %v3409, %v3443
        %v3447 = vmul.f32 %v3412, %v3443
        %v3448 = vmul.f32 %v3415, %v3443
        %v3449 = vmul.f32 %v3418, %v3443
        %v3450 = vmul.f32 %v3421, %v3443
        %v3451 = vmul.f32 %v3424, %v3443
        %v3452 = vmul.f32 %v3427, %v3443
        %v3453 = vmul.f32 %v3430, %v3443
        %v3454 = vmul.f32 %v3433, %v3443
        %v3455 = vmul.f32 %v3436, %v3443
        %v3456 = vmul.f32 %v3439, %v3443
        %v3457 = vmul.f32 %v3442, %v3443
        %v3458 = vsub.f32 %v3387, %v3444
        %v3459 = vsub.f32 %v3388, %v3445
        %v3460 = vsub.f32 %v3389, %v3446
        %v3461 = vsub.f32 %v3390, %v3447
        %v3462 = vsub.f32 %v3391, %v3448
        %v3463 = vsub.f32 %v3392, %v3449
        %v3464 = vsub.f32 %v3393, %v3450
        %v3465 = vsub.f32 %v3394, %v3451
        %v3466 = vsub.f32 %v3395, %v3452
        %v3467 = vsub.f32 %v3396, %v3453
        %v3468 = vsub.f32 %v3397, %v3454
        %v3469 = vsub.f32 %v3398, %v3455
        %v3470 = vsub.f32 %v3399, %v3456
        %v3471 = vsub.f32 %v3400, %v3457
        %v3472 = vmul.f32 %v3458, %v3458
        %v3473 = vmul.f32 %v3459, %v3459
        %v3474 = vmul.f32 %v3460, %v3460
        %v3475 = vmul.f32 %v3461, %v3461
        %v3476 = vmul.f32 %v3462, %v3462
        %v3477 = vmul.f32 %v3463, %v3463
        %v3478 = vmul.f32 %v3464, %v3464
        %v3479 = vmul.f32 %v3465, %v3465
        %v3480 = vmul.f32 %v3466, %v3466
        %v3481 = vmul.f32 %v3467, %v3467
        %v3482 = vmul.f32 %v3468, %v3468
        %v3483 = vmul.f32 %v3469, %v3469
        %v3484 = vmul.f32 %v3470, %v3470
        %v3485 = vmul.f32 %v3471, %v3471
        %v3486 = vsel %vm1010, %v3472, 0.0
        %3487 = vadd.xlane.f32.xlu0 %v3486
        %v3488 = vpop.xlane.xlu0 %3487
        %v3489 = vsel %vm1010, %v3473, 0.0
        %3490 = vadd.xlane.f32.xlu0 %v3489
        %v3491 = vpop.xlane.xlu0 %3490
        %v3492 = vsel %vm1010, %v3474, 0.0
        %3493 = vadd.xlane.f32.xlu0 %v3492
        %v3494 = vpop.xlane.xlu0 %3493
        %v3495 = vsel %vm1010, %v3475, 0.0
        %3496 = vadd.xlane.f32.xlu0 %v3495
        %v3497 = vpop.xlane.xlu0 %3496
        %v3498 = vsel %vm1010, %v3476, 0.0
        %3499 = vadd.xlane.f32.xlu0 %v3498
        %v3500 = vpop.xlane.xlu0 %3499
        %v3501 = vsel %vm1010, %v3477, 0.0
        %3502 = vadd.xlane.f32.xlu0 %v3501
        %v3503 = vpop.xlane.xlu0 %3502
        %v3504 = vsel %vm1010, %v3478, 0.0
        %3505 = vadd.xlane.f32.xlu0 %v3504
        %v3506 = vpop.xlane.xlu0 %3505
        %v3507 = vsel %vm1010, %v3479, 0.0
        %3508 = vadd.xlane.f32.xlu0 %v3507
        %v3509 = vpop.xlane.xlu0 %3508
        %v3510 = vsel %vm1010, %v3480, 0.0
        %3511 = vadd.xlane.f32.xlu0 %v3510
        %v3512 = vpop.xlane.xlu0 %3511
        %v3513 = vsel %vm1010, %v3481, 0.0
        %3514 = vadd.xlane.f32.xlu0 %v3513
        %v3515 = vpop.xlane.xlu0 %3514
        %v3516 = vsel %vm1010, %v3482, 0.0
        %3517 = vadd.xlane.f32.xlu0 %v3516
        %v3518 = vpop.xlane.xlu0 %3517
        %v3519 = vsel %vm1010, %v3483, 0.0
        %3520 = vadd.xlane.f32.xlu0 %v3519
        %v3521 = vpop.xlane.xlu0 %3520
        %v3522 = vsel %vm1010, %v3484, 0.0
        %3523 = vadd.xlane.f32.xlu0 %v3522
        %v3524 = vpop.xlane.xlu0 %3523
        %v3525 = vsel %vm1010, %v3485, 0.0
        %3526 = vadd.xlane.f32.xlu0 %v3525
        %v3527 = vpop.xlane.xlu0 %3526
        %v3528 = vmul.f32 %v3488, %v3443
        %v3529 = vmul.f32 %v3491, %v3443
        %v3530 = vmul.f32 %v3494, %v3443
        %v3531 = vmul.f32 %v3497, %v3443
        %v3532 = vmul.f32 %v3500, %v3443
        %v3533 = vmul.f32 %v3503, %v3443
        %v3534 = vmul.f32 %v3506, %v3443
        %v3535 = vmul.f32 %v3509, %v3443
        %v3536 = vmul.f32 %v3512, %v3443
        %v3537 = vmul.f32 %v3515, %v3443
        %v3538 = vmul.f32 %v3518, %v3443
        %v3539 = vmul.f32 %v3521, %v3443
        %v3540 = vmul.f32 %v3524, %v3443
        %v3541 = vmul.f32 %v3527, %v3443
        %v3542 = vadd.f32 %v3528, 1e-05
        %v3543 = vadd.f32 %v3529, 1e-05
        %v3544 = vadd.f32 %v3530, 1e-05
        %v3545 = vadd.f32 %v3531, 1e-05
        %v3546 = vadd.f32 %v3532, 1e-05
        %v3547 = vadd.f32 %v3533, 1e-05
        %v3548 = vadd.f32 %v3534, 1e-05
        %v3549 = vadd.f32 %v3535, 1e-05
        %v3550 = vadd.f32 %v3536, 1e-05
        %v3551 = vadd.f32 %v3537, 1e-05
        %v3552 = vadd.f32 %v3538, 1e-05
        %v3553 = vadd.f32 %v3539, 1e-05
        %v3554 = vadd.f32 %v3540, 1e-05
        %v3555 = vadd.f32 %v3541, 1e-05
        %v3556 = vrsqrt.pop %v3542
        %v3557 = vrsqrt.pop %v3543
        %v3558 = vrsqrt.pop %v3544
        %v3559 = vrsqrt.pop %v3545
        %v3560 = vrsqrt.pop %v3546
        %v3561 = vrsqrt.pop %v3547
        %v3562 = vrsqrt.pop %v3548
        %v3563 = vrsqrt.pop %v3549
        %v3564 = vrsqrt.pop %v3550
        %v3565 = vrsqrt.pop %v3551
        %v3566 = vrsqrt.pop %v3552
        %v3567 = vrsqrt.pop %v3553
        %v3568 = vrsqrt.pop %v3554
        %v3569 = vrsqrt.pop %v3555
        %v3570 = vmul.f32 %v3458, %v3556
        %v3571 = vmul.f32 %v3459, %v3557
        %v3572 = vmul.f32 %v3460, %v3558
        %v3573 = vmul.f32 %v3461, %v3559
        %v3574 = vmul.f32 %v3462, %v3560
        %v3575 = vmul.f32 %v3463, %v3561
        %v3576 = vmul.f32 %v3464, %v3562
        %v3577 = vmul.f32 %v3465, %v3563
        %v3578 = vmul.f32 %v3466, %v3564
        %v3579 = vmul.f32 %v3467, %v3565
        %v3580 = vmul.f32 %v3468, %v3566
        %v3581 = vmul.f32 %v3469, %v3567
        %v3582 = vmul.f32 %v3470, %v3568
        %v3583 = vmul.f32 %v3471, %v3569
        %v3584 = vlaneseq
        %v3585 = vshrl.u32 %v3584, 7
        %v3586 = vsub.s32 4, %v3585
        %v3587 = vrot.slane %v982, %v3586
        %v3588 = vmul.f32 %v3570, %v3587
        %v3589 = vmul.f32 %v3571, %v3587
        %v3590 = vmul.f32 %v3572, %v3587
        %v3591 = vmul.f32 %v3573, %v3587
        %v3592 = vmul.f32 %v3574, %v3587
        %v3593 = vmul.f32 %v3575, %v3587
        %v3594 = vmul.f32 %v3576, %v3587
        %v3595 = vmul.f32 %v3577, %v3587
        %v3596 = vmul.f32 %v3578, %v3587
        %v3597 = vmul.f32 %v3579, %v3587
        %v3598 = vmul.f32 %v3580, %v3587
        %v3599 = vmul.f32 %v3581, %v3587
        %v3600 = vmul.f32 %v3582, %v3587
        %v3601 = vmul.f32 %v3583, %v3587
        %v3602 = vlaneseq
        %v3603 = vshrl.u32 %v3602, 7
        %v3604 = vsub.s32 5, %v3603
        %v3605 = vrot.slane %v982, %v3604
        %v3606 = vadd.f32 %v3588, %v3605
        %v3607 = vadd.f32 %v3589, %v3605
        %v3608 = vadd.f32 %v3590, %v3605
        %v3609 = vadd.f32 %v3591, %v3605
        %v3610 = vadd.f32 %v3592, %v3605
        %v3611 = vadd.f32 %v3593, %v3605
        %v3612 = vadd.f32 %v3594, %v3605
        %v3613 = vadd.f32 %v3595, %v3605
        %v3614 = vadd.f32 %v3596, %v3605
        %v3615 = vadd.f32 %v3597, %v3605
        %v3616 = vadd.f32 %v3598, %v3605
        %v3617 = vadd.f32 %v3599, %v3605
        %v3618 = vadd.f32 %v3600, %v3605
        %v3619 = vadd.f32 %v3601, %v3605
        %v3620 = vpack.c.bf16 %v3607, %v3606
        %v3621 = vpack.c.bf16 %v3609, %v3608
        %v3622 = vpack.c.bf16 %v3611, %v3610
        %v3623 = vpack.c.bf16 %v3613, %v3612
        %v3624 = vpack.c.bf16 %v3615, %v3614
        %v3625 = vpack.c.bf16 %v3617, %v3616
        %v3626 = vpack.c.bf16 %v3619, %v3618
        %v3627 = vld [vmem:[%s6] sm:$0xf]
        %v3628 = vld [vmem:[%s6 + $0x4] sm:$0xf]
        %v3629 = vld [vmem:[%s6 + $0x8] sm:$0xf]
        %v3630 = vld [vmem:[%s6 + $0xc] sm:$0xf]
        %v3631 = vlaneseq
        %v3632 = vshrl.u32 %v3631, 7
        %v3633 = vsub.s32 2, %v3632
        %v3634 = vrot.slane %v982, %v3633
        %v3639 = vunpack.c.l.b16 %v3627
        %v3640 = vunpack.c.l.b16 %v3628
        %v3641 = vunpack.c.l.b16 %v3629
        %v3642 = vunpack.c.l.b16 %v3630
        %v3643 = vpack.c.b16 %v3640, %v3639
        %v3644 = vpack.c.b16 %v3642, %v3641
        %v3648 = vsel %vm1010, %v3620, 0
        %v3651 = vsel %vm1010, %v3621, 0
        %v3654 = vsel %vm1010, %v3622, 0
        %v3657 = vsel %vm1010, %v3623, 0
        %v3660 = vsel %vm1010, %v3624, 0
        %v3663 = vsel %vm1010, %v3625, 0
        %v3666 = vsel %vm1010, %v3626, 0
        %3668 = vmatprep.subr.bf16.mxu0 0
        %3669 = vmatpush1.bf16.msra.mxu0 %v3643
        %3670 = vmatprep.subr.bf16.mxu0 0
        %3671 = vmatpush1.bf16.msra.mxu0 %v3644
        %3672 = vmatprep.subr.bf16.mxu0 0
        %3673 = vmatpush1.bf16.msra.mxu0 0
        %3674 = vmatprep.subr.bf16.mxu0 0
        %3675 = vmatpush1.bf16.msra.mxu0 0
        %3676 = vmatprep.subr.bf16.mxu0 0
        %3677 = vmatpush1.bf16.msra.mxu0 0
        %3678 = vmatprep.subr.bf16.mxu0 0
        %3679 = vmatpush1.bf16.msra.mxu0 0
        %3680 = vmatprep.subr.bf16.mxu0 0
        %3681 = vmatpush1.bf16.msra.mxu0 0
        %3682 = vmatprep.subr.bf16.mxu0 0
        %3683 = vmatpush1.bf16.msra.mxu0 0
        %3684 = vmatprep.subr.bf16.mxu0 0
        %3685 = vmatpush1.bf16.msra.mxu0 0
        %3686 = vmatprep.subr.bf16.mxu0 0
        %3687 = vmatpush1.bf16.msra.mxu0 0
        %3688 = vmatprep.subr.bf16.mxu0 0
        %3689 = vmatpush1.bf16.msra.mxu0 0
        %3690 = vmatprep.subr.bf16.mxu0 0
        %3691 = vmatpush1.bf16.msra.mxu0 0
        %3692 = vmatprep.subr.bf16.mxu0 0
        %3693 = vmatpush1.bf16.msra.mxu0 0
        %3694 = vmatprep.subr.bf16.mxu0 0
        %3695 = vmatpush1.bf16.msra.mxu0 0
        %3696 = vmatprep.subr.bf16.mxu0 0
        %3697 = vmatpush1.bf16.msra.mxu0 0
        %3698 = vmatprep.subr.bf16.mxu0 0
        %3699 = vmatpush1.bf16.msra.mxu0 0
        %3700 = vmatprep.mubr.bf16.mxu0 0
        %3701 = vmatmul.mubr.bf16.gmra.mrb[0].mxu0 %v3648
        %v3702 = vpop.f32.mrb[0].mxu0
        %v3703 = vadd.f32 %v3634, %v3702
        %v3704 = vpop.f32.mrb[0].mxu0
        %v3705 = vpop.f32.mrb[0].mxu0
        %v3706 = vadd.f32 %v3634, %v3705
        %v3707 = vpop.f32.mrb[0].mxu0
        %3708 = vmatprep.mubr.bf16.mxu0 0
        %3709 = vmatmul.mubr.bf16.gmra.mrb[0].mxu0 %v3651
        %v3710 = vpop.f32.mrb[0].mxu0
        %v3711 = vadd.f32 %v3634, %v3710
        %v3712 = vpop.f32.mrb[0].mxu0
        %v3713 = vpop.f32.mrb[0].mxu0
        %v3714 = vadd.f32 %v3634, %v3713
        %v3715 = vpop.f32.mrb[0].mxu0
        %3716 = vmatprep.mubr.bf16.mxu0 0
        %3717 = vmatmul.mubr.bf16.gmra.mrb[0].mxu0 %v3654
        %v3718 = vpop.f32.mrb[0].mxu0
        %v3719 = vadd.f32 %v3634, %v3718
        %v3720 = vpop.f32.mrb[0].mxu0
        %v3721 = vpop.f32.mrb[0].mxu0
        %v3722 = vadd.f32 %v3634, %v3721
        %v3723 = vpop.f32.mrb[0].mxu0
        %3724 = vmatprep.mubr.bf16.mxu0 0
        %3725 = vmatmul.mubr.bf16.gmra.mrb[0].mxu0 %v3657
        %v3726 = vpop.f32.mrb[0].mxu0
        %v3727 = vadd.f32 %v3634, %v3726
        %v3728 = vpop.f32.mrb[0].mxu0
        %v3729 = vpop.f32.mrb[0].mxu0
        %v3730 = vadd.f32 %v3634, %v3729
        %v3731 = vpop.f32.mrb[0].mxu0
        %3732 = vmatprep.mubr.bf16.mxu0 0
        %3733 = vmatmul.mubr.bf16.gmra.mrb[0].mxu0 %v3660
        %v3734 = vpop.f32.mrb[0].mxu0
        %v3735 = vadd.f32 %v3634, %v3734
        %v3736 = vpop.f32.mrb[0].mxu0
        %v3737 = vpop.f32.mrb[0].mxu0
        %v3738 = vadd.f32 %v3634, %v3737
        %v3739 = vpop.f32.mrb[0].mxu0
        %3740 = vmatprep.mubr.bf16.mxu0 0
        %3741 = vmatmul.mubr.bf16.gmra.mrb[0].mxu0 %v3663
        %v3742 = vpop.f32.mrb[0].mxu0
        %v3743 = vadd.f32 %v3634, %v3742
        %v3744 = vpop.f32.mrb[0].mxu0
        %v3745 = vpop.f32.mrb[0].mxu0
        %v3746 = vadd.f32 %v3634, %v3745
        %v3747 = vpop.f32.mrb[0].mxu0
        %3748 = vmatprep.mubr.bf16.mxu0 0
        %3749 = vmatmul.mubr.bf16.gmra.mrb[0].mxu0 %v3666
        %v3750 = vpop.f32.mrb[0].mxu0
        %v3751 = vadd.f32 %v3634, %v3750
        %v3752 = vpop.f32.mrb[0].mxu0
        %v3753 = vpop.f32.mrb[0].mxu0
        %v3754 = vadd.f32 %v3634, %v3753
        %v3755 = vpop.f32.mrb[0].mxu0
        %3756 = vdwg.mxu0
        %v3757 = vmax.f32 %v3703, 0.0
        %v3758 = vmax.f32 %v3706, 0.0
        %v3759 = vmax.f32 %v3711, 0.0
        %v3760 = vmax.f32 %v3714, 0.0
        %v3761 = vmax.f32 %v3719, 0.0
        %v3762 = vmax.f32 %v3722, 0.0
        %v3763 = vmax.f32 %v3727, 0.0
        %v3764 = vmax.f32 %v3730, 0.0
        %v3765 = vmax.f32 %v3735, 0.0
        %v3766 = vmax.f32 %v3738, 0.0
        %v3767 = vmax.f32 %v3743, 0.0
        %v3768 = vmax.f32 %v3746, 0.0
        %v3769 = vmax.f32 %v3751, 0.0
        %v3770 = vmax.f32 %v3754, 0.0
        %v3771 = vpack.c.bf16 %v3758, %v3757
        %v3772 = vpack.c.bf16 %v3760, %v3759
        %v3773 = vpack.c.bf16 %v3762, %v3761
        %v3774 = vpack.c.bf16 %v3764, %v3763
        %v3775 = vpack.c.bf16 %v3766, %v3765
        %v3776 = vpack.c.bf16 %v3768, %v3767
        %v3777 = vpack.c.bf16 %v3770, %v3769
        %v3778 = vld [vmem:[%s7] sm:$0xf]
        %v3779 = vld [vmem:[%s7 + $0x4] sm:$0xf]
        %v3780 = vld [vmem:[%s7 + $0x8] sm:$0xf]
        %v3781 = vld [vmem:[%s7 + $0xc] sm:$0xf]
        %v3782 = vld [vmem:[%s7 + $0x10] sm:$0xf]
        %v3783 = vld [vmem:[%s7 + $0x14] sm:$0xf]
        %v3784 = vld [vmem:[%s7 + $0x18] sm:$0xf]
        %v3785 = vld [vmem:[%s7 + $0x1c] sm:$0xf]
        %v3786 = vlaneseq
        %v3787 = vshrl.u32 %v3786, 7
        %v3788 = vsub.s32 3, %v3787
        %v3789 = vrot.slane %v982, %v3788
        %v3798 = vunpack.c.l.b16 %v3778
        %v3799 = vunpack.c.l.b16 %v3779
        %v3800 = vunpack.c.l.b16 %v3780
        %v3801 = vunpack.c.l.b16 %v3781
        %v3802 = vunpack.c.l.b16 %v3782
        %v3803 = vunpack.c.l.b16 %v3783
        %v3804 = vunpack.c.l.b16 %v3784
        %v3805 = vunpack.c.l.b16 %v3785
        %v3806 = vpack.c.b16 %v3799, %v3798
        %v3807 = vpack.c.b16 %v3801, %v3800
        %v3808 = vpack.c.b16 %v3803, %v3802
        %v3809 = vpack.c.b16 %v3805, %v3804
        %vm3814 = vcmask 523264
        %v3816 = vsel %vm3814, %v3771, 0
        %v3819 = vsel %vm3814, %v3772, 0
        %v3822 = vsel %vm3814, %v3773, 0
        %v3825 = vsel %vm3814, %v3774, 0
        %v3828 = vsel %vm3814, %v3775, 0
        %v3831 = vsel %vm3814, %v3776, 0
        %v3834 = vsel %vm3814, %v3777, 0
        %3836 = vmatprep.subr.bf16.mxu0 0
        %3837 = vmatpush1.bf16.msra.mxu0 %v3806
        %3838 = vmatprep.subr.bf16.mxu0 0
        %3839 = vmatpush1.bf16.msra.mxu0 %v3807
        %3840 = vmatprep.subr.bf16.mxu0 0
        %3841 = vmatpush1.bf16.msra.mxu0 %v3808
        %3842 = vmatprep.subr.bf16.mxu0 0
        %3843 = vmatpush1.bf16.msra.mxu0 %v3809
        %3844 = vmatprep.subr.bf16.mxu0 0
        %3845 = vmatpush1.bf16.msra.mxu0 0
        %3846 = vmatprep.subr.bf16.mxu0 0
        %3847 = vmatpush1.bf16.msra.mxu0 0
        %3848 = vmatprep.subr.bf16.mxu0 0
        %3849 = vmatpush1.bf16.msra.mxu0 0
        %3850 = vmatprep.subr.bf16.mxu0 0
        %3851 = vmatpush1.bf16.msra.mxu0 0
        %3852 = vmatprep.subr.bf16.mxu0 0
        %3853 = vmatpush1.bf16.msra.mxu0 0
        %3854 = vmatprep.subr.bf16.mxu0 0
        %3855 = vmatpush1.bf16.msra.mxu0 0
        %3856 = vmatprep.subr.bf16.mxu0 0
        %3857 = vmatpush1.bf16.msra.mxu0 0
        %3858 = vmatprep.subr.bf16.mxu0 0
        %3859 = vmatpush1.bf16.msra.mxu0 0
        %3860 = vmatprep.subr.bf16.mxu0 0
        %3861 = vmatpush1.bf16.msra.mxu0 0
        %3862 = vmatprep.subr.bf16.mxu0 0
        %3863 = vmatpush1.bf16.msra.mxu0 0
        %3864 = vmatprep.subr.bf16.mxu0 0
        %3865 = vmatpush1.bf16.msra.mxu0 0
        %3866 = vmatprep.subr.bf16.mxu0 0
        %3867 = vmatpush1.bf16.msra.mxu0 0
        %3868 = vmatprep.mubr.bf16.mxu0 0
        %3869 = vmatmul.mubr.bf16.gmra.mrb[0].mxu0 %v3816
        %v3870 = vpop.f32.mrb[0].mxu0
        %v3871 = vadd.f32 %v3789, %v3870
        %v3872 = vpop.f32.mrb[0].mxu0
        %v3873 = vpop.f32.mrb[0].mxu0
        %v3874 = vadd.f32 %v3789, %v3873
        %v3875 = vpop.f32.mrb[0].mxu0
        %3876 = vmatprep.mubr.bf16.mxu0 0
        %3877 = vmatmul.mubr.bf16.gmra.mrb[0].mxu0 %v3819
        %v3878 = vpop.f32.mrb[0].mxu0
        %v3879 = vadd.f32 %v3789, %v3878
        %v3880 = vpop.f32.mrb[0].mxu0
        %v3881 = vpop.f32.mrb[0].mxu0
        %v3882 = vadd.f32 %v3789, %v3881
        %v3883 = vpop.f32.mrb[0].mxu0
        %3884 = vmatprep.mubr.bf16.mxu0 0
        %3885 = vmatmul.mubr.bf16.gmra.mrb[0].mxu0 %v3822
        %v3886 = vpop.f32.mrb[0].mxu0
        %v3887 = vadd.f32 %v3789, %v3886
        %v3888 = vpop.f32.mrb[0].mxu0
        %v3889 = vpop.f32.mrb[0].mxu0
        %v3890 = vadd.f32 %v3789, %v3889
        %v3891 = vpop.f32.mrb[0].mxu0
        %3892 = vmatprep.mubr.bf16.mxu0 0
        %3893 = vmatmul.mubr.bf16.gmra.mrb[0].mxu0 %v3825
        %v3894 = vpop.f32.mrb[0].mxu0
        %v3895 = vadd.f32 %v3789, %v3894
        %v3896 = vpop.f32.mrb[0].mxu0
        %v3897 = vpop.f32.mrb[0].mxu0
        %v3898 = vadd.f32 %v3789, %v3897
        %v3899 = vpop.f32.mrb[0].mxu0
        %3900 = vmatprep.mubr.bf16.mxu0 0
        %3901 = vmatmul.mubr.bf16.gmra.mrb[0].mxu0 %v3828
        %v3902 = vpop.f32.mrb[0].mxu0
        %v3903 = vadd.f32 %v3789, %v3902
        %v3904 = vpop.f32.mrb[0].mxu0
        %v3905 = vpop.f32.mrb[0].mxu0
        %v3906 = vadd.f32 %v3789, %v3905
        %v3907 = vpop.f32.mrb[0].mxu0
        %3908 = vmatprep.mubr.bf16.mxu0 0
        %3909 = vmatmul.mubr.bf16.gmra.mrb[0].mxu0 %v3831
        %v3910 = vpop.f32.mrb[0].mxu0
        %v3911 = vadd.f32 %v3789, %v3910
        %v3912 = vpop.f32.mrb[0].mxu0
        %v3913 = vpop.f32.mrb[0].mxu0
        %v3914 = vadd.f32 %v3789, %v3913
        %v3915 = vpop.f32.mrb[0].mxu0
        %3916 = vmatprep.mubr.bf16.mxu0 0
        %3917 = vmatmul.mubr.bf16.gmra.mrb[0].mxu0 %v3834
        %v3918 = vpop.f32.mrb[0].mxu0
        %v3919 = vadd.f32 %v3789, %v3918
        %v3920 = vpop.f32.mrb[0].mxu0
        %v3921 = vpop.f32.mrb[0].mxu0
        %v3922 = vadd.f32 %v3789, %v3921
        %v3923 = vpop.f32.mrb[0].mxu0
        %3924 = vdwg.mxu0
        %v3925 = vadd.f32 %v3606, %v3871
        %v3926 = vadd.f32 %v3607, %v3874
        %v3927 = vadd.f32 %v3608, %v3879
        %v3928 = vadd.f32 %v3609, %v3882
        %v3929 = vadd.f32 %v3610, %v3887
        %v3930 = vadd.f32 %v3611, %v3890
        %v3931 = vadd.f32 %v3612, %v3895
        %v3932 = vadd.f32 %v3613, %v3898
        %v3933 = vadd.f32 %v3614, %v3903
        %v3934 = vadd.f32 %v3615, %v3906
        %v3935 = vadd.f32 %v3616, %v3911
        %v3936 = vadd.f32 %v3617, %v3914
        %v3937 = vadd.f32 %v3618, %v3919
        %v3938 = vadd.f32 %v3619, %v3922
        %v3939 = vsel %vm1010, %v3925, 0.0
        %3940 = vadd.xlane.f32.xlu0 %v3939
        %v3941 = vpop.xlane.xlu0 %3940
        %v3942 = vsel %vm1010, %v3926, 0.0
        %3943 = vadd.xlane.f32.xlu0 %v3942
        %v3944 = vpop.xlane.xlu0 %3943
        %v3945 = vsel %vm1010, %v3927, 0.0
        %3946 = vadd.xlane.f32.xlu0 %v3945
        %v3947 = vpop.xlane.xlu0 %3946
        %v3948 = vsel %vm1010, %v3928, 0.0
        %3949 = vadd.xlane.f32.xlu0 %v3948
        %v3950 = vpop.xlane.xlu0 %3949
        %v3951 = vsel %vm1010, %v3929, 0.0
        %3952 = vadd.xlane.f32.xlu0 %v3951
        %v3953 = vpop.xlane.xlu0 %3952
        %v3954 = vsel %vm1010, %v3930, 0.0
        %3955 = vadd.xlane.f32.xlu0 %v3954
        %v3956 = vpop.xlane.xlu0 %3955
        %v3957 = vsel %vm1010, %v3931, 0.0
        %3958 = vadd.xlane.f32.xlu0 %v3957
        %v3959 = vpop.xlane.xlu0 %3958
        %v3960 = vsel %vm1010, %v3932, 0.0
        %3961 = vadd.xlane.f32.xlu0 %v3960
        %v3962 = vpop.xlane.xlu0 %3961
        %v3963 = vsel %vm1010, %v3933, 0.0
        %3964 = vadd.xlane.f32.xlu0 %v3963
        %v3965 = vpop.xlane.xlu0 %3964
        %v3966 = vsel %vm1010, %v3934, 0.0
        %3967 = vadd.xlane.f32.xlu0 %v3966
        %v3968 = vpop.xlane.xlu0 %3967
        %v3969 = vsel %vm1010, %v3935, 0.0
        %3970 = vadd.xlane.f32.xlu0 %v3969
        %v3971 = vpop.xlane.xlu0 %3970
        %v3972 = vsel %vm1010, %v3936, 0.0
        %3973 = vadd.xlane.f32.xlu0 %v3972
        %v3974 = vpop.xlane.xlu0 %3973
        %v3975 = vsel %vm1010, %v3937, 0.0
        %3976 = vadd.xlane.f32.xlu0 %v3975
        %v3977 = vpop.xlane.xlu0 %3976
        %v3978 = vsel %vm1010, %v3938, 0.0
        %3979 = vadd.xlane.f32.xlu0 %v3978
        %v3980 = vpop.xlane.xlu0 %3979
        %v3981 = vmul.f32 %v3941, %v3443
        %v3982 = vmul.f32 %v3944, %v3443
        %v3983 = vmul.f32 %v3947, %v3443
        %v3984 = vmul.f32 %v3950, %v3443
        %v3985 = vmul.f32 %v3953, %v3443
        %v3986 = vmul.f32 %v3956, %v3443
        %v3987 = vmul.f32 %v3959, %v3443
        %v3988 = vmul.f32 %v3962, %v3443
        %v3989 = vmul.f32 %v3965, %v3443
        %v3990 = vmul.f32 %v3968, %v3443
        %v3991 = vmul.f32 %v3971, %v3443
        %v3992 = vmul.f32 %v3974, %v3443
        %v3993 = vmul.f32 %v3977, %v3443
        %v3994 = vmul.f32 %v3980, %v3443
        %v3995 = vsub.f32 %v3925, %v3981
        %v3996 = vsub.f32 %v3926, %v3982
        %v3997 = vsub.f32 %v3927, %v3983
        %v3998 = vsub.f32 %v3928, %v3984
        %v3999 = vsub.f32 %v3929, %v3985
        %v4000 = vsub.f32 %v3930, %v3986
        %v4001 = vsub.f32 %v3931, %v3987
        %v4002 = vsub.f32 %v3932, %v3988
        %v4003 = vsub.f32 %v3933, %v3989
        %v4004 = vsub.f32 %v3934, %v3990
        %v4005 = vsub.f32 %v3935, %v3991
        %v4006 = vsub.f32 %v3936, %v3992
        %v4007 = vsub.f32 %v3937, %v3993
        %v4008 = vsub.f32 %v3938, %v3994
        %v4009 = vmul.f32 %v3995, %v3995
        %v4010 = vmul.f32 %v3996, %v3996
        %v4011 = vmul.f32 %v3997, %v3997
        %v4012 = vmul.f32 %v3998, %v3998
        %v4013 = vmul.f32 %v3999, %v3999
        %v4014 = vmul.f32 %v4000, %v4000
        %v4015 = vmul.f32 %v4001, %v4001
        %v4016 = vmul.f32 %v4002, %v4002
        %v4017 = vmul.f32 %v4003, %v4003
        %v4018 = vmul.f32 %v4004, %v4004
        %v4019 = vmul.f32 %v4005, %v4005
        %v4020 = vmul.f32 %v4006, %v4006
        %v4021 = vmul.f32 %v4007, %v4007
        %v4022 = vmul.f32 %v4008, %v4008
        %v4023 = vsel %vm1010, %v4009, 0.0
        %4024 = vadd.xlane.f32.xlu0 %v4023
        %v4025 = vpop.xlane.xlu0 %4024
        %v4026 = vsel %vm1010, %v4010, 0.0
        %4027 = vadd.xlane.f32.xlu0 %v4026
        %v4028 = vpop.xlane.xlu0 %4027
        %v4029 = vsel %vm1010, %v4011, 0.0
        %4030 = vadd.xlane.f32.xlu0 %v4029
        %v4031 = vpop.xlane.xlu0 %4030
        %v4032 = vsel %vm1010, %v4012, 0.0
        %4033 = vadd.xlane.f32.xlu0 %v4032
        %v4034 = vpop.xlane.xlu0 %4033
        %v4035 = vsel %vm1010, %v4013, 0.0
        %4036 = vadd.xlane.f32.xlu0 %v4035
        %v4037 = vpop.xlane.xlu0 %4036
        %v4038 = vsel %vm1010, %v4014, 0.0
        %4039 = vadd.xlane.f32.xlu0 %v4038
        %v4040 = vpop.xlane.xlu0 %4039
        %v4041 = vsel %vm1010, %v4015, 0.0
        %4042 = vadd.xlane.f32.xlu0 %v4041
        %v4043 = vpop.xlane.xlu0 %4042
        %v4044 = vsel %vm1010, %v4016, 0.0
        %4045 = vadd.xlane.f32.xlu0 %v4044
        %v4046 = vpop.xlane.xlu0 %4045
        %v4047 = vsel %vm1010, %v4017, 0.0
        %4048 = vadd.xlane.f32.xlu0 %v4047
        %v4049 = vpop.xlane.xlu0 %4048
        %v4050 = vsel %vm1010, %v4018, 0.0
        %4051 = vadd.xlane.f32.xlu0 %v4050
        %v4052 = vpop.xlane.xlu0 %4051
        %v4053 = vsel %vm1010, %v4019, 0.0
        %4054 = vadd.xlane.f32.xlu0 %v4053
        %v4055 = vpop.xlane.xlu0 %4054
        %v4056 = vsel %vm1010, %v4020, 0.0
        %4057 = vadd.xlane.f32.xlu0 %v4056
        %v4058 = vpop.xlane.xlu0 %4057
        %v4059 = vsel %vm1010, %v4021, 0.0
        %4060 = vadd.xlane.f32.xlu0 %v4059
        %v4061 = vpop.xlane.xlu0 %4060
        %v4062 = vsel %vm1010, %v4022, 0.0
        %4063 = vadd.xlane.f32.xlu0 %v4062
        %v4064 = vpop.xlane.xlu0 %4063
        %v4065 = vmul.f32 %v4025, %v3443
        %v4066 = vmul.f32 %v4028, %v3443
        %v4067 = vmul.f32 %v4031, %v3443
        %v4068 = vmul.f32 %v4034, %v3443
        %v4069 = vmul.f32 %v4037, %v3443
        %v4070 = vmul.f32 %v4040, %v3443
        %v4071 = vmul.f32 %v4043, %v3443
        %v4072 = vmul.f32 %v4046, %v3443
        %v4073 = vmul.f32 %v4049, %v3443
        %v4074 = vmul.f32 %v4052, %v3443
        %v4075 = vmul.f32 %v4055, %v3443
        %v4076 = vmul.f32 %v4058, %v3443
        %v4077 = vmul.f32 %v4061, %v3443
        %v4078 = vmul.f32 %v4064, %v3443
        %v4079 = vadd.f32 %v4065, 1e-05
        %v4080 = vadd.f32 %v4066, 1e-05
        %v4081 = vadd.f32 %v4067, 1e-05
        %v4082 = vadd.f32 %v4068, 1e-05
        %v4083 = vadd.f32 %v4069, 1e-05
        %v4084 = vadd.f32 %v4070, 1e-05
        %v4085 = vadd.f32 %v4071, 1e-05
        %v4086 = vadd.f32 %v4072, 1e-05
        %v4087 = vadd.f32 %v4073, 1e-05
        %v4088 = vadd.f32 %v4074, 1e-05
        %v4089 = vadd.f32 %v4075, 1e-05
        %v4090 = vadd.f32 %v4076, 1e-05
        %v4091 = vadd.f32 %v4077, 1e-05
        %v4092 = vadd.f32 %v4078, 1e-05
        %v4093 = vrsqrt.pop %v4079
        %v4094 = vrsqrt.pop %v4080
        %v4095 = vrsqrt.pop %v4081
        %v4096 = vrsqrt.pop %v4082
        %v4097 = vrsqrt.pop %v4083
        %v4098 = vrsqrt.pop %v4084
        %v4099 = vrsqrt.pop %v4085
        %v4100 = vrsqrt.pop %v4086
        %v4101 = vrsqrt.pop %v4087
        %v4102 = vrsqrt.pop %v4088
        %v4103 = vrsqrt.pop %v4089
        %v4104 = vrsqrt.pop %v4090
        %v4105 = vrsqrt.pop %v4091
        %v4106 = vrsqrt.pop %v4092
        %v4107 = vmul.f32 %v3995, %v4093
        %v4108 = vmul.f32 %v3996, %v4094
        %v4109 = vmul.f32 %v3997, %v4095
        %v4110 = vmul.f32 %v3998, %v4096
        %v4111 = vmul.f32 %v3999, %v4097
        %v4112 = vmul.f32 %v4000, %v4098
        %v4113 = vmul.f32 %v4001, %v4099
        %v4114 = vmul.f32 %v4002, %v4100
        %v4115 = vmul.f32 %v4003, %v4101
        %v4116 = vmul.f32 %v4004, %v4102
        %v4117 = vmul.f32 %v4005, %v4103
        %v4118 = vmul.f32 %v4006, %v4104
        %v4119 = vmul.f32 %v4007, %v4105
        %v4120 = vmul.f32 %v4008, %v4106
        %v4121 = vlaneseq
        %v4122 = vshrl.u32 %v4121, 7
        %v4123 = vsub.s32 6, %v4122
        %v4124 = vrot.slane %v982, %v4123
        %v4125 = vmul.f32 %v4107, %v4124
        %v4126 = vmul.f32 %v4108, %v4124
        %v4127 = vmul.f32 %v4109, %v4124
        %v4128 = vmul.f32 %v4110, %v4124
        %v4129 = vmul.f32 %v4111, %v4124
        %v4130 = vmul.f32 %v4112, %v4124
        %v4131 = vmul.f32 %v4113, %v4124
        %v4132 = vmul.f32 %v4114, %v4124
        %v4133 = vmul.f32 %v4115, %v4124
        %v4134 = vmul.f32 %v4116, %v4124
        %v4135 = vmul.f32 %v4117, %v4124
        %v4136 = vmul.f32 %v4118, %v4124
        %v4137 = vmul.f32 %v4119, %v4124
        %v4138 = vmul.f32 %v4120, %v4124
        %v4139 = vlaneseq
        %v4140 = vshrl.u32 %v4139, 7
        %v4141 = vsub.s32 7, %v4140
        %v4142 = vrot.slane %v982, %v4141
        %v4143 = vadd.f32 %v4125, %v4142
        %v4144 = vadd.f32 %v4126, %v4142
        %v4145 = vadd.f32 %v4127, %v4142
        %v4146 = vadd.f32 %v4128, %v4142
        %v4147 = vadd.f32 %v4129, %v4142
        %v4148 = vadd.f32 %v4130, %v4142
        %v4149 = vadd.f32 %v4131, %v4142
        %v4150 = vadd.f32 %v4132, %v4142
        %v4151 = vadd.f32 %v4133, %v4142
        %v4152 = vadd.f32 %v4134, %v4142
        %v4153 = vadd.f32 %v4135, %v4142
        %v4154 = vadd.f32 %v4136, %v4142
        %v4155 = vadd.f32 %v4137, %v4142
        %v4156 = vadd.f32 %v4138, %v4142
        %s4157 = scalar_lea.vmem %s10, 8
        %v4158 = vld [vmem:[%s4157] sm:$0xff]
        %v4159 = vpack.c.bf16 %v4144, %v4143
        %v4160 = vpack.c.bf16 %v4146, %v4145
        %v4161 = vpack.c.bf16 %v4148, %v4147
        %v4162 = vpack.c.bf16 %v4150, %v4149
        %v4163 = vpack.c.bf16 %v4152, %v4151
        %v4164 = vpack.c.bf16 %v4154, %v4153
        %v4165 = vpack.c.bf16 %v4156, %v4155
        %s4166 = scalar_lea.vmem %s4, 16
        %v4167 = vld [vmem:[%s4166] sm:$0xf]
        %v4168 = vld [vmem:[%s4166 + $0x4] sm:$0xf]
        %v4169 = vld [vmem:[%s4166 + $0x8] sm:$0xf]
        %v4170 = vld [vmem:[%s4166 + $0xc] sm:$0xf]
        %v4171 = vlaneseq
        %v4172 = vshrl.u32 %v4171, 7
        %v4173 = vsub.s32 0, %v4172
        %v4174 = vrot.slane %v4158, %v4173
        %v4179 = vunpack.c.l.b16 %v4167
        %v4180 = vunpack.c.l.b16 %v4168
        %v4181 = vunpack.c.l.b16 %v4169
        %v4182 = vunpack.c.l.b16 %v4170
        %v4183 = vpack.c.b16 %v4180, %v4179
        %v4184 = vpack.c.b16 %v4182, %v4181
        %v4188 = vsel %vm1010, %v4159, 0
        %v4191 = vsel %vm1010, %v4160, 0
        %v4194 = vsel %vm1010, %v4161, 0
        %v4197 = vsel %vm1010, %v4162, 0
        %v4200 = vsel %vm1010, %v4163, 0
        %v4203 = vsel %vm1010, %v4164, 0
        %v4206 = vsel %vm1010, %v4165, 0
        %4208 = vmatprep.subr.bf16.mxu0 0
        %4209 = vmatpush1.bf16.msra.mxu0 %v4183
        %4210 = vmatprep.subr.bf16.mxu0 0
        %4211 = vmatpush1.bf16.msra.mxu0 %v4184
        %4212 = vmatprep.subr.bf16.mxu0 0
        %4213 = vmatpush1.bf16.msra.mxu0 0
        %4214 = vmatprep.subr.bf16.mxu0 0
        %4215 = vmatpush1.bf16.msra.mxu0 0
        %4216 = vmatprep.subr.bf16.mxu0 0
        %4217 = vmatpush1.bf16.msra.mxu0 0
        %4218 = vmatprep.subr.bf16.mxu0 0
        %4219 = vmatpush1.bf16.msra.mxu0 0
        %4220 = vmatprep.subr.bf16.mxu0 0
        %4221 = vmatpush1.bf16.msra.mxu0 0
        %4222 = vmatprep.subr.bf16.mxu0 0
        %4223 = vmatpush1.bf16.msra.mxu0 0
        %4224 = vmatprep.subr.bf16.mxu0 0
        %4225 = vmatpush1.bf16.msra.mxu0 0
        %4226 = vmatprep.subr.bf16.mxu0 0
        %4227 = vmatpush1.bf16.msra.mxu0 0
        %4228 = vmatprep.subr.bf16.mxu0 0
        %4229 = vmatpush1.bf16.msra.mxu0 0
        %4230 = vmatprep.subr.bf16.mxu0 0
        %4231 = vmatpush1.bf16.msra.mxu0 0
        %4232 = vmatprep.subr.bf16.mxu0 0
        %4233 = vmatpush1.bf16.msra.mxu0 0
        %4234 = vmatprep.subr.bf16.mxu0 0
        %4235 = vmatpush1.bf16.msra.mxu0 0
        %4236 = vmatprep.subr.bf16.mxu0 0
        %4237 = vmatpush1.bf16.msra.mxu0 0
        %4238 = vmatprep.subr.bf16.mxu0 0
        %4239 = vmatpush1.bf16.msra.mxu0 0
        %4240 = vmatprep.mubr.bf16.mxu0 0
        %4241 = vmatmul.mubr.bf16.gmra.mrb[0].mxu0 %v4188
        %v4242 = vpop.f32.mrb[0].mxu0
        %v4243 = vadd.f32 %v4174, %v4242
        %v4244 = vpop.f32.mrb[0].mxu0
        %v4245 = vpop.f32.mrb[0].mxu0
        %v4246 = vadd.f32 %v4174, %v4245
        %v4247 = vpop.f32.mrb[0].mxu0
        %4248 = vmatprep.mubr.bf16.mxu0 0
        %4249 = vmatmul.mubr.bf16.gmra.mrb[0].mxu0 %v4191
        %v4250 = vpop.f32.mrb[0].mxu0
        %v4251 = vadd.f32 %v4174, %v4250
        %v4252 = vpop.f32.mrb[0].mxu0
        %v4253 = vpop.f32.mrb[0].mxu0
        %v4254 = vadd.f32 %v4174, %v4253
        %v4255 = vpop.f32.mrb[0].mxu0
        %4256 = vmatprep.mubr.bf16.mxu0 0
        %4257 = vmatmul.mubr.bf16.gmra.mrb[0].mxu0 %v4194
        %v4258 = vpop.f32.mrb[0].mxu0
        %v4259 = vadd.f32 %v4174, %v4258
        %v4260 = vpop.f32.mrb[0].mxu0
        %v4261 = vpop.f32.mrb[0].mxu0
        %v4262 = vadd.f32 %v4174, %v4261
        %v4263 = vpop.f32.mrb[0].mxu0
        %4264 = vmatprep.mubr.bf16.mxu0 0
        %4265 = vmatmul.mubr.bf16.gmra.mrb[0].mxu0 %v4197
        %v4266 = vpop.f32.mrb[0].mxu0
        %v4267 = vadd.f32 %v4174, %v4266
        %v4268 = vpop.f32.mrb[0].mxu0
        %v4269 = vpop.f32.mrb[0].mxu0
        %v4270 = vadd.f32 %v4174, %v4269
        %v4271 = vpop.f32.mrb[0].mxu0
        %4272 = vmatprep.mubr.bf16.mxu0 0
        %4273 = vmatmul.mubr.bf16.gmra.mrb[0].mxu0 %v4200
        %v4274 = vpop.f32.mrb[0].mxu0
        %v4275 = vadd.f32 %v4174, %v4274
        %v4276 = vpop.f32.mrb[0].mxu0
        %v4277 = vpop.f32.mrb[0].mxu0
        %v4278 = vadd.f32 %v4174, %v4277
        %v4279 = vpop.f32.mrb[0].mxu0
        %4280 = vmatprep.mubr.bf16.mxu0 0
        %4281 = vmatmul.mubr.bf16.gmra.mrb[0].mxu0 %v4203
        %v4282 = vpop.f32.mrb[0].mxu0
        %v4283 = vadd.f32 %v4174, %v4282
        %v4284 = vpop.f32.mrb[0].mxu0
        %v4285 = vpop.f32.mrb[0].mxu0
        %v4286 = vadd.f32 %v4174, %v4285
        %v4287 = vpop.f32.mrb[0].mxu0
        %4288 = vmatprep.mubr.bf16.mxu0 0
        %4289 = vmatmul.mubr.bf16.gmra.mrb[0].mxu0 %v4206
        %v4290 = vpop.f32.mrb[0].mxu0
        %v4291 = vadd.f32 %v4174, %v4290
        %v4292 = vpop.f32.mrb[0].mxu0
        %v4293 = vpop.f32.mrb[0].mxu0
        %v4294 = vadd.f32 %v4174, %v4293
        %v4295 = vpop.f32.mrb[0].mxu0
        %4296 = vdwg.mxu0
        %v4297 = vpack.c.bf16 %v4246, %v4243
        %v4298 = vpack.c.bf16 %v4254, %v4251
        %v4299 = vpack.c.bf16 %v4262, %v4259
        %v4300 = vpack.c.bf16 %v4270, %v4267
        %v4301 = vpack.c.bf16 %v4278, %v4275
        %v4302 = vpack.c.bf16 %v4286, %v4283
        %v4303 = vpack.c.bf16 %v4294, %v4291
        %4311 = vrot.lane.b32.xlu0 %v4297, 96
        %v4312 = vpop.permute.xlu0 %4311
        %4313 = vrot.lane.b32.xlu0 %v4298, 96
        %v4314 = vpop.permute.xlu0 %4313
        %4315 = vrot.lane.b32.xlu0 %v4299, 96
        %v4316 = vpop.permute.xlu0 %4315
        %4317 = vrot.lane.b32.xlu0 %v4300, 96
        %v4318 = vpop.permute.xlu0 %4317
        %4319 = vrot.lane.b32.xlu0 %v4301, 96
        %v4320 = vpop.permute.xlu0 %4319
        %4321 = vrot.lane.b32.xlu0 %v4302, 96
        %v4322 = vpop.permute.xlu0 %4321
        %4323 = vrot.lane.b32.xlu0 %v4303, 96
        %v4324 = vpop.permute.xlu0 %4323
        %v4326 = vsel %vm1149, %v4297, 0
        %v4329 = vsel %vm1149, %v4298, 0
        %v4332 = vsel %vm1149, %v4299, 0
        %v4335 = vsel %vm1149, %v4300, 0
        %v4338 = vsel %vm1149, %v4301, 0
        %v4341 = vsel %vm1149, %v4302, 0
        %v4344 = vsel %vm1149, %v4303, 0
        %v4347 = vsel %vm1149, %v4312, 0
        %v4350 = vsel %vm1149, %v4314, 0
        %v4353 = vsel %vm1149, %v4316, 0
        %v4356 = vsel %vm1149, %v4318, 0
        %v4359 = vsel %vm1149, %v4320, 0
        %v4362 = vsel %vm1149, %v4322, 0
        %v4365 = vsel %vm1149, %v4324, 0
        %4367 = vmatprep.subr.bf16.mxu0 0
        %4368 = vmatpush1.bf16.xpose.msra.mxu0 %v4347
        %4369 = vmatprep.subr.bf16.mxu0 0
        %4370 = vmatpush1.bf16.xpose.msra.mxu0 %v4350
        %4371 = vmatprep.subr.bf16.mxu0 0
        %4372 = vmatpush1.bf16.xpose.msra.mxu0 %v4353
        %4373 = vmatprep.subr.bf16.mxu0 0
        %4374 = vmatpush1.bf16.xpose.msra.mxu0 %v4356
        %4375 = vmatprep.subr.bf16.mxu0 0
        %4376 = vmatpush1.bf16.xpose.msra.mxu0 %v4359
        %4377 = vmatprep.subr.bf16.mxu0 0
        %4378 = vmatpush1.bf16.xpose.msra.mxu0 %v4362
        %4379 = vmatprep.subr.bf16.mxu0 0
        %4380 = vmatpush1.bf16.xpose.msra.mxu0 %v4365
        %4381 = vmatprep.subr.bf16.mxu0 0
        %4382 = vmatpush1.bf16.xpose.msra.mxu0 0
        %4383 = vmatprep.subr.bf16.mxu0 0
        %4384 = vmatpush1.bf16.xpose.msra.mxu0 0
        %4385 = vmatprep.subr.bf16.mxu0 0
        %4386 = vmatpush1.bf16.xpose.msra.mxu0 0
        %4387 = vmatprep.subr.bf16.mxu0 0
        %4388 = vmatpush1.bf16.xpose.msra.mxu0 0
        %4389 = vmatprep.subr.bf16.mxu0 0
        %4390 = vmatpush1.bf16.xpose.msra.mxu0 0
        %4391 = vmatprep.subr.bf16.mxu0 0
        %4392 = vmatpush1.bf16.xpose.msra.mxu0 0
        %4393 = vmatprep.subr.bf16.mxu0 0
        %4394 = vmatpush1.bf16.xpose.msra.mxu0 0
        %4395 = vmatprep.subr.bf16.mxu0 0
        %4396 = vmatpush1.bf16.xpose.msra.mxu0 0
        %4397 = vmatprep.subr.bf16.mxu0 0
        %4398 = vmatpush1.bf16.xpose.msra.mxu0 0
        %4399 = vmatprep.mubr.bf16.mxu0 0
        %4400 = vmatmul.mubr.bf16.gmra.mrb[0].mxu0 %v4326
        %v4401 = vpop.f32.mrb[0].mxu0
        %v4402 = vadd.f32 0.0, %v4401
        %v4403 = vpop.f32.mrb[0].mxu0
        %v4404 = vpop.f32.mrb[0].mxu0
        %v4405 = vadd.f32 0.0, %v4404
        %v4406 = vpop.f32.mrb[0].mxu0
        %4407 = vmatprep.mubr.bf16.mxu0 0
        %4408 = vmatmul.mubr.bf16.gmra.mrb[0].mxu0 %v4329
        %v4409 = vpop.f32.mrb[0].mxu0
        %v4410 = vadd.f32 0.0, %v4409
        %v4411 = vpop.f32.mrb[0].mxu0
        %v4412 = vpop.f32.mrb[0].mxu0
        %v4413 = vadd.f32 0.0, %v4412
        %v4414 = vpop.f32.mrb[0].mxu0
        %4415 = vmatprep.mubr.bf16.mxu0 0
        %4416 = vmatmul.mubr.bf16.gmra.mrb[0].mxu0 %v4332
        %v4417 = vpop.f32.mrb[0].mxu0
        %v4418 = vadd.f32 0.0, %v4417
        %v4419 = vpop.f32.mrb[0].mxu0
        %v4420 = vpop.f32.mrb[0].mxu0
        %v4421 = vadd.f32 0.0, %v4420
        %v4422 = vpop.f32.mrb[0].mxu0
        %4423 = vmatprep.mubr.bf16.mxu0 0
        %4424 = vmatmul.mubr.bf16.gmra.mrb[0].mxu0 %v4335
        %v4425 = vpop.f32.mrb[0].mxu0
        %v4426 = vadd.f32 0.0, %v4425
        %v4427 = vpop.f32.mrb[0].mxu0
        %v4428 = vpop.f32.mrb[0].mxu0
        %v4429 = vadd.f32 0.0, %v4428
        %v4430 = vpop.f32.mrb[0].mxu0
        %4431 = vmatprep.mubr.bf16.mxu0 0
        %4432 = vmatmul.mubr.bf16.gmra.mrb[0].mxu0 %v4338
        %v4433 = vpop.f32.mrb[0].mxu0
        %v4434 = vadd.f32 0.0, %v4433
        %v4435 = vpop.f32.mrb[0].mxu0
        %v4436 = vpop.f32.mrb[0].mxu0
        %v4437 = vadd.f32 0.0, %v4436
        %v4438 = vpop.f32.mrb[0].mxu0
        %4439 = vmatprep.mubr.bf16.mxu0 0
        %4440 = vmatmul.mubr.bf16.gmra.mrb[0].mxu0 %v4341
        %v4441 = vpop.f32.mrb[0].mxu0
        %v4442 = vadd.f32 0.0, %v4441
        %v4443 = vpop.f32.mrb[0].mxu0
        %v4444 = vpop.f32.mrb[0].mxu0
        %v4445 = vadd.f32 0.0, %v4444
        %v4446 = vpop.f32.mrb[0].mxu0
        %4447 = vmatprep.mubr.bf16.mxu0 0
        %4448 = vmatmul.mubr.bf16.gmra.mrb[0].mxu0 %v4344
        %v4449 = vpop.f32.mrb[0].mxu0
        %v4450 = vadd.f32 0.0, %v4449
        %v4451 = vpop.f32.mrb[0].mxu0
        %v4452 = vpop.f32.mrb[0].mxu0
        %v4453 = vadd.f32 0.0, %v4452
        %v4454 = vpop.f32.mrb[0].mxu0
        %4455 = vdwg.mxu0
        %v4456 = vmul.f32 %v4402, 0.35355338
        %v4457 = vmul.f32 %v4405, 0.35355338
        %v4458 = vmul.f32 %v4410, 0.35355338
        %v4459 = vmul.f32 %v4413, 0.35355338
        %v4460 = vmul.f32 %v4418, 0.35355338
        %v4461 = vmul.f32 %v4421, 0.35355338
        %v4462 = vmul.f32 %v4426, 0.35355338
        %v4463 = vmul.f32 %v4429, 0.35355338
        %v4464 = vmul.f32 %v4434, 0.35355338
        %v4465 = vmul.f32 %v4437, 0.35355338
        %v4466 = vmul.f32 %v4442, 0.35355338
        %v4467 = vmul.f32 %v4445, 0.35355338
        %v4468 = vmul.f32 %v4450, 0.35355338
        %v4469 = vmul.f32 %v4453, 0.35355338
        %v4470 = vadd.f32 %v4456, %v444
        %v4471 = vadd.f32 %v4457, %v445
        %v4472 = vadd.f32 %v4458, %v446
        %v4473 = vadd.f32 %v4459, %v447
        %v4474 = vadd.f32 %v4460, %v448
        %v4475 = vadd.f32 %v4461, %v449
        %v4476 = vadd.f32 %v4462, %v450
        %v4477 = vadd.f32 %v4463, %v451
        %v4478 = vadd.f32 %v4464, %v452
        %v4479 = vadd.f32 %v4465, %v453
        %v4480 = vadd.f32 %v4466, %v454
        %v4481 = vadd.f32 %v4467, %v455
        %v4482 = vadd.f32 %v4468, %v456
        %v4483 = vadd.f32 %v4469, %v457
        %v4484 = vsel %vm1309, %v4470, -inf
        %4485 = vmax.xlane.f32.xlu0 %v4484
        %v4486 = vpop.xlane.xlu0 %4485
        %v4487 = vsel %vm1309, %v4471, -inf
        %4488 = vmax.xlane.f32.xlu0 %v4487
        %v4489 = vpop.xlane.xlu0 %4488
        %v4490 = vsel %vm1309, %v4472, -inf
        %4491 = vmax.xlane.f32.xlu0 %v4490
        %v4492 = vpop.xlane.xlu0 %4491
        %v4493 = vsel %vm1309, %v4473, -inf
        %4494 = vmax.xlane.f32.xlu0 %v4493
        %v4495 = vpop.xlane.xlu0 %4494
        %v4496 = vsel %vm1309, %v4474, -inf
        %4497 = vmax.xlane.f32.xlu0 %v4496
        %v4498 = vpop.xlane.xlu0 %4497
        %v4499 = vsel %vm1309, %v4475, -inf
        %4500 = vmax.xlane.f32.xlu0 %v4499
        %v4501 = vpop.xlane.xlu0 %4500
        %v4502 = vsel %vm1309, %v4476, -inf
        %4503 = vmax.xlane.f32.xlu0 %v4502
        %v4504 = vpop.xlane.xlu0 %4503
        %v4505 = vsel %vm1309, %v4477, -inf
        %4506 = vmax.xlane.f32.xlu0 %v4505
        %v4507 = vpop.xlane.xlu0 %4506
        %v4508 = vsel %vm1309, %v4478, -inf
        %4509 = vmax.xlane.f32.xlu0 %v4508
        %v4510 = vpop.xlane.xlu0 %4509
        %v4511 = vsel %vm1309, %v4479, -inf
        %4512 = vmax.xlane.f32.xlu0 %v4511
        %v4513 = vpop.xlane.xlu0 %4512
        %v4514 = vsel %vm1309, %v4480, -inf
        %4515 = vmax.xlane.f32.xlu0 %v4514
        %v4516 = vpop.xlane.xlu0 %4515
        %v4517 = vsel %vm1309, %v4481, -inf
        %4518 = vmax.xlane.f32.xlu0 %v4517
        %v4519 = vpop.xlane.xlu0 %4518
        %v4520 = vsel %vm1309, %v4482, -inf
        %4521 = vmax.xlane.f32.xlu0 %v4520
        %v4522 = vpop.xlane.xlu0 %4521
        %v4523 = vsel %vm1309, %v4483, -inf
        %4524 = vmax.xlane.f32.xlu0 %v4523
        %v4525 = vpop.xlane.xlu0 %4524
        %v4526 = vsub.f32 %v4470, %v4486
        %v4527 = vsub.f32 %v4471, %v4489
        %v4528 = vsub.f32 %v4472, %v4492
        %v4529 = vsub.f32 %v4473, %v4495
        %v4530 = vsub.f32 %v4474, %v4498
        %v4531 = vsub.f32 %v4475, %v4501
        %v4532 = vsub.f32 %v4476, %v4504
        %v4533 = vsub.f32 %v4477, %v4507
        %v4534 = vsub.f32 %v4478, %v4510
        %v4535 = vsub.f32 %v4479, %v4513
        %v4536 = vsub.f32 %v4480, %v4516
        %v4537 = vsub.f32 %v4481, %v4519
        %v4538 = vsub.f32 %v4482, %v4522
        %v4539 = vsub.f32 %v4483, %v4525
        %v4540 = vmul.f32 %v4526, 1.442695
        %v4541 = vpow.pop %v4540
        %v4542 = vmul.f32 %v4527, 1.442695
        %v4543 = vpow.pop %v4542
        %v4544 = vmul.f32 %v4528, 1.442695
        %v4545 = vpow.pop %v4544
        %v4546 = vmul.f32 %v4529, 1.442695
        %v4547 = vpow.pop %v4546
        %v4548 = vmul.f32 %v4530, 1.442695
        %v4549 = vpow.pop %v4548
        %v4550 = vmul.f32 %v4531, 1.442695
        %v4551 = vpow.pop %v4550
        %v4552 = vmul.f32 %v4532, 1.442695
        %v4553 = vpow.pop %v4552
        %v4554 = vmul.f32 %v4533, 1.442695
        %v4555 = vpow.pop %v4554
        %v4556 = vmul.f32 %v4534, 1.442695
        %v4557 = vpow.pop %v4556
        %v4558 = vmul.f32 %v4535, 1.442695
        %v4559 = vpow.pop %v4558
        %v4560 = vmul.f32 %v4536, 1.442695
        %v4561 = vpow.pop %v4560
        %v4562 = vmul.f32 %v4537, 1.442695
        %v4563 = vpow.pop %v4562
        %v4564 = vmul.f32 %v4538, 1.442695
        %v4565 = vpow.pop %v4564
        %v4566 = vmul.f32 %v4539, 1.442695
        %v4567 = vpow.pop %v4566
        %v4568 = vsel %vm1309, %v4541, 0.0
        %4569 = vadd.xlane.f32.xlu0 %v4568
        %v4570 = vpop.xlane.xlu0 %4569
        %v4571 = vsel %vm1309, %v4543, 0.0
        %4572 = vadd.xlane.f32.xlu0 %v4571
        %v4573 = vpop.xlane.xlu0 %4572
        %v4574 = vsel %vm1309, %v4545, 0.0
        %4575 = vadd.xlane.f32.xlu0 %v4574
        %v4576 = vpop.xlane.xlu0 %4575
        %v4577 = vsel %vm1309, %v4547, 0.0
        %4578 = vadd.xlane.f32.xlu0 %v4577
        %v4579 = vpop.xlane.xlu0 %4578
        %v4580 = vsel %vm1309, %v4549, 0.0
        %4581 = vadd.xlane.f32.xlu0 %v4580
        %v4582 = vpop.xlane.xlu0 %4581
        %v4583 = vsel %vm1309, %v4551, 0.0
        %4584 = vadd.xlane.f32.xlu0 %v4583
        %v4585 = vpop.xlane.xlu0 %4584
        %v4586 = vsel %vm1309, %v4553, 0.0
        %4587 = vadd.xlane.f32.xlu0 %v4586
        %v4588 = vpop.xlane.xlu0 %4587
        %v4589 = vsel %vm1309, %v4555, 0.0
        %4590 = vadd.xlane.f32.xlu0 %v4589
        %v4591 = vpop.xlane.xlu0 %4590
        %v4592 = vsel %vm1309, %v4557, 0.0
        %4593 = vadd.xlane.f32.xlu0 %v4592
        %v4594 = vpop.xlane.xlu0 %4593
        %v4595 = vsel %vm1309, %v4559, 0.0
        %4596 = vadd.xlane.f32.xlu0 %v4595
        %v4597 = vpop.xlane.xlu0 %4596
        %v4598 = vsel %vm1309, %v4561, 0.0
        %4599 = vadd.xlane.f32.xlu0 %v4598
        %v4600 = vpop.xlane.xlu0 %4599
        %v4601 = vsel %vm1309, %v4563, 0.0
        %4602 = vadd.xlane.f32.xlu0 %v4601
        %v4603 = vpop.xlane.xlu0 %4602
        %v4604 = vsel %vm1309, %v4565, 0.0
        %4605 = vadd.xlane.f32.xlu0 %v4604
        %v4606 = vpop.xlane.xlu0 %4605
        %v4607 = vsel %vm1309, %v4567, 0.0
        %4608 = vadd.xlane.f32.xlu0 %v4607
        %v4609 = vpop.xlane.xlu0 %4608
        %v4610 = vrcp.pop %v4570
        %v4611 = vrcp.pop %v4573
        %v4612 = vrcp.pop %v4576
        %v4613 = vrcp.pop %v4579
        %v4614 = vrcp.pop %v4582
        %v4615 = vrcp.pop %v4585
        %v4616 = vrcp.pop %v4588
        %v4617 = vrcp.pop %v4591
        %v4618 = vrcp.pop %v4594
        %v4619 = vrcp.pop %v4597
        %v4620 = vrcp.pop %v4600
        %v4621 = vrcp.pop %v4603
        %v4622 = vrcp.pop %v4606
        %v4623 = vrcp.pop %v4609
        %v4624 = vmul.f32 %v4541, %v4610
        %v4625 = vmul.f32 %v4543, %v4611
        %v4626 = vmul.f32 %v4545, %v4612
        %v4627 = vmul.f32 %v4547, %v4613
        %v4628 = vmul.f32 %v4549, %v4614
        %v4629 = vmul.f32 %v4551, %v4615
        %v4630 = vmul.f32 %v4553, %v4616
        %v4631 = vmul.f32 %v4555, %v4617
        %v4632 = vmul.f32 %v4557, %v4618
        %v4633 = vmul.f32 %v4559, %v4619
        %v4634 = vmul.f32 %v4561, %v4620
        %v4635 = vmul.f32 %v4563, %v4621
        %v4636 = vmul.f32 %v4565, %v4622
        %v4637 = vmul.f32 %v4567, %v4623
        %v4638 = vpack.c.bf16 %v4625, %v4624
        %v4639 = vpack.c.bf16 %v4627, %v4626
        %v4640 = vpack.c.bf16 %v4629, %v4628
        %v4641 = vpack.c.bf16 %v4631, %v4630
        %v4642 = vpack.c.bf16 %v4633, %v4632
        %v4643 = vpack.c.bf16 %v4635, %v4634
        %v4644 = vpack.c.bf16 %v4637, %v4636
        %4645 = vrot.lane.b32.xlu0 %v4297, 64
        %v4646 = vpop.permute.xlu0 %4645
        %4647 = vrot.lane.b32.xlu0 %v4298, 64
        %v4648 = vpop.permute.xlu0 %4647
        %4649 = vrot.lane.b32.xlu0 %v4299, 64
        %v4650 = vpop.permute.xlu0 %4649
        %4651 = vrot.lane.b32.xlu0 %v4300, 64
        %v4652 = vpop.permute.xlu0 %4651
        %4653 = vrot.lane.b32.xlu0 %v4301, 64
        %v4654 = vpop.permute.xlu0 %4653
        %4655 = vrot.lane.b32.xlu0 %v4302, 64
        %v4656 = vpop.permute.xlu0 %4655
        %4657 = vrot.lane.b32.xlu0 %v4303, 64
        %v4658 = vpop.permute.xlu0 %4657
        %v4667 = vsel %vm1309, %v4638, 0
        %v4670 = vsel %vm1309, %v4639, 0
        %v4673 = vsel %vm1309, %v4640, 0
        %v4676 = vsel %vm1309, %v4641, 0
        %v4679 = vsel %vm1309, %v4642, 0
        %v4682 = vsel %vm1309, %v4643, 0
        %v4685 = vsel %vm1309, %v4644, 0
        %4687 = vmatprep.subr.bf16.mxu0 0
        %4688 = vmatpush1.bf16.msra.mxu0 %v4646
        %4689 = vmatprep.subr.bf16.mxu0 0
        %4690 = vmatpush1.bf16.msra.mxu0 %v4648
        %4691 = vmatprep.subr.bf16.mxu0 0
        %4692 = vmatpush1.bf16.msra.mxu0 %v4650
        %4693 = vmatprep.subr.bf16.mxu0 0
        %4694 = vmatpush1.bf16.msra.mxu0 %v4652
        %4695 = vmatprep.subr.bf16.mxu0 0
        %4696 = vmatpush1.bf16.msra.mxu0 %v4654
        %4697 = vmatprep.subr.bf16.mxu0 0
        %4698 = vmatpush1.bf16.msra.mxu0 %v4656
        %4699 = vmatprep.subr.bf16.mxu0 0
        %4700 = vmatpush1.bf16.msra.mxu0 %v4658
        %4701 = vmatprep.subr.bf16.mxu0 0
        %4702 = vmatpush1.bf16.msra.mxu0 0
        %4703 = vmatprep.subr.bf16.mxu0 0
        %4704 = vmatpush1.bf16.msra.mxu0 0
        %4705 = vmatprep.subr.bf16.mxu0 0
        %4706 = vmatpush1.bf16.msra.mxu0 0
        %4707 = vmatprep.subr.bf16.mxu0 0
        %4708 = vmatpush1.bf16.msra.mxu0 0
        %4709 = vmatprep.subr.bf16.mxu0 0
        %4710 = vmatpush1.bf16.msra.mxu0 0
        %4711 = vmatprep.subr.bf16.mxu0 0
        %4712 = vmatpush1.bf16.msra.mxu0 0
        %4713 = vmatprep.subr.bf16.mxu0 0
        %4714 = vmatpush1.bf16.msra.mxu0 0
        %4715 = vmatprep.subr.bf16.mxu0 0
        %4716 = vmatpush1.bf16.msra.mxu0 0
        %4717 = vmatprep.subr.bf16.mxu0 0
        %4718 = vmatpush1.bf16.msra.mxu0 0
        %4719 = vmatprep.mubr.bf16.mxu0 0
        %4720 = vmatmul.mubr.bf16.gmra.mrb[0].mxu0 %v4667
        %v4721 = vpop.f32.mrb[0].mxu0
        %v4722 = vadd.f32 0.0, %v4721
        %v4723 = vpop.f32.mrb[0].mxu0
        %v4724 = vpop.f32.mrb[0].mxu0
        %v4725 = vadd.f32 0.0, %v4724
        %v4726 = vpop.f32.mrb[0].mxu0
        %4727 = vmatprep.mubr.bf16.mxu0 0
        %4728 = vmatmul.mubr.bf16.gmra.mrb[0].mxu0 %v4670
        %v4729 = vpop.f32.mrb[0].mxu0
        %v4730 = vadd.f32 0.0, %v4729
        %v4731 = vpop.f32.mrb[0].mxu0
        %v4732 = vpop.f32.mrb[0].mxu0
        %v4733 = vadd.f32 0.0, %v4732
        %v4734 = vpop.f32.mrb[0].mxu0
        %4735 = vmatprep.mubr.bf16.mxu0 0
        %4736 = vmatmul.mubr.bf16.gmra.mrb[0].mxu0 %v4673
        %v4737 = vpop.f32.mrb[0].mxu0
        %v4738 = vadd.f32 0.0, %v4737
        %v4739 = vpop.f32.mrb[0].mxu0
        %v4740 = vpop.f32.mrb[0].mxu0
        %v4741 = vadd.f32 0.0, %v4740
        %v4742 = vpop.f32.mrb[0].mxu0
        %4743 = vmatprep.mubr.bf16.mxu0 0
        %4744 = vmatmul.mubr.bf16.gmra.mrb[0].mxu0 %v4676
        %v4745 = vpop.f32.mrb[0].mxu0
        %v4746 = vadd.f32 0.0, %v4745
        %v4747 = vpop.f32.mrb[0].mxu0
        %v4748 = vpop.f32.mrb[0].mxu0
        %v4749 = vadd.f32 0.0, %v4748
        %v4750 = vpop.f32.mrb[0].mxu0
        %4751 = vmatprep.mubr.bf16.mxu0 0
        %4752 = vmatmul.mubr.bf16.gmra.mrb[0].mxu0 %v4679
        %v4753 = vpop.f32.mrb[0].mxu0
        %v4754 = vadd.f32 0.0, %v4753
        %v4755 = vpop.f32.mrb[0].mxu0
        %v4756 = vpop.f32.mrb[0].mxu0
        %v4757 = vadd.f32 0.0, %v4756
        %v4758 = vpop.f32.mrb[0].mxu0
        %4759 = vmatprep.mubr.bf16.mxu0 0
        %4760 = vmatmul.mubr.bf16.gmra.mrb[0].mxu0 %v4682
        %v4761 = vpop.f32.mrb[0].mxu0
        %v4762 = vadd.f32 0.0, %v4761
        %v4763 = vpop.f32.mrb[0].mxu0
        %v4764 = vpop.f32.mrb[0].mxu0
        %v4765 = vadd.f32 0.0, %v4764
        %v4766 = vpop.f32.mrb[0].mxu0
        %4767 = vmatprep.mubr.bf16.mxu0 0
        %4768 = vmatmul.mubr.bf16.gmra.mrb[0].mxu0 %v4685
        %v4769 = vpop.f32.mrb[0].mxu0
        %v4770 = vadd.f32 0.0, %v4769
        %v4771 = vpop.f32.mrb[0].mxu0
        %v4772 = vpop.f32.mrb[0].mxu0
        %v4773 = vadd.f32 0.0, %v4772
        %v4774 = vpop.f32.mrb[0].mxu0
        %4775 = vdwg.mxu0
        %4776 = vrot.lane.b32.xlu0 %v4297, 120
        %v4777 = vpop.permute.xlu0 %4776
        %4778 = vrot.lane.b32.xlu0 %v4298, 120
        %v4779 = vpop.permute.xlu0 %4778
        %4780 = vrot.lane.b32.xlu0 %v4299, 120
        %v4781 = vpop.permute.xlu0 %4780
        %4782 = vrot.lane.b32.xlu0 %v4300, 120
        %v4783 = vpop.permute.xlu0 %4782
        %4784 = vrot.lane.b32.xlu0 %v4301, 120
        %v4785 = vpop.permute.xlu0 %4784
        %4786 = vrot.lane.b32.xlu0 %v4302, 120
        %v4787 = vpop.permute.xlu0 %4786
        %4788 = vrot.lane.b32.xlu0 %v4303, 120
        %v4789 = vpop.permute.xlu0 %4788
        %4790 = vrot.lane.b32.xlu0 %v4297, 88
        %v4791 = vpop.permute.xlu0 %4790
        %4792 = vrot.lane.b32.xlu0 %v4298, 88
        %v4793 = vpop.permute.xlu0 %4792
        %4794 = vrot.lane.b32.xlu0 %v4299, 88
        %v4795 = vpop.permute.xlu0 %4794
        %4796 = vrot.lane.b32.xlu0 %v4300, 88
        %v4797 = vpop.permute.xlu0 %4796
        %4798 = vrot.lane.b32.xlu0 %v4301, 88
        %v4799 = vpop.permute.xlu0 %4798
        %4800 = vrot.lane.b32.xlu0 %v4302, 88
        %v4801 = vpop.permute.xlu0 %4800
        %4802 = vrot.lane.b32.xlu0 %v4303, 88
        %v4803 = vpop.permute.xlu0 %4802
        %v4805 = vsel %vm1149, %v4777, 0
        %v4808 = vsel %vm1149, %v4779, 0
        %v4811 = vsel %vm1149, %v4781, 0
        %v4814 = vsel %vm1149, %v4783, 0
        %v4817 = vsel %vm1149, %v4785, 0
        %v4820 = vsel %vm1149, %v4787, 0
        %v4823 = vsel %vm1149, %v4789, 0
        %v4826 = vsel %vm1149, %v4791, 0
        %v4829 = vsel %vm1149, %v4793, 0
        %v4832 = vsel %vm1149, %v4795, 0
        %v4835 = vsel %vm1149, %v4797, 0
        %v4838 = vsel %vm1149, %v4799, 0
        %v4841 = vsel %vm1149, %v4801, 0
        %v4844 = vsel %vm1149, %v4803, 0
        %4846 = vmatprep.subr.bf16.mxu0 0
        %4847 = vmatpush1.bf16.xpose.msra.mxu0 %v4826
        %4848 = vmatprep.subr.bf16.mxu0 0
        %4849 = vmatpush1.bf16.xpose.msra.mxu0 %v4829
        %4850 = vmatprep.subr.bf16.mxu0 0
        %4851 = vmatpush1.bf16.xpose.msra.mxu0 %v4832
        %4852 = vmatprep.subr.bf16.mxu0 0
        %4853 = vmatpush1.bf16.xpose.msra.mxu0 %v4835
        %4854 = vmatprep.subr.bf16.mxu0 0
        %4855 = vmatpush1.bf16.xpose.msra.mxu0 %v4838
        %4856 = vmatprep.subr.bf16.mxu0 0
        %4857 = vmatpush1.bf16.xpose.msra.mxu0 %v4841
        %4858 = vmatprep.subr.bf16.mxu0 0
        %4859 = vmatpush1.bf16.xpose.msra.mxu0 %v4844
        %4860 = vmatprep.subr.bf16.mxu0 0
        %4861 = vmatpush1.bf16.xpose.msra.mxu0 0
        %4862 = vmatprep.subr.bf16.mxu0 0
        %4863 = vmatpush1.bf16.xpose.msra.mxu0 0
        %4864 = vmatprep.subr.bf16.mxu0 0
        %4865 = vmatpush1.bf16.xpose.msra.mxu0 0
        %4866 = vmatprep.subr.bf16.mxu0 0
        %4867 = vmatpush1.bf16.xpose.msra.mxu0 0
        %4868 = vmatprep.subr.bf16.mxu0 0
        %4869 = vmatpush1.bf16.xpose.msra.mxu0 0
        %4870 = vmatprep.subr.bf16.mxu0 0
        %4871 = vmatpush1.bf16.xpose.msra.mxu0 0
        %4872 = vmatprep.subr.bf16.mxu0 0
        %4873 = vmatpush1.bf16.xpose.msra.mxu0 0
        %4874 = vmatprep.subr.bf16.mxu0 0
        %4875 = vmatpush1.bf16.xpose.msra.mxu0 0
        %4876 = vmatprep.subr.bf16.mxu0 0
        %4877 = vmatpush1.bf16.xpose.msra.mxu0 0
        %4878 = vmatprep.mubr.bf16.mxu0 0
        %4879 = vmatmul.mubr.bf16.gmra.mrb[0].mxu0 %v4805
        %v4880 = vpop.f32.mrb[0].mxu0
        %v4881 = vadd.f32 0.0, %v4880
        %v4882 = vpop.f32.mrb[0].mxu0
        %v4883 = vpop.f32.mrb[0].mxu0
        %v4884 = vadd.f32 0.0, %v4883
        %v4885 = vpop.f32.mrb[0].mxu0
        %4886 = vmatprep.mubr.bf16.mxu0 0
        %4887 = vmatmul.mubr.bf16.gmra.mrb[0].mxu0 %v4808
        %v4888 = vpop.f32.mrb[0].mxu0
        %v4889 = vadd.f32 0.0, %v4888
        %v4890 = vpop.f32.mrb[0].mxu0
        %v4891 = vpop.f32.mrb[0].mxu0
        %v4892 = vadd.f32 0.0, %v4891
        %v4893 = vpop.f32.mrb[0].mxu0
        %4894 = vmatprep.mubr.bf16.mxu0 0
        %4895 = vmatmul.mubr.bf16.gmra.mrb[0].mxu0 %v4811
        %v4896 = vpop.f32.mrb[0].mxu0
        %v4897 = vadd.f32 0.0, %v4896
        %v4898 = vpop.f32.mrb[0].mxu0
        %v4899 = vpop.f32.mrb[0].mxu0
        %v4900 = vadd.f32 0.0, %v4899
        %v4901 = vpop.f32.mrb[0].mxu0
        %4902 = vmatprep.mubr.bf16.mxu0 0
        %4903 = vmatmul.mubr.bf16.gmra.mrb[0].mxu0 %v4814
        %v4904 = vpop.f32.mrb[0].mxu0
        %v4905 = vadd.f32 0.0, %v4904
        %v4906 = vpop.f32.mrb[0].mxu0
        %v4907 = vpop.f32.mrb[0].mxu0
        %v4908 = vadd.f32 0.0, %v4907
        %v4909 = vpop.f32.mrb[0].mxu0
        %4910 = vmatprep.mubr.bf16.mxu0 0
        %4911 = vmatmul.mubr.bf16.gmra.mrb[0].mxu0 %v4817
        %v4912 = vpop.f32.mrb[0].mxu0
        %v4913 = vadd.f32 0.0, %v4912
        %v4914 = vpop.f32.mrb[0].mxu0
        %v4915 = vpop.f32.mrb[0].mxu0
        %v4916 = vadd.f32 0.0, %v4915
        %v4917 = vpop.f32.mrb[0].mxu0
        %4918 = vmatprep.mubr.bf16.mxu0 0
        %4919 = vmatmul.mubr.bf16.gmra.mrb[0].mxu0 %v4820
        %v4920 = vpop.f32.mrb[0].mxu0
        %v4921 = vadd.f32 0.0, %v4920
        %v4922 = vpop.f32.mrb[0].mxu0
        %v4923 = vpop.f32.mrb[0].mxu0
        %v4924 = vadd.f32 0.0, %v4923
        %v4925 = vpop.f32.mrb[0].mxu0
        %4926 = vmatprep.mubr.bf16.mxu0 0
        %4927 = vmatmul.mubr.bf16.gmra.mrb[0].mxu0 %v4823
        %v4928 = vpop.f32.mrb[0].mxu0
        %v4929 = vadd.f32 0.0, %v4928
        %v4930 = vpop.f32.mrb[0].mxu0
        %v4931 = vpop.f32.mrb[0].mxu0
        %v4932 = vadd.f32 0.0, %v4931
        %v4933 = vpop.f32.mrb[0].mxu0
        %4934 = vdwg.mxu0
        %v4935 = vmul.f32 %v4881, 0.35355338
        %v4936 = vmul.f32 %v4884, 0.35355338
        %v4937 = vmul.f32 %v4889, 0.35355338
        %v4938 = vmul.f32 %v4892, 0.35355338
        %v4939 = vmul.f32 %v4897, 0.35355338
        %v4940 = vmul.f32 %v4900, 0.35355338
        %v4941 = vmul.f32 %v4905, 0.35355338
        %v4942 = vmul.f32 %v4908, 0.35355338
        %v4943 = vmul.f32 %v4913, 0.35355338
        %v4944 = vmul.f32 %v4916, 0.35355338
        %v4945 = vmul.f32 %v4921, 0.35355338
        %v4946 = vmul.f32 %v4924, 0.35355338
        %v4947 = vmul.f32 %v4929, 0.35355338
        %v4948 = vmul.f32 %v4932, 0.35355338
        %v4949 = vadd.f32 %v4935, %v444
        %v4950 = vadd.f32 %v4936, %v445
        %v4951 = vadd.f32 %v4937, %v446
        %v4952 = vadd.f32 %v4938, %v447
        %v4953 = vadd.f32 %v4939, %v448
        %v4954 = vadd.f32 %v4940, %v449
        %v4955 = vadd.f32 %v4941, %v450
        %v4956 = vadd.f32 %v4942, %v451
        %v4957 = vadd.f32 %v4943, %v452
        %v4958 = vadd.f32 %v4944, %v453
        %v4959 = vadd.f32 %v4945, %v454
        %v4960 = vadd.f32 %v4946, %v455
        %v4961 = vadd.f32 %v4947, %v456
        %v4962 = vadd.f32 %v4948, %v457
        %v4963 = vsel %vm1309, %v4949, -inf
        %4964 = vmax.xlane.f32.xlu0 %v4963
        %v4965 = vpop.xlane.xlu0 %4964
        %v4966 = vsel %vm1309, %v4950, -inf
        %4967 = vmax.xlane.f32.xlu0 %v4966
        %v4968 = vpop.xlane.xlu0 %4967
        %v4969 = vsel %vm1309, %v4951, -inf
        %4970 = vmax.xlane.f32.xlu0 %v4969
        %v4971 = vpop.xlane.xlu0 %4970
        %v4972 = vsel %vm1309, %v4952, -inf
        %4973 = vmax.xlane.f32.xlu0 %v4972
        %v4974 = vpop.xlane.xlu0 %4973
        %v4975 = vsel %vm1309, %v4953, -inf
        %4976 = vmax.xlane.f32.xlu0 %v4975
        %v4977 = vpop.xlane.xlu0 %4976
        %v4978 = vsel %vm1309, %v4954, -inf
        %4979 = vmax.xlane.f32.xlu0 %v4978
        %v4980 = vpop.xlane.xlu0 %4979
        %v4981 = vsel %vm1309, %v4955, -inf
        %4982 = vmax.xlane.f32.xlu0 %v4981
        %v4983 = vpop.xlane.xlu0 %4982
        %v4984 = vsel %vm1309, %v4956, -inf
        %4985 = vmax.xlane.f32.xlu0 %v4984
        %v4986 = vpop.xlane.xlu0 %4985
        %v4987 = vsel %vm1309, %v4957, -inf
        %4988 = vmax.xlane.f32.xlu0 %v4987
        %v4989 = vpop.xlane.xlu0 %4988
        %v4990 = vsel %vm1309, %v4958, -inf
        %4991 = vmax.xlane.f32.xlu0 %v4990
        %v4992 = vpop.xlane.xlu0 %4991
        %v4993 = vsel %vm1309, %v4959, -inf
        %4994 = vmax.xlane.f32.xlu0 %v4993
        %v4995 = vpop.xlane.xlu0 %4994
        %v4996 = vsel %vm1309, %v4960, -inf
        %4997 = vmax.xlane.f32.xlu0 %v4996
        %v4998 = vpop.xlane.xlu0 %4997
        %v4999 = vsel %vm1309, %v4961, -inf
        %5000 = vmax.xlane.f32.xlu0 %v4999
        %v5001 = vpop.xlane.xlu0 %5000
        %v5002 = vsel %vm1309, %v4962, -inf
        %5003 = vmax.xlane.f32.xlu0 %v5002
        %v5004 = vpop.xlane.xlu0 %5003
        %v5005 = vsub.f32 %v4949, %v4965
        %v5006 = vsub.f32 %v4950, %v4968
        %v5007 = vsub.f32 %v4951, %v4971
        %v5008 = vsub.f32 %v4952, %v4974
        %v5009 = vsub.f32 %v4953, %v4977
        %v5010 = vsub.f32 %v4954, %v4980
        %v5011 = vsub.f32 %v4955, %v4983
        %v5012 = vsub.f32 %v4956, %v4986
        %v5013 = vsub.f32 %v4957, %v4989
        %v5014 = vsub.f32 %v4958, %v4992
        %v5015 = vsub.f32 %v4959, %v4995
        %v5016 = vsub.f32 %v4960, %v4998
        %v5017 = vsub.f32 %v4961, %v5001
        %v5018 = vsub.f32 %v4962, %v5004
        %v5019 = vmul.f32 %v5005, 1.442695
        %v5020 = vpow.pop %v5019
        %v5021 = vmul.f32 %v5006, 1.442695
        %v5022 = vpow.pop %v5021
        %v5023 = vmul.f32 %v5007, 1.442695
        %v5024 = vpow.pop %v5023
        %v5025 = vmul.f32 %v5008, 1.442695
        %v5026 = vpow.pop %v5025
        %v5027 = vmul.f32 %v5009, 1.442695
        %v5028 = vpow.pop %v5027
        %v5029 = vmul.f32 %v5010, 1.442695
        %v5030 = vpow.pop %v5029
        %v5031 = vmul.f32 %v5011, 1.442695
        %v5032 = vpow.pop %v5031
        %v5033 = vmul.f32 %v5012, 1.442695
        %v5034 = vpow.pop %v5033
        %v5035 = vmul.f32 %v5013, 1.442695
        %v5036 = vpow.pop %v5035
        %v5037 = vmul.f32 %v5014, 1.442695
        %v5038 = vpow.pop %v5037
        %v5039 = vmul.f32 %v5015, 1.442695
        %v5040 = vpow.pop %v5039
        %v5041 = vmul.f32 %v5016, 1.442695
        %v5042 = vpow.pop %v5041
        %v5043 = vmul.f32 %v5017, 1.442695
        %v5044 = vpow.pop %v5043
        %v5045 = vmul.f32 %v5018, 1.442695
        %v5046 = vpow.pop %v5045
        %v5047 = vsel %vm1309, %v5020, 0.0
        %5048 = vadd.xlane.f32.xlu0 %v5047
        %v5049 = vpop.xlane.xlu0 %5048
        %v5050 = vsel %vm1309, %v5022, 0.0
        %5051 = vadd.xlane.f32.xlu0 %v5050
        %v5052 = vpop.xlane.xlu0 %5051
        %v5053 = vsel %vm1309, %v5024, 0.0
        %5054 = vadd.xlane.f32.xlu0 %v5053
        %v5055 = vpop.xlane.xlu0 %5054
        %v5056 = vsel %vm1309, %v5026, 0.0
        %5057 = vadd.xlane.f32.xlu0 %v5056
        %v5058 = vpop.xlane.xlu0 %5057
        %v5059 = vsel %vm1309, %v5028, 0.0
        %5060 = vadd.xlane.f32.xlu0 %v5059
        %v5061 = vpop.xlane.xlu0 %5060
        %v5062 = vsel %vm1309, %v5030, 0.0
        %5063 = vadd.xlane.f32.xlu0 %v5062
        %v5064 = vpop.xlane.xlu0 %5063
        %v5065 = vsel %vm1309, %v5032, 0.0
        %5066 = vadd.xlane.f32.xlu0 %v5065
        %v5067 = vpop.xlane.xlu0 %5066
        %v5068 = vsel %vm1309, %v5034, 0.0
        %5069 = vadd.xlane.f32.xlu0 %v5068
        %v5070 = vpop.xlane.xlu0 %5069
        %v5071 = vsel %vm1309, %v5036, 0.0
        %5072 = vadd.xlane.f32.xlu0 %v5071
        %v5073 = vpop.xlane.xlu0 %5072
        %v5074 = vsel %vm1309, %v5038, 0.0
        %5075 = vadd.xlane.f32.xlu0 %v5074
        %v5076 = vpop.xlane.xlu0 %5075
        %v5077 = vsel %vm1309, %v5040, 0.0
        %5078 = vadd.xlane.f32.xlu0 %v5077
        %v5079 = vpop.xlane.xlu0 %5078
        %v5080 = vsel %vm1309, %v5042, 0.0
        %5081 = vadd.xlane.f32.xlu0 %v5080
        %v5082 = vpop.xlane.xlu0 %5081
        %v5083 = vsel %vm1309, %v5044, 0.0
        %5084 = vadd.xlane.f32.xlu0 %v5083
        %v5085 = vpop.xlane.xlu0 %5084
        %v5086 = vsel %vm1309, %v5046, 0.0
        %5087 = vadd.xlane.f32.xlu0 %v5086
        %v5088 = vpop.xlane.xlu0 %5087
        %v5089 = vrcp.pop %v5049
        %v5090 = vrcp.pop %v5052
        %v5091 = vrcp.pop %v5055
        %v5092 = vrcp.pop %v5058
        %v5093 = vrcp.pop %v5061
        %v5094 = vrcp.pop %v5064
        %v5095 = vrcp.pop %v5067
        %v5096 = vrcp.pop %v5070
        %v5097 = vrcp.pop %v5073
        %v5098 = vrcp.pop %v5076
        %v5099 = vrcp.pop %v5079
        %v5100 = vrcp.pop %v5082
        %v5101 = vrcp.pop %v5085
        %v5102 = vrcp.pop %v5088
        %v5103 = vmul.f32 %v5020, %v5089
        %v5104 = vmul.f32 %v5022, %v5090
        %v5105 = vmul.f32 %v5024, %v5091
        %v5106 = vmul.f32 %v5026, %v5092
        %v5107 = vmul.f32 %v5028, %v5093
        %v5108 = vmul.f32 %v5030, %v5094
        %v5109 = vmul.f32 %v5032, %v5095
        %v5110 = vmul.f32 %v5034, %v5096
        %v5111 = vmul.f32 %v5036, %v5097
        %v5112 = vmul.f32 %v5038, %v5098
        %v5113 = vmul.f32 %v5040, %v5099
        %v5114 = vmul.f32 %v5042, %v5100
        %v5115 = vmul.f32 %v5044, %v5101
        %v5116 = vmul.f32 %v5046, %v5102
        %v5117 = vpack.c.bf16 %v5104, %v5103
        %v5118 = vpack.c.bf16 %v5106, %v5105
        %v5119 = vpack.c.bf16 %v5108, %v5107
        %v5120 = vpack.c.bf16 %v5110, %v5109
        %v5121 = vpack.c.bf16 %v5112, %v5111
        %v5122 = vpack.c.bf16 %v5114, %v5113
        %v5123 = vpack.c.bf16 %v5116, %v5115
        %5124 = vrot.lane.b32.xlu0 %v4297, 56
        %v5125 = vpop.permute.xlu0 %5124
        %5126 = vrot.lane.b32.xlu0 %v4298, 56
        %v5127 = vpop.permute.xlu0 %5126
        %5128 = vrot.lane.b32.xlu0 %v4299, 56
        %v5129 = vpop.permute.xlu0 %5128
        %5130 = vrot.lane.b32.xlu0 %v4300, 56
        %v5131 = vpop.permute.xlu0 %5130
        %5132 = vrot.lane.b32.xlu0 %v4301, 56
        %v5133 = vpop.permute.xlu0 %5132
        %5134 = vrot.lane.b32.xlu0 %v4302, 56
        %v5135 = vpop.permute.xlu0 %5134
        %5136 = vrot.lane.b32.xlu0 %v4303, 56
        %v5137 = vpop.permute.xlu0 %5136
        %v5146 = vsel %vm1309, %v5117, 0
        %v5149 = vsel %vm1309, %v5118, 0
        %v5152 = vsel %vm1309, %v5119, 0
        %v5155 = vsel %vm1309, %v5120, 0
        %v5158 = vsel %vm1309, %v5121, 0
        %v5161 = vsel %vm1309, %v5122, 0
        %v5164 = vsel %vm1309, %v5123, 0
        %5166 = vmatprep.subr.bf16.mxu0 0
        %5167 = vmatpush1.bf16.msra.mxu0 %v5125
        %5168 = vmatprep.subr.bf16.mxu0 0
        %5169 = vmatpush1.bf16.msra.mxu0 %v5127
        %5170 = vmatprep.subr.bf16.mxu0 0
        %5171 = vmatpush1.bf16.msra.mxu0 %v5129
        %5172 = vmatprep.subr.bf16.mxu0 0
        %5173 = vmatpush1.bf16.msra.mxu0 %v5131
        %5174 = vmatprep.subr.bf16.mxu0 0
        %5175 = vmatpush1.bf16.msra.mxu0 %v5133
        %5176 = vmatprep.subr.bf16.mxu0 0
        %5177 = vmatpush1.bf16.msra.mxu0 %v5135
        %5178 = vmatprep.subr.bf16.mxu0 0
        %5179 = vmatpush1.bf16.msra.mxu0 %v5137
        %5180 = vmatprep.subr.bf16.mxu0 0
        %5181 = vmatpush1.bf16.msra.mxu0 0
        %5182 = vmatprep.subr.bf16.mxu0 0
        %5183 = vmatpush1.bf16.msra.mxu0 0
        %5184 = vmatprep.subr.bf16.mxu0 0
        %5185 = vmatpush1.bf16.msra.mxu0 0
        %5186 = vmatprep.subr.bf16.mxu0 0
        %5187 = vmatpush1.bf16.msra.mxu0 0
        %5188 = vmatprep.subr.bf16.mxu0 0
        %5189 = vmatpush1.bf16.msra.mxu0 0
        %5190 = vmatprep.subr.bf16.mxu0 0
        %5191 = vmatpush1.bf16.msra.mxu0 0
        %5192 = vmatprep.subr.bf16.mxu0 0
        %5193 = vmatpush1.bf16.msra.mxu0 0
        %5194 = vmatprep.subr.bf16.mxu0 0
        %5195 = vmatpush1.bf16.msra.mxu0 0
        %5196 = vmatprep.subr.bf16.mxu0 0
        %5197 = vmatpush1.bf16.msra.mxu0 0
        %5198 = vmatprep.mubr.bf16.mxu0 0
        %5199 = vmatmul.mubr.bf16.gmra.mrb[0].mxu0 %v5146
        %v5200 = vpop.f32.mrb[0].mxu0
        %v5201 = vadd.f32 0.0, %v5200
        %v5202 = vpop.f32.mrb[0].mxu0
        %v5203 = vpop.f32.mrb[0].mxu0
        %v5204 = vadd.f32 0.0, %v5203
        %v5205 = vpop.f32.mrb[0].mxu0
        %5206 = vmatprep.mubr.bf16.mxu0 0
        %5207 = vmatmul.mubr.bf16.gmra.mrb[0].mxu0 %v5149
        %v5208 = vpop.f32.mrb[0].mxu0
        %v5209 = vadd.f32 0.0, %v5208
        %v5210 = vpop.f32.mrb[0].mxu0
        %v5211 = vpop.f32.mrb[0].mxu0
        %v5212 = vadd.f32 0.0, %v5211
        %v5213 = vpop.f32.mrb[0].mxu0
        %5214 = vmatprep.mubr.bf16.mxu0 0
        %5215 = vmatmul.mubr.bf16.gmra.mrb[0].mxu0 %v5152
        %v5216 = vpop.f32.mrb[0].mxu0
        %v5217 = vadd.f32 0.0, %v5216
        %v5218 = vpop.f32.mrb[0].mxu0
        %v5219 = vpop.f32.mrb[0].mxu0
        %v5220 = vadd.f32 0.0, %v5219
        %v5221 = vpop.f32.mrb[0].mxu0
        %5222 = vmatprep.mubr.bf16.mxu0 0
        %5223 = vmatmul.mubr.bf16.gmra.mrb[0].mxu0 %v5155
        %v5224 = vpop.f32.mrb[0].mxu0
        %v5225 = vadd.f32 0.0, %v5224
        %v5226 = vpop.f32.mrb[0].mxu0
        %v5227 = vpop.f32.mrb[0].mxu0
        %v5228 = vadd.f32 0.0, %v5227
        %v5229 = vpop.f32.mrb[0].mxu0
        %5230 = vmatprep.mubr.bf16.mxu0 0
        %5231 = vmatmul.mubr.bf16.gmra.mrb[0].mxu0 %v5158
        %v5232 = vpop.f32.mrb[0].mxu0
        %v5233 = vadd.f32 0.0, %v5232
        %v5234 = vpop.f32.mrb[0].mxu0
        %v5235 = vpop.f32.mrb[0].mxu0
        %v5236 = vadd.f32 0.0, %v5235
        %v5237 = vpop.f32.mrb[0].mxu0
        %5238 = vmatprep.mubr.bf16.mxu0 0
        %5239 = vmatmul.mubr.bf16.gmra.mrb[0].mxu0 %v5161
        %v5240 = vpop.f32.mrb[0].mxu0
        %v5241 = vadd.f32 0.0, %v5240
        %v5242 = vpop.f32.mrb[0].mxu0
        %v5243 = vpop.f32.mrb[0].mxu0
        %v5244 = vadd.f32 0.0, %v5243
        %v5245 = vpop.f32.mrb[0].mxu0
        %5246 = vmatprep.mubr.bf16.mxu0 0
        %5247 = vmatmul.mubr.bf16.gmra.mrb[0].mxu0 %v5164
        %v5248 = vpop.f32.mrb[0].mxu0
        %v5249 = vadd.f32 0.0, %v5248
        %v5250 = vpop.f32.mrb[0].mxu0
        %v5251 = vpop.f32.mrb[0].mxu0
        %v5252 = vadd.f32 0.0, %v5251
        %v5253 = vpop.f32.mrb[0].mxu0
        %5254 = vdwg.mxu0
        %5255 = vrot.lane.b32.xlu0 %v4297, 112
        %v5256 = vpop.permute.xlu0 %5255
        %5257 = vrot.lane.b32.xlu0 %v4298, 112
        %v5258 = vpop.permute.xlu0 %5257
        %5259 = vrot.lane.b32.xlu0 %v4299, 112
        %v5260 = vpop.permute.xlu0 %5259
        %5261 = vrot.lane.b32.xlu0 %v4300, 112
        %v5262 = vpop.permute.xlu0 %5261
        %5263 = vrot.lane.b32.xlu0 %v4301, 112
        %v5264 = vpop.permute.xlu0 %5263
        %5265 = vrot.lane.b32.xlu0 %v4302, 112
        %v5266 = vpop.permute.xlu0 %5265
        %5267 = vrot.lane.b32.xlu0 %v4303, 112
        %v5268 = vpop.permute.xlu0 %5267
        %5269 = vrot.lane.b32.xlu0 %v4297, 80
        %v5270 = vpop.permute.xlu0 %5269
        %5271 = vrot.lane.b32.xlu0 %v4298, 80
        %v5272 = vpop.permute.xlu0 %5271
        %5273 = vrot.lane.b32.xlu0 %v4299, 80
        %v5274 = vpop.permute.xlu0 %5273
        %5275 = vrot.lane.b32.xlu0 %v4300, 80
        %v5276 = vpop.permute.xlu0 %5275
        %5277 = vrot.lane.b32.xlu0 %v4301, 80
        %v5278 = vpop.permute.xlu0 %5277
        %5279 = vrot.lane.b32.xlu0 %v4302, 80
        %v5280 = vpop.permute.xlu0 %5279
        %5281 = vrot.lane.b32.xlu0 %v4303, 80
        %v5282 = vpop.permute.xlu0 %5281
        %v5284 = vsel %vm1149, %v5256, 0
        %v5287 = vsel %vm1149, %v5258, 0
        %v5290 = vsel %vm1149, %v5260, 0
        %v5293 = vsel %vm1149, %v5262, 0
        %v5296 = vsel %vm1149, %v5264, 0
        %v5299 = vsel %vm1149, %v5266, 0
        %v5302 = vsel %vm1149, %v5268, 0
        %v5305 = vsel %vm1149, %v5270, 0
        %v5308 = vsel %vm1149, %v5272, 0
        %v5311 = vsel %vm1149, %v5274, 0
        %v5314 = vsel %vm1149, %v5276, 0
        %v5317 = vsel %vm1149, %v5278, 0
        %v5320 = vsel %vm1149, %v5280, 0
        %v5323 = vsel %vm1149, %v5282, 0
        %5325 = vmatprep.subr.bf16.mxu0 0
        %5326 = vmatpush1.bf16.xpose.msra.mxu0 %v5305
        %5327 = vmatprep.subr.bf16.mxu0 0
        %5328 = vmatpush1.bf16.xpose.msra.mxu0 %v5308
        %5329 = vmatprep.subr.bf16.mxu0 0
        %5330 = vmatpush1.bf16.xpose.msra.mxu0 %v5311
        %5331 = vmatprep.subr.bf16.mxu0 0
        %5332 = vmatpush1.bf16.xpose.msra.mxu0 %v5314
        %5333 = vmatprep.subr.bf16.mxu0 0
        %5334 = vmatpush1.bf16.xpose.msra.mxu0 %v5317
        %5335 = vmatprep.subr.bf16.mxu0 0
        %5336 = vmatpush1.bf16.xpose.msra.mxu0 %v5320
        %5337 = vmatprep.subr.bf16.mxu0 0
        %5338 = vmatpush1.bf16.xpose.msra.mxu0 %v5323
        %5339 = vmatprep.subr.bf16.mxu0 0
        %5340 = vmatpush1.bf16.xpose.msra.mxu0 0
        %5341 = vmatprep.subr.bf16.mxu0 0
        %5342 = vmatpush1.bf16.xpose.msra.mxu0 0
        %5343 = vmatprep.subr.bf16.mxu0 0
        %5344 = vmatpush1.bf16.xpose.msra.mxu0 0
        %5345 = vmatprep.subr.bf16.mxu0 0
        %5346 = vmatpush1.bf16.xpose.msra.mxu0 0
        %5347 = vmatprep.subr.bf16.mxu0 0
        %5348 = vmatpush1.bf16.xpose.msra.mxu0 0
        %5349 = vmatprep.subr.bf16.mxu0 0
        %5350 = vmatpush1.bf16.xpose.msra.mxu0 0
        %5351 = vmatprep.subr.bf16.mxu0 0
        %5352 = vmatpush1.bf16.xpose.msra.mxu0 0
        %5353 = vmatprep.subr.bf16.mxu0 0
        %5354 = vmatpush1.bf16.xpose.msra.mxu0 0
        %5355 = vmatprep.subr.bf16.mxu0 0
        %5356 = vmatpush1.bf16.xpose.msra.mxu0 0
        %5357 = vmatprep.mubr.bf16.mxu0 0
        %5358 = vmatmul.mubr.bf16.gmra.mrb[0].mxu0 %v5284
        %v5359 = vpop.f32.mrb[0].mxu0
        %v5360 = vadd.f32 0.0, %v5359
        %v5361 = vpop.f32.mrb[0].mxu0
        %v5362 = vpop.f32.mrb[0].mxu0
        %v5363 = vadd.f32 0.0, %v5362
        %v5364 = vpop.f32.mrb[0].mxu0
        %5365 = vmatprep.mubr.bf16.mxu0 0
        %5366 = vmatmul.mubr.bf16.gmra.mrb[0].mxu0 %v5287
        %v5367 = vpop.f32.mrb[0].mxu0
        %v5368 = vadd.f32 0.0, %v5367
        %v5369 = vpop.f32.mrb[0].mxu0
        %v5370 = vpop.f32.mrb[0].mxu0
        %v5371 = vadd.f32 0.0, %v5370
        %v5372 = vpop.f32.mrb[0].mxu0
        %5373 = vmatprep.mubr.bf16.mxu0 0
        %5374 = vmatmul.mubr.bf16.gmra.mrb[0].mxu0 %v5290
        %v5375 = vpop.f32.mrb[0].mxu0
        %v5376 = vadd.f32 0.0, %v5375
        %v5377 = vpop.f32.mrb[0].mxu0
        %v5378 = vpop.f32.mrb[0].mxu0
        %v5379 = vadd.f32 0.0, %v5378
        %v5380 = vpop.f32.mrb[0].mxu0
        %5381 = vmatprep.mubr.bf16.mxu0 0
        %5382 = vmatmul.mubr.bf16.gmra.mrb[0].mxu0 %v5293
        %v5383 = vpop.f32.mrb[0].mxu0
        %v5384 = vadd.f32 0.0, %v5383
        %v5385 = vpop.f32.mrb[0].mxu0
        %v5386 = vpop.f32.mrb[0].mxu0
        %v5387 = vadd.f32 0.0, %v5386
        %v5388 = vpop.f32.mrb[0].mxu0
        %5389 = vmatprep.mubr.bf16.mxu0 0
        %5390 = vmatmul.mubr.bf16.gmra.mrb[0].mxu0 %v5296
        %v5391 = vpop.f32.mrb[0].mxu0
        %v5392 = vadd.f32 0.0, %v5391
        %v5393 = vpop.f32.mrb[0].mxu0
        %v5394 = vpop.f32.mrb[0].mxu0
        %v5395 = vadd.f32 0.0, %v5394
        %v5396 = vpop.f32.mrb[0].mxu0
        %5397 = vmatprep.mubr.bf16.mxu0 0
        %5398 = vmatmul.mubr.bf16.gmra.mrb[0].mxu0 %v5299
        %v5399 = vpop.f32.mrb[0].mxu0
        %v5400 = vadd.f32 0.0, %v5399
        %v5401 = vpop.f32.mrb[0].mxu0
        %v5402 = vpop.f32.mrb[0].mxu0
        %v5403 = vadd.f32 0.0, %v5402
        %v5404 = vpop.f32.mrb[0].mxu0
        %5405 = vmatprep.mubr.bf16.mxu0 0
        %5406 = vmatmul.mubr.bf16.gmra.mrb[0].mxu0 %v5302
        %v5407 = vpop.f32.mrb[0].mxu0
        %v5408 = vadd.f32 0.0, %v5407
        %v5409 = vpop.f32.mrb[0].mxu0
        %v5410 = vpop.f32.mrb[0].mxu0
        %v5411 = vadd.f32 0.0, %v5410
        %v5412 = vpop.f32.mrb[0].mxu0
        %5413 = vdwg.mxu0
        %v5414 = vmul.f32 %v5360, 0.35355338
        %v5415 = vmul.f32 %v5363, 0.35355338
        %v5416 = vmul.f32 %v5368, 0.35355338
        %v5417 = vmul.f32 %v5371, 0.35355338
        %v5418 = vmul.f32 %v5376, 0.35355338
        %v5419 = vmul.f32 %v5379, 0.35355338
        %v5420 = vmul.f32 %v5384, 0.35355338
        %v5421 = vmul.f32 %v5387, 0.35355338
        %v5422 = vmul.f32 %v5392, 0.35355338
        %v5423 = vmul.f32 %v5395, 0.35355338
        %v5424 = vmul.f32 %v5400, 0.35355338
        %v5425 = vmul.f32 %v5403, 0.35355338
        %v5426 = vmul.f32 %v5408, 0.35355338
        %v5427 = vmul.f32 %v5411, 0.35355338
        %v5428 = vadd.f32 %v5414, %v444
        %v5429 = vadd.f32 %v5415, %v445
        %v5430 = vadd.f32 %v5416, %v446
        %v5431 = vadd.f32 %v5417, %v447
        %v5432 = vadd.f32 %v5418, %v448
        %v5433 = vadd.f32 %v5419, %v449
        %v5434 = vadd.f32 %v5420, %v450
        %v5435 = vadd.f32 %v5421, %v451
        %v5436 = vadd.f32 %v5422, %v452
        %v5437 = vadd.f32 %v5423, %v453
        %v5438 = vadd.f32 %v5424, %v454
        %v5439 = vadd.f32 %v5425, %v455
        %v5440 = vadd.f32 %v5426, %v456
        %v5441 = vadd.f32 %v5427, %v457
        %v5442 = vsel %vm1309, %v5428, -inf
        %5443 = vmax.xlane.f32.xlu0 %v5442
        %v5444 = vpop.xlane.xlu0 %5443
        %v5445 = vsel %vm1309, %v5429, -inf
        %5446 = vmax.xlane.f32.xlu0 %v5445
        %v5447 = vpop.xlane.xlu0 %5446
        %v5448 = vsel %vm1309, %v5430, -inf
        %5449 = vmax.xlane.f32.xlu0 %v5448
        %v5450 = vpop.xlane.xlu0 %5449
        %v5451 = vsel %vm1309, %v5431, -inf
        %5452 = vmax.xlane.f32.xlu0 %v5451
        %v5453 = vpop.xlane.xlu0 %5452
        %v5454 = vsel %vm1309, %v5432, -inf
        %5455 = vmax.xlane.f32.xlu0 %v5454
        %v5456 = vpop.xlane.xlu0 %5455
        %v5457 = vsel %vm1309, %v5433, -inf
        %5458 = vmax.xlane.f32.xlu0 %v5457
        %v5459 = vpop.xlane.xlu0 %5458
        %v5460 = vsel %vm1309, %v5434, -inf
        %5461 = vmax.xlane.f32.xlu0 %v5460
        %v5462 = vpop.xlane.xlu0 %5461
        %v5463 = vsel %vm1309, %v5435, -inf
        %5464 = vmax.xlane.f32.xlu0 %v5463
        %v5465 = vpop.xlane.xlu0 %5464
        %v5466 = vsel %vm1309, %v5436, -inf
        %5467 = vmax.xlane.f32.xlu0 %v5466
        %v5468 = vpop.xlane.xlu0 %5467
        %v5469 = vsel %vm1309, %v5437, -inf
        %5470 = vmax.xlane.f32.xlu0 %v5469
        %v5471 = vpop.xlane.xlu0 %5470
        %v5472 = vsel %vm1309, %v5438, -inf
        %5473 = vmax.xlane.f32.xlu0 %v5472
        %v5474 = vpop.xlane.xlu0 %5473
        %v5475 = vsel %vm1309, %v5439, -inf
        %5476 = vmax.xlane.f32.xlu0 %v5475
        %v5477 = vpop.xlane.xlu0 %5476
        %v5478 = vsel %vm1309, %v5440, -inf
        %5479 = vmax.xlane.f32.xlu0 %v5478
        %v5480 = vpop.xlane.xlu0 %5479
        %v5481 = vsel %vm1309, %v5441, -inf
        %5482 = vmax.xlane.f32.xlu0 %v5481
        %v5483 = vpop.xlane.xlu0 %5482
        %v5484 = vsub.f32 %v5428, %v5444
        %v5485 = vsub.f32 %v5429, %v5447
        %v5486 = vsub.f32 %v5430, %v5450
        %v5487 = vsub.f32 %v5431, %v5453
        %v5488 = vsub.f32 %v5432, %v5456
        %v5489 = vsub.f32 %v5433, %v5459
        %v5490 = vsub.f32 %v5434, %v5462
        %v5491 = vsub.f32 %v5435, %v5465
        %v5492 = vsub.f32 %v5436, %v5468
        %v5493 = vsub.f32 %v5437, %v5471
        %v5494 = vsub.f32 %v5438, %v5474
        %v5495 = vsub.f32 %v5439, %v5477
        %v5496 = vsub.f32 %v5440, %v5480
        %v5497 = vsub.f32 %v5441, %v5483
        %v5498 = vmul.f32 %v5484, 1.442695
        %v5499 = vpow.pop %v5498
        %v5500 = vmul.f32 %v5485, 1.442695
        %v5501 = vpow.pop %v5500
        %v5502 = vmul.f32 %v5486, 1.442695
        %v5503 = vpow.pop %v5502
        %v5504 = vmul.f32 %v5487, 1.442695
        %v5505 = vpow.pop %v5504
        %v5506 = vmul.f32 %v5488, 1.442695
        %v5507 = vpow.pop %v5506
        %v5508 = vmul.f32 %v5489, 1.442695
        %v5509 = vpow.pop %v5508
        %v5510 = vmul.f32 %v5490, 1.442695
        %v5511 = vpow.pop %v5510
        %v5512 = vmul.f32 %v5491, 1.442695
        %v5513 = vpow.pop %v5512
        %v5514 = vmul.f32 %v5492, 1.442695
        %v5515 = vpow.pop %v5514
        %v5516 = vmul.f32 %v5493, 1.442695
        %v5517 = vpow.pop %v5516
        %v5518 = vmul.f32 %v5494, 1.442695
        %v5519 = vpow.pop %v5518
        %v5520 = vmul.f32 %v5495, 1.442695
        %v5521 = vpow.pop %v5520
        %v5522 = vmul.f32 %v5496, 1.442695
        %v5523 = vpow.pop %v5522
        %v5524 = vmul.f32 %v5497, 1.442695
        %v5525 = vpow.pop %v5524
        %v5526 = vsel %vm1309, %v5499, 0.0
        %5527 = vadd.xlane.f32.xlu0 %v5526
        %v5528 = vpop.xlane.xlu0 %5527
        %v5529 = vsel %vm1309, %v5501, 0.0
        %5530 = vadd.xlane.f32.xlu0 %v5529
        %v5531 = vpop.xlane.xlu0 %5530
        %v5532 = vsel %vm1309, %v5503, 0.0
        %5533 = vadd.xlane.f32.xlu0 %v5532
        %v5534 = vpop.xlane.xlu0 %5533
        %v5535 = vsel %vm1309, %v5505, 0.0
        %5536 = vadd.xlane.f32.xlu0 %v5535
        %v5537 = vpop.xlane.xlu0 %5536
        %v5538 = vsel %vm1309, %v5507, 0.0
        %5539 = vadd.xlane.f32.xlu0 %v5538
        %v5540 = vpop.xlane.xlu0 %5539
        %v5541 = vsel %vm1309, %v5509, 0.0
        %5542 = vadd.xlane.f32.xlu0 %v5541
        %v5543 = vpop.xlane.xlu0 %5542
        %v5544 = vsel %vm1309, %v5511, 0.0
        %5545 = vadd.xlane.f32.xlu0 %v5544
        %v5546 = vpop.xlane.xlu0 %5545
        %v5547 = vsel %vm1309, %v5513, 0.0
        %5548 = vadd.xlane.f32.xlu0 %v5547
        %v5549 = vpop.xlane.xlu0 %5548
        %v5550 = vsel %vm1309, %v5515, 0.0
        %5551 = vadd.xlane.f32.xlu0 %v5550
        %v5552 = vpop.xlane.xlu0 %5551
        %v5553 = vsel %vm1309, %v5517, 0.0
        %5554 = vadd.xlane.f32.xlu0 %v5553
        %v5555 = vpop.xlane.xlu0 %5554
        %v5556 = vsel %vm1309, %v5519, 0.0
        %5557 = vadd.xlane.f32.xlu0 %v5556
        %v5558 = vpop.xlane.xlu0 %5557
        %v5559 = vsel %vm1309, %v5521, 0.0
        %5560 = vadd.xlane.f32.xlu0 %v5559
        %v5561 = vpop.xlane.xlu0 %5560
        %v5562 = vsel %vm1309, %v5523, 0.0
        %5563 = vadd.xlane.f32.xlu0 %v5562
        %v5564 = vpop.xlane.xlu0 %5563
        %v5565 = vsel %vm1309, %v5525, 0.0
        %5566 = vadd.xlane.f32.xlu0 %v5565
        %v5567 = vpop.xlane.xlu0 %5566
        %v5568 = vrcp.pop %v5528
        %v5569 = vrcp.pop %v5531
        %v5570 = vrcp.pop %v5534
        %v5571 = vrcp.pop %v5537
        %v5572 = vrcp.pop %v5540
        %v5573 = vrcp.pop %v5543
        %v5574 = vrcp.pop %v5546
        %v5575 = vrcp.pop %v5549
        %v5576 = vrcp.pop %v5552
        %v5577 = vrcp.pop %v5555
        %v5578 = vrcp.pop %v5558
        %v5579 = vrcp.pop %v5561
        %v5580 = vrcp.pop %v5564
        %v5581 = vrcp.pop %v5567
        %v5582 = vmul.f32 %v5499, %v5568
        %v5583 = vmul.f32 %v5501, %v5569
        %v5584 = vmul.f32 %v5503, %v5570
        %v5585 = vmul.f32 %v5505, %v5571
        %v5586 = vmul.f32 %v5507, %v5572
        %v5587 = vmul.f32 %v5509, %v5573
        %v5588 = vmul.f32 %v5511, %v5574
        %v5589 = vmul.f32 %v5513, %v5575
        %v5590 = vmul.f32 %v5515, %v5576
        %v5591 = vmul.f32 %v5517, %v5577
        %v5592 = vmul.f32 %v5519, %v5578
        %v5593 = vmul.f32 %v5521, %v5579
        %v5594 = vmul.f32 %v5523, %v5580
        %v5595 = vmul.f32 %v5525, %v5581
        %v5596 = vpack.c.bf16 %v5583, %v5582
        %v5597 = vpack.c.bf16 %v5585, %v5584
        %v5598 = vpack.c.bf16 %v5587, %v5586
        %v5599 = vpack.c.bf16 %v5589, %v5588
        %v5600 = vpack.c.bf16 %v5591, %v5590
        %v5601 = vpack.c.bf16 %v5593, %v5592
        %v5602 = vpack.c.bf16 %v5595, %v5594
        %5603 = vrot.lane.b32.xlu0 %v4297, 48
        %v5604 = vpop.permute.xlu0 %5603
        %5605 = vrot.lane.b32.xlu0 %v4298, 48
        %v5606 = vpop.permute.xlu0 %5605
        %5607 = vrot.lane.b32.xlu0 %v4299, 48
        %v5608 = vpop.permute.xlu0 %5607
        %5609 = vrot.lane.b32.xlu0 %v4300, 48
        %v5610 = vpop.permute.xlu0 %5609
        %5611 = vrot.lane.b32.xlu0 %v4301, 48
        %v5612 = vpop.permute.xlu0 %5611
        %5613 = vrot.lane.b32.xlu0 %v4302, 48
        %v5614 = vpop.permute.xlu0 %5613
        %5615 = vrot.lane.b32.xlu0 %v4303, 48
        %v5616 = vpop.permute.xlu0 %5615
        %v5625 = vsel %vm1309, %v5596, 0
        %v5628 = vsel %vm1309, %v5597, 0
        %v5631 = vsel %vm1309, %v5598, 0
        %v5634 = vsel %vm1309, %v5599, 0
        %v5637 = vsel %vm1309, %v5600, 0
        %v5640 = vsel %vm1309, %v5601, 0
        %v5643 = vsel %vm1309, %v5602, 0
        %5645 = vmatprep.subr.bf16.mxu0 0
        %5646 = vmatpush1.bf16.msra.mxu0 %v5604
        %5647 = vmatprep.subr.bf16.mxu0 0
        %5648 = vmatpush1.bf16.msra.mxu0 %v5606
        %5649 = vmatprep.subr.bf16.mxu0 0
        %5650 = vmatpush1.bf16.msra.mxu0 %v5608
        %5651 = vmatprep.subr.bf16.mxu0 0
        %5652 = vmatpush1.bf16.msra.mxu0 %v5610
        %5653 = vmatprep.subr.bf16.mxu0 0
        %5654 = vmatpush1.bf16.msra.mxu0 %v5612
        %5655 = vmatprep.subr.bf16.mxu0 0
        %5656 = vmatpush1.bf16.msra.mxu0 %v5614
        %5657 = vmatprep.subr.bf16.mxu0 0
        %5658 = vmatpush1.bf16.msra.mxu0 %v5616
        %5659 = vmatprep.subr.bf16.mxu0 0
        %5660 = vmatpush1.bf16.msra.mxu0 0
        %5661 = vmatprep.subr.bf16.mxu0 0
        %5662 = vmatpush1.bf16.msra.mxu0 0
        %5663 = vmatprep.subr.bf16.mxu0 0
        %5664 = vmatpush1.bf16.msra.mxu0 0
        %5665 = vmatprep.subr.bf16.mxu0 0
        %5666 = vmatpush1.bf16.msra.mxu0 0
        %5667 = vmatprep.subr.bf16.mxu0 0
        %5668 = vmatpush1.bf16.msra.mxu0 0
        %5669 = vmatprep.subr.bf16.mxu0 0
        %5670 = vmatpush1.bf16.msra.mxu0 0
        %5671 = vmatprep.subr.bf16.mxu0 0
        %5672 = vmatpush1.bf16.msra.mxu0 0
        %5673 = vmatprep.subr.bf16.mxu0 0
        %5674 = vmatpush1.bf16.msra.mxu0 0
        %5675 = vmatprep.subr.bf16.mxu0 0
        %5676 = vmatpush1.bf16.msra.mxu0 0
        %5677 = vmatprep.mubr.bf16.mxu0 0
        %5678 = vmatmul.mubr.bf16.gmra.mrb[0].mxu0 %v5625
        %v5679 = vpop.f32.mrb[0].mxu0
        %v5680 = vadd.f32 0.0, %v5679
        %v5681 = vpop.f32.mrb[0].mxu0
        %v5682 = vpop.f32.mrb[0].mxu0
        %v5683 = vadd.f32 0.0, %v5682
        %v5684 = vpop.f32.mrb[0].mxu0
        %5685 = vmatprep.mubr.bf16.mxu0 0
        %5686 = vmatmul.mubr.bf16.gmra.mrb[0].mxu0 %v5628
        %v5687 = vpop.f32.mrb[0].mxu0
        %v5688 = vadd.f32 0.0, %v5687
        %v5689 = vpop.f32.mrb[0].mxu0
        %v5690 = vpop.f32.mrb[0].mxu0
        %v5691 = vadd.f32 0.0, %v5690
        %v5692 = vpop.f32.mrb[0].mxu0
        %5693 = vmatprep.mubr.bf16.mxu0 0
        %5694 = vmatmul.mubr.bf16.gmra.mrb[0].mxu0 %v5631
        %v5695 = vpop.f32.mrb[0].mxu0
        %v5696 = vadd.f32 0.0, %v5695
        %v5697 = vpop.f32.mrb[0].mxu0
        %v5698 = vpop.f32.mrb[0].mxu0
        %v5699 = vadd.f32 0.0, %v5698
        %v5700 = vpop.f32.mrb[0].mxu0
        %5701 = vmatprep.mubr.bf16.mxu0 0
        %5702 = vmatmul.mubr.bf16.gmra.mrb[0].mxu0 %v5634
        %v5703 = vpop.f32.mrb[0].mxu0
        %v5704 = vadd.f32 0.0, %v5703
        %v5705 = vpop.f32.mrb[0].mxu0
        %v5706 = vpop.f32.mrb[0].mxu0
        %v5707 = vadd.f32 0.0, %v5706
        %v5708 = vpop.f32.mrb[0].mxu0
        %5709 = vmatprep.mubr.bf16.mxu0 0
        %5710 = vmatmul.mubr.bf16.gmra.mrb[0].mxu0 %v5637
        %v5711 = vpop.f32.mrb[0].mxu0
        %v5712 = vadd.f32 0.0, %v5711
        %v5713 = vpop.f32.mrb[0].mxu0
        %v5714 = vpop.f32.mrb[0].mxu0
        %v5715 = vadd.f32 0.0, %v5714
        %v5716 = vpop.f32.mrb[0].mxu0
        %5717 = vmatprep.mubr.bf16.mxu0 0
        %5718 = vmatmul.mubr.bf16.gmra.mrb[0].mxu0 %v5640
        %v5719 = vpop.f32.mrb[0].mxu0
        %v5720 = vadd.f32 0.0, %v5719
        %v5721 = vpop.f32.mrb[0].mxu0
        %v5722 = vpop.f32.mrb[0].mxu0
        %v5723 = vadd.f32 0.0, %v5722
        %v5724 = vpop.f32.mrb[0].mxu0
        %5725 = vmatprep.mubr.bf16.mxu0 0
        %5726 = vmatmul.mubr.bf16.gmra.mrb[0].mxu0 %v5643
        %v5727 = vpop.f32.mrb[0].mxu0
        %v5728 = vadd.f32 0.0, %v5727
        %v5729 = vpop.f32.mrb[0].mxu0
        %v5730 = vpop.f32.mrb[0].mxu0
        %v5731 = vadd.f32 0.0, %v5730
        %v5732 = vpop.f32.mrb[0].mxu0
        %5733 = vdwg.mxu0
        %5734 = vrot.lane.b32.xlu0 %v4297, 104
        %v5735 = vpop.permute.xlu0 %5734
        %5736 = vrot.lane.b32.xlu0 %v4298, 104
        %v5737 = vpop.permute.xlu0 %5736
        %5738 = vrot.lane.b32.xlu0 %v4299, 104
        %v5739 = vpop.permute.xlu0 %5738
        %5740 = vrot.lane.b32.xlu0 %v4300, 104
        %v5741 = vpop.permute.xlu0 %5740
        %5742 = vrot.lane.b32.xlu0 %v4301, 104
        %v5743 = vpop.permute.xlu0 %5742
        %5744 = vrot.lane.b32.xlu0 %v4302, 104
        %v5745 = vpop.permute.xlu0 %5744
        %5746 = vrot.lane.b32.xlu0 %v4303, 104
        %v5747 = vpop.permute.xlu0 %5746
        %5748 = vrot.lane.b32.xlu0 %v4297, 72
        %v5749 = vpop.permute.xlu0 %5748
        %5750 = vrot.lane.b32.xlu0 %v4298, 72
        %v5751 = vpop.permute.xlu0 %5750
        %5752 = vrot.lane.b32.xlu0 %v4299, 72
        %v5753 = vpop.permute.xlu0 %5752
        %5754 = vrot.lane.b32.xlu0 %v4300, 72
        %v5755 = vpop.permute.xlu0 %5754
        %5756 = vrot.lane.b32.xlu0 %v4301, 72
        %v5757 = vpop.permute.xlu0 %5756
        %5758 = vrot.lane.b32.xlu0 %v4302, 72
        %v5759 = vpop.permute.xlu0 %5758
        %5760 = vrot.lane.b32.xlu0 %v4303, 72
        %v5761 = vpop.permute.xlu0 %5760
        %v5763 = vsel %vm1149, %v5735, 0
        %v5766 = vsel %vm1149, %v5737, 0
        %v5769 = vsel %vm1149, %v5739, 0
        %v5772 = vsel %vm1149, %v5741, 0
        %v5775 = vsel %vm1149, %v5743, 0
        %v5778 = vsel %vm1149, %v5745, 0
        %v5781 = vsel %vm1149, %v5747, 0
        %v5784 = vsel %vm1149, %v5749, 0
        %v5787 = vsel %vm1149, %v5751, 0
        %v5790 = vsel %vm1149, %v5753, 0
        %v5793 = vsel %vm1149, %v5755, 0
        %v5796 = vsel %vm1149, %v5757, 0
        %v5799 = vsel %vm1149, %v5759, 0
        %v5802 = vsel %vm1149, %v5761, 0
        %5804 = vmatprep.subr.bf16.mxu0 0
        %5805 = vmatpush1.bf16.xpose.msra.mxu0 %v5784
        %5806 = vmatprep.subr.bf16.mxu0 0
        %5807 = vmatpush1.bf16.xpose.msra.mxu0 %v5787
        %5808 = vmatprep.subr.bf16.mxu0 0
        %5809 = vmatpush1.bf16.xpose.msra.mxu0 %v5790
        %5810 = vmatprep.subr.bf16.mxu0 0
        %5811 = vmatpush1.bf16.xpose.msra.mxu0 %v5793
        %5812 = vmatprep.subr.bf16.mxu0 0
        %5813 = vmatpush1.bf16.xpose.msra.mxu0 %v5796
        %5814 = vmatprep.subr.bf16.mxu0 0
        %5815 = vmatpush1.bf16.xpose.msra.mxu0 %v5799
        %5816 = vmatprep.subr.bf16.mxu0 0
        %5817 = vmatpush1.bf16.xpose.msra.mxu0 %v5802
        %5818 = vmatprep.subr.bf16.mxu0 0
        %5819 = vmatpush1.bf16.xpose.msra.mxu0 0
        %5820 = vmatprep.subr.bf16.mxu0 0
        %5821 = vmatpush1.bf16.xpose.msra.mxu0 0
        %5822 = vmatprep.subr.bf16.mxu0 0
        %5823 = vmatpush1.bf16.xpose.msra.mxu0 0
        %5824 = vmatprep.subr.bf16.mxu0 0
        %5825 = vmatpush1.bf16.xpose.msra.mxu0 0
        %5826 = vmatprep.subr.bf16.mxu0 0
        %5827 = vmatpush1.bf16.xpose.msra.mxu0 0
        %5828 = vmatprep.subr.bf16.mxu0 0
        %5829 = vmatpush1.bf16.xpose.msra.mxu0 0
        %5830 = vmatprep.subr.bf16.mxu0 0
        %5831 = vmatpush1.bf16.xpose.msra.mxu0 0
        %5832 = vmatprep.subr.bf16.mxu0 0
        %5833 = vmatpush1.bf16.xpose.msra.mxu0 0
        %5834 = vmatprep.subr.bf16.mxu0 0
        %5835 = vmatpush1.bf16.xpose.msra.mxu0 0
        %5836 = vmatprep.mubr.bf16.mxu0 0
        %5837 = vmatmul.mubr.bf16.gmra.mrb[0].mxu0 %v5763
        %v5838 = vpop.f32.mrb[0].mxu0
        %v5839 = vadd.f32 0.0, %v5838
        %v5840 = vpop.f32.mrb[0].mxu0
        %v5841 = vpop.f32.mrb[0].mxu0
        %v5842 = vadd.f32 0.0, %v5841
        %v5843 = vpop.f32.mrb[0].mxu0
        %5844 = vmatprep.mubr.bf16.mxu0 0
        %5845 = vmatmul.mubr.bf16.gmra.mrb[0].mxu0 %v5766
        %v5846 = vpop.f32.mrb[0].mxu0
        %v5847 = vadd.f32 0.0, %v5846
        %v5848 = vpop.f32.mrb[0].mxu0
        %v5849 = vpop.f32.mrb[0].mxu0
        %v5850 = vadd.f32 0.0, %v5849
        %v5851 = vpop.f32.mrb[0].mxu0
        %5852 = vmatprep.mubr.bf16.mxu0 0
        %5853 = vmatmul.mubr.bf16.gmra.mrb[0].mxu0 %v5769
        %v5854 = vpop.f32.mrb[0].mxu0
        %v5855 = vadd.f32 0.0, %v5854
        %v5856 = vpop.f32.mrb[0].mxu0
        %v5857 = vpop.f32.mrb[0].mxu0
        %v5858 = vadd.f32 0.0, %v5857
        %v5859 = vpop.f32.mrb[0].mxu0
        %5860 = vmatprep.mubr.bf16.mxu0 0
        %5861 = vmatmul.mubr.bf16.gmra.mrb[0].mxu0 %v5772
        %v5862 = vpop.f32.mrb[0].mxu0
        %v5863 = vadd.f32 0.0, %v5862
        %v5864 = vpop.f32.mrb[0].mxu0
        %v5865 = vpop.f32.mrb[0].mxu0
        %v5866 = vadd.f32 0.0, %v5865
        %v5867 = vpop.f32.mrb[0].mxu0
        %5868 = vmatprep.mubr.bf16.mxu0 0
        %5869 = vmatmul.mubr.bf16.gmra.mrb[0].mxu0 %v5775
        %v5870 = vpop.f32.mrb[0].mxu0
        %v5871 = vadd.f32 0.0, %v5870
        %v5872 = vpop.f32.mrb[0].mxu0
        %v5873 = vpop.f32.mrb[0].mxu0
        %v5874 = vadd.f32 0.0, %v5873
        %v5875 = vpop.f32.mrb[0].mxu0
        %5876 = vmatprep.mubr.bf16.mxu0 0
        %5877 = vmatmul.mubr.bf16.gmra.mrb[0].mxu0 %v5778
        %v5878 = vpop.f32.mrb[0].mxu0
        %v5879 = vadd.f32 0.0, %v5878
        %v5880 = vpop.f32.mrb[0].mxu0
        %v5881 = vpop.f32.mrb[0].mxu0
        %v5882 = vadd.f32 0.0, %v5881
        %v5883 = vpop.f32.mrb[0].mxu0
        %5884 = vmatprep.mubr.bf16.mxu0 0
        %5885 = vmatmul.mubr.bf16.gmra.mrb[0].mxu0 %v5781
        %v5886 = vpop.f32.mrb[0].mxu0
        %v5887 = vadd.f32 0.0, %v5886
        %v5888 = vpop.f32.mrb[0].mxu0
        %v5889 = vpop.f32.mrb[0].mxu0
        %v5890 = vadd.f32 0.0, %v5889
        %v5891 = vpop.f32.mrb[0].mxu0
        %5892 = vdwg.mxu0
        %v5893 = vmul.f32 %v5839, 0.35355338
        %v5894 = vmul.f32 %v5842, 0.35355338
        %v5895 = vmul.f32 %v5847, 0.35355338
        %v5896 = vmul.f32 %v5850, 0.35355338
        %v5897 = vmul.f32 %v5855, 0.35355338
        %v5898 = vmul.f32 %v5858, 0.35355338
        %v5899 = vmul.f32 %v5863, 0.35355338
        %v5900 = vmul.f32 %v5866, 0.35355338
        %v5901 = vmul.f32 %v5871, 0.35355338
        %v5902 = vmul.f32 %v5874, 0.35355338
        %v5903 = vmul.f32 %v5879, 0.35355338
        %v5904 = vmul.f32 %v5882, 0.35355338
        %v5905 = vmul.f32 %v5887, 0.35355338
        %v5906 = vmul.f32 %v5890, 0.35355338
        %v5907 = vadd.f32 %v5893, %v444
        %v5908 = vadd.f32 %v5894, %v445
        %v5909 = vadd.f32 %v5895, %v446
        %v5910 = vadd.f32 %v5896, %v447
        %v5911 = vadd.f32 %v5897, %v448
        %v5912 = vadd.f32 %v5898, %v449
        %v5913 = vadd.f32 %v5899, %v450
        %v5914 = vadd.f32 %v5900, %v451
        %v5915 = vadd.f32 %v5901, %v452
        %v5916 = vadd.f32 %v5902, %v453
        %v5917 = vadd.f32 %v5903, %v454
        %v5918 = vadd.f32 %v5904, %v455
        %v5919 = vadd.f32 %v5905, %v456
        %v5920 = vadd.f32 %v5906, %v457
        %v5921 = vsel %vm1309, %v5907, -inf
        %5922 = vmax.xlane.f32.xlu0 %v5921
        %v5923 = vpop.xlane.xlu0 %5922
        %v5924 = vsel %vm1309, %v5908, -inf
        %5925 = vmax.xlane.f32.xlu0 %v5924
        %v5926 = vpop.xlane.xlu0 %5925
        %v5927 = vsel %vm1309, %v5909, -inf
        %5928 = vmax.xlane.f32.xlu0 %v5927
        %v5929 = vpop.xlane.xlu0 %5928
        %v5930 = vsel %vm1309, %v5910, -inf
        %5931 = vmax.xlane.f32.xlu0 %v5930
        %v5932 = vpop.xlane.xlu0 %5931
        %v5933 = vsel %vm1309, %v5911, -inf
        %5934 = vmax.xlane.f32.xlu0 %v5933
        %v5935 = vpop.xlane.xlu0 %5934
        %v5936 = vsel %vm1309, %v5912, -inf
        %5937 = vmax.xlane.f32.xlu0 %v5936
        %v5938 = vpop.xlane.xlu0 %5937
        %v5939 = vsel %vm1309, %v5913, -inf
        %5940 = vmax.xlane.f32.xlu0 %v5939
        %v5941 = vpop.xlane.xlu0 %5940
        %v5942 = vsel %vm1309, %v5914, -inf
        %5943 = vmax.xlane.f32.xlu0 %v5942
        %v5944 = vpop.xlane.xlu0 %5943
        %v5945 = vsel %vm1309, %v5915, -inf
        %5946 = vmax.xlane.f32.xlu0 %v5945
        %v5947 = vpop.xlane.xlu0 %5946
        %v5948 = vsel %vm1309, %v5916, -inf
        %5949 = vmax.xlane.f32.xlu0 %v5948
        %v5950 = vpop.xlane.xlu0 %5949
        %v5951 = vsel %vm1309, %v5917, -inf
        %5952 = vmax.xlane.f32.xlu0 %v5951
        %v5953 = vpop.xlane.xlu0 %5952
        %v5954 = vsel %vm1309, %v5918, -inf
        %5955 = vmax.xlane.f32.xlu0 %v5954
        %v5956 = vpop.xlane.xlu0 %5955
        %v5957 = vsel %vm1309, %v5919, -inf
        %5958 = vmax.xlane.f32.xlu0 %v5957
        %v5959 = vpop.xlane.xlu0 %5958
        %v5960 = vsel %vm1309, %v5920, -inf
        %5961 = vmax.xlane.f32.xlu0 %v5960
        %v5962 = vpop.xlane.xlu0 %5961
        %v5963 = vsub.f32 %v5907, %v5923
        %v5964 = vsub.f32 %v5908, %v5926
        %v5965 = vsub.f32 %v5909, %v5929
        %v5966 = vsub.f32 %v5910, %v5932
        %v5967 = vsub.f32 %v5911, %v5935
        %v5968 = vsub.f32 %v5912, %v5938
        %v5969 = vsub.f32 %v5913, %v5941
        %v5970 = vsub.f32 %v5914, %v5944
        %v5971 = vsub.f32 %v5915, %v5947
        %v5972 = vsub.f32 %v5916, %v5950
        %v5973 = vsub.f32 %v5917, %v5953
        %v5974 = vsub.f32 %v5918, %v5956
        %v5975 = vsub.f32 %v5919, %v5959
        %v5976 = vsub.f32 %v5920, %v5962
        %v5977 = vmul.f32 %v5963, 1.442695
        %v5978 = vpow.pop %v5977
        %v5979 = vmul.f32 %v5964, 1.442695
        %v5980 = vpow.pop %v5979
        %v5981 = vmul.f32 %v5965, 1.442695
        %v5982 = vpow.pop %v5981
        %v5983 = vmul.f32 %v5966, 1.442695
        %v5984 = vpow.pop %v5983
        %v5985 = vmul.f32 %v5967, 1.442695
        %v5986 = vpow.pop %v5985
        %v5987 = vmul.f32 %v5968, 1.442695
        %v5988 = vpow.pop %v5987
        %v5989 = vmul.f32 %v5969, 1.442695
        %v5990 = vpow.pop %v5989
        %v5991 = vmul.f32 %v5970, 1.442695
        %v5992 = vpow.pop %v5991
        %v5993 = vmul.f32 %v5971, 1.442695
        %v5994 = vpow.pop %v5993
        %v5995 = vmul.f32 %v5972, 1.442695
        %v5996 = vpow.pop %v5995
        %v5997 = vmul.f32 %v5973, 1.442695
        %v5998 = vpow.pop %v5997
        %v5999 = vmul.f32 %v5974, 1.442695
        %v6000 = vpow.pop %v5999
        %v6001 = vmul.f32 %v5975, 1.442695
        %v6002 = vpow.pop %v6001
        %v6003 = vmul.f32 %v5976, 1.442695
        %v6004 = vpow.pop %v6003
        %v6005 = vsel %vm1309, %v5978, 0.0
        %6006 = vadd.xlane.f32.xlu0 %v6005
        %v6007 = vpop.xlane.xlu0 %6006
        %v6008 = vsel %vm1309, %v5980, 0.0
        %6009 = vadd.xlane.f32.xlu0 %v6008
        %v6010 = vpop.xlane.xlu0 %6009
        %v6011 = vsel %vm1309, %v5982, 0.0
        %6012 = vadd.xlane.f32.xlu0 %v6011
        %v6013 = vpop.xlane.xlu0 %6012
        %v6014 = vsel %vm1309, %v5984, 0.0
        %6015 = vadd.xlane.f32.xlu0 %v6014
        %v6016 = vpop.xlane.xlu0 %6015
        %v6017 = vsel %vm1309, %v5986, 0.0
        %6018 = vadd.xlane.f32.xlu0 %v6017
        %v6019 = vpop.xlane.xlu0 %6018
        %v6020 = vsel %vm1309, %v5988, 0.0
        %6021 = vadd.xlane.f32.xlu0 %v6020
        %v6022 = vpop.xlane.xlu0 %6021
        %v6023 = vsel %vm1309, %v5990, 0.0
        %6024 = vadd.xlane.f32.xlu0 %v6023
        %v6025 = vpop.xlane.xlu0 %6024
        %v6026 = vsel %vm1309, %v5992, 0.0
        %6027 = vadd.xlane.f32.xlu0 %v6026
        %v6028 = vpop.xlane.xlu0 %6027
        %v6029 = vsel %vm1309, %v5994, 0.0
        %6030 = vadd.xlane.f32.xlu0 %v6029
        %v6031 = vpop.xlane.xlu0 %6030
        %v6032 = vsel %vm1309, %v5996, 0.0
        %6033 = vadd.xlane.f32.xlu0 %v6032
        %v6034 = vpop.xlane.xlu0 %6033
        %v6035 = vsel %vm1309, %v5998, 0.0
        %6036 = vadd.xlane.f32.xlu0 %v6035
        %v6037 = vpop.xlane.xlu0 %6036
        %v6038 = vsel %vm1309, %v6000, 0.0
        %6039 = vadd.xlane.f32.xlu0 %v6038
        %v6040 = vpop.xlane.xlu0 %6039
        %v6041 = vsel %vm1309, %v6002, 0.0
        %6042 = vadd.xlane.f32.xlu0 %v6041
        %v6043 = vpop.xlane.xlu0 %6042
        %v6044 = vsel %vm1309, %v6004, 0.0
        %6045 = vadd.xlane.f32.xlu0 %v6044
        %v6046 = vpop.xlane.xlu0 %6045
        %v6047 = vrcp.pop %v6007
        %v6048 = vrcp.pop %v6010
        %v6049 = vrcp.pop %v6013
        %v6050 = vrcp.pop %v6016
        %v6051 = vrcp.pop %v6019
        %v6052 = vrcp.pop %v6022
        %v6053 = vrcp.pop %v6025
        %v6054 = vrcp.pop %v6028
        %v6055 = vrcp.pop %v6031
        %v6056 = vrcp.pop %v6034
        %v6057 = vrcp.pop %v6037
        %v6058 = vrcp.pop %v6040
        %v6059 = vrcp.pop %v6043
        %v6060 = vrcp.pop %v6046
        %v6061 = vmul.f32 %v5978, %v6047
        %v6062 = vmul.f32 %v5980, %v6048
        %v6063 = vmul.f32 %v5982, %v6049
        %v6064 = vmul.f32 %v5984, %v6050
        %v6065 = vmul.f32 %v5986, %v6051
        %v6066 = vmul.f32 %v5988, %v6052
        %v6067 = vmul.f32 %v5990, %v6053
        %v6068 = vmul.f32 %v5992, %v6054
        %v6069 = vmul.f32 %v5994, %v6055
        %v6070 = vmul.f32 %v5996, %v6056
        %v6071 = vmul.f32 %v5998, %v6057
        %v6072 = vmul.f32 %v6000, %v6058
        %v6073 = vmul.f32 %v6002, %v6059
        %v6074 = vmul.f32 %v6004, %v6060
        %v6075 = vpack.c.bf16 %v6062, %v6061
        %v6076 = vpack.c.bf16 %v6064, %v6063
        %v6077 = vpack.c.bf16 %v6066, %v6065
        %v6078 = vpack.c.bf16 %v6068, %v6067
        %v6079 = vpack.c.bf16 %v6070, %v6069
        %v6080 = vpack.c.bf16 %v6072, %v6071
        %v6081 = vpack.c.bf16 %v6074, %v6073
        %6082 = vrot.lane.b32.xlu0 %v4297, 40
        %v6083 = vpop.permute.xlu0 %6082
        %6084 = vrot.lane.b32.xlu0 %v4298, 40
        %v6085 = vpop.permute.xlu0 %6084
        %6086 = vrot.lane.b32.xlu0 %v4299, 40
        %v6087 = vpop.permute.xlu0 %6086
        %6088 = vrot.lane.b32.xlu0 %v4300, 40
        %v6089 = vpop.permute.xlu0 %6088
        %6090 = vrot.lane.b32.xlu0 %v4301, 40
        %v6091 = vpop.permute.xlu0 %6090
        %6092 = vrot.lane.b32.xlu0 %v4302, 40
        %v6093 = vpop.permute.xlu0 %6092
        %6094 = vrot.lane.b32.xlu0 %v4303, 40
        %v6095 = vpop.permute.xlu0 %6094
        %v6104 = vsel %vm1309, %v6075, 0
        %v6107 = vsel %vm1309, %v6076, 0
        %v6110 = vsel %vm1309, %v6077, 0
        %v6113 = vsel %vm1309, %v6078, 0
        %v6116 = vsel %vm1309, %v6079, 0
        %v6119 = vsel %vm1309, %v6080, 0
        %v6122 = vsel %vm1309, %v6081, 0
        %6124 = vmatprep.subr.bf16.mxu0 0
        %6125 = vmatpush1.bf16.msra.mxu0 %v6083
        %6126 = vmatprep.subr.bf16.mxu0 0
        %6127 = vmatpush1.bf16.msra.mxu0 %v6085
        %6128 = vmatprep.subr.bf16.mxu0 0
        %6129 = vmatpush1.bf16.msra.mxu0 %v6087
        %6130 = vmatprep.subr.bf16.mxu0 0
        %6131 = vmatpush1.bf16.msra.mxu0 %v6089
        %6132 = vmatprep.subr.bf16.mxu0 0
        %6133 = vmatpush1.bf16.msra.mxu0 %v6091
        %6134 = vmatprep.subr.bf16.mxu0 0
        %6135 = vmatpush1.bf16.msra.mxu0 %v6093
        %6136 = vmatprep.subr.bf16.mxu0 0
        %6137 = vmatpush1.bf16.msra.mxu0 %v6095
        %6138 = vmatprep.subr.bf16.mxu0 0
        %6139 = vmatpush1.bf16.msra.mxu0 0
        %6140 = vmatprep.subr.bf16.mxu0 0
        %6141 = vmatpush1.bf16.msra.mxu0 0
        %6142 = vmatprep.subr.bf16.mxu0 0
        %6143 = vmatpush1.bf16.msra.mxu0 0
        %6144 = vmatprep.subr.bf16.mxu0 0
        %6145 = vmatpush1.bf16.msra.mxu0 0
        %6146 = vmatprep.subr.bf16.mxu0 0
        %6147 = vmatpush1.bf16.msra.mxu0 0
        %6148 = vmatprep.subr.bf16.mxu0 0
        %6149 = vmatpush1.bf16.msra.mxu0 0
        %6150 = vmatprep.subr.bf16.mxu0 0
        %6151 = vmatpush1.bf16.msra.mxu0 0
        %6152 = vmatprep.subr.bf16.mxu0 0
        %6153 = vmatpush1.bf16.msra.mxu0 0
        %6154 = vmatprep.subr.bf16.mxu0 0
        %6155 = vmatpush1.bf16.msra.mxu0 0
        %6156 = vmatprep.mubr.bf16.mxu0 0
        %6157 = vmatmul.mubr.bf16.gmra.mrb[0].mxu0 %v6104
        %v6158 = vpop.f32.mrb[0].mxu0
        %v6159 = vadd.f32 0.0, %v6158
        %v6160 = vpop.f32.mrb[0].mxu0
        %v6161 = vpop.f32.mrb[0].mxu0
        %v6162 = vadd.f32 0.0, %v6161
        %v6163 = vpop.f32.mrb[0].mxu0
        %6164 = vmatprep.mubr.bf16.mxu0 0
        %6165 = vmatmul.mubr.bf16.gmra.mrb[0].mxu0 %v6107
        %v6166 = vpop.f32.mrb[0].mxu0
        %v6167 = vadd.f32 0.0, %v6166
        %v6168 = vpop.f32.mrb[0].mxu0
        %v6169 = vpop.f32.mrb[0].mxu0
        %v6170 = vadd.f32 0.0, %v6169
        %v6171 = vpop.f32.mrb[0].mxu0
        %6172 = vmatprep.mubr.bf16.mxu0 0
        %6173 = vmatmul.mubr.bf16.gmra.mrb[0].mxu0 %v6110
        %v6174 = vpop.f32.mrb[0].mxu0
        %v6175 = vadd.f32 0.0, %v6174
        %v6176 = vpop.f32.mrb[0].mxu0
        %v6177 = vpop.f32.mrb[0].mxu0
        %v6178 = vadd.f32 0.0, %v6177
        %v6179 = vpop.f32.mrb[0].mxu0
        %6180 = vmatprep.mubr.bf16.mxu0 0
        %6181 = vmatmul.mubr.bf16.gmra.mrb[0].mxu0 %v6113
        %v6182 = vpop.f32.mrb[0].mxu0
        %v6183 = vadd.f32 0.0, %v6182
        %v6184 = vpop.f32.mrb[0].mxu0
        %v6185 = vpop.f32.mrb[0].mxu0
        %v6186 = vadd.f32 0.0, %v6185
        %v6187 = vpop.f32.mrb[0].mxu0
        %6188 = vmatprep.mubr.bf16.mxu0 0
        %6189 = vmatmul.mubr.bf16.gmra.mrb[0].mxu0 %v6116
        %v6190 = vpop.f32.mrb[0].mxu0
        %v6191 = vadd.f32 0.0, %v6190
        %v6192 = vpop.f32.mrb[0].mxu0
        %v6193 = vpop.f32.mrb[0].mxu0
        %v6194 = vadd.f32 0.0, %v6193
        %v6195 = vpop.f32.mrb[0].mxu0
        %6196 = vmatprep.mubr.bf16.mxu0 0
        %6197 = vmatmul.mubr.bf16.gmra.mrb[0].mxu0 %v6119
        %v6198 = vpop.f32.mrb[0].mxu0
        %v6199 = vadd.f32 0.0, %v6198
        %v6200 = vpop.f32.mrb[0].mxu0
        %v6201 = vpop.f32.mrb[0].mxu0
        %v6202 = vadd.f32 0.0, %v6201
        %v6203 = vpop.f32.mrb[0].mxu0
        %6204 = vmatprep.mubr.bf16.mxu0 0
        %6205 = vmatmul.mubr.bf16.gmra.mrb[0].mxu0 %v6122
        %v6206 = vpop.f32.mrb[0].mxu0
        %v6207 = vadd.f32 0.0, %v6206
        %v6208 = vpop.f32.mrb[0].mxu0
        %v6209 = vpop.f32.mrb[0].mxu0
        %v6210 = vadd.f32 0.0, %v6209
        %v6211 = vpop.f32.mrb[0].mxu0
        %6212 = vdwg.mxu0
        %6227 = vrot.lane.b32.xlu0 %v5201, 8
        %v6228 = vpop.permute.xlu0 %6227
        %6229 = vrot.lane.b32.xlu0 %v5204, 8
        %v6230 = vpop.permute.xlu0 %6229
        %6231 = vrot.lane.b32.xlu0 %v5209, 8
        %v6232 = vpop.permute.xlu0 %6231
        %6233 = vrot.lane.b32.xlu0 %v5212, 8
        %v6234 = vpop.permute.xlu0 %6233
        %6235 = vrot.lane.b32.xlu0 %v5217, 8
        %v6236 = vpop.permute.xlu0 %6235
        %6237 = vrot.lane.b32.xlu0 %v5220, 8
        %v6238 = vpop.permute.xlu0 %6237
        %6239 = vrot.lane.b32.xlu0 %v5225, 8
        %v6240 = vpop.permute.xlu0 %6239
        %6241 = vrot.lane.b32.xlu0 %v5228, 8
        %v6242 = vpop.permute.xlu0 %6241
        %6243 = vrot.lane.b32.xlu0 %v5233, 8
        %v6244 = vpop.permute.xlu0 %6243
        %6245 = vrot.lane.b32.xlu0 %v5236, 8
        %v6246 = vpop.permute.xlu0 %6245
        %6247 = vrot.lane.b32.xlu0 %v5241, 8
        %v6248 = vpop.permute.xlu0 %6247
        %6249 = vrot.lane.b32.xlu0 %v5244, 8
        %v6250 = vpop.permute.xlu0 %6249
        %6251 = vrot.lane.b32.xlu0 %v5249, 8
        %v6252 = vpop.permute.xlu0 %6251
        %6253 = vrot.lane.b32.xlu0 %v5252, 8
        %v6254 = vpop.permute.xlu0 %6253
        %6283 = vrot.lane.b32.xlu0 %v5680, 16
        %v6284 = vpop.permute.xlu0 %6283
        %6285 = vrot.lane.b32.xlu0 %v5683, 16
        %v6286 = vpop.permute.xlu0 %6285
        %6287 = vrot.lane.b32.xlu0 %v5688, 16
        %v6288 = vpop.permute.xlu0 %6287
        %6289 = vrot.lane.b32.xlu0 %v5691, 16
        %v6290 = vpop.permute.xlu0 %6289
        %6291 = vrot.lane.b32.xlu0 %v5696, 16
        %v6292 = vpop.permute.xlu0 %6291
        %6293 = vrot.lane.b32.xlu0 %v5699, 16
        %v6294 = vpop.permute.xlu0 %6293
        %6295 = vrot.lane.b32.xlu0 %v5704, 16
        %v6296 = vpop.permute.xlu0 %6295
        %6297 = vrot.lane.b32.xlu0 %v5707, 16
        %v6298 = vpop.permute.xlu0 %6297
        %6299 = vrot.lane.b32.xlu0 %v5712, 16
        %v6300 = vpop.permute.xlu0 %6299
        %6301 = vrot.lane.b32.xlu0 %v5715, 16
        %v6302 = vpop.permute.xlu0 %6301
        %6303 = vrot.lane.b32.xlu0 %v5720, 16
        %v6304 = vpop.permute.xlu0 %6303
        %6305 = vrot.lane.b32.xlu0 %v5723, 16
        %v6306 = vpop.permute.xlu0 %6305
        %6307 = vrot.lane.b32.xlu0 %v5728, 16
        %v6308 = vpop.permute.xlu0 %6307
        %6309 = vrot.lane.b32.xlu0 %v5731, 16
        %v6310 = vpop.permute.xlu0 %6309
        %6339 = vrot.lane.b32.xlu0 %v6159, 24
        %v6340 = vpop.permute.xlu0 %6339
        %6341 = vrot.lane.b32.xlu0 %v6162, 24
        %v6342 = vpop.permute.xlu0 %6341
        %6343 = vrot.lane.b32.xlu0 %v6167, 24
        %v6344 = vpop.permute.xlu0 %6343
        %6345 = vrot.lane.b32.xlu0 %v6170, 24
        %v6346 = vpop.permute.xlu0 %6345
        %6347 = vrot.lane.b32.xlu0 %v6175, 24
        %v6348 = vpop.permute.xlu0 %6347
        %6349 = vrot.lane.b32.xlu0 %v6178, 24
        %v6350 = vpop.permute.xlu0 %6349
        %6351 = vrot.lane.b32.xlu0 %v6183, 24
        %v6352 = vpop.permute.xlu0 %6351
        %6353 = vrot.lane.b32.xlu0 %v6186, 24
        %v6354 = vpop.permute.xlu0 %6353
        %6355 = vrot.lane.b32.xlu0 %v6191, 24
        %v6356 = vpop.permute.xlu0 %6355
        %6357 = vrot.lane.b32.xlu0 %v6194, 24
        %v6358 = vpop.permute.xlu0 %6357
        %6359 = vrot.lane.b32.xlu0 %v6199, 24
        %v6360 = vpop.permute.xlu0 %6359
        %6361 = vrot.lane.b32.xlu0 %v6202, 24
        %v6362 = vpop.permute.xlu0 %6361
        %6363 = vrot.lane.b32.xlu0 %v6207, 24
        %v6364 = vpop.permute.xlu0 %6363
        %6365 = vrot.lane.b32.xlu0 %v6210, 24
        %v6366 = vpop.permute.xlu0 %6365
        %v6381 = vsel %vm1149, %v4722, %v6228
        %v6382 = vsel %vm1149, %v4725, %v6230
        %v6383 = vsel %vm1149, %v4730, %v6232
        %v6384 = vsel %vm1149, %v4733, %v6234
        %v6385 = vsel %vm1149, %v4738, %v6236
        %v6386 = vsel %vm1149, %v4741, %v6238
        %v6387 = vsel %vm1149, %v4746, %v6240
        %v6388 = vsel %vm1149, %v4749, %v6242
        %v6389 = vsel %vm1149, %v4754, %v6244
        %v6390 = vsel %vm1149, %v4757, %v6246
        %v6391 = vsel %vm1149, %v4762, %v6248
        %v6392 = vsel %vm1149, %v4765, %v6250
        %v6393 = vsel %vm1149, %v4770, %v6252
        %v6394 = vsel %vm1149, %v4773, %v6254
        %v6395 = vsel %vm459, %v6381, %v6284
        %v6396 = vsel %vm459, %v6382, %v6286
        %v6397 = vsel %vm459, %v6383, %v6288
        %v6398 = vsel %vm459, %v6384, %v6290
        %v6399 = vsel %vm459, %v6385, %v6292
        %v6400 = vsel %vm459, %v6386, %v6294
        %v6401 = vsel %vm459, %v6387, %v6296
        %v6402 = vsel %vm459, %v6388, %v6298
        %v6403 = vsel %vm459, %v6389, %v6300
        %v6404 = vsel %vm459, %v6390, %v6302
        %v6405 = vsel %vm459, %v6391, %v6304
        %v6406 = vsel %vm459, %v6392, %v6306
        %v6407 = vsel %vm459, %v6393, %v6308
        %v6408 = vsel %vm459, %v6394, %v6310
        %v6409 = vsel %vm3235, %v6395, %v6340
        %v6410 = vsel %vm3235, %v6396, %v6342
        %v6411 = vsel %vm3235, %v6397, %v6344
        %v6412 = vsel %vm3235, %v6398, %v6346
        %v6413 = vsel %vm3235, %v6399, %v6348
        %v6414 = vsel %vm3235, %v6400, %v6350
        %v6415 = vsel %vm3235, %v6401, %v6352
        %v6416 = vsel %vm3235, %v6402, %v6354
        %v6417 = vsel %vm3235, %v6403, %v6356
        %v6418 = vsel %vm3235, %v6404, %v6358
        %v6419 = vsel %vm3235, %v6405, %v6360
        %v6420 = vsel %vm3235, %v6406, %v6362
        %v6421 = vsel %vm3235, %v6407, %v6364
        %v6422 = vsel %vm3235, %v6408, %v6366
        %v6423 = vpack.c.bf16 %v6410, %v6409
        %v6424 = vpack.c.bf16 %v6412, %v6411
        %v6425 = vpack.c.bf16 %v6414, %v6413
        %v6426 = vpack.c.bf16 %v6416, %v6415
        %v6427 = vpack.c.bf16 %v6418, %v6417
        %v6428 = vpack.c.bf16 %v6420, %v6419
        %v6429 = vpack.c.bf16 %v6422, %v6421
        %s6430 = scalar_lea.vmem %s5, 16
        %v6431 = vld [vmem:[%s6430] sm:$0xf]
        %v6432 = vld [vmem:[%s6430 + $0x4] sm:$0xf]
        %v6433 = vld [vmem:[%s6430 + $0x8] sm:$0xf]
        %v6434 = vld [vmem:[%s6430 + $0xc] sm:$0xf]
        %v6435 = vlaneseq
        %v6436 = vshrl.u32 %v6435, 7
        %v6437 = vsub.s32 1, %v6436
        %v6438 = vrot.slane %v4158, %v6437
        %v6443 = vunpack.c.l.b16 %v6431
        %v6444 = vunpack.c.l.b16 %v6432
        %v6445 = vunpack.c.l.b16 %v6433
        %v6446 = vunpack.c.l.b16 %v6434
        %v6447 = vpack.c.b16 %v6444, %v6443
        %v6448 = vpack.c.b16 %v6446, %v6445
        %v6452 = vsel %vm1010, %v6423, 0
        %v6455 = vsel %vm1010, %v6424, 0
        %v6458 = vsel %vm1010, %v6425, 0
        %v6461 = vsel %vm1010, %v6426, 0
        %v6464 = vsel %vm1010, %v6427, 0
        %v6467 = vsel %vm1010, %v6428, 0
        %v6470 = vsel %vm1010, %v6429, 0
        %6472 = vmatprep.subr.bf16.mxu0 0
        %6473 = vmatpush1.bf16.msra.mxu0 %v6447
        %6474 = vmatprep.subr.bf16.mxu0 0
        %6475 = vmatpush1.bf16.msra.mxu0 %v6448
        %6476 = vmatprep.subr.bf16.mxu0 0
        %6477 = vmatpush1.bf16.msra.mxu0 0
        %6478 = vmatprep.subr.bf16.mxu0 0
        %6479 = vmatpush1.bf16.msra.mxu0 0
        %6480 = vmatprep.subr.bf16.mxu0 0
        %6481 = vmatpush1.bf16.msra.mxu0 0
        %6482 = vmatprep.subr.bf16.mxu0 0
        %6483 = vmatpush1.bf16.msra.mxu0 0
        %6484 = vmatprep.subr.bf16.mxu0 0
        %6485 = vmatpush1.bf16.msra.mxu0 0
        %6486 = vmatprep.subr.bf16.mxu0 0
        %6487 = vmatpush1.bf16.msra.mxu0 0
        %6488 = vmatprep.subr.bf16.mxu0 0
        %6489 = vmatpush1.bf16.msra.mxu0 0
        %6490 = vmatprep.subr.bf16.mxu0 0
        %6491 = vmatpush1.bf16.msra.mxu0 0
        %6492 = vmatprep.subr.bf16.mxu0 0
        %6493 = vmatpush1.bf16.msra.mxu0 0
        %6494 = vmatprep.subr.bf16.mxu0 0
        %6495 = vmatpush1.bf16.msra.mxu0 0
        %6496 = vmatprep.subr.bf16.mxu0 0
        %6497 = vmatpush1.bf16.msra.mxu0 0
        %6498 = vmatprep.subr.bf16.mxu0 0
        %6499 = vmatpush1.bf16.msra.mxu0 0
        %6500 = vmatprep.subr.bf16.mxu0 0
        %6501 = vmatpush1.bf16.msra.mxu0 0
        %6502 = vmatprep.subr.bf16.mxu0 0
        %6503 = vmatpush1.bf16.msra.mxu0 0
        %6504 = vmatprep.mubr.bf16.mxu0 0
        %6505 = vmatmul.mubr.bf16.gmra.mrb[0].mxu0 %v6452
        %v6506 = vpop.f32.mrb[0].mxu0
        %v6507 = vadd.f32 %v6438, %v6506
        %v6508 = vpop.f32.mrb[0].mxu0
        %v6509 = vpop.f32.mrb[0].mxu0
        %v6510 = vadd.f32 %v6438, %v6509
        %v6511 = vpop.f32.mrb[0].mxu0
        %6512 = vmatprep.mubr.bf16.mxu0 0
        %6513 = vmatmul.mubr.bf16.gmra.mrb[0].mxu0 %v6455
        %v6514 = vpop.f32.mrb[0].mxu0
        %v6515 = vadd.f32 %v6438, %v6514
        %v6516 = vpop.f32.mrb[0].mxu0
        %v6517 = vpop.f32.mrb[0].mxu0
        %v6518 = vadd.f32 %v6438, %v6517
        %v6519 = vpop.f32.mrb[0].mxu0
        %6520 = vmatprep.mubr.bf16.mxu0 0
        %6521 = vmatmul.mubr.bf16.gmra.mrb[0].mxu0 %v6458
        %v6522 = vpop.f32.mrb[0].mxu0
        %v6523 = vadd.f32 %v6438, %v6522
        %v6524 = vpop.f32.mrb[0].mxu0
        %v6525 = vpop.f32.mrb[0].mxu0
        %v6526 = vadd.f32 %v6438, %v6525
        %v6527 = vpop.f32.mrb[0].mxu0
        %6528 = vmatprep.mubr.bf16.mxu0 0
        %6529 = vmatmul.mubr.bf16.gmra.mrb[0].mxu0 %v6461
        %v6530 = vpop.f32.mrb[0].mxu0
        %v6531 = vadd.f32 %v6438, %v6530
        %v6532 = vpop.f32.mrb[0].mxu0
        %v6533 = vpop.f32.mrb[0].mxu0
        %v6534 = vadd.f32 %v6438, %v6533
        %v6535 = vpop.f32.mrb[0].mxu0
        %6536 = vmatprep.mubr.bf16.mxu0 0
        %6537 = vmatmul.mubr.bf16.gmra.mrb[0].mxu0 %v6464
        %v6538 = vpop.f32.mrb[0].mxu0
        %v6539 = vadd.f32 %v6438, %v6538
        %v6540 = vpop.f32.mrb[0].mxu0
        %v6541 = vpop.f32.mrb[0].mxu0
        %v6542 = vadd.f32 %v6438, %v6541
        %v6543 = vpop.f32.mrb[0].mxu0
        %6544 = vmatprep.mubr.bf16.mxu0 0
        %6545 = vmatmul.mubr.bf16.gmra.mrb[0].mxu0 %v6467
        %v6546 = vpop.f32.mrb[0].mxu0
        %v6547 = vadd.f32 %v6438, %v6546
        %v6548 = vpop.f32.mrb[0].mxu0
        %v6549 = vpop.f32.mrb[0].mxu0
        %v6550 = vadd.f32 %v6438, %v6549
        %v6551 = vpop.f32.mrb[0].mxu0
        %6552 = vmatprep.mubr.bf16.mxu0 0
        %6553 = vmatmul.mubr.bf16.gmra.mrb[0].mxu0 %v6470
        %v6554 = vpop.f32.mrb[0].mxu0
        %v6555 = vadd.f32 %v6438, %v6554
        %v6556 = vpop.f32.mrb[0].mxu0
        %v6557 = vpop.f32.mrb[0].mxu0
        %v6558 = vadd.f32 %v6438, %v6557
        %v6559 = vpop.f32.mrb[0].mxu0
        %6560 = vdwg.mxu0
        %v6561 = vadd.f32 %v4143, %v6507
        %v6562 = vadd.f32 %v4144, %v6510
        %v6563 = vadd.f32 %v4145, %v6515
        %v6564 = vadd.f32 %v4146, %v6518
        %v6565 = vadd.f32 %v4147, %v6523
        %v6566 = vadd.f32 %v4148, %v6526
        %v6567 = vadd.f32 %v4149, %v6531
        %v6568 = vadd.f32 %v4150, %v6534
        %v6569 = vadd.f32 %v4151, %v6539
        %v6570 = vadd.f32 %v4152, %v6542
        %v6571 = vadd.f32 %v4153, %v6547
        %v6572 = vadd.f32 %v4154, %v6550
        %v6573 = vadd.f32 %v4155, %v6555
        %v6574 = vadd.f32 %v4156, %v6558
        %v6575 = vsel %vm1010, %v6561, 0.0
        %6576 = vadd.xlane.f32.xlu0 %v6575
        %v6577 = vpop.xlane.xlu0 %6576
        %v6578 = vsel %vm1010, %v6562, 0.0
        %6579 = vadd.xlane.f32.xlu0 %v6578
        %v6580 = vpop.xlane.xlu0 %6579
        %v6581 = vsel %vm1010, %v6563, 0.0
        %6582 = vadd.xlane.f32.xlu0 %v6581
        %v6583 = vpop.xlane.xlu0 %6582
        %v6584 = vsel %vm1010, %v6564, 0.0
        %6585 = vadd.xlane.f32.xlu0 %v6584
        %v6586 = vpop.xlane.xlu0 %6585
        %v6587 = vsel %vm1010, %v6565, 0.0
        %6588 = vadd.xlane.f32.xlu0 %v6587
        %v6589 = vpop.xlane.xlu0 %6588
        %v6590 = vsel %vm1010, %v6566, 0.0
        %6591 = vadd.xlane.f32.xlu0 %v6590
        %v6592 = vpop.xlane.xlu0 %6591
        %v6593 = vsel %vm1010, %v6567, 0.0
        %6594 = vadd.xlane.f32.xlu0 %v6593
        %v6595 = vpop.xlane.xlu0 %6594
        %v6596 = vsel %vm1010, %v6568, 0.0
        %6597 = vadd.xlane.f32.xlu0 %v6596
        %v6598 = vpop.xlane.xlu0 %6597
        %v6599 = vsel %vm1010, %v6569, 0.0
        %6600 = vadd.xlane.f32.xlu0 %v6599
        %v6601 = vpop.xlane.xlu0 %6600
        %v6602 = vsel %vm1010, %v6570, 0.0
        %6603 = vadd.xlane.f32.xlu0 %v6602
        %v6604 = vpop.xlane.xlu0 %6603
        %v6605 = vsel %vm1010, %v6571, 0.0
        %6606 = vadd.xlane.f32.xlu0 %v6605
        %v6607 = vpop.xlane.xlu0 %6606
        %v6608 = vsel %vm1010, %v6572, 0.0
        %6609 = vadd.xlane.f32.xlu0 %v6608
        %v6610 = vpop.xlane.xlu0 %6609
        %v6611 = vsel %vm1010, %v6573, 0.0
        %6612 = vadd.xlane.f32.xlu0 %v6611
        %v6613 = vpop.xlane.xlu0 %6612
        %v6614 = vsel %vm1010, %v6574, 0.0
        %6615 = vadd.xlane.f32.xlu0 %v6614
        %v6616 = vpop.xlane.xlu0 %6615
        %v6617 = vmul.f32 %v6577, %v3443
        %v6618 = vmul.f32 %v6580, %v3443
        %v6619 = vmul.f32 %v6583, %v3443
        %v6620 = vmul.f32 %v6586, %v3443
        %v6621 = vmul.f32 %v6589, %v3443
        %v6622 = vmul.f32 %v6592, %v3443
        %v6623 = vmul.f32 %v6595, %v3443
        %v6624 = vmul.f32 %v6598, %v3443
        %v6625 = vmul.f32 %v6601, %v3443
        %v6626 = vmul.f32 %v6604, %v3443
        %v6627 = vmul.f32 %v6607, %v3443
        %v6628 = vmul.f32 %v6610, %v3443
        %v6629 = vmul.f32 %v6613, %v3443
        %v6630 = vmul.f32 %v6616, %v3443
        %v6631 = vsub.f32 %v6561, %v6617
        %v6632 = vsub.f32 %v6562, %v6618
        %v6633 = vsub.f32 %v6563, %v6619
        %v6634 = vsub.f32 %v6564, %v6620
        %v6635 = vsub.f32 %v6565, %v6621
        %v6636 = vsub.f32 %v6566, %v6622
        %v6637 = vsub.f32 %v6567, %v6623
        %v6638 = vsub.f32 %v6568, %v6624
        %v6639 = vsub.f32 %v6569, %v6625
        %v6640 = vsub.f32 %v6570, %v6626
        %v6641 = vsub.f32 %v6571, %v6627
        %v6642 = vsub.f32 %v6572, %v6628
        %v6643 = vsub.f32 %v6573, %v6629
        %v6644 = vsub.f32 %v6574, %v6630
        %v6645 = vmul.f32 %v6631, %v6631
        %v6646 = vmul.f32 %v6632, %v6632
        %v6647 = vmul.f32 %v6633, %v6633
        %v6648 = vmul.f32 %v6634, %v6634
        %v6649 = vmul.f32 %v6635, %v6635
        %v6650 = vmul.f32 %v6636, %v6636
        %v6651 = vmul.f32 %v6637, %v6637
        %v6652 = vmul.f32 %v6638, %v6638
        %v6653 = vmul.f32 %v6639, %v6639
        %v6654 = vmul.f32 %v6640, %v6640
        %v6655 = vmul.f32 %v6641, %v6641
        %v6656 = vmul.f32 %v6642, %v6642
        %v6657 = vmul.f32 %v6643, %v6643
        %v6658 = vmul.f32 %v6644, %v6644
        %v6659 = vsel %vm1010, %v6645, 0.0
        %6660 = vadd.xlane.f32.xlu0 %v6659
        %v6661 = vpop.xlane.xlu0 %6660
        %v6662 = vsel %vm1010, %v6646, 0.0
        %6663 = vadd.xlane.f32.xlu0 %v6662
        %v6664 = vpop.xlane.xlu0 %6663
        %v6665 = vsel %vm1010, %v6647, 0.0
        %6666 = vadd.xlane.f32.xlu0 %v6665
        %v6667 = vpop.xlane.xlu0 %6666
        %v6668 = vsel %vm1010, %v6648, 0.0
        %6669 = vadd.xlane.f32.xlu0 %v6668
        %v6670 = vpop.xlane.xlu0 %6669
        %v6671 = vsel %vm1010, %v6649, 0.0
        %6672 = vadd.xlane.f32.xlu0 %v6671
        %v6673 = vpop.xlane.xlu0 %6672
        %v6674 = vsel %vm1010, %v6650, 0.0
        %6675 = vadd.xlane.f32.xlu0 %v6674
        %v6676 = vpop.xlane.xlu0 %6675
        %v6677 = vsel %vm1010, %v6651, 0.0
        %6678 = vadd.xlane.f32.xlu0 %v6677
        %v6679 = vpop.xlane.xlu0 %6678
        %v6680 = vsel %vm1010, %v6652, 0.0
        %6681 = vadd.xlane.f32.xlu0 %v6680
        %v6682 = vpop.xlane.xlu0 %6681
        %v6683 = vsel %vm1010, %v6653, 0.0
        %6684 = vadd.xlane.f32.xlu0 %v6683
        %v6685 = vpop.xlane.xlu0 %6684
        %v6686 = vsel %vm1010, %v6654, 0.0
        %6687 = vadd.xlane.f32.xlu0 %v6686
        %v6688 = vpop.xlane.xlu0 %6687
        %v6689 = vsel %vm1010, %v6655, 0.0
        %6690 = vadd.xlane.f32.xlu0 %v6689
        %v6691 = vpop.xlane.xlu0 %6690
        %v6692 = vsel %vm1010, %v6656, 0.0
        %6693 = vadd.xlane.f32.xlu0 %v6692
        %v6694 = vpop.xlane.xlu0 %6693
        %v6695 = vsel %vm1010, %v6657, 0.0
        %6696 = vadd.xlane.f32.xlu0 %v6695
        %v6697 = vpop.xlane.xlu0 %6696
        %v6698 = vsel %vm1010, %v6658, 0.0
        %6699 = vadd.xlane.f32.xlu0 %v6698
        %v6700 = vpop.xlane.xlu0 %6699
        %v6701 = vmul.f32 %v6661, %v3443
        %v6702 = vmul.f32 %v6664, %v3443
        %v6703 = vmul.f32 %v6667, %v3443
        %v6704 = vmul.f32 %v6670, %v3443
        %v6705 = vmul.f32 %v6673, %v3443
        %v6706 = vmul.f32 %v6676, %v3443
        %v6707 = vmul.f32 %v6679, %v3443
        %v6708 = vmul.f32 %v6682, %v3443
        %v6709 = vmul.f32 %v6685, %v3443
        %v6710 = vmul.f32 %v6688, %v3443
        %v6711 = vmul.f32 %v6691, %v3443
        %v6712 = vmul.f32 %v6694, %v3443
        %v6713 = vmul.f32 %v6697, %v3443
        %v6714 = vmul.f32 %v6700, %v3443
        %v6715 = vadd.f32 %v6701, 1e-05
        %v6716 = vadd.f32 %v6702, 1e-05
        %v6717 = vadd.f32 %v6703, 1e-05
        %v6718 = vadd.f32 %v6704, 1e-05
        %v6719 = vadd.f32 %v6705, 1e-05
        %v6720 = vadd.f32 %v6706, 1e-05
        %v6721 = vadd.f32 %v6707, 1e-05
        %v6722 = vadd.f32 %v6708, 1e-05
        %v6723 = vadd.f32 %v6709, 1e-05
        %v6724 = vadd.f32 %v6710, 1e-05
        %v6725 = vadd.f32 %v6711, 1e-05
        %v6726 = vadd.f32 %v6712, 1e-05
        %v6727 = vadd.f32 %v6713, 1e-05
        %v6728 = vadd.f32 %v6714, 1e-05
        %v6729 = vrsqrt.pop %v6715
        %v6730 = vrsqrt.pop %v6716
        %v6731 = vrsqrt.pop %v6717
        %v6732 = vrsqrt.pop %v6718
        %v6733 = vrsqrt.pop %v6719
        %v6734 = vrsqrt.pop %v6720
        %v6735 = vrsqrt.pop %v6721
        %v6736 = vrsqrt.pop %v6722
        %v6737 = vrsqrt.pop %v6723
        %v6738 = vrsqrt.pop %v6724
        %v6739 = vrsqrt.pop %v6725
        %v6740 = vrsqrt.pop %v6726
        %v6741 = vrsqrt.pop %v6727
        %v6742 = vrsqrt.pop %v6728
        %v6743 = vmul.f32 %v6631, %v6729
        %v6744 = vmul.f32 %v6632, %v6730
        %v6745 = vmul.f32 %v6633, %v6731
        %v6746 = vmul.f32 %v6634, %v6732
        %v6747 = vmul.f32 %v6635, %v6733
        %v6748 = vmul.f32 %v6636, %v6734
        %v6749 = vmul.f32 %v6637, %v6735
        %v6750 = vmul.f32 %v6638, %v6736
        %v6751 = vmul.f32 %v6639, %v6737
        %v6752 = vmul.f32 %v6640, %v6738
        %v6753 = vmul.f32 %v6641, %v6739
        %v6754 = vmul.f32 %v6642, %v6740
        %v6755 = vmul.f32 %v6643, %v6741
        %v6756 = vmul.f32 %v6644, %v6742
        %v6757 = vlaneseq
        %v6758 = vshrl.u32 %v6757, 7
        %v6759 = vsub.s32 4, %v6758
        %v6760 = vrot.slane %v4158, %v6759
        %v6761 = vmul.f32 %v6743, %v6760
        %v6762 = vmul.f32 %v6744, %v6760
        %v6763 = vmul.f32 %v6745, %v6760
        %v6764 = vmul.f32 %v6746, %v6760
        %v6765 = vmul.f32 %v6747, %v6760
        %v6766 = vmul.f32 %v6748, %v6760
        %v6767 = vmul.f32 %v6749, %v6760
        %v6768 = vmul.f32 %v6750, %v6760
        %v6769 = vmul.f32 %v6751, %v6760
        %v6770 = vmul.f32 %v6752, %v6760
        %v6771 = vmul.f32 %v6753, %v6760
        %v6772 = vmul.f32 %v6754, %v6760
        %v6773 = vmul.f32 %v6755, %v6760
        %v6774 = vmul.f32 %v6756, %v6760
        %v6775 = vlaneseq
        %v6776 = vshrl.u32 %v6775, 7
        %v6777 = vsub.s32 5, %v6776
        %v6778 = vrot.slane %v4158, %v6777
        %v6779 = vadd.f32 %v6761, %v6778
        %v6780 = vadd.f32 %v6762, %v6778
        %v6781 = vadd.f32 %v6763, %v6778
        %v6782 = vadd.f32 %v6764, %v6778
        %v6783 = vadd.f32 %v6765, %v6778
        %v6784 = vadd.f32 %v6766, %v6778
        %v6785 = vadd.f32 %v6767, %v6778
        %v6786 = vadd.f32 %v6768, %v6778
        %v6787 = vadd.f32 %v6769, %v6778
        %v6788 = vadd.f32 %v6770, %v6778
        %v6789 = vadd.f32 %v6771, %v6778
        %v6790 = vadd.f32 %v6772, %v6778
        %v6791 = vadd.f32 %v6773, %v6778
        %v6792 = vadd.f32 %v6774, %v6778
        %v6793 = vpack.c.bf16 %v6780, %v6779
        %v6794 = vpack.c.bf16 %v6782, %v6781
        %v6795 = vpack.c.bf16 %v6784, %v6783
        %v6796 = vpack.c.bf16 %v6786, %v6785
        %v6797 = vpack.c.bf16 %v6788, %v6787
        %v6798 = vpack.c.bf16 %v6790, %v6789
        %v6799 = vpack.c.bf16 %v6792, %v6791
        %s6800 = scalar_lea.vmem %s6, 16
        %v6801 = vld [vmem:[%s6800] sm:$0xf]
        %v6802 = vld [vmem:[%s6800 + $0x4] sm:$0xf]
        %v6803 = vld [vmem:[%s6800 + $0x8] sm:$0xf]
        %v6804 = vld [vmem:[%s6800 + $0xc] sm:$0xf]
        %v6805 = vlaneseq
        %v6806 = vshrl.u32 %v6805, 7
        %v6807 = vsub.s32 2, %v6806
        %v6808 = vrot.slane %v4158, %v6807
        %v6813 = vunpack.c.l.b16 %v6801
        %v6814 = vunpack.c.l.b16 %v6802
        %v6815 = vunpack.c.l.b16 %v6803
        %v6816 = vunpack.c.l.b16 %v6804
        %v6817 = vpack.c.b16 %v6814, %v6813
        %v6818 = vpack.c.b16 %v6816, %v6815
        %v6822 = vsel %vm1010, %v6793, 0
        %v6825 = vsel %vm1010, %v6794, 0
        %v6828 = vsel %vm1010, %v6795, 0
        %v6831 = vsel %vm1010, %v6796, 0
        %v6834 = vsel %vm1010, %v6797, 0
        %v6837 = vsel %vm1010, %v6798, 0
        %v6840 = vsel %vm1010, %v6799, 0
        %6842 = vmatprep.subr.bf16.mxu0 0
        %6843 = vmatpush1.bf16.msra.mxu0 %v6817
        %6844 = vmatprep.subr.bf16.mxu0 0
        %6845 = vmatpush1.bf16.msra.mxu0 %v6818
        %6846 = vmatprep.subr.bf16.mxu0 0
        %6847 = vmatpush1.bf16.msra.mxu0 0
        %6848 = vmatprep.subr.bf16.mxu0 0
        %6849 = vmatpush1.bf16.msra.mxu0 0
        %6850 = vmatprep.subr.bf16.mxu0 0
        %6851 = vmatpush1.bf16.msra.mxu0 0
        %6852 = vmatprep.subr.bf16.mxu0 0
        %6853 = vmatpush1.bf16.msra.mxu0 0
        %6854 = vmatprep.subr.bf16.mxu0 0
        %6855 = vmatpush1.bf16.msra.mxu0 0
        %6856 = vmatprep.subr.bf16.mxu0 0
        %6857 = vmatpush1.bf16.msra.mxu0 0
        %6858 = vmatprep.subr.bf16.mxu0 0
        %6859 = vmatpush1.bf16.msra.mxu0 0
        %6860 = vmatprep.subr.bf16.mxu0 0
        %6861 = vmatpush1.bf16.msra.mxu0 0
        %6862 = vmatprep.subr.bf16.mxu0 0
        %6863 = vmatpush1.bf16.msra.mxu0 0
        %6864 = vmatprep.subr.bf16.mxu0 0
        %6865 = vmatpush1.bf16.msra.mxu0 0
        %6866 = vmatprep.subr.bf16.mxu0 0
        %6867 = vmatpush1.bf16.msra.mxu0 0
        %6868 = vmatprep.subr.bf16.mxu0 0
        %6869 = vmatpush1.bf16.msra.mxu0 0
        %6870 = vmatprep.subr.bf16.mxu0 0
        %6871 = vmatpush1.bf16.msra.mxu0 0
        %6872 = vmatprep.subr.bf16.mxu0 0
        %6873 = vmatpush1.bf16.msra.mxu0 0
        %6874 = vmatprep.mubr.bf16.mxu0 0
        %6875 = vmatmul.mubr.bf16.gmra.mrb[0].mxu0 %v6822
        %v6876 = vpop.f32.mrb[0].mxu0
        %v6877 = vadd.f32 %v6808, %v6876
        %v6878 = vpop.f32.mrb[0].mxu0
        %v6879 = vpop.f32.mrb[0].mxu0
        %v6880 = vadd.f32 %v6808, %v6879
        %v6881 = vpop.f32.mrb[0].mxu0
        %6882 = vmatprep.mubr.bf16.mxu0 0
        %6883 = vmatmul.mubr.bf16.gmra.mrb[0].mxu0 %v6825
        %v6884 = vpop.f32.mrb[0].mxu0
        %v6885 = vadd.f32 %v6808, %v6884
        %v6886 = vpop.f32.mrb[0].mxu0
        %v6887 = vpop.f32.mrb[0].mxu0
        %v6888 = vadd.f32 %v6808, %v6887
        %v6889 = vpop.f32.mrb[0].mxu0
        %6890 = vmatprep.mubr.bf16.mxu0 0
        %6891 = vmatmul.mubr.bf16.gmra.mrb[0].mxu0 %v6828
        %v6892 = vpop.f32.mrb[0].mxu0
        %v6893 = vadd.f32 %v6808, %v6892
        %v6894 = vpop.f32.mrb[0].mxu0
        %v6895 = vpop.f32.mrb[0].mxu0
        %v6896 = vadd.f32 %v6808, %v6895
        %v6897 = vpop.f32.mrb[0].mxu0
        %6898 = vmatprep.mubr.bf16.mxu0 0
        %6899 = vmatmul.mubr.bf16.gmra.mrb[0].mxu0 %v6831
        %v6900 = vpop.f32.mrb[0].mxu0
        %v6901 = vadd.f32 %v6808, %v6900
        %v6902 = vpop.f32.mrb[0].mxu0
        %v6903 = vpop.f32.mrb[0].mxu0
        %v6904 = vadd.f32 %v6808, %v6903
        %v6905 = vpop.f32.mrb[0].mxu0
        %6906 = vmatprep.mubr.bf16.mxu0 0
        %6907 = vmatmul.mubr.bf16.gmra.mrb[0].mxu0 %v6834
        %v6908 = vpop.f32.mrb[0].mxu0
        %v6909 = vadd.f32 %v6808, %v6908
        %v6910 = vpop.f32.mrb[0].mxu0
        %v6911 = vpop.f32.mrb[0].mxu0
        %v6912 = vadd.f32 %v6808, %v6911
        %v6913 = vpop.f32.mrb[0].mxu0
        %6914 = vmatprep.mubr.bf16.mxu0 0
        %6915 = vmatmul.mubr.bf16.gmra.mrb[0].mxu0 %v6837
        %v6916 = vpop.f32.mrb[0].mxu0
        %v6917 = vadd.f32 %v6808, %v6916
        %v6918 = vpop.f32.mrb[0].mxu0
        %v6919 = vpop.f32.mrb[0].mxu0
        %v6920 = vadd.f32 %v6808, %v6919
        %v6921 = vpop.f32.mrb[0].mxu0
        %6922 = vmatprep.mubr.bf16.mxu0 0
        %6923 = vmatmul.mubr.bf16.gmra.mrb[0].mxu0 %v6840
        %v6924 = vpop.f32.mrb[0].mxu0
        %v6925 = vadd.f32 %v6808, %v6924
        %v6926 = vpop.f32.mrb[0].mxu0
        %v6927 = vpop.f32.mrb[0].mxu0
        %v6928 = vadd.f32 %v6808, %v6927
        %v6929 = vpop.f32.mrb[0].mxu0
        %6930 = vdwg.mxu0
        %v6931 = vmax.f32 %v6877, 0.0
        %v6932 = vmax.f32 %v6880, 0.0
        %v6933 = vmax.f32 %v6885, 0.0
        %v6934 = vmax.f32 %v6888, 0.0
        %v6935 = vmax.f32 %v6893, 0.0
        %v6936 = vmax.f32 %v6896, 0.0
        %v6937 = vmax.f32 %v6901, 0.0
        %v6938 = vmax.f32 %v6904, 0.0
        %v6939 = vmax.f32 %v6909, 0.0
        %v6940 = vmax.f32 %v6912, 0.0
        %v6941 = vmax.f32 %v6917, 0.0
        %v6942 = vmax.f32 %v6920, 0.0
        %v6943 = vmax.f32 %v6925, 0.0
        %v6944 = vmax.f32 %v6928, 0.0
        %v6945 = vpack.c.bf16 %v6932, %v6931
        %v6946 = vpack.c.bf16 %v6934, %v6933
        %v6947 = vpack.c.bf16 %v6936, %v6935
        %v6948 = vpack.c.bf16 %v6938, %v6937
        %v6949 = vpack.c.bf16 %v6940, %v6939
        %v6950 = vpack.c.bf16 %v6942, %v6941
        %v6951 = vpack.c.bf16 %v6944, %v6943
        %s6952 = scalar_lea.vmem %s7, 32
        %v6953 = vld [vmem:[%s6952] sm:$0xf]
        %v6954 = vld [vmem:[%s6952 + $0x4] sm:$0xf]
        %v6955 = vld [vmem:[%s6952 + $0x8] sm:$0xf]
        %v6956 = vld [vmem:[%s6952 + $0xc] sm:$0xf]
        %v6957 = vld [vmem:[%s6952 + $0x10] sm:$0xf]
        %v6958 = vld [vmem:[%s6952 + $0x14] sm:$0xf]
        %v6959 = vld [vmem:[%s6952 + $0x18] sm:$0xf]
        %v6960 = vld [vmem:[%s6952 + $0x1c] sm:$0xf]
        %v6961 = vlaneseq
        %v6962 = vshrl.u32 %v6961, 7
        %v6963 = vsub.s32 3, %v6962
        %v6964 = vrot.slane %v4158, %v6963
        %v6973 = vunpack.c.l.b16 %v6953
        %v6974 = vunpack.c.l.b16 %v6954
        %v6975 = vunpack.c.l.b16 %v6955
        %v6976 = vunpack.c.l.b16 %v6956
        %v6977 = vunpack.c.l.b16 %v6957
        %v6978 = vunpack.c.l.b16 %v6958
        %v6979 = vunpack.c.l.b16 %v6959
        %v6980 = vunpack.c.l.b16 %v6960
        %v6981 = vpack.c.b16 %v6974, %v6973
        %v6982 = vpack.c.b16 %v6976, %v6975
        %v6983 = vpack.c.b16 %v6978, %v6977
        %v6984 = vpack.c.b16 %v6980, %v6979
        %v6990 = vsel %vm3814, %v6945, 0
        %v6993 = vsel %vm3814, %v6946, 0
        %v6996 = vsel %vm3814, %v6947, 0
        %v6999 = vsel %vm3814, %v6948, 0
        %v7002 = vsel %vm3814, %v6949, 0
        %v7005 = vsel %vm3814, %v6950, 0
        %v7008 = vsel %vm3814, %v6951, 0
        %7010 = vmatprep.subr.bf16.mxu0 0
        %7011 = vmatpush1.bf16.msra.mxu0 %v6981
        %7012 = vmatprep.subr.bf16.mxu0 0
        %7013 = vmatpush1.bf16.msra.mxu0 %v6982
        %7014 = vmatprep.subr.bf16.mxu0 0
        %7015 = vmatpush1.bf16.msra.mxu0 %v6983
        %7016 = vmatprep.subr.bf16.mxu0 0
        %7017 = vmatpush1.bf16.msra.mxu0 %v6984
        %7018 = vmatprep.subr.bf16.mxu0 0
        %7019 = vmatpush1.bf16.msra.mxu0 0
        %7020 = vmatprep.subr.bf16.mxu0 0
        %7021 = vmatpush1.bf16.msra.mxu0 0
        %7022 = vmatprep.subr.bf16.mxu0 0
        %7023 = vmatpush1.bf16.msra.mxu0 0
        %7024 = vmatprep.subr.bf16.mxu0 0
        %7025 = vmatpush1.bf16.msra.mxu0 0
        %7026 = vmatprep.subr.bf16.mxu0 0
        %7027 = vmatpush1.bf16.msra.mxu0 0
        %7028 = vmatprep.subr.bf16.mxu0 0
        %7029 = vmatpush1.bf16.msra.mxu0 0
        %7030 = vmatprep.subr.bf16.mxu0 0
        %7031 = vmatpush1.bf16.msra.mxu0 0
        %7032 = vmatprep.subr.bf16.mxu0 0
        %7033 = vmatpush1.bf16.msra.mxu0 0
        %7034 = vmatprep.subr.bf16.mxu0 0
        %7035 = vmatpush1.bf16.msra.mxu0 0
        %7036 = vmatprep.subr.bf16.mxu0 0
        %7037 = vmatpush1.bf16.msra.mxu0 0
        %7038 = vmatprep.subr.bf16.mxu0 0
        %7039 = vmatpush1.bf16.msra.mxu0 0
        %7040 = vmatprep.subr.bf16.mxu0 0
        %7041 = vmatpush1.bf16.msra.mxu0 0
        %7042 = vmatprep.mubr.bf16.mxu0 0
        %7043 = vmatmul.mubr.bf16.gmra.mrb[0].mxu0 %v6990
        %v7044 = vpop.f32.mrb[0].mxu0
        %v7045 = vadd.f32 %v6964, %v7044
        %v7046 = vpop.f32.mrb[0].mxu0
        %v7047 = vpop.f32.mrb[0].mxu0
        %v7048 = vadd.f32 %v6964, %v7047
        %v7049 = vpop.f32.mrb[0].mxu0
        %7050 = vmatprep.mubr.bf16.mxu0 0
        %7051 = vmatmul.mubr.bf16.gmra.mrb[0].mxu0 %v6993
        %v7052 = vpop.f32.mrb[0].mxu0
        %v7053 = vadd.f32 %v6964, %v7052
        %v7054 = vpop.f32.mrb[0].mxu0
        %v7055 = vpop.f32.mrb[0].mxu0
        %v7056 = vadd.f32 %v6964, %v7055
        %v7057 = vpop.f32.mrb[0].mxu0
        %7058 = vmatprep.mubr.bf16.mxu0 0
        %7059 = vmatmul.mubr.bf16.gmra.mrb[0].mxu0 %v6996
        %v7060 = vpop.f32.mrb[0].mxu0
        %v7061 = vadd.f32 %v6964, %v7060
        %v7062 = vpop.f32.mrb[0].mxu0
        %v7063 = vpop.f32.mrb[0].mxu0
        %v7064 = vadd.f32 %v6964, %v7063
        %v7065 = vpop.f32.mrb[0].mxu0
        %7066 = vmatprep.mubr.bf16.mxu0 0
        %7067 = vmatmul.mubr.bf16.gmra.mrb[0].mxu0 %v6999
        %v7068 = vpop.f32.mrb[0].mxu0
        %v7069 = vadd.f32 %v6964, %v7068
        %v7070 = vpop.f32.mrb[0].mxu0
        %v7071 = vpop.f32.mrb[0].mxu0
        %v7072 = vadd.f32 %v6964, %v7071
        %v7073 = vpop.f32.mrb[0].mxu0
        %7074 = vmatprep.mubr.bf16.mxu0 0
        %7075 = vmatmul.mubr.bf16.gmra.mrb[0].mxu0 %v7002
        %v7076 = vpop.f32.mrb[0].mxu0
        %v7077 = vadd.f32 %v6964, %v7076
        %v7078 = vpop.f32.mrb[0].mxu0
        %v7079 = vpop.f32.mrb[0].mxu0
        %v7080 = vadd.f32 %v6964, %v7079
        %v7081 = vpop.f32.mrb[0].mxu0
        %7082 = vmatprep.mubr.bf16.mxu0 0
        %7083 = vmatmul.mubr.bf16.gmra.mrb[0].mxu0 %v7005
        %v7084 = vpop.f32.mrb[0].mxu0
        %v7085 = vadd.f32 %v6964, %v7084
        %v7086 = vpop.f32.mrb[0].mxu0
        %v7087 = vpop.f32.mrb[0].mxu0
        %v7088 = vadd.f32 %v6964, %v7087
        %v7089 = vpop.f32.mrb[0].mxu0
        %7090 = vmatprep.mubr.bf16.mxu0 0
        %7091 = vmatmul.mubr.bf16.gmra.mrb[0].mxu0 %v7008
        %v7092 = vpop.f32.mrb[0].mxu0
        %v7093 = vadd.f32 %v6964, %v7092
        %v7094 = vpop.f32.mrb[0].mxu0
        %v7095 = vpop.f32.mrb[0].mxu0
        %v7096 = vadd.f32 %v6964, %v7095
        %v7097 = vpop.f32.mrb[0].mxu0
        %7098 = vdwg.mxu0
        %v7099 = vadd.f32 %v6779, %v7045
        %v7100 = vadd.f32 %v6780, %v7048
        %v7101 = vadd.f32 %v6781, %v7053
        %v7102 = vadd.f32 %v6782, %v7056
        %v7103 = vadd.f32 %v6783, %v7061
        %v7104 = vadd.f32 %v6784, %v7064
        %v7105 = vadd.f32 %v6785, %v7069
        %v7106 = vadd.f32 %v6786, %v7072
        %v7107 = vadd.f32 %v6787, %v7077
        %v7108 = vadd.f32 %v6788, %v7080
        %v7109 = vadd.f32 %v6789, %v7085
        %v7110 = vadd.f32 %v6790, %v7088
        %v7111 = vadd.f32 %v6791, %v7093
        %v7112 = vadd.f32 %v6792, %v7096
        %v7113 = vsel %vm1010, %v7099, 0.0
        %7114 = vadd.xlane.f32.xlu0 %v7113
        %v7115 = vpop.xlane.xlu0 %7114
        %v7116 = vsel %vm1010, %v7100, 0.0
        %7117 = vadd.xlane.f32.xlu0 %v7116
        %v7118 = vpop.xlane.xlu0 %7117
        %v7119 = vsel %vm1010, %v7101, 0.0
        %7120 = vadd.xlane.f32.xlu0 %v7119
        %v7121 = vpop.xlane.xlu0 %7120
        %v7122 = vsel %vm1010, %v7102, 0.0
        %7123 = vadd.xlane.f32.xlu0 %v7122
        %v7124 = vpop.xlane.xlu0 %7123
        %v7125 = vsel %vm1010, %v7103, 0.0
        %7126 = vadd.xlane.f32.xlu0 %v7125
        %v7127 = vpop.xlane.xlu0 %7126
        %v7128 = vsel %vm1010, %v7104, 0.0
        %7129 = vadd.xlane.f32.xlu0 %v7128
        %v7130 = vpop.xlane.xlu0 %7129
        %v7131 = vsel %vm1010, %v7105, 0.0
        %7132 = vadd.xlane.f32.xlu0 %v7131
        %v7133 = vpop.xlane.xlu0 %7132
        %v7134 = vsel %vm1010, %v7106, 0.0
        %7135 = vadd.xlane.f32.xlu0 %v7134
        %v7136 = vpop.xlane.xlu0 %7135
        %v7137 = vsel %vm1010, %v7107, 0.0
        %7138 = vadd.xlane.f32.xlu0 %v7137
        %v7139 = vpop.xlane.xlu0 %7138
        %v7140 = vsel %vm1010, %v7108, 0.0
        %7141 = vadd.xlane.f32.xlu0 %v7140
        %v7142 = vpop.xlane.xlu0 %7141
        %v7143 = vsel %vm1010, %v7109, 0.0
        %7144 = vadd.xlane.f32.xlu0 %v7143
        %v7145 = vpop.xlane.xlu0 %7144
        %v7146 = vsel %vm1010, %v7110, 0.0
        %7147 = vadd.xlane.f32.xlu0 %v7146
        %v7148 = vpop.xlane.xlu0 %7147
        %v7149 = vsel %vm1010, %v7111, 0.0
        %7150 = vadd.xlane.f32.xlu0 %v7149
        %v7151 = vpop.xlane.xlu0 %7150
        %v7152 = vsel %vm1010, %v7112, 0.0
        %7153 = vadd.xlane.f32.xlu0 %v7152
        %v7154 = vpop.xlane.xlu0 %7153
        %v7155 = vmul.f32 %v7115, %v3443
        %v7156 = vmul.f32 %v7118, %v3443
        %v7157 = vmul.f32 %v7121, %v3443
        %v7158 = vmul.f32 %v7124, %v3443
        %v7159 = vmul.f32 %v7127, %v3443
        %v7160 = vmul.f32 %v7130, %v3443
        %v7161 = vmul.f32 %v7133, %v3443
        %v7162 = vmul.f32 %v7136, %v3443
        %v7163 = vmul.f32 %v7139, %v3443
        %v7164 = vmul.f32 %v7142, %v3443
        %v7165 = vmul.f32 %v7145, %v3443
        %v7166 = vmul.f32 %v7148, %v3443
        %v7167 = vmul.f32 %v7151, %v3443
        %v7168 = vmul.f32 %v7154, %v3443
        %v7169 = vsub.f32 %v7099, %v7155
        %v7170 = vsub.f32 %v7100, %v7156
        %v7171 = vsub.f32 %v7101, %v7157
        %v7172 = vsub.f32 %v7102, %v7158
        %v7173 = vsub.f32 %v7103, %v7159
        %v7174 = vsub.f32 %v7104, %v7160
        %v7175 = vsub.f32 %v7105, %v7161
        %v7176 = vsub.f32 %v7106, %v7162
        %v7177 = vsub.f32 %v7107, %v7163
        %v7178 = vsub.f32 %v7108, %v7164
        %v7179 = vsub.f32 %v7109, %v7165
        %v7180 = vsub.f32 %v7110, %v7166
        %v7181 = vsub.f32 %v7111, %v7167
        %v7182 = vsub.f32 %v7112, %v7168
        %v7183 = vmul.f32 %v7169, %v7169
        %v7184 = vmul.f32 %v7170, %v7170
        %v7185 = vmul.f32 %v7171, %v7171
        %v7186 = vmul.f32 %v7172, %v7172
        %v7187 = vmul.f32 %v7173, %v7173
        %v7188 = vmul.f32 %v7174, %v7174
        %v7189 = vmul.f32 %v7175, %v7175
        %v7190 = vmul.f32 %v7176, %v7176
        %v7191 = vmul.f32 %v7177, %v7177
        %v7192 = vmul.f32 %v7178, %v7178
        %v7193 = vmul.f32 %v7179, %v7179
        %v7194 = vmul.f32 %v7180, %v7180
        %v7195 = vmul.f32 %v7181, %v7181
        %v7196 = vmul.f32 %v7182, %v7182
        %v7197 = vsel %vm1010, %v7183, 0.0
        %7198 = vadd.xlane.f32.xlu0 %v7197
        %v7199 = vpop.xlane.xlu0 %7198
        %v7200 = vsel %vm1010, %v7184, 0.0
        %7201 = vadd.xlane.f32.xlu0 %v7200
        %v7202 = vpop.xlane.xlu0 %7201
        %v7203 = vsel %vm1010, %v7185, 0.0
        %7204 = vadd.xlane.f32.xlu0 %v7203
        %v7205 = vpop.xlane.xlu0 %7204
        %v7206 = vsel %vm1010, %v7186, 0.0
        %7207 = vadd.xlane.f32.xlu0 %v7206
        %v7208 = vpop.xlane.xlu0 %7207
        %v7209 = vsel %vm1010, %v7187, 0.0
        %7210 = vadd.xlane.f32.xlu0 %v7209
        %v7211 = vpop.xlane.xlu0 %7210
        %v7212 = vsel %vm1010, %v7188, 0.0
        %7213 = vadd.xlane.f32.xlu0 %v7212
        %v7214 = vpop.xlane.xlu0 %7213
        %v7215 = vsel %vm1010, %v7189, 0.0
        %7216 = vadd.xlane.f32.xlu0 %v7215
        %v7217 = vpop.xlane.xlu0 %7216
        %v7218 = vsel %vm1010, %v7190, 0.0
        %7219 = vadd.xlane.f32.xlu0 %v7218
        %v7220 = vpop.xlane.xlu0 %7219
        %v7221 = vsel %vm1010, %v7191, 0.0
        %7222 = vadd.xlane.f32.xlu0 %v7221
        %v7223 = vpop.xlane.xlu0 %7222
        %v7224 = vsel %vm1010, %v7192, 0.0
        %7225 = vadd.xlane.f32.xlu0 %v7224
        %v7226 = vpop.xlane.xlu0 %7225
        %v7227 = vsel %vm1010, %v7193, 0.0
        %7228 = vadd.xlane.f32.xlu0 %v7227
        %v7229 = vpop.xlane.xlu0 %7228
        %v7230 = vsel %vm1010, %v7194, 0.0
        %7231 = vadd.xlane.f32.xlu0 %v7230
        %v7232 = vpop.xlane.xlu0 %7231
        %v7233 = vsel %vm1010, %v7195, 0.0
        %7234 = vadd.xlane.f32.xlu0 %v7233
        %v7235 = vpop.xlane.xlu0 %7234
        %v7236 = vsel %vm1010, %v7196, 0.0
        %7237 = vadd.xlane.f32.xlu0 %v7236
        %v7238 = vpop.xlane.xlu0 %7237
        %v7239 = vmul.f32 %v7199, %v3443
        %v7240 = vmul.f32 %v7202, %v3443
        %v7241 = vmul.f32 %v7205, %v3443
        %v7242 = vmul.f32 %v7208, %v3443
        %v7243 = vmul.f32 %v7211, %v3443
        %v7244 = vmul.f32 %v7214, %v3443
        %v7245 = vmul.f32 %v7217, %v3443
        %v7246 = vmul.f32 %v7220, %v3443
        %v7247 = vmul.f32 %v7223, %v3443
        %v7248 = vmul.f32 %v7226, %v3443
        %v7249 = vmul.f32 %v7229, %v3443
        %v7250 = vmul.f32 %v7232, %v3443
        %v7251 = vmul.f32 %v7235, %v3443
        %v7252 = vmul.f32 %v7238, %v3443
        %v7253 = vadd.f32 %v7239, 1e-05
        %v7254 = vadd.f32 %v7240, 1e-05
        %v7255 = vadd.f32 %v7241, 1e-05
        %v7256 = vadd.f32 %v7242, 1e-05
        %v7257 = vadd.f32 %v7243, 1e-05
        %v7258 = vadd.f32 %v7244, 1e-05
        %v7259 = vadd.f32 %v7245, 1e-05
        %v7260 = vadd.f32 %v7246, 1e-05
        %v7261 = vadd.f32 %v7247, 1e-05
        %v7262 = vadd.f32 %v7248, 1e-05
        %v7263 = vadd.f32 %v7249, 1e-05
        %v7264 = vadd.f32 %v7250, 1e-05
        %v7265 = vadd.f32 %v7251, 1e-05
        %v7266 = vadd.f32 %v7252, 1e-05
        %v7267 = vrsqrt.pop %v7253
        %v7268 = vrsqrt.pop %v7254
        %v7269 = vrsqrt.pop %v7255
        %v7270 = vrsqrt.pop %v7256
        %v7271 = vrsqrt.pop %v7257
        %v7272 = vrsqrt.pop %v7258
        %v7273 = vrsqrt.pop %v7259
        %v7274 = vrsqrt.pop %v7260
        %v7275 = vrsqrt.pop %v7261
        %v7276 = vrsqrt.pop %v7262
        %v7277 = vrsqrt.pop %v7263
        %v7278 = vrsqrt.pop %v7264
        %v7279 = vrsqrt.pop %v7265
        %v7280 = vrsqrt.pop %v7266
        %v7281 = vmul.f32 %v7169, %v7267
        %v7282 = vmul.f32 %v7170, %v7268
        %v7283 = vmul.f32 %v7171, %v7269
        %v7284 = vmul.f32 %v7172, %v7270
        %v7285 = vmul.f32 %v7173, %v7271
        %v7286 = vmul.f32 %v7174, %v7272
        %v7287 = vmul.f32 %v7175, %v7273
        %v7288 = vmul.f32 %v7176, %v7274
        %v7289 = vmul.f32 %v7177, %v7275
        %v7290 = vmul.f32 %v7178, %v7276
        %v7291 = vmul.f32 %v7179, %v7277
        %v7292 = vmul.f32 %v7180, %v7278
        %v7293 = vmul.f32 %v7181, %v7279
        %v7294 = vmul.f32 %v7182, %v7280
        %v7295 = vlaneseq
        %v7296 = vshrl.u32 %v7295, 7
        %v7297 = vsub.s32 6, %v7296
        %v7298 = vrot.slane %v4158, %v7297
        %v7299 = vmul.f32 %v7281, %v7298
        %v7300 = vmul.f32 %v7282, %v7298
        %v7301 = vmul.f32 %v7283, %v7298
        %v7302 = vmul.f32 %v7284, %v7298
        %v7303 = vmul.f32 %v7285, %v7298
        %v7304 = vmul.f32 %v7286, %v7298
        %v7305 = vmul.f32 %v7287, %v7298
        %v7306 = vmul.f32 %v7288, %v7298
        %v7307 = vmul.f32 %v7289, %v7298
        %v7308 = vmul.f32 %v7290, %v7298
        %v7309 = vmul.f32 %v7291, %v7298
        %v7310 = vmul.f32 %v7292, %v7298
        %v7311 = vmul.f32 %v7293, %v7298
        %v7312 = vmul.f32 %v7294, %v7298
        %v7313 = vlaneseq
        %v7314 = vshrl.u32 %v7313, 7
        %v7315 = vsub.s32 7, %v7314
        %v7316 = vrot.slane %v4158, %v7315
        %v7317 = vadd.f32 %v7299, %v7316
        %v7318 = vadd.f32 %v7300, %v7316
        %v7319 = vadd.f32 %v7301, %v7316
        %v7320 = vadd.f32 %v7302, %v7316
        %v7321 = vadd.f32 %v7303, %v7316
        %v7322 = vadd.f32 %v7304, %v7316
        %v7323 = vadd.f32 %v7305, %v7316
        %v7324 = vadd.f32 %v7306, %v7316
        %v7325 = vadd.f32 %v7307, %v7316
        %v7326 = vadd.f32 %v7308, %v7316
        %v7327 = vadd.f32 %v7309, %v7316
        %v7328 = vadd.f32 %v7310, %v7316
        %v7329 = vadd.f32 %v7311, %v7316
        %v7330 = vadd.f32 %v7312, %v7316
        %v7331 = vsel %vm1010, %v7317, 0.0
        %7332 = vadd.xlane.f32.xlu0 %v7331
        %v7333 = vpop.xlane.xlu0 %7332
        %v7334 = vsel %vm1010, %v7318, 0.0
        %7335 = vadd.xlane.f32.xlu0 %v7334
        %v7336 = vpop.xlane.xlu0 %7335
        %v7337 = vsel %vm1010, %v7319, 0.0
        %7338 = vadd.xlane.f32.xlu0 %v7337
        %v7339 = vpop.xlane.xlu0 %7338
        %v7340 = vsel %vm1010, %v7320, 0.0
        %7341 = vadd.xlane.f32.xlu0 %v7340
        %v7342 = vpop.xlane.xlu0 %7341
        %v7343 = vsel %vm1010, %v7321, 0.0
        %7344 = vadd.xlane.f32.xlu0 %v7343
        %v7345 = vpop.xlane.xlu0 %7344
        %v7346 = vsel %vm1010, %v7322, 0.0
        %7347 = vadd.xlane.f32.xlu0 %v7346
        %v7348 = vpop.xlane.xlu0 %7347
        %v7349 = vsel %vm1010, %v7323, 0.0
        %7350 = vadd.xlane.f32.xlu0 %v7349
        %v7351 = vpop.xlane.xlu0 %7350
        %v7352 = vsel %vm1010, %v7324, 0.0
        %7353 = vadd.xlane.f32.xlu0 %v7352
        %v7354 = vpop.xlane.xlu0 %7353
        %v7355 = vsel %vm1010, %v7325, 0.0
        %7356 = vadd.xlane.f32.xlu0 %v7355
        %v7357 = vpop.xlane.xlu0 %7356
        %v7358 = vsel %vm1010, %v7326, 0.0
        %7359 = vadd.xlane.f32.xlu0 %v7358
        %v7360 = vpop.xlane.xlu0 %7359
        %v7361 = vsel %vm1010, %v7327, 0.0
        %7362 = vadd.xlane.f32.xlu0 %v7361
        %v7363 = vpop.xlane.xlu0 %7362
        %v7364 = vsel %vm1010, %v7328, 0.0
        %7365 = vadd.xlane.f32.xlu0 %v7364
        %v7366 = vpop.xlane.xlu0 %7365
        %v7367 = vsel %vm1010, %v7329, 0.0
        %7368 = vadd.xlane.f32.xlu0 %v7367
        %v7369 = vpop.xlane.xlu0 %7368
        %v7370 = vsel %vm1010, %v7330, 0.0
        %7371 = vadd.xlane.f32.xlu0 %v7370
        %v7372 = vpop.xlane.xlu0 %7371
        %v7373 = vmul.f32 %v7333, %v3443
        %v7374 = vmul.f32 %v7336, %v3443
        %v7375 = vmul.f32 %v7339, %v3443
        %v7376 = vmul.f32 %v7342, %v3443
        %v7377 = vmul.f32 %v7345, %v3443
        %v7378 = vmul.f32 %v7348, %v3443
        %v7379 = vmul.f32 %v7351, %v3443
        %v7380 = vmul.f32 %v7354, %v3443
        %v7381 = vmul.f32 %v7357, %v3443
        %v7382 = vmul.f32 %v7360, %v3443
        %v7383 = vmul.f32 %v7363, %v3443
        %v7384 = vmul.f32 %v7366, %v3443
        %v7385 = vmul.f32 %v7369, %v3443
        %v7386 = vmul.f32 %v7372, %v3443
        %v7387 = vsub.f32 %v7317, %v7373
        %v7388 = vsub.f32 %v7318, %v7374
        %v7389 = vsub.f32 %v7319, %v7375
        %v7390 = vsub.f32 %v7320, %v7376
        %v7391 = vsub.f32 %v7321, %v7377
        %v7392 = vsub.f32 %v7322, %v7378
        %v7393 = vsub.f32 %v7323, %v7379
        %v7394 = vsub.f32 %v7324, %v7380
        %v7395 = vsub.f32 %v7325, %v7381
        %v7396 = vsub.f32 %v7326, %v7382
        %v7397 = vsub.f32 %v7327, %v7383
        %v7398 = vsub.f32 %v7328, %v7384
        %v7399 = vsub.f32 %v7329, %v7385
        %v7400 = vsub.f32 %v7330, %v7386
        %v7401 = vmul.f32 %v7387, %v7387
        %v7402 = vmul.f32 %v7388, %v7388
        %v7403 = vmul.f32 %v7389, %v7389
        %v7404 = vmul.f32 %v7390, %v7390
        %v7405 = vmul.f32 %v7391, %v7391
        %v7406 = vmul.f32 %v7392, %v7392
        %v7407 = vmul.f32 %v7393, %v7393
        %v7408 = vmul.f32 %v7394, %v7394
        %v7409 = vmul.f32 %v7395, %v7395
        %v7410 = vmul.f32 %v7396, %v7396
        %v7411 = vmul.f32 %v7397, %v7397
        %v7412 = vmul.f32 %v7398, %v7398
        %v7413 = vmul.f32 %v7399, %v7399
        %v7414 = vmul.f32 %v7400, %v7400
        %v7415 = vsel %vm1010, %v7401, 0.0
        %7416 = vadd.xlane.f32.xlu0 %v7415
        %v7417 = vpop.xlane.xlu0 %7416
        %v7418 = vsel %vm1010, %v7402, 0.0
        %7419 = vadd.xlane.f32.xlu0 %v7418
        %v7420 = vpop.xlane.xlu0 %7419
        %v7421 = vsel %vm1010, %v7403, 0.0
        %7422 = vadd.xlane.f32.xlu0 %v7421
        %v7423 = vpop.xlane.xlu0 %7422
        %v7424 = vsel %vm1010, %v7404, 0.0
        %7425 = vadd.xlane.f32.xlu0 %v7424
        %v7426 = vpop.xlane.xlu0 %7425
        %v7427 = vsel %vm1010, %v7405, 0.0
        %7428 = vadd.xlane.f32.xlu0 %v7427
        %v7429 = vpop.xlane.xlu0 %7428
        %v7430 = vsel %vm1010, %v7406, 0.0
        %7431 = vadd.xlane.f32.xlu0 %v7430
        %v7432 = vpop.xlane.xlu0 %7431
        %v7433 = vsel %vm1010, %v7407, 0.0
        %7434 = vadd.xlane.f32.xlu0 %v7433
        %v7435 = vpop.xlane.xlu0 %7434
        %v7436 = vsel %vm1010, %v7408, 0.0
        %7437 = vadd.xlane.f32.xlu0 %v7436
        %v7438 = vpop.xlane.xlu0 %7437
        %v7439 = vsel %vm1010, %v7409, 0.0
        %7440 = vadd.xlane.f32.xlu0 %v7439
        %v7441 = vpop.xlane.xlu0 %7440
        %v7442 = vsel %vm1010, %v7410, 0.0
        %7443 = vadd.xlane.f32.xlu0 %v7442
        %v7444 = vpop.xlane.xlu0 %7443
        %v7445 = vsel %vm1010, %v7411, 0.0
        %7446 = vadd.xlane.f32.xlu0 %v7445
        %v7447 = vpop.xlane.xlu0 %7446
        %v7448 = vsel %vm1010, %v7412, 0.0
        %7449 = vadd.xlane.f32.xlu0 %v7448
        %v7450 = vpop.xlane.xlu0 %7449
        %v7451 = vsel %vm1010, %v7413, 0.0
        %7452 = vadd.xlane.f32.xlu0 %v7451
        %v7453 = vpop.xlane.xlu0 %7452
        %v7454 = vsel %vm1010, %v7414, 0.0
        %7455 = vadd.xlane.f32.xlu0 %v7454
        %v7456 = vpop.xlane.xlu0 %7455
        %v7457 = vmul.f32 %v7417, %v3443
        %v7458 = vmul.f32 %v7420, %v3443
        %v7459 = vmul.f32 %v7423, %v3443
        %v7460 = vmul.f32 %v7426, %v3443
        %v7461 = vmul.f32 %v7429, %v3443
        %v7462 = vmul.f32 %v7432, %v3443
        %v7463 = vmul.f32 %v7435, %v3443
        %v7464 = vmul.f32 %v7438, %v3443
        %v7465 = vmul.f32 %v7441, %v3443
        %v7466 = vmul.f32 %v7444, %v3443
        %v7467 = vmul.f32 %v7447, %v3443
        %v7468 = vmul.f32 %v7450, %v3443
        %v7469 = vmul.f32 %v7453, %v3443
        %v7470 = vmul.f32 %v7456, %v3443
        %v7471 = vadd.f32 %v7457, 1e-05
        %v7472 = vadd.f32 %v7458, 1e-05
        %v7473 = vadd.f32 %v7459, 1e-05
        %v7474 = vadd.f32 %v7460, 1e-05
        %v7475 = vadd.f32 %v7461, 1e-05
        %v7476 = vadd.f32 %v7462, 1e-05
        %v7477 = vadd.f32 %v7463, 1e-05
        %v7478 = vadd.f32 %v7464, 1e-05
        %v7479 = vadd.f32 %v7465, 1e-05
        %v7480 = vadd.f32 %v7466, 1e-05
        %v7481 = vadd.f32 %v7467, 1e-05
        %v7482 = vadd.f32 %v7468, 1e-05
        %v7483 = vadd.f32 %v7469, 1e-05
        %v7484 = vadd.f32 %v7470, 1e-05
        %v7485 = vrsqrt.pop %v7471
        %v7486 = vrsqrt.pop %v7472
        %v7487 = vrsqrt.pop %v7473
        %v7488 = vrsqrt.pop %v7474
        %v7489 = vrsqrt.pop %v7475
        %v7490 = vrsqrt.pop %v7476
        %v7491 = vrsqrt.pop %v7477
        %v7492 = vrsqrt.pop %v7478
        %v7493 = vrsqrt.pop %v7479
        %v7494 = vrsqrt.pop %v7480
        %v7495 = vrsqrt.pop %v7481
        %v7496 = vrsqrt.pop %v7482
        %v7497 = vrsqrt.pop %v7483
        %v7498 = vrsqrt.pop %v7484
        %v7499 = vmul.f32 %v7387, %v7485
        %v7500 = vmul.f32 %v7388, %v7486
        %v7501 = vmul.f32 %v7389, %v7487
        %v7502 = vmul.f32 %v7390, %v7488
        %v7503 = vmul.f32 %v7391, %v7489
        %v7504 = vmul.f32 %v7392, %v7490
        %v7505 = vmul.f32 %v7393, %v7491
        %v7506 = vmul.f32 %v7394, %v7492
        %v7507 = vmul.f32 %v7395, %v7493
        %v7508 = vmul.f32 %v7396, %v7494
        %v7509 = vmul.f32 %v7397, %v7495
        %v7510 = vmul.f32 %v7398, %v7496
        %v7511 = vmul.f32 %v7399, %v7497
        %v7512 = vmul.f32 %v7400, %v7498
        %v7513 = vlaneseq
        %v7514 = vshrl.u32 %v7513, 7
        %v7515 = vsub.s32 1, %v7514
        %v7516 = vrot.slane %v458, %v7515
        %v7517 = vmul.f32 %v7499, %v7516
        %v7518 = vmul.f32 %v7500, %v7516
        %v7519 = vmul.f32 %v7501, %v7516
        %v7520 = vmul.f32 %v7502, %v7516
        %v7521 = vmul.f32 %v7503, %v7516
        %v7522 = vmul.f32 %v7504, %v7516
        %v7523 = vmul.f32 %v7505, %v7516
        %v7524 = vmul.f32 %v7506, %v7516
        %v7525 = vmul.f32 %v7507, %v7516
        %v7526 = vmul.f32 %v7508, %v7516
        %v7527 = vmul.f32 %v7509, %v7516
        %v7528 = vmul.f32 %v7510, %v7516
        %v7529 = vmul.f32 %v7511, %v7516
        %v7530 = vmul.f32 %v7512, %v7516
        %v7531 = vlaneseq
        %v7532 = vshrl.u32 %v7531, 7
        %v7533 = vsub.s32 2, %v7532
        %v7534 = vrot.slane %v458, %v7533
        %v7535 = vadd.f32 %v7517, %v7534
        %v7536 = vadd.f32 %v7518, %v7534
        %v7537 = vadd.f32 %v7519, %v7534
        %v7538 = vadd.f32 %v7520, %v7534
        %v7539 = vadd.f32 %v7521, %v7534
        %v7540 = vadd.f32 %v7522, %v7534
        %v7541 = vadd.f32 %v7523, %v7534
        %v7542 = vadd.f32 %v7524, %v7534
        %v7543 = vadd.f32 %v7525, %v7534
        %v7544 = vadd.f32 %v7526, %v7534
        %v7545 = vadd.f32 %v7527, %v7534
        %v7546 = vadd.f32 %v7528, %v7534
        %v7547 = vadd.f32 %v7529, %v7534
        %v7548 = vadd.f32 %v7530, %v7534
        %v7549 = vpack.c.bf16 %v7536, %v7535
        %v7550 = vpack.c.bf16 %v7538, %v7537
        %v7551 = vpack.c.bf16 %v7540, %v7539
        %v7552 = vpack.c.bf16 %v7542, %v7541
        %v7553 = vpack.c.bf16 %v7544, %v7543
        %v7554 = vpack.c.bf16 %v7546, %v7545
        %v7555 = vpack.c.bf16 %v7548, %v7547
        %v7556 = vld [vmem:[%s8] sm:$0xf]
        %v7557 = vld [vmem:[%s8 + $0x4] sm:$0xf]
        %v7558 = vld [vmem:[%s8 + $0x8] sm:$0xf]
        %v7559 = vld [vmem:[%s8 + $0xc] sm:$0xf]
        %v7560 = vld [vmem:[%s9] sm:$0x1]
        %v7562 = vlaneseq
        %v7563 = vshrl.u32 %v7562, 7
        %v7564 = vsub.s32 0, %v7563
        %v7565 = vrot.slane %v7560, %v7564
        %v7571 = vunpack.c.l.b16 %v7556
        %v7572 = vunpack.c.l.b16 %v7557
        %v7573 = vunpack.c.l.b16 %v7558
        %v7574 = vunpack.c.l.b16 %v7559
        %v7575 = vpack.c.b16 %v7572, %v7571
        %v7576 = vpack.c.b16 %v7574, %v7573
        %v7580 = vsel %vm1010, %v7549, 0
        %v7583 = vsel %vm1010, %v7550, 0
        %v7586 = vsel %vm1010, %v7551, 0
        %v7589 = vsel %vm1010, %v7552, 0
        %v7592 = vsel %vm1010, %v7553, 0
        %v7595 = vsel %vm1010, %v7554, 0
        %v7598 = vsel %vm1010, %v7555, 0
        %7600 = vmatprep.subr.bf16.mxu0 0
        %7601 = vmatpush1.bf16.msra.mxu0 %v7575
        %7602 = vmatprep.subr.bf16.mxu0 0
        %7603 = vmatpush1.bf16.msra.mxu0 %v7576
        %7604 = vmatprep.subr.bf16.mxu0 0
        %7605 = vmatpush1.bf16.msra.mxu0 0
        %7606 = vmatprep.subr.bf16.mxu0 0
        %7607 = vmatpush1.bf16.msra.mxu0 0
        %7608 = vmatprep.subr.bf16.mxu0 0
        %7609 = vmatpush1.bf16.msra.mxu0 0
        %7610 = vmatprep.subr.bf16.mxu0 0
        %7611 = vmatpush1.bf16.msra.mxu0 0
        %7612 = vmatprep.subr.bf16.mxu0 0
        %7613 = vmatpush1.bf16.msra.mxu0 0
        %7614 = vmatprep.subr.bf16.mxu0 0
        %7615 = vmatpush1.bf16.msra.mxu0 0
        %7616 = vmatprep.subr.bf16.mxu0 0
        %7617 = vmatpush1.bf16.msra.mxu0 0
        %7618 = vmatprep.subr.bf16.mxu0 0
        %7619 = vmatpush1.bf16.msra.mxu0 0
        %7620 = vmatprep.subr.bf16.mxu0 0
        %7621 = vmatpush1.bf16.msra.mxu0 0
        %7622 = vmatprep.subr.bf16.mxu0 0
        %7623 = vmatpush1.bf16.msra.mxu0 0
        %7624 = vmatprep.subr.bf16.mxu0 0
        %7625 = vmatpush1.bf16.msra.mxu0 0
        %7626 = vmatprep.subr.bf16.mxu0 0
        %7627 = vmatpush1.bf16.msra.mxu0 0
        %7628 = vmatprep.subr.bf16.mxu0 0
        %7629 = vmatpush1.bf16.msra.mxu0 0
        %7630 = vmatprep.subr.bf16.mxu0 0
        %7631 = vmatpush1.bf16.msra.mxu0 0
        %7632 = vmatprep.mubr.bf16.mxu0 0
        %7633 = vmatmul.mubr.bf16.gmra.mrb[0].mxu0 %v7580
        %v7634 = vpop.f32.mrb[0].mxu0
        %v7635 = vadd.f32 %v7565, %v7634
        %v7636 = vpop.f32.mrb[0].mxu0
        %v7637 = vpop.f32.mrb[0].mxu0
        %v7638 = vadd.f32 %v7565, %v7637
        %v7639 = vpop.f32.mrb[0].mxu0
        %7640 = vmatprep.mubr.bf16.mxu0 0
        %7641 = vmatmul.mubr.bf16.gmra.mrb[0].mxu0 %v7583
        %v7642 = vpop.f32.mrb[0].mxu0
        %v7643 = vadd.f32 %v7565, %v7642
        %v7644 = vpop.f32.mrb[0].mxu0
        %v7645 = vpop.f32.mrb[0].mxu0
        %v7646 = vadd.f32 %v7565, %v7645
        %v7647 = vpop.f32.mrb[0].mxu0
        %7648 = vmatprep.mubr.bf16.mxu0 0
        %7649 = vmatmul.mubr.bf16.gmra.mrb[0].mxu0 %v7586
        %v7650 = vpop.f32.mrb[0].mxu0
        %v7651 = vadd.f32 %v7565, %v7650
        %v7652 = vpop.f32.mrb[0].mxu0
        %v7653 = vpop.f32.mrb[0].mxu0
        %v7654 = vadd.f32 %v7565, %v7653
        %v7655 = vpop.f32.mrb[0].mxu0
        %7656 = vmatprep.mubr.bf16.mxu0 0
        %7657 = vmatmul.mubr.bf16.gmra.mrb[0].mxu0 %v7589
        %v7658 = vpop.f32.mrb[0].mxu0
        %v7659 = vadd.f32 %v7565, %v7658
        %v7660 = vpop.f32.mrb[0].mxu0
        %v7661 = vpop.f32.mrb[0].mxu0
        %v7662 = vadd.f32 %v7565, %v7661
        %v7663 = vpop.f32.mrb[0].mxu0
        %7664 = vmatprep.mubr.bf16.mxu0 0
        %7665 = vmatmul.mubr.bf16.gmra.mrb[0].mxu0 %v7592
        %v7666 = vpop.f32.mrb[0].mxu0
        %v7667 = vadd.f32 %v7565, %v7666
        %v7668 = vpop.f32.mrb[0].mxu0
        %v7669 = vpop.f32.mrb[0].mxu0
        %v7670 = vadd.f32 %v7565, %v7669
        %v7671 = vpop.f32.mrb[0].mxu0
        %7672 = vmatprep.mubr.bf16.mxu0 0
        %7673 = vmatmul.mubr.bf16.gmra.mrb[0].mxu0 %v7595
        %v7674 = vpop.f32.mrb[0].mxu0
        %v7675 = vadd.f32 %v7565, %v7674
        %v7676 = vpop.f32.mrb[0].mxu0
        %v7677 = vpop.f32.mrb[0].mxu0
        %v7678 = vadd.f32 %v7565, %v7677
        %v7679 = vpop.f32.mrb[0].mxu0
        %7680 = vmatprep.mubr.bf16.mxu0 0
        %7681 = vmatmul.mubr.bf16.gmra.mrb[0].mxu0 %v7598
        %v7682 = vpop.f32.mrb[0].mxu0
        %v7683 = vadd.f32 %v7565, %v7682
        %v7684 = vpop.f32.mrb[0].mxu0
        %v7685 = vpop.f32.mrb[0].mxu0
        %v7686 = vadd.f32 %v7565, %v7685
        %v7687 = vpop.f32.mrb[0].mxu0
        %7688 = vdwg.mxu0
        %v7689 = vmul.f32 %v7635, %v621
        %v7690 = vmul.f32 %v7638, %v628
        %v7691 = vmul.f32 %v7643, %v635
        %v7692 = vmul.f32 %v7646, %v642
        %v7693 = vmul.f32 %v7651, %v649
        %v7694 = vmul.f32 %v7654, %v656
        %v7695 = vmul.f32 %v7659, %v663
        %v7696 = vmul.f32 %v7662, %v670
        %v7697 = vmul.f32 %v7667, %v677
        %v7698 = vmul.f32 %v7670, %v684
        %v7699 = vmul.f32 %v7675, %v691
        %v7700 = vmul.f32 %v7678, %v698
        %v7701 = vmul.f32 %v7683, %v705
        %v7702 = vmul.f32 %v7686, %v712
        %v7703 = vadd.f32 %v7689, %v503
        %v7704 = vadd.f32 %v7690, %v504
        %v7705 = vadd.f32 %v7691, %v505
        %v7706 = vadd.f32 %v7692, %v506
        %v7707 = vadd.f32 %v7693, %v507
        %v7708 = vadd.f32 %v7694, %v508
        %v7709 = vadd.f32 %v7695, %v509
        %v7710 = vadd.f32 %v7696, %v510
        %v7711 = vadd.f32 %v7697, %v511
        %v7712 = vadd.f32 %v7698, %v512
        %v7713 = vadd.f32 %v7699, %v513
        %v7714 = vadd.f32 %v7700, %v514
        %v7715 = vadd.f32 %v7701, %v515
        %v7716 = vadd.f32 %v7702, %v516
        %7717 = vst [vmem:[%s407] sm:$0xff] %v7703
        %7718 = vst [vmem:[%s407 + $0x8] sm:$0xff] %v7704
        %7719 = vst [vmem:[%s407 + $0x10] sm:$0xff] %v7705
        %7720 = vst [vmem:[%s407 + $0x18] sm:$0xff] %v7706
        %7721 = vst [vmem:[%s407 + $0x20] sm:$0xff] %v7707
        %7722 = vst [vmem:[%s407 + $0x28] sm:$0xff] %v7708
        %7723 = vst [vmem:[%s407 + $0x30] sm:$0xff] %v7709
        %7724 = vst [vmem:[%s407 + $0x38] sm:$0xff] %v7710
        %7725 = vst [vmem:[%s407 + $0x40] sm:$0xff] %v7711
        %7726 = vst [vmem:[%s407 + $0x48] sm:$0xff] %v7712
        %7727 = vst [vmem:[%s407 + $0x50] sm:$0xff] %v7713
        %7728 = vst [vmem:[%s407 + $0x58] sm:$0xff] %v7714
        %7729 = vst [vmem:[%s407 + $0x60] sm:$0xff] %v7715
        %7730 = vst [vmem:[%s407 + $0x68] sm:$0xff] %v7716
        %s7731 = sand.u32 %s291, 1
        %s7732 = scalar_lea.sflag [#allocation3], %s7731
        %s7733 = sand.u32 %s291, 1
        %s7734 = smul.addr %s7733, 112
        %s7735 = scalar_lea.vmem [#allocation2], %s7734
        // Predicated region
        $region69: #{tpu_custom_call.1} parent=67 // pred_check
          %p7736 = pneg %p301
        $region70: #{tpu_custom_call.1} parent=67 // pred_check_branch
          %7738 = sbr.rel (%p7736) target = $region72
        $region71: #{tpu_custom_call.1} parent=67 // pred_region
          %s7739 = smul.u32 14, %s26
          %s7741 = ssub.s32 1792, 1792
          %7742 = vsyncadd %s7732, %s7741
          %s7743 = smul.addr %s7739, 128
          %s7744 = scalar_lea.hbm %s12, %s7743
          %s7745 = sshll.u32 %s7735, 4
          %s7746 = int_to_ptr.vmem [resolvable:$true] %s7745
          %7751 = dma.vmem_to_hbm [thread:$0]  %s7746, 1792, %s7744, %s7732, 128, 128, 8
        $region72: #{tpu_custom_call.1} parent=67 // pred_fallthru
          _
      $region68: #{tpu_custom_call.1} parent=5 // pred_fallthru
        _
      %p7752 = scmp.le.s32.totalorder 2, %s21
      // Predicated region
      $region73: #{tpu_custom_call.1} parent=5 // pred_check
        %p7753 = pneg %p7752
      $region74: #{tpu_custom_call.1} parent=5 // pred_check_branch
        %7755 = sbr.rel (%p7753) target = $region76
      $region75: #{tpu_custom_call.1} parent=5 // pred_region
        %s7756 = ssub.s32 %s21, 2
        // Predicated region
        $region77: #{tpu_custom_call.1} parent=75 // pred_check
          %p7757 = pneg %p307
        $region78: #{tpu_custom_call.1} parent=75 // pred_check_branch
          %7759 = sbr.rel (%p7757) target = $region80
        $region79: #{tpu_custom_call.1} parent=75 // pred_region
          %s7760 = sand.u32 %s292, 1
          %s7761 = scalar_lea.sflag [#allocation3], %s7760
          %s7762 = sand.u32 %s292, 1
          %s7763 = smul.addr %s7762, 112
          %s7764 = scalar_lea.vmem [#allocation2], %s7763
          %7765 = dma.done %s7761, 1792
        $region80: #{tpu_custom_call.1} parent=75 // pred_fallthru
          _
      $region76: #{tpu_custom_call.1} parent=5 // pred_fallthru
        _
    $region6: #{tpu_custom_call.1} parent=1 // loop_footer
      %s25 = sadd.s32 1, %s21
    $region7: #{tpu_custom_call.1} parent=1 // loop_footer_branch
      %20 = sbr.rel target = $region3
    $region8: #{tpu_custom_call.1} parent=1 // loop_exit
      _
    %7766 = vsyncpa [#allocation3], 1
    %s7767 = scalar_lea.sflag [#allocation3], 1
    %7768 = vsyncpa %s7767, 1

</llo_original>
